<compile_context>
chip_gen: v7x
topology: tpu7x:2x2x1
jax: 0.10.0
libtpu: 0.0.40
codegen_flags: <defaults>
</compile_context>

<pallas_src>
import math
import functools

import jax
import jax.numpy as jnp
from jax import lax
from jax.experimental import pallas as pl
from jax.experimental.pallas import tpu as pltpu


# --------------------------------------------------------------------------
# In-kernel helpers (traced inline inside the fused kernels)
# --------------------------------------------------------------------------
def _layer_norm(x, g, b, eps):
    mean = jnp.mean(x, axis=-1, keepdims=True)
    xc = x - mean
    var = jnp.mean(xc * xc, axis=-1, keepdims=True)
    return xc * lax.rsqrt(var + eps) * g + b


def _mha_heads(q, k, v, h, d_k, d_v, causal):
    """q:(Lq,h*d_k) k:(Lk,h*d_k) v:(Lk,h*d_v) f32 -> (Lq,h*d_v) f32.

    1/sqrt(d_k) is already folded into the q projection weights.
    Heads are unrolled statically inside the kernel (no grid serialization,
    no HBM traffic) and the merged output is lane-dense (Lq, h*d_v).
    """
    Lq, Lk = q.shape[0], k.shape[0]
    if causal:
        row = lax.broadcasted_iota(jnp.int32, (Lq, Lk), 0)
        col = lax.broadcasted_iota(jnp.int32, (Lq, Lk), 1)
        neg = jnp.where(col > row, jnp.float32(-1e30), jnp.float32(0.0))
    outs = []
    for i in range(h):
        qh = q[:, i * d_k:(i + 1) * d_k].astype(jnp.bfloat16)
        kh = k[:, i * d_k:(i + 1) * d_k].astype(jnp.bfloat16)
        vh = v[:, i * d_v:(i + 1) * d_v].astype(jnp.bfloat16)
        s = jnp.einsum("qd,kd->qk", qh, kh, preferred_element_type=jnp.float32)
        if causal:
            s = s + neg
        m = jnp.max(s, axis=-1, keepdims=True)
        p = jnp.exp(s - m)
        denom = jnp.sum(p, axis=-1, keepdims=True)
        p = p * pl.reciprocal(denom, approx=True)
        outs.append(jnp.dot(p.astype(jnp.bfloat16), vh,
                            preferred_element_type=jnp.float32))
    return jnp.concatenate(outs, axis=-1)


def _bf16_matmul(x, w_ref, b_ref):
    return jnp.dot(x.astype(jnp.bfloat16), w_ref[...],
                   preferred_element_type=jnp.float32) + b_ref[...]


# --------------------------------------------------------------------------
# Fused block kernels
# --------------------------------------------------------------------------
def _encoder_block_kernel(x_ref, wqkv_ref, bqkv_ref, wo_ref, bo_ref,
                          ln1g_ref, ln1b_ref,
                          ffw1_ref, ffb1_ref, ffw2_ref, ffb2_ref,
                          ln2g_ref, ln2b_ref,
                          o_ref, *, h, d_k, d_v, eps):
    x = x_ref[0]                                       # (L, D) f32
    # fused QKV projection (single wide MXU matmul, bf16 operands, f32 acc)
    qkv = _bf16_matmul(x, wqkv_ref, bqkv_ref)          # (L, 2*h*d_k + h*d_v)
    q = qkv[:, : h * d_k]
    k = qkv[:, h * d_k: 2 * h * d_k]
    v = qkv[:, 2 * h * d_k:]
    a = _mha_heads(q, k, v, h, d_k, d_v, causal=False)  # (L, h*d_v)
    a = _bf16_matmul(a, wo_ref, bo_ref)                 # (L, D)
    x1 = _layer_norm(x + a, ln1g_ref[...], ln1b_ref[...], eps)
    # FFN (relu) fused with residual + LN epilogue
    f = _bf16_matmul(x1, ffw1_ref, ffb1_ref)
    f = jnp.maximum(f, 0.0)
    f = _bf16_matmul(f, ffw2_ref, ffb2_ref)
    o_ref[0] = _layer_norm(x1 + f, ln2g_ref[...], ln2b_ref[...], eps
                           ).astype(o_ref.dtype)


def _decoder_block_kernel(x_ref, src_ref,
                          wqkv_s_ref, bqkv_s_ref, wo_s_ref, bo_s_ref,
                          ln1g_ref, ln1b_ref,
                          wq_c_ref, bq_c_ref, wkv_c_ref, bkv_c_ref,
                          wo_c_ref, bo_c_ref,
                          ln2g_ref, ln2b_ref,
                          ffw1_ref, ffb1_ref, ffw2_ref, ffb2_ref,
                          ln3g_ref, ln3b_ref,
                          o_ref, *, h, d_k, d_v, eps):
    x = x_ref[0]                                       # (L, D)
    src = src_ref[0]                                   # (Ls, D)
    # --- causal self-attention ---
    qkv = _bf16_matmul(x, wqkv_s_ref, bqkv_s_ref)
    q = qkv[:, : h * d_k]
    k = qkv[:, h * d_k: 2 * h * d_k]
    v = qkv[:, 2 * h * d_k:]
    a = _mha_heads(q, k, v, h, d_k, d_v, causal=True)
    a = _bf16_matmul(a, wo_s_ref, bo_s_ref)
    x1 = _layer_norm(x + a, ln1g_ref[...], ln1b_ref[...], eps)
    # --- cross-attention ---
    qc = _bf16_matmul(x1, wq_c_ref, bq_c_ref)           # (L, h*d_k)
    kvc = _bf16_matmul(src, wkv_c_ref, bkv_c_ref)       # (Ls, h*d_k + h*d_v)
    kc = kvc[:, : h * d_k]
    vc = kvc[:, h * d_k:]
    c = _mha_heads(qc, kc, vc, h, d_k, d_v, causal=False)
    c = _bf16_matmul(c, wo_c_ref, bo_c_ref)
    x2 = _layer_norm(x1 + c, ln2g_ref[...], ln2b_ref[...], eps)
    # --- FFN ---
    f = _bf16_matmul(x2, ffw1_ref, ffb1_ref)
    f = jnp.maximum(f, 0.0)
    f = _bf16_matmul(f, ffw2_ref, ffb2_ref)
    o_ref[0] = _layer_norm(x2 + f, ln3g_ref[...], ln3b_ref[...], eps
                           ).astype(o_ref.dtype)


def _mlp_kernel(x_ref, w1_ref, b1_ref, w2_ref, b2_ref, o_ref):
    hmid = _bf16_matmul(x_ref[...], w1_ref, b1_ref)
    hmid = jnp.maximum(hmid, 0.0)
    o_ref[...] = _bf16_matmul(hmid, w2_ref, b2_ref).astype(o_ref.dtype)


# --------------------------------------------------------------------------
# pallas_call wrappers
# --------------------------------------------------------------------------
_COMPILER_PARAMS = pltpu.CompilerParams(
    dimension_semantics=("parallel",),          # v7x: shard batch over 2 TCs
    vmem_limit_bytes=32 * 1024 * 1024,          # safe on v5e/v6e/v7x
)


def _full_spec(a):
    nd = a.ndim
    return pl.BlockSpec(a.shape, lambda *_: (0,) * nd)


def encoder_block(x, p, h, d_k, d_v):
    B, L, D = x.shape
    weights = [p["wqkv"], p["bqkv"], p["wo"], p["bo"],
               p["ln1_g"], p["ln1_b"],
               p["ff_w1"], p["ff_b1"], p["ff_w2"], p["ff_b2"],
               p["ln2_g"], p["ln2_b"]]
    return pl.pallas_call(
        functools.partial(_encoder_block_kernel, h=h, d_k=d_k, d_v=d_v, eps=1e-5),
        out_shape=jax.ShapeDtypeStruct((B, L, D), jnp.float32),
        grid=(B,),
        in_specs=[pl.BlockSpec((1, L, D), lambda b: (b, 0, 0))]
                 + [_full_spec(a) for a in weights],
        out_specs=pl.BlockSpec((1, L, D), lambda b: (b, 0, 0)),
        compiler_params=_COMPILER_PARAMS,
    )(x, *weights)


def decoder_block(x, src, p, h, d_k, d_v):
    B, L, D = x.shape
    Ls = src.shape[1]
    weights = [p["wqkv_s"], p["bqkv_s"], p["wo_s"], p["bo_s"],
               p["ln1_g"], p["ln1_b"],
               p["wq_c"], p["bq_c"], p["wkv_c"], p["bkv_c"],
               p["wo_c"], p["bo_c"],
               p["ln2_g"], p["ln2_b"],
               p["ff_w1"], p["ff_b1"], p["ff_w2"], p["ff_b2"],
               p["ln3_g"], p["ln3_b"]]
    return pl.pallas_call(
        functools.partial(_decoder_block_kernel, h=h, d_k=d_k, d_v=d_v, eps=1e-5),
        out_shape=jax.ShapeDtypeStruct((B, L, D), jnp.float32),
        grid=(B,),
        in_specs=[pl.BlockSpec((1, L, D), lambda b: (b, 0, 0)),
                  pl.BlockSpec((1, Ls, D), lambda b: (b, 0, 0))]
                 + [_full_spec(a) for a in weights],
        out_specs=pl.BlockSpec((1, L, D), lambda b: (b, 0, 0)),
        compiler_params=_COMPILER_PARAMS,
    )(x, src, *weights)


def mlp_head(x2d, params):
    M, D = x2d.shape
    H = params["mlp_w1"].shape[1]
    V = params["mlp_w2"].shape[1]
    tm = 8 if M % 8 == 0 else M
    # TODO(synk): at realistic vocab sizes, pad V to a multiple of 128 for
    #             lane-dense stores and tile N/K; unnecessary at this scale.
    return pl.pallas_call(
        _mlp_kernel,
        out_shape=jax.ShapeDtypeStruct((M, V), jnp.float32),
        grid=(M // tm,),
        in_specs=[
            pl.BlockSpec((tm, D), lambda i: (i, 0)),
            pl.BlockSpec((D, H), lambda i: (0, 0)),
            pl.BlockSpec((1, H), lambda i: (0, 0)),
            pl.BlockSpec((H, V), lambda i: (0, 0)),
            pl.BlockSpec((1, V), lambda i: (0, 0)),
        ],
        out_specs=pl.BlockSpec((tm, V), lambda i: (i, 0)),
        compiler_params=_COMPILER_PARAMS,
    )(x2d, params["mlp_w1"], params["mlp_b1"], params["mlp_w2"], params["mlp_b2"])


# --------------------------------------------------------------------------
# Transformer forward
# --------------------------------------------------------------------------
def sinusoidal_pe(seq_len, d_model):
    pos = jnp.arange(seq_len, dtype=jnp.float32)[:, None]
    i = jnp.arange(d_model // 2, dtype=jnp.float32)[None, :]
    angle = pos / jnp.power(10000.0, 2.0 * i / d_model)
    pe = jnp.zeros((seq_len, d_model), jnp.float32)
    pe = pe.at[:, 0::2].set(jnp.sin(angle))
    pe = pe.at[:, 1::2].set(jnp.cos(angle))
    return pe


def transformer_forward(params, x_tokens, y_tokens, cfg):
    B, L = x_tokens.shape
    D = cfg["d_model"]
    h, d_k, d_v = cfg["h"], cfg["d_k"], cfg["d_v"]

    # embedding lookups + positional encoding (plain-JAX glue)
    src = params["src_emb"][y_tokens] + params["pe"][: y_tokens.shape[1]][None]
    x = params["tgt_emb"][x_tokens] + params["pe"][:L][None]

    for pblk in params["encoder"]:
        src = encoder_block(src, pblk, h, d_k, d_v)
    for pblk in params["decoder"]:
        x = decoder_block(x, src, pblk, h, d_k, d_v)

    return mlp_head(x.reshape(B * L, D), params)       # (B*L, vocab)


# --------------------------------------------------------------------------
# Deterministic parameter construction (kernel layout: fused weights, bf16,
# 1/sqrt(d_k) folded into q projections, row-vector biases)
# --------------------------------------------------------------------------
def init_params(key, cfg):
    D, h, d_k, d_v = cfg["d_model"], cfg["h"], cfg["d_k"], cfg["d_v"]
    vocab, seq_len = cfg["vocab_size"], cfg["seq_len"]
    d_ff = 4 * D
    q_scale = 1.0 / math.sqrt(d_k)
    keys = iter(jax.random.split(key, 1024))

    def w(shape, scale=0.02):
        return (scale * jax.random.normal(next(keys), shape)).astype(jnp.float32)

    def bf16(a):
        return a.astype(jnp.bfloat16)

    def zrow(n):
        return jnp.zeros((1, n), jnp.float32)

    def orow(n):
        return jnp.ones((1, n), jnp.float32)

    def packed_qkv():
        wq = w((D, h * d_k)) * q_scale          # fold attention scale into wq
        wk = w((D, h * d_k))
        wv = w((D, h * d_v))
        return bf16(jnp.concatenate([wq, wk, wv], axis=1)), zrow(2 * h * d_k + h * d_v)

    def enc_block():
        wqkv, bqkv = packed_qkv()
        return dict(
            wqkv=wqkv, bqkv=bqkv,
            wo=bf16(w((h * d_v, D))), bo=zrow(D),
            ln1_g=orow(D), ln1_b=zrow(D),
            ff_w1=bf16(w((D, d_ff))), ff_b1=zrow(d_ff),
            ff_w2=bf16(w((d_ff, D))), ff_b2=zrow(D),
            ln2_g=orow(D), ln2_b=zrow(D),
        )

    def dec_block():
        wqkv, bqkv = packed_qkv()
        return dict(
            wqkv_s=wqkv, bqkv_s=bqkv,
            wo_s=bf16(w((h * d_v, D))), bo_s=zrow(D),
            ln1_g=orow(D), ln1_b=zrow(D),
            wq_c=bf16(w((D, h * d_k)) * q_scale), bq_c=zrow(h * d_k),
            wkv_c=bf16(jnp.concatenate([w((D, h * d_k)), w((D, h * d_v))], axis=1)),
            bkv_c=zrow(h * d_k + h * d_v),
            wo_c=bf16(w((h * d_v, D))), bo_c=zrow(D),
            ln2_g=orow(D), ln2_b=zrow(D),
            ff_w1=bf16(w((D, d_ff))), ff_b1=zrow(d_ff),
            ff_w2=bf16(w((d_ff, D))), ff_b2=zrow(D),
            ln3_g=orow(D), ln3_b=zrow(D),
        )

    tgt_emb = w((vocab, D))
    tgt_emb = tgt_emb.at[cfg["PAD"]].set(0.0)   # padding_idx=PAD -> zero row

    return dict(
        src_emb=w((vocab, D)),
        tgt_emb=tgt_emb,
        pe=sinusoidal_pe(seq_len, D),
        encoder=[enc_block() for _ in range(cfg["num_blocks"])],
        decoder=[dec_block() for _ in range(cfg["num_blocks"])],
        mlp_w1=bf16(w((D, cfg["mlp_size"]))), mlp_b1=zrow(cfg["mlp_size"]),
        mlp_w2=bf16(w((cfg["mlp_size"], vocab))), mlp_b2=zrow(vocab),
    )


# --------------------------------------------------------------------------
if __name__ == "__main__":
    cfg = dict(
        seq_len=8, num_blocks=2, h=4, d_model=32, vocab_size=16,
        BOS=1, EOS=2, PAD=0, d_k=8, d_v=8, mlp_size=64,
    )

    key = jax.random.PRNGKey(0)
    kp, kx, ky = jax.random.split(key, 3)
    params = init_params(kp, cfg)

    B, L = 2, cfg["seq_len"]
    x_tokens = jax.random.randint(kx, (B, L), 0, cfg["vocab_size"], dtype=jnp.int32)
    y_tokens = jax.random.randint(ky, (B, L), 0, cfg["vocab_size"], dtype=jnp.int32)

    fwd = jax.jit(functools.partial(transformer_forward, cfg=cfg))
    logits = fwd(params, x_tokens, y_tokens)
    jax.block_until_ready(logits)

    assert logits.shape == (B * L, cfg["vocab_size"]), logits.shape
    assert bool(jnp.all(jnp.isfinite(logits)))
    print("KERNEL_OK")
</pallas_src>

<mosaic_0001>
module attributes {stable_mosaic.version = 11 : i64} {
  func.func @_encoder_block_kernel(%arg0: i32, %arg1: memref<1x8x32xf32, #tpu.memory_space<vmem>>, %arg2: memref<32x96xbf16, #tpu.memory_space<vmem>>, %arg3: memref<1x96xf32, #tpu.memory_space<vmem>>, %arg4: memref<32x32xbf16, #tpu.memory_space<vmem>>, %arg5: memref<1x32xf32, #tpu.memory_space<vmem>>, %arg6: memref<1x32xf32, #tpu.memory_space<vmem>>, %arg7: memref<1x32xf32, #tpu.memory_space<vmem>>, %arg8: memref<32x128xbf16, #tpu.memory_space<vmem>>, %arg9: memref<1x128xf32, #tpu.memory_space<vmem>>, %arg10: memref<128x32xbf16, #tpu.memory_space<vmem>>, %arg11: memref<1x32xf32, #tpu.memory_space<vmem>>, %arg12: memref<1x32xf32, #tpu.memory_space<vmem>>, %arg13: memref<1x32xf32, #tpu.memory_space<vmem>>, %arg14: memref<1x8x32xf32, #tpu.memory_space<vmem>>) attributes {dimension_semantics = [#tpu.dimension_semantics<parallel>], iteration_bounds = array<i64: 2>, scalar_prefetch = 0 : i64, scratch_operands = 0 : i64, tpu.core_type = #tpu.core_type<tc>, window_params = [{transform_indices = @transform_0, window_bounds = array<i64: 1, 8, 32>}, {pipeline_mode = #tpu.pipeline_mode<synchronous>, transform_indices = @transform_1, window_bounds = array<i64: 32, 96>}, {pipeline_mode = #tpu.pipeline_mode<synchronous>, transform_indices = @transform_2, window_bounds = array<i64: 1, 96>}, {pipeline_mode = #tpu.pipeline_mode<synchronous>, transform_indices = @transform_3, window_bounds = array<i64: 32, 32>}, {pipeline_mode = #tpu.pipeline_mode<synchronous>, transform_indices = @transform_4, window_bounds = array<i64: 1, 32>}, {pipeline_mode = #tpu.pipeline_mode<synchronous>, transform_indices = @transform_5, window_bounds = array<i64: 1, 32>}, {pipeline_mode = #tpu.pipeline_mode<synchronous>, transform_indices = @transform_6, window_bounds = array<i64: 1, 32>}, {pipeline_mode = #tpu.pipeline_mode<synchronous>, transform_indices = @transform_7, window_bounds = array<i64: 32, 128>}, {pipeline_mode = #tpu.pipeline_mode<synchronous>, transform_indices = @transform_8, window_bounds = array<i64: 1, 128>}, {pipeline_mode = #tpu.pipeline_mode<synchronous>, transform_indices = @transform_9, window_bounds = array<i64: 128, 32>}, {pipeline_mode = #tpu.pipeline_mode<synchronous>, transform_indices = @transform_10, window_bounds = array<i64: 1, 32>}, {pipeline_mode = #tpu.pipeline_mode<synchronous>, transform_indices = @transform_11, window_bounds = array<i64: 1, 32>}, {pipeline_mode = #tpu.pipeline_mode<synchronous>, transform_indices = @transform_12, window_bounds = array<i64: 1, 32>}, {transform_indices = @transform_13, window_bounds = array<i64: 1, 8, 32>}]} {
    %c0 = arith.constant 0 : index
    %c0_0 = arith.constant 0 : index
    %c0_1 = arith.constant 0 : index
    %0 = vector.load %arg1[%c0, %c0_0, %c0_1] : memref<1x8x32xf32, #tpu.memory_space<vmem>>, vector<1x8x32xf32>
    %1 = vector.shape_cast %0 : vector<1x8x32xf32> to vector<8x32xf32>
    %2 = arith.truncf %1 : vector<8x32xf32> to vector<8x32xbf16>
    %c0_2 = arith.constant 0 : index
    %c0_3 = arith.constant 0 : index
    %3 = vector.load %arg2[%c0_2, %c0_3] : memref<32x96xbf16, #tpu.memory_space<vmem>>, vector<32x96xbf16>
    %cst = arith.constant dense<0.000000e+00> : vector<8x96xf32>
    %4 = tpu.matmul %2, %3, %cst {dimension_numbers = #tpu.dot_dimension_numbers<[1], [0], [0], [1], [0, 0, 1, 1], [], []>} : vector<8x32xbf16>, vector<32x96xbf16>, vector<8x96xf32> -> vector<8x96xf32>
    %c0_4 = arith.constant 0 : index
    %c0_5 = arith.constant 0 : index
    %5 = vector.load %arg3[%c0_4, %c0_5] : memref<1x96xf32, #tpu.memory_space<vmem>>, vector<1x96xf32>
    %6 = vector.broadcast %5 : vector<1x96xf32> to vector<8x96xf32>
    %7 = arith.addf %4, %6 : vector<8x96xf32>
    %8 = vector.extract_strided_slice %7 {offsets = [0, 0], sizes = [8, 32], strides = [1, 1]} : vector<8x96xf32> to vector<8x32xf32>
    %9 = vector.extract_strided_slice %7 {offsets = [0, 32], sizes = [8, 32], strides = [1, 1]} : vector<8x96xf32> to vector<8x32xf32>
    %10 = vector.extract_strided_slice %7 {offsets = [0, 64], sizes = [8, 32], strides = [1, 1]} : vector<8x96xf32> to vector<8x32xf32>
    %11 = vector.extract_strided_slice %8 {offsets = [0, 0], sizes = [8, 8], strides = [1, 1]} : vector<8x32xf32> to vector<8x8xf32>
    %12 = arith.truncf %11 : vector<8x8xf32> to vector<8x8xbf16>
    %13 = vector.extract_strided_slice %9 {offsets = [0, 0], sizes = [8, 8], strides = [1, 1]} : vector<8x32xf32> to vector<8x8xf32>
    %14 = arith.truncf %13 : vector<8x8xf32> to vector<8x8xbf16>
    %15 = vector.extract_strided_slice %10 {offsets = [0, 0], sizes = [8, 8], strides = [1, 1]} : vector<8x32xf32> to vector<8x8xf32>
    %16 = arith.truncf %15 : vector<8x8xf32> to vector<8x8xbf16>
    "tpu.trace_start"() <{level = 10 : i32, message = "qd,kd->qk"}> : () -> ()
    %cst_6 = arith.constant dense<0.000000e+00> : vector<8x8xf32>
    %17 = tpu.matmul %12, %14, %cst_6 {dimension_numbers = #tpu.dot_dimension_numbers<[1], [1], [0], [0], [0, 0, 1, 0], [], []>} : vector<8x8xbf16>, vector<8x8xbf16>, vector<8x8xf32> -> vector<8x8xf32>
    "tpu.trace_stop"() : () -> ()
    %cst_7 = arith.constant dense<0xFF800000> : vector<8xf32>
    %18 = vector.multi_reduction <maximumf>, %17, %cst_7 [1] : vector<8x8xf32> to vector<8xf32>
    %19 = vector.shape_cast %18 : vector<8xf32> to vector<8x1xf32>
    %20 = vector.broadcast %19 : vector<8x1xf32> to vector<8x8xf32>
    %21 = arith.subf %17, %20 : vector<8x8xf32>
    %22 = math.exp %21 : vector<8x8xf32>
    %cst_8 = arith.constant dense<0.000000e+00> : vector<8xf32>
    %23 = vector.multi_reduction <add>, %22, %cst_8 [1] : vector<8x8xf32> to vector<8xf32>
    %24 = vector.shape_cast %23 : vector<8xf32> to vector<8x1xf32>
    %25 = tpu.reciprocal %24 {approx = true} : vector<8x1xf32> -> vector<8x1xf32>
    %26 = vector.broadcast %25 : vector<8x1xf32> to vector<8x8xf32>
    %27 = arith.mulf %22, %26 : vector<8x8xf32>
    %28 = arith.truncf %27 : vector<8x8xf32> to vector<8x8xbf16>
    %cst_9 = arith.constant dense<0.000000e+00> : vector<8x8xf32>
    %29 = tpu.matmul %28, %16, %cst_9 {dimension_numbers = #tpu.dot_dimension_numbers<[1], [0], [0], [1], [0, 0, 1, 1], [], []>} : vector<8x8xbf16>, vector<8x8xbf16>, vector<8x8xf32> -> vector<8x8xf32>
    %30 = vector.extract_strided_slice %8 {offsets = [0, 8], sizes = [8, 8], strides = [1, 1]} : vector<8x32xf32> to vector<8x8xf32>
    %31 = arith.truncf %30 : vector<8x8xf32> to vector<8x8xbf16>
    %32 = vector.extract_strided_slice %9 {offsets = [0, 8], sizes = [8, 8], strides = [1, 1]} : vector<8x32xf32> to vector<8x8xf32>
    %33 = arith.truncf %32 : vector<8x8xf32> to vector<8x8xbf16>
    %34 = vector.extract_strided_slice %10 {offsets = [0, 8], sizes = [8, 8], strides = [1, 1]} : vector<8x32xf32> to vector<8x8xf32>
    %35 = arith.truncf %34 : vector<8x8xf32> to vector<8x8xbf16>
    "tpu.trace_start"() <{level = 10 : i32, message = "qd,kd->qk"}> : () -> ()
    %cst_10 = arith.constant dense<0.000000e+00> : vector<8x8xf32>
    %36 = tpu.matmul %31, %33, %cst_10 {dimension_numbers = #tpu.dot_dimension_numbers<[1], [1], [0], [0], [0, 0, 1, 0], [], []>} : vector<8x8xbf16>, vector<8x8xbf16>, vector<8x8xf32> -> vector<8x8xf32>
    "tpu.trace_stop"() : () -> ()
    %cst_11 = arith.constant dense<0xFF800000> : vector<8xf32>
    %37 = vector.multi_reduction <maximumf>, %36, %cst_11 [1] : vector<8x8xf32> to vector<8xf32>
    %38 = vector.shape_cast %37 : vector<8xf32> to vector<8x1xf32>
    %39 = vector.broadcast %38 : vector<8x1xf32> to vector<8x8xf32>
    %40 = arith.subf %36, %39 : vector<8x8xf32>
    %41 = math.exp %40 : vector<8x8xf32>
    %cst_12 = arith.constant dense<0.000000e+00> : vector<8xf32>
    %42 = vector.multi_reduction <add>, %41, %cst_12 [1] : vector<8x8xf32> to vector<8xf32>
    %43 = vector.shape_cast %42 : vector<8xf32> to vector<8x1xf32>
    %44 = tpu.reciprocal %43 {approx = true} : vector<8x1xf32> -> vector<8x1xf32>
    %45 = vector.broadcast %44 : vector<8x1xf32> to vector<8x8xf32>
    %46 = arith.mulf %41, %45 : vector<8x8xf32>
    %47 = arith.truncf %46 : vector<8x8xf32> to vector<8x8xbf16>
    %cst_13 = arith.constant dense<0.000000e+00> : vector<8x8xf32>
    %48 = tpu.matmul %47, %35, %cst_13 {dimension_numbers = #tpu.dot_dimension_numbers<[1], [0], [0], [1], [0, 0, 1, 1], [], []>} : vector<8x8xbf16>, vector<8x8xbf16>, vector<8x8xf32> -> vector<8x8xf32>
    %49 = vector.extract_strided_slice %8 {offsets = [0, 16], sizes = [8, 8], strides = [1, 1]} : vector<8x32xf32> to vector<8x8xf32>
    %50 = arith.truncf %49 : vector<8x8xf32> to vector<8x8xbf16>
    %51 = vector.extract_strided_slice %9 {offsets = [0, 16], sizes = [8, 8], strides = [1, 1]} : vector<8x32xf32> to vector<8x8xf32>
    %52 = arith.truncf %51 : vector<8x8xf32> to vector<8x8xbf16>
    %53 = vector.extract_strided_slice %10 {offsets = [0, 16], sizes = [8, 8], strides = [1, 1]} : vector<8x32xf32> to vector<8x8xf32>
    %54 = arith.truncf %53 : vector<8x8xf32> to vector<8x8xbf16>
    "tpu.trace_start"() <{level = 10 : i32, message = "qd,kd->qk"}> : () -> ()
    %cst_14 = arith.constant dense<0.000000e+00> : vector<8x8xf32>
    %55 = tpu.matmul %50, %52, %cst_14 {dimension_numbers = #tpu.dot_dimension_numbers<[1], [1], [0], [0], [0, 0, 1, 0], [], []>} : vector<8x8xbf16>, vector<8x8xbf16>, vector<8x8xf32> -> vector<8x8xf32>
    "tpu.trace_stop"() : () -> ()
    %cst_15 = arith.constant dense<0xFF800000> : vector<8xf32>
    %56 = vector.multi_reduction <maximumf>, %55, %cst_15 [1] : vector<8x8xf32> to vector<8xf32>
    %57 = vector.shape_cast %56 : vector<8xf32> to vector<8x1xf32>
    %58 = vector.broadcast %57 : vector<8x1xf32> to vector<8x8xf32>
    %59 = arith.subf %55, %58 : vector<8x8xf32>
    %60 = math.exp %59 : vector<8x8xf32>
    %cst_16 = arith.constant dense<0.000000e+00> : vector<8xf32>
    %61 = vector.multi_reduction <add>, %60, %cst_16 [1] : vector<8x8xf32> to vector<8xf32>
    %62 = vector.shape_cast %61 : vector<8xf32> to vector<8x1xf32>
    %63 = tpu.reciprocal %62 {approx = true} : vector<8x1xf32> -> vector<8x1xf32>
    %64 = vector.broadcast %63 : vector<8x1xf32> to vector<8x8xf32>
    %65 = arith.mulf %60, %64 : vector<8x8xf32>
    %66 = arith.truncf %65 : vector<8x8xf32> to vector<8x8xbf16>
    %cst_17 = arith.constant dense<0.000000e+00> : vector<8x8xf32>
    %67 = tpu.matmul %66, %54, %cst_17 {dimension_numbers = #tpu.dot_dimension_numbers<[1], [0], [0], [1], [0, 0, 1, 1], [], []>} : vector<8x8xbf16>, vector<8x8xbf16>, vector<8x8xf32> -> vector<8x8xf32>
    %68 = vector.extract_strided_slice %8 {offsets = [0, 24], sizes = [8, 8], strides = [1, 1]} : vector<8x32xf32> to vector<8x8xf32>
    %69 = arith.truncf %68 : vector<8x8xf32> to vector<8x8xbf16>
    %70 = vector.extract_strided_slice %9 {offsets = [0, 24], sizes = [8, 8], strides = [1, 1]} : vector<8x32xf32> to vector<8x8xf32>
    %71 = arith.truncf %70 : vector<8x8xf32> to vector<8x8xbf16>
    %72 = vector.extract_strided_slice %10 {offsets = [0, 24], sizes = [8, 8], strides = [1, 1]} : vector<8x32xf32> to vector<8x8xf32>
    %73 = arith.truncf %72 : vector<8x8xf32> to vector<8x8xbf16>
    "tpu.trace_start"() <{level = 10 : i32, message = "qd,kd->qk"}> : () -> ()
    %cst_18 = arith.constant dense<0.000000e+00> : vector<8x8xf32>
    %74 = tpu.matmul %69, %71, %cst_18 {dimension_numbers = #tpu.dot_dimension_numbers<[1], [1], [0], [0], [0, 0, 1, 0], [], []>} : vector<8x8xbf16>, vector<8x8xbf16>, vector<8x8xf32> -> vector<8x8xf32>
    "tpu.trace_stop"() : () -> ()
    %cst_19 = arith.constant dense<0xFF800000> : vector<8xf32>
    %75 = vector.multi_reduction <maximumf>, %74, %cst_19 [1] : vector<8x8xf32> to vector<8xf32>
    %76 = vector.shape_cast %75 : vector<8xf32> to vector<8x1xf32>
    %77 = vector.broadcast %76 : vector<8x1xf32> to vector<8x8xf32>
    %78 = arith.subf %74, %77 : vector<8x8xf32>
    %79 = math.exp %78 : vector<8x8xf32>
    %cst_20 = arith.constant dense<0.000000e+00> : vector<8xf32>
    %80 = vector.multi_reduction <add>, %79, %cst_20 [1] : vector<8x8xf32> to vector<8xf32>
    %81 = vector.shape_cast %80 : vector<8xf32> to vector<8x1xf32>
    %82 = tpu.reciprocal %81 {approx = true} : vector<8x1xf32> -> vector<8x1xf32>
    %83 = vector.broadcast %82 : vector<8x1xf32> to vector<8x8xf32>
    %84 = arith.mulf %79, %83 : vector<8x8xf32>
    %85 = arith.truncf %84 : vector<8x8xf32> to vector<8x8xbf16>
    %cst_21 = arith.constant dense<0.000000e+00> : vector<8x8xf32>
    %86 = tpu.matmul %85, %73, %cst_21 {dimension_numbers = #tpu.dot_dimension_numbers<[1], [0], [0], [1], [0, 0, 1, 1], [], []>} : vector<8x8xbf16>, vector<8x8xbf16>, vector<8x8xf32> -> vector<8x8xf32>
    %87 = tpu.concatenate %29, %48, %67, %86 in 1 : vector<8x8xf32>, vector<8x8xf32>, vector<8x8xf32>, vector<8x8xf32> -> vector<8x32xf32>
    %88 = arith.truncf %87 : vector<8x32xf32> to vector<8x32xbf16>
    %c0_22 = arith.constant 0 : index
    %c0_23 = arith.constant 0 : index
    %89 = vector.load %arg4[%c0_22, %c0_23] : memref<32x32xbf16, #tpu.memory_space<vmem>>, vector<32x32xbf16>
    %cst_24 = arith.constant dense<0.000000e+00> : vector<8x32xf32>
    %90 = tpu.matmul %88, %89, %cst_24 {dimension_numbers = #tpu.dot_dimension_numbers<[1], [0], [0], [1], [0, 0, 1, 1], [], []>} : vector<8x32xbf16>, vector<32x32xbf16>, vector<8x32xf32> -> vector<8x32xf32>
    %c0_25 = arith.constant 0 : index
    %c0_26 = arith.constant 0 : index
    %91 = vector.load %arg5[%c0_25, %c0_26] : memref<1x32xf32, #tpu.memory_space<vmem>>, vector<1x32xf32>
    %92 = vector.broadcast %91 : vector<1x32xf32> to vector<8x32xf32>
    %93 = arith.addf %90, %92 : vector<8x32xf32>
    %94 = arith.addf %1, %93 : vector<8x32xf32>
    %c0_27 = arith.constant 0 : index
    %c0_28 = arith.constant 0 : index
    %95 = vector.load %arg6[%c0_27, %c0_28] : memref<1x32xf32, #tpu.memory_space<vmem>>, vector<1x32xf32>
    %c0_29 = arith.constant 0 : index
    %c0_30 = arith.constant 0 : index
    %96 = vector.load %arg7[%c0_29, %c0_30] : memref<1x32xf32, #tpu.memory_space<vmem>>, vector<1x32xf32>
    %cst_31 = arith.constant dense<0.000000e+00> : vector<8xf32>
    %97 = vector.multi_reduction <add>, %94, %cst_31 [1] : vector<8x32xf32> to vector<8xf32>
    %98 = vector.shape_cast %97 : vector<8xf32> to vector<8x1xf32>
    %cst_32 = arith.constant 3.200000e+01 : f32
    %99 = vector.broadcast %cst_32 : f32 to vector<8x1xf32>
    %100 = arith.divf %98, %99 : vector<8x1xf32>
    %101 = vector.broadcast %100 : vector<8x1xf32> to vector<8x32xf32>
    %102 = arith.subf %94, %101 : vector<8x32xf32>
    %103 = arith.mulf %102, %102 : vector<8x32xf32>
    %cst_33 = arith.constant dense<0.000000e+00> : vector<8xf32>
    %104 = vector.multi_reduction <add>, %103, %cst_33 [1] : vector<8x32xf32> to vector<8xf32>
    %105 = vector.shape_cast %104 : vector<8xf32> to vector<8x1xf32>
    %cst_34 = arith.constant 3.200000e+01 : f32
    %106 = vector.broadcast %cst_34 : f32 to vector<8x1xf32>
    %107 = arith.divf %105, %106 : vector<8x1xf32>
    %cst_35 = arith.constant 9.99999974E-6 : f32
    %108 = vector.broadcast %cst_35 : f32 to vector<8x1xf32>
    %109 = arith.addf %107, %108 : vector<8x1xf32>
    %110 = math.rsqrt %109 : vector<8x1xf32>
    %111 = vector.broadcast %110 : vector<8x1xf32> to vector<8x32xf32>
    %112 = arith.mulf %102, %111 : vector<8x32xf32>
    %113 = vector.broadcast %95 : vector<1x32xf32> to vector<8x32xf32>
    %114 = arith.mulf %112, %113 : vector<8x32xf32>
    %115 = vector.broadcast %96 : vector<1x32xf32> to vector<8x32xf32>
    %116 = arith.addf %114, %115 : vector<8x32xf32>
    %117 = arith.truncf %116 : vector<8x32xf32> to vector<8x32xbf16>
    %c0_36 = arith.constant 0 : index
    %c0_37 = arith.constant 0 : index
    %118 = vector.load %arg8[%c0_36, %c0_37] : memref<32x128xbf16, #tpu.memory_space<vmem>>, vector<32x128xbf16>
    %cst_38 = arith.constant dense<0.000000e+00> : vector<8x128xf32>
    %119 = tpu.matmul %117, %118, %cst_38 {dimension_numbers = #tpu.dot_dimension_numbers<[1], [0], [0], [1], [0, 0, 1, 1], [], []>} : vector<8x32xbf16>, vector<32x128xbf16>, vector<8x128xf32> -> vector<8x128xf32>
    %c0_39 = arith.constant 0 : index
    %c0_40 = arith.constant 0 : index
    %120 = vector.load %arg9[%c0_39, %c0_40] : memref<1x128xf32, #tpu.memory_space<vmem>>, vector<1x128xf32>
    %121 = vector.broadcast %120 : vector<1x128xf32> to vector<8x128xf32>
    %122 = arith.addf %119, %121 : vector<8x128xf32>
    %cst_41 = arith.constant 0.000000e+00 : f32
    %123 = vector.broadcast %cst_41 : f32 to vector<8x128xf32>
    %124 = arith.maximumf %122, %123 : vector<8x128xf32>
    %125 = arith.truncf %124 : vector<8x128xf32> to vector<8x128xbf16>
    %c0_42 = arith.constant 0 : index
    %c0_43 = arith.constant 0 : index
    %126 = vector.load %arg10[%c0_42, %c0_43] : memref<128x32xbf16, #tpu.memory_space<vmem>>, vector<128x32xbf16>
    %cst_44 = arith.constant dense<0.000000e+00> : vector<8x32xf32>
    %127 = tpu.matmul %125, %126, %cst_44 {dimension_numbers = #tpu.dot_dimension_numbers<[1], [0], [0], [1], [0, 0, 1, 1], [], []>} : vector<8x128xbf16>, vector<128x32xbf16>, vector<8x32xf32> -> vector<8x32xf32>
    %c0_45 = arith.constant 0 : index
    %c0_46 = arith.constant 0 : index
    %128 = vector.load %arg11[%c0_45, %c0_46] : memref<1x32xf32, #tpu.memory_space<vmem>>, vector<1x32xf32>
    %129 = vector.broadcast %128 : vector<1x32xf32> to vector<8x32xf32>
    %130 = arith.addf %127, %129 : vector<8x32xf32>
    %131 = arith.addf %116, %130 : vector<8x32xf32>
    %c0_47 = arith.constant 0 : index
    %c0_48 = arith.constant 0 : index
    %132 = vector.load %arg12[%c0_47, %c0_48] : memref<1x32xf32, #tpu.memory_space<vmem>>, vector<1x32xf32>
    %c0_49 = arith.constant 0 : index
    %c0_50 = arith.constant 0 : index
    %133 = vector.load %arg13[%c0_49, %c0_50] : memref<1x32xf32, #tpu.memory_space<vmem>>, vector<1x32xf32>
    %cst_51 = arith.constant dense<0.000000e+00> : vector<8xf32>
    %134 = vector.multi_reduction <add>, %131, %cst_51 [1] : vector<8x32xf32> to vector<8xf32>
    %135 = vector.shape_cast %134 : vector<8xf32> to vector<8x1xf32>
    %cst_52 = arith.constant 3.200000e+01 : f32
    %136 = vector.broadcast %cst_52 : f32 to vector<8x1xf32>
    %137 = arith.divf %135, %136 : vector<8x1xf32>
    %138 = vector.broadcast %137 : vector<8x1xf32> to vector<8x32xf32>
    %139 = arith.subf %131, %138 : vector<8x32xf32>
    %140 = arith.mulf %139, %139 : vector<8x32xf32>
    %cst_53 = arith.constant dense<0.000000e+00> : vector<8xf32>
    %141 = vector.multi_reduction <add>, %140, %cst_53 [1] : vector<8x32xf32> to vector<8xf32>
    %142 = vector.shape_cast %141 : vector<8xf32> to vector<8x1xf32>
    %cst_54 = arith.constant 3.200000e+01 : f32
    %143 = vector.broadcast %cst_54 : f32 to vector<8x1xf32>
    %144 = arith.divf %142, %143 : vector<8x1xf32>
    %cst_55 = arith.constant 9.99999974E-6 : f32
    %145 = vector.broadcast %cst_55 : f32 to vector<8x1xf32>
    %146 = arith.addf %144, %145 : vector<8x1xf32>
    %147 = math.rsqrt %146 : vector<8x1xf32>
    %148 = vector.broadcast %147 : vector<8x1xf32> to vector<8x32xf32>
    %149 = arith.mulf %139, %148 : vector<8x32xf32>
    %150 = vector.broadcast %132 : vector<1x32xf32> to vector<8x32xf32>
    %151 = arith.mulf %149, %150 : vector<8x32xf32>
    %152 = vector.broadcast %133 : vector<1x32xf32> to vector<8x32xf32>
    %153 = arith.addf %151, %152 : vector<8x32xf32>
    %c0_56 = arith.constant 0 : index
    %c0_57 = arith.constant 0 : index
    %c0_58 = arith.constant 0 : index
    %154 = vector.load %arg14[%c0_56, %c0_57, %c0_58] : memref<1x8x32xf32, #tpu.memory_space<vmem>>, vector<1x8x32xf32>
    %155 = vector.shape_cast %154 : vector<1x8x32xf32> to vector<8x32xf32>
    %156 = vector.shape_cast %153 : vector<8x32xf32> to vector<1x8x32xf32>
    tpu.vector_store %arg14[%c0_56, %c0_57, %c0_58], %156 {strides = array<i32>} : memref<1x8x32xf32, #tpu.memory_space<vmem>>, vector<1x8x32xf32>,
    return
  }
  func.func @transform_0(%arg0: i32) -> (i32, i32, i32) {
    %c0_i32 = arith.constant 0 : i32
    %c0_i32_0 = arith.constant 0 : i32
    %c0_i32_1 = arith.constant 0 : i32
    return %arg0, %c0_i32, %c0_i32_0 : i32, i32, i32
  }
  func.func @transform_1(%arg0: i32) -> (i32, i32) {
    %c0_i32 = arith.constant 0 : i32
    %c0_i32_0 = arith.constant 0 : i32
    %c0_i32_1 = arith.constant 0 : i32
    return %c0_i32, %c0_i32_0 : i32, i32
  }
  func.func @transform_2(%arg0: i32) -> (i32, i32) {
    %c0_i32 = arith.constant 0 : i32
    %c0_i32_0 = arith.constant 0 : i32
    %c0_i32_1 = arith.constant 0 : i32
    return %c0_i32, %c0_i32_0 : i32, i32
  }
  func.func @transform_3(%arg0: i32) -> (i32, i32) {
    %c0_i32 = arith.constant 0 : i32
    %c0_i32_0 = arith.constant 0 : i32
    %c0_i32_1 = arith.constant 0 : i32
    return %c0_i32, %c0_i32_0 : i32, i32
  }
  func.func @transform_4(%arg0: i32) -> (i32, i32) {
    %c0_i32 = arith.constant 0 : i32
    %c0_i32_0 = arith.constant 0 : i32
    %c0_i32_1 = arith.constant 0 : i32
    return %c0_i32, %c0_i32_0 : i32, i32
  }
  func.func @transform_5(%arg0: i32) -> (i32, i32) {
    %c0_i32 = arith.constant 0 : i32
    %c0_i32_0 = arith.constant 0 : i32
    %c0_i32_1 = arith.constant 0 : i32
    return %c0_i32, %c0_i32_0 : i32, i32
  }
  func.func @transform_6(%arg0: i32) -> (i32, i32) {
    %c0_i32 = arith.constant 0 : i32
    %c0_i32_0 = arith.constant 0 : i32
    %c0_i32_1 = arith.constant 0 : i32
    return %c0_i32, %c0_i32_0 : i32, i32
  }
  func.func @transform_7(%arg0: i32) -> (i32, i32) {
    %c0_i32 = arith.constant 0 : i32
    %c0_i32_0 = arith.constant 0 : i32
    %c0_i32_1 = arith.constant 0 : i32
    return %c0_i32, %c0_i32_0 : i32, i32
  }
  func.func @transform_8(%arg0: i32) -> (i32, i32) {
    %c0_i32 = arith.constant 0 : i32
    %c0_i32_0 = arith.constant 0 : i32
    %c0_i32_1 = arith.constant 0 : i32
    return %c0_i32, %c0_i32_0 : i32, i32
  }
  func.func @transform_9(%arg0: i32) -> (i32, i32) {
    %c0_i32 = arith.constant 0 : i32
    %c0_i32_0 = arith.constant 0 : i32
    %c0_i32_1 = arith.constant 0 : i32
    return %c0_i32, %c0_i32_0 : i32, i32
  }
  func.func @transform_10(%arg0: i32) -> (i32, i32) {
    %c0_i32 = arith.constant 0 : i32
    %c0_i32_0 = arith.constant 0 : i32
    %c0_i32_1 = arith.constant 0 : i32
    return %c0_i32, %c0_i32_0 : i32, i32
  }
  func.func @transform_11(%arg0: i32) -> (i32, i32) {
    %c0_i32 = arith.constant 0 : i32
    %c0_i32_0 = arith.constant 0 : i32
    %c0_i32_1 = arith.constant 0 : i32
    return %c0_i32, %c0_i32_0 : i32, i32
  }
  func.func @transform_12(%arg0: i32) -> (i32, i32) {
    %c0_i32 = arith.constant 0 : i32
    %c0_i32_0 = arith.constant 0 : i32
    %c0_i32_1 = arith.constant 0 : i32
    return %c0_i32, %c0_i32_0 : i32, i32
  }
  func.func @transform_13(%arg0: i32) -> (i32, i32, i32) {
    %c0_i32 = arith.constant 0 : i32
    %c0_i32_0 = arith.constant 0 : i32
    %c0_i32_1 = arith.constant 0 : i32
    return %arg0, %c0_i32, %c0_i32_0 : i32, i32, i32
  }
}

module attributes {stable_mosaic.version = 11 : i64} {
  func.func @_decoder_block_kernel(%arg0: i32, %arg1: memref<1x8x32xf32, #tpu.memory_space<vmem>>, %arg2: memref<1x8x32xf32, #tpu.memory_space<vmem>>, %arg3: memref<32x96xbf16, #tpu.memory_space<vmem>>, %arg4: memref<1x96xf32, #tpu.memory_space<vmem>>, %arg5: memref<32x32xbf16, #tpu.memory_space<vmem>>, %arg6: memref<1x32xf32, #tpu.memory_space<vmem>>, %arg7: memref<1x32xf32, #tpu.memory_space<vmem>>, %arg8: memref<1x32xf32, #tpu.memory_space<vmem>>, %arg9: memref<32x32xbf16, #tpu.memory_space<vmem>>, %arg10: memref<1x32xf32, #tpu.memory_space<vmem>>, %arg11: memref<32x64xbf16, #tpu.memory_space<vmem>>, %arg12: memref<1x64xf32, #tpu.memory_space<vmem>>, %arg13: memref<32x32xbf16, #tpu.memory_space<vmem>>, %arg14: memref<1x32xf32, #tpu.memory_space<vmem>>, %arg15: memref<1x32xf32, #tpu.memory_space<vmem>>, %arg16: memref<1x32xf32, #tpu.memory_space<vmem>>, %arg17: memref<32x128xbf16, #tpu.memory_space<vmem>>, %arg18: memref<1x128xf32, #tpu.memory_space<vmem>>, %arg19: memref<128x32xbf16, #tpu.memory_space<vmem>>, %arg20: memref<1x32xf32, #tpu.memory_space<vmem>>, %arg21: memref<1x32xf32, #tpu.memory_space<vmem>>, %arg22: memref<1x32xf32, #tpu.memory_space<vmem>>, %arg23: memref<1x8x32xf32, #tpu.memory_space<vmem>>) attributes {dimension_semantics = [#tpu.dimension_semantics<parallel>], iteration_bounds = array<i64: 2>, scalar_prefetch = 0 : i64, scratch_operands = 0 : i64, tpu.core_type = #tpu.core_type<tc>, window_params = [{transform_indices = @transform_0, window_bounds = array<i64: 1, 8, 32>}, {transform_indices = @transform_1, window_bounds = array<i64: 1, 8, 32>}, {pipeline_mode = #tpu.pipeline_mode<synchronous>, transform_indices = @transform_2, window_bounds = array<i64: 32, 96>}, {pipeline_mode = #tpu.pipeline_mode<synchronous>, transform_indices = @transform_3, window_bounds = array<i64: 1, 96>}, {pipeline_mode = #tpu.pipeline_mode<synchronous>, transform_indices = @transform_4, window_bounds = array<i64: 32, 32>}, {pipeline_mode = #tpu.pipeline_mode<synchronous>, transform_indices = @transform_5, window_bounds = array<i64: 1, 32>}, {pipeline_mode = #tpu.pipeline_mode<synchronous>, transform_indices = @transform_6, window_bounds = array<i64: 1, 32>}, {pipeline_mode = #tpu.pipeline_mode<synchronous>, transform_indices = @transform_7, window_bounds = array<i64: 1, 32>}, {pipeline_mode = #tpu.pipeline_mode<synchronous>, transform_indices = @transform_8, window_bounds = array<i64: 32, 32>}, {pipeline_mode = #tpu.pipeline_mode<synchronous>, transform_indices = @transform_9, window_bounds = array<i64: 1, 32>}, {pipeline_mode = #tpu.pipeline_mode<synchronous>, transform_indices = @transform_10, window_bounds = array<i64: 32, 64>}, {pipeline_mode = #tpu.pipeline_mode<synchronous>, transform_indices = @transform_11, window_bounds = array<i64: 1, 64>}, {pipeline_mode = #tpu.pipeline_mode<synchronous>, transform_indices = @transform_12, window_bounds = array<i64: 32, 32>}, {pipeline_mode = #tpu.pipeline_mode<synchronous>, transform_indices = @transform_13, window_bounds = array<i64: 1, 32>}, {pipeline_mode = #tpu.pipeline_mode<synchronous>, transform_indices = @transform_14, window_bounds = array<i64: 1, 32>}, {pipeline_mode = #tpu.pipeline_mode<synchronous>, transform_indices = @transform_15, window_bounds = array<i64: 1, 32>}, {pipeline_mode = #tpu.pipeline_mode<synchronous>, transform_indices = @transform_16, window_bounds = array<i64: 32, 128>}, {pipeline_mode = #tpu.pipeline_mode<synchronous>, transform_indices = @transform_17, window_bounds = array<i64: 1, 128>}, {pipeline_mode = #tpu.pipeline_mode<synchronous>, transform_indices = @transform_18, window_bounds = array<i64: 128, 32>}, {pipeline_mode = #tpu.pipeline_mode<synchronous>, transform_indices = @transform_19, window_bounds = array<i64: 1, 32>}, {pipeline_mode = #tpu.pipeline_mode<synchronous>, transform_indices = @transform_20, window_bounds = array<i64: 1, 32>}, {pipeline_mode = #tpu.pipeline_mode<synchronous>, transform_indices = @transform_21, window_bounds = array<i64: 1, 32>}, {transform_indices = @transform_22, window_bounds = array<i64: 1, 8, 32>}]} {
    %c0 = arith.constant 0 : index
    %c0_0 = arith.constant 0 : index
    %c0_1 = arith.constant 0 : index
    %0 = vector.load %arg1[%c0, %c0_0, %c0_1] : memref<1x8x32xf32, #tpu.memory_space<vmem>>, vector<1x8x32xf32>
    %1 = vector.shape_cast %0 : vector<1x8x32xf32> to vector<8x32xf32>
    %c0_2 = arith.constant 0 : index
    %c0_3 = arith.constant 0 : index
    %c0_4 = arith.constant 0 : index
    %2 = vector.load %arg2[%c0_2, %c0_3, %c0_4] : memref<1x8x32xf32, #tpu.memory_space<vmem>>, vector<1x8x32xf32>
    %3 = vector.shape_cast %2 : vector<1x8x32xf32> to vector<8x32xf32>
    %4 = arith.truncf %1 : vector<8x32xf32> to vector<8x32xbf16>
    %c0_5 = arith.constant 0 : index
    %c0_6 = arith.constant 0 : index
    %5 = vector.load %arg3[%c0_5, %c0_6] : memref<32x96xbf16, #tpu.memory_space<vmem>>, vector<32x96xbf16>
    %cst = arith.constant dense<0.000000e+00> : vector<8x96xf32>
    %6 = tpu.matmul %4, %5, %cst {dimension_numbers = #tpu.dot_dimension_numbers<[1], [0], [0], [1], [0, 0, 1, 1], [], []>} : vector<8x32xbf16>, vector<32x96xbf16>, vector<8x96xf32> -> vector<8x96xf32>
    %c0_7 = arith.constant 0 : index
    %c0_8 = arith.constant 0 : index
    %7 = vector.load %arg4[%c0_7, %c0_8] : memref<1x96xf32, #tpu.memory_space<vmem>>, vector<1x96xf32>
    %8 = vector.broadcast %7 : vector<1x96xf32> to vector<8x96xf32>
    %9 = arith.addf %6, %8 : vector<8x96xf32>
    %10 = vector.extract_strided_slice %9 {offsets = [0, 0], sizes = [8, 32], strides = [1, 1]} : vector<8x96xf32> to vector<8x32xf32>
    %11 = vector.extract_strided_slice %9 {offsets = [0, 32], sizes = [8, 32], strides = [1, 1]} : vector<8x96xf32> to vector<8x32xf32>
    %12 = vector.extract_strided_slice %9 {offsets = [0, 64], sizes = [8, 32], strides = [1, 1]} : vector<8x96xf32> to vector<8x32xf32>
    %13 = tpu.iota {dimensions = array<i32: 0>} : vector<8x8xi32>
    %14 = tpu.iota {dimensions = array<i32: 1>} : vector<8x8xi32>
    %15 = arith.cmpi sgt, %14, %13 : vector<8x8xi32>
    %cst_9 = arith.constant -1.000000e+30 : f32
    %cst_10 = arith.constant 0.000000e+00 : f32
    %16 = vector.broadcast %cst_9 : f32 to vector<8x8xf32>
    %17 = vector.broadcast %cst_10 : f32 to vector<8x8xf32>
    %18 = arith.select %15, %16, %17 : vector<8x8xi1>, vector<8x8xf32>
    %19 = vector.extract_strided_slice %10 {offsets = [0, 0], sizes = [8, 8], strides = [1, 1]} : vector<8x32xf32> to vector<8x8xf32>
    %20 = arith.truncf %19 : vector<8x8xf32> to vector<8x8xbf16>
    %21 = vector.extract_strided_slice %11 {offsets = [0, 0], sizes = [8, 8], strides = [1, 1]} : vector<8x32xf32> to vector<8x8xf32>
    %22 = arith.truncf %21 : vector<8x8xf32> to vector<8x8xbf16>
    %23 = vector.extract_strided_slice %12 {offsets = [0, 0], sizes = [8, 8], strides = [1, 1]} : vector<8x32xf32> to vector<8x8xf32>
    %24 = arith.truncf %23 : vector<8x8xf32> to vector<8x8xbf16>
    "tpu.trace_start"() <{level = 10 : i32, message = "qd,kd->qk"}> : () -> ()
    %cst_11 = arith.constant dense<0.000000e+00> : vector<8x8xf32>
    %25 = tpu.matmul %20, %22, %cst_11 {dimension_numbers = #tpu.dot_dimension_numbers<[1], [1], [0], [0], [0, 0, 1, 0], [], []>} : vector<8x8xbf16>, vector<8x8xbf16>, vector<8x8xf32> -> vector<8x8xf32>
    "tpu.trace_stop"() : () -> ()
    %26 = arith.addf %25, %18 : vector<8x8xf32>
    %cst_12 = arith.constant dense<0xFF800000> : vector<8xf32>
    %27 = vector.multi_reduction <maximumf>, %26, %cst_12 [1] : vector<8x8xf32> to vector<8xf32>
    %28 = vector.shape_cast %27 : vector<8xf32> to vector<8x1xf32>
    %29 = vector.broadcast %28 : vector<8x1xf32> to vector<8x8xf32>
    %30 = arith.subf %26, %29 : vector<8x8xf32>
    %31 = math.exp %30 : vector<8x8xf32>
    %cst_13 = arith.constant dense<0.000000e+00> : vector<8xf32>
    %32 = vector.multi_reduction <add>, %31, %cst_13 [1] : vector<8x8xf32> to vector<8xf32>
    %33 = vector.shape_cast %32 : vector<8xf32> to vector<8x1xf32>
    %34 = tpu.reciprocal %33 {approx = true} : vector<8x1xf32> -> vector<8x1xf32>
    %35 = vector.broadcast %34 : vector<8x1xf32> to vector<8x8xf32>
    %36 = arith.mulf %31, %35 : vector<8x8xf32>
    %37 = arith.truncf %36 : vector<8x8xf32> to vector<8x8xbf16>
    %cst_14 = arith.constant dense<0.000000e+00> : vector<8x8xf32>
    %38 = tpu.matmul %37, %24, %cst_14 {dimension_numbers = #tpu.dot_dimension_numbers<[1], [0], [0], [1], [0, 0, 1, 1], [], []>} : vector<8x8xbf16>, vector<8x8xbf16>, vector<8x8xf32> -> vector<8x8xf32>
    %39 = vector.extract_strided_slice %10 {offsets = [0, 8], sizes = [8, 8], strides = [1, 1]} : vector<8x32xf32> to vector<8x8xf32>
    %40 = arith.truncf %39 : vector<8x8xf32> to vector<8x8xbf16>
    %41 = vector.extract_strided_slice %11 {offsets = [0, 8], sizes = [8, 8], strides = [1, 1]} : vector<8x32xf32> to vector<8x8xf32>
    %42 = arith.truncf %41 : vector<8x8xf32> to vector<8x8xbf16>
    %43 = vector.extract_strided_slice %12 {offsets = [0, 8], sizes = [8, 8], strides = [1, 1]} : vector<8x32xf32> to vector<8x8xf32>
    %44 = arith.truncf %43 : vector<8x8xf32> to vector<8x8xbf16>
    "tpu.trace_start"() <{level = 10 : i32, message = "qd,kd->qk"}> : () -> ()
    %cst_15 = arith.constant dense<0.000000e+00> : vector<8x8xf32>
    %45 = tpu.matmul %40, %42, %cst_15 {dimension_numbers = #tpu.dot_dimension_numbers<[1], [1], [0], [0], [0, 0, 1, 0], [], []>} : vector<8x8xbf16>, vector<8x8xbf16>, vector<8x8xf32> -> vector<8x8xf32>
    "tpu.trace_stop"() : () -> ()
    %46 = arith.addf %45, %18 : vector<8x8xf32>
    %cst_16 = arith.constant dense<0xFF800000> : vector<8xf32>
    %47 = vector.multi_reduction <maximumf>, %46, %cst_16 [1] : vector<8x8xf32> to vector<8xf32>
    %48 = vector.shape_cast %47 : vector<8xf32> to vector<8x1xf32>
    %49 = vector.broadcast %48 : vector<8x1xf32> to vector<8x8xf32>
    %50 = arith.subf %46, %49 : vector<8x8xf32>
    %51 = math.exp %50 : vector<8x8xf32>
    %cst_17 = arith.constant dense<0.000000e+00> : vector<8xf32>
    %52 = vector.multi_reduction <add>, %51, %cst_17 [1] : vector<8x8xf32> to vector<8xf32>
    %53 = vector.shape_cast %52 : vector<8xf32> to vector<8x1xf32>
    %54 = tpu.reciprocal %53 {approx = true} : vector<8x1xf32> -> vector<8x1xf32>
    %55 = vector.broadcast %54 : vector<8x1xf32> to vector<8x8xf32>
    %56 = arith.mulf %51, %55 : vector<8x8xf32>
    %57 = arith.truncf %56 : vector<8x8xf32> to vector<8x8xbf16>
    %cst_18 = arith.constant dense<0.000000e+00> : vector<8x8xf32>
    %58 = tpu.matmul %57, %44, %cst_18 {dimension_numbers = #tpu.dot_dimension_numbers<[1], [0], [0], [1], [0, 0, 1, 1], [], []>} : vector<8x8xbf16>, vector<8x8xbf16>, vector<8x8xf32> -> vector<8x8xf32>
    %59 = vector.extract_strided_slice %10 {offsets = [0, 16], sizes = [8, 8], strides = [1, 1]} : vector<8x32xf32> to vector<8x8xf32>
    %60 = arith.truncf %59 : vector<8x8xf32> to vector<8x8xbf16>
    %61 = vector.extract_strided_slice %11 {offsets = [0, 16], sizes = [8, 8], strides = [1, 1]} : vector<8x32xf32> to vector<8x8xf32>
    %62 = arith.truncf %61 : vector<8x8xf32> to vector<8x8xbf16>
    %63 = vector.extract_strided_slice %12 {offsets = [0, 16], sizes = [8, 8], strides = [1, 1]} : vector<8x32xf32> to vector<8x8xf32>
    %64 = arith.truncf %63 : vector<8x8xf32> to vector<8x8xbf16>
    "tpu.trace_start"() <{level = 10 : i32, message = "qd,kd->qk"}> : () -> ()
    %cst_19 = arith.constant dense<0.000000e+00> : vector<8x8xf32>
    %65 = tpu.matmul %60, %62, %cst_19 {dimension_numbers = #tpu.dot_dimension_numbers<[1], [1], [0], [0], [0, 0, 1, 0], [], []>} : vector<8x8xbf16>, vector<8x8xbf16>, vector<8x8xf32> -> vector<8x8xf32>
    "tpu.trace_stop"() : () -> ()
    %66 = arith.addf %65, %18 : vector<8x8xf32>
    %cst_20 = arith.constant dense<0xFF800000> : vector<8xf32>
    %67 = vector.multi_reduction <maximumf>, %66, %cst_20 [1] : vector<8x8xf32> to vector<8xf32>
    %68 = vector.shape_cast %67 : vector<8xf32> to vector<8x1xf32>
    %69 = vector.broadcast %68 : vector<8x1xf32> to vector<8x8xf32>
    %70 = arith.subf %66, %69 : vector<8x8xf32>
    %71 = math.exp %70 : vector<8x8xf32>
    %cst_21 = arith.constant dense<0.000000e+00> : vector<8xf32>
    %72 = vector.multi_reduction <add>, %71, %cst_21 [1] : vector<8x8xf32> to vector<8xf32>
    %73 = vector.shape_cast %72 : vector<8xf32> to vector<8x1xf32>
    %74 = tpu.reciprocal %73 {approx = true} : vector<8x1xf32> -> vector<8x1xf32>
    %75 = vector.broadcast %74 : vector<8x1xf32> to vector<8x8xf32>
    %76 = arith.mulf %71, %75 : vector<8x8xf32>
    %77 = arith.truncf %76 : vector<8x8xf32> to vector<8x8xbf16>
    %cst_22 = arith.constant dense<0.000000e+00> : vector<8x8xf32>
    %78 = tpu.matmul %77, %64, %cst_22 {dimension_numbers = #tpu.dot_dimension_numbers<[1], [0], [0], [1], [0, 0, 1, 1], [], []>} : vector<8x8xbf16>, vector<8x8xbf16>, vector<8x8xf32> -> vector<8x8xf32>
    %79 = vector.extract_strided_slice %10 {offsets = [0, 24], sizes = [8, 8], strides = [1, 1]} : vector<8x32xf32> to vector<8x8xf32>
    %80 = arith.truncf %79 : vector<8x8xf32> to vector<8x8xbf16>
    %81 = vector.extract_strided_slice %11 {offsets = [0, 24], sizes = [8, 8], strides = [1, 1]} : vector<8x32xf32> to vector<8x8xf32>
    %82 = arith.truncf %81 : vector<8x8xf32> to vector<8x8xbf16>
    %83 = vector.extract_strided_slice %12 {offsets = [0, 24], sizes = [8, 8], strides = [1, 1]} : vector<8x32xf32> to vector<8x8xf32>
    %84 = arith.truncf %83 : vector<8x8xf32> to vector<8x8xbf16>
    "tpu.trace_start"() <{level = 10 : i32, message = "qd,kd->qk"}> : () -> ()
    %cst_23 = arith.constant dense<0.000000e+00> : vector<8x8xf32>
    %85 = tpu.matmul %80, %82, %cst_23 {dimension_numbers = #tpu.dot_dimension_numbers<[1], [1], [0], [0], [0, 0, 1, 0], [], []>} : vector<8x8xbf16>, vector<8x8xbf16>, vector<8x8xf32> -> vector<8x8xf32>
    "tpu.trace_stop"() : () -> ()
    %86 = arith.addf %85, %18 : vector<8x8xf32>
    %cst_24 = arith.constant dense<0xFF800000> : vector<8xf32>
    %87 = vector.multi_reduction <maximumf>, %86, %cst_24 [1] : vector<8x8xf32> to vector<8xf32>
    %88 = vector.shape_cast %87 : vector<8xf32> to vector<8x1xf32>
    %89 = vector.broadcast %88 : vector<8x1xf32> to vector<8x8xf32>
    %90 = arith.subf %86, %89 : vector<8x8xf32>
    %91 = math.exp %90 : vector<8x8xf32>
    %cst_25 = arith.constant dense<0.000000e+00> : vector<8xf32>
    %92 = vector.multi_reduction <add>, %91, %cst_25 [1] : vector<8x8xf32> to vector<8xf32>
    %93 = vector.shape_cast %92 : vector<8xf32> to vector<8x1xf32>
    %94 = tpu.reciprocal %93 {approx = true} : vector<8x1xf32> -> vector<8x1xf32>
    %95 = vector.broadcast %94 : vector<8x1xf32> to vector<8x8xf32>
    %96 = arith.mulf %91, %95 : vector<8x8xf32>
    %97 = arith.truncf %96 : vector<8x8xf32> to vector<8x8xbf16>
    %cst_26 = arith.constant dense<0.000000e+00> : vector<8x8xf32>
    %98 = tpu.matmul %97, %84, %cst_26 {dimension_numbers = #tpu.dot_dimension_numbers<[1], [0], [0], [1], [0, 0, 1, 1], [], []>} : vector<8x8xbf16>, vector<8x8xbf16>, vector<8x8xf32> -> vector<8x8xf32>
    %99 = tpu.concatenate %38, %58, %78, %98 in 1 : vector<8x8xf32>, vector<8x8xf32>, vector<8x8xf32>, vector<8x8xf32> -> vector<8x32xf32>
    %100 = arith.truncf %99 : vector<8x32xf32> to vector<8x32xbf16>
    %c0_27 = arith.constant 0 : index
    %c0_28 = arith.constant 0 : index
    %101 = vector.load %arg5[%c0_27, %c0_28] : memref<32x32xbf16, #tpu.memory_space<vmem>>, vector<32x32xbf16>
    %cst_29 = arith.constant dense<0.000000e+00> : vector<8x32xf32>
    %102 = tpu.matmul %100, %101, %cst_29 {dimension_numbers = #tpu.dot_dimension_numbers<[1], [0], [0], [1], [0, 0, 1, 1], [], []>} : vector<8x32xbf16>, vector<32x32xbf16>, vector<8x32xf32> -> vector<8x32xf32>
    %c0_30 = arith.constant 0 : index
    %c0_31 = arith.constant 0 : index
    %103 = vector.load %arg6[%c0_30, %c0_31] : memref<1x32xf32, #tpu.memory_space<vmem>>, vector<1x32xf32>
    %104 = vector.broadcast %103 : vector<1x32xf32> to vector<8x32xf32>
    %105 = arith.addf %102, %104 : vector<8x32xf32>
    %106 = arith.addf %1, %105 : vector<8x32xf32>
    %c0_32 = arith.constant 0 : index
    %c0_33 = arith.constant 0 : index
    %107 = vector.load %arg7[%c0_32, %c0_33] : memref<1x32xf32, #tpu.memory_space<vmem>>, vector<1x32xf32>
    %c0_34 = arith.constant 0 : index
    %c0_35 = arith.constant 0 : index
    %108 = vector.load %arg8[%c0_34, %c0_35] : memref<1x32xf32, #tpu.memory_space<vmem>>, vector<1x32xf32>
    %cst_36 = arith.constant dense<0.000000e+00> : vector<8xf32>
    %109 = vector.multi_reduction <add>, %106, %cst_36 [1] : vector<8x32xf32> to vector<8xf32>
    %110 = vector.shape_cast %109 : vector<8xf32> to vector<8x1xf32>
    %cst_37 = arith.constant 3.200000e+01 : f32
    %111 = vector.broadcast %cst_37 : f32 to vector<8x1xf32>
    %112 = arith.divf %110, %111 : vector<8x1xf32>
    %113 = vector.broadcast %112 : vector<8x1xf32> to vector<8x32xf32>
    %114 = arith.subf %106, %113 : vector<8x32xf32>
    %115 = arith.mulf %114, %114 : vector<8x32xf32>
    %cst_38 = arith.constant dense<0.000000e+00> : vector<8xf32>
    %116 = vector.multi_reduction <add>, %115, %cst_38 [1] : vector<8x32xf32> to vector<8xf32>
    %117 = vector.shape_cast %116 : vector<8xf32> to vector<8x1xf32>
    %cst_39 = arith.constant 3.200000e+01 : f32
    %118 = vector.broadcast %cst_39 : f32 to vector<8x1xf32>
    %119 = arith.divf %117, %118 : vector<8x1xf32>
    %cst_40 = arith.constant 9.99999974E-6 : f32
    %120 = vector.broadcast %cst_40 : f32 to vector<8x1xf32>
    %121 = arith.addf %119, %120 : vector<8x1xf32>
    %122 = math.rsqrt %121 : vector<8x1xf32>
    %123 = vector.broadcast %122 : vector<8x1xf32> to vector<8x32xf32>
    %124 = arith.mulf %114, %123 : vector<8x32xf32>
    %125 = vector.broadcast %107 : vector<1x32xf32> to vector<8x32xf32>
    %126 = arith.mulf %124, %125 : vector<8x32xf32>
    %127 = vector.broadcast %108 : vector<1x32xf32> to vector<8x32xf32>
    %128 = arith.addf %126, %127 : vector<8x32xf32>
    %129 = arith.truncf %128 : vector<8x32xf32> to vector<8x32xbf16>
    %c0_41 = arith.constant 0 : index
    %c0_42 = arith.constant 0 : index
    %130 = vector.load %arg9[%c0_41, %c0_42] : memref<32x32xbf16, #tpu.memory_space<vmem>>, vector<32x32xbf16>
    %cst_43 = arith.constant dense<0.000000e+00> : vector<8x32xf32>
    %131 = tpu.matmul %129, %130, %cst_43 {dimension_numbers = #tpu.dot_dimension_numbers<[1], [0], [0], [1], [0, 0, 1, 1], [], []>} : vector<8x32xbf16>, vector<32x32xbf16>, vector<8x32xf32> -> vector<8x32xf32>
    %c0_44 = arith.constant 0 : index
    %c0_45 = arith.constant 0 : index
    %132 = vector.load %arg10[%c0_44, %c0_45] : memref<1x32xf32, #tpu.memory_space<vmem>>, vector<1x32xf32>
    %133 = vector.broadcast %132 : vector<1x32xf32> to vector<8x32xf32>
    %134 = arith.addf %131, %133 : vector<8x32xf32>
    %135 = arith.truncf %3 : vector<8x32xf32> to vector<8x32xbf16>
    %c0_46 = arith.constant 0 : index
    %c0_47 = arith.constant 0 : index
    %136 = vector.load %arg11[%c0_46, %c0_47] : memref<32x64xbf16, #tpu.memory_space<vmem>>, vector<32x64xbf16>
    %cst_48 = arith.constant dense<0.000000e+00> : vector<8x64xf32>
    %137 = tpu.matmul %135, %136, %cst_48 {dimension_numbers = #tpu.dot_dimension_numbers<[1], [0], [0], [1], [0, 0, 1, 1], [], []>} : vector<8x32xbf16>, vector<32x64xbf16>, vector<8x64xf32> -> vector<8x64xf32>
    %c0_49 = arith.constant 0 : index
    %c0_50 = arith.constant 0 : index
    %138 = vector.load %arg12[%c0_49, %c0_50] : memref<1x64xf32, #tpu.memory_space<vmem>>, vector<1x64xf32>
    %139 = vector.broadcast %138 : vector<1x64xf32> to vector<8x64xf32>
    %140 = arith.addf %137, %139 : vector<8x64xf32>
    %141 = vector.extract_strided_slice %140 {offsets = [0, 0], sizes = [8, 32], strides = [1, 1]} : vector<8x64xf32> to vector<8x32xf32>
    %142 = vector.extract_strided_slice %140 {offsets = [0, 32], sizes = [8, 32], strides = [1, 1]} : vector<8x64xf32> to vector<8x32xf32>
    %143 = vector.extract_strided_slice %134 {offsets = [0, 0], sizes = [8, 8], strides = [1, 1]} : vector<8x32xf32> to vector<8x8xf32>
    %144 = arith.truncf %143 : vector<8x8xf32> to vector<8x8xbf16>
    %145 = vector.extract_strided_slice %141 {offsets = [0, 0], sizes = [8, 8], strides = [1, 1]} : vector<8x32xf32> to vector<8x8xf32>
    %146 = arith.truncf %145 : vector<8x8xf32> to vector<8x8xbf16>
    %147 = vector.extract_strided_slice %142 {offsets = [0, 0], sizes = [8, 8], strides = [1, 1]} : vector<8x32xf32> to vector<8x8xf32>
    %148 = arith.truncf %147 : vector<8x8xf32> to vector<8x8xbf16>
    "tpu.trace_start"() <{level = 10 : i32, message = "qd,kd->qk"}> : () -> ()
    %cst_51 = arith.constant dense<0.000000e+00> : vector<8x8xf32>
    %149 = tpu.matmul %144, %146, %cst_51 {dimension_numbers = #tpu.dot_dimension_numbers<[1], [1], [0], [0], [0, 0, 1, 0], [], []>} : vector<8x8xbf16>, vector<8x8xbf16>, vector<8x8xf32> -> vector<8x8xf32>
    "tpu.trace_stop"() : () -> ()
    %cst_52 = arith.constant dense<0xFF800000> : vector<8xf32>
    %150 = vector.multi_reduction <maximumf>, %149, %cst_52 [1] : vector<8x8xf32> to vector<8xf32>
    %151 = vector.shape_cast %150 : vector<8xf32> to vector<8x1xf32>
    %152 = vector.broadcast %151 : vector<8x1xf32> to vector<8x8xf32>
    %153 = arith.subf %149, %152 : vector<8x8xf32>
    %154 = math.exp %153 : vector<8x8xf32>
    %cst_53 = arith.constant dense<0.000000e+00> : vector<8xf32>
    %155 = vector.multi_reduction <add>, %154, %cst_53 [1] : vector<8x8xf32> to vector<8xf32>
    %156 = vector.shape_cast %155 : vector<8xf32> to vector<8x1xf32>
    %157 = tpu.reciprocal %156 {approx = true} : vector<8x1xf32> -> vector<8x1xf32>
    %158 = vector.broadcast %157 : vector<8x1xf32> to vector<8x8xf32>
    %159 = arith.mulf %154, %158 : vector<8x8xf32>
    %160 = arith.truncf %159 : vector<8x8xf32> to vector<8x8xbf16>
    %cst_54 = arith.constant dense<0.000000e+00> : vector<8x8xf32>
    %161 = tpu.matmul %160, %148, %cst_54 {dimension_numbers = #tpu.dot_dimension_numbers<[1], [0], [0], [1], [0, 0, 1, 1], [], []>} : vector<8x8xbf16>, vector<8x8xbf16>, vector<8x8xf32> -> vector<8x8xf32>
    %162 = vector.extract_strided_slice %134 {offsets = [0, 8], sizes = [8, 8], strides = [1, 1]} : vector<8x32xf32> to vector<8x8xf32>
    %163 = arith.truncf %162 : vector<8x8xf32> to vector<8x8xbf16>
    %164 = vector.extract_strided_slice %141 {offsets = [0, 8], sizes = [8, 8], strides = [1, 1]} : vector<8x32xf32> to vector<8x8xf32>
    %165 = arith.truncf %164 : vector<8x8xf32> to vector<8x8xbf16>
    %166 = vector.extract_strided_slice %142 {offsets = [0, 8], sizes = [8, 8], strides = [1, 1]} : vector<8x32xf32> to vector<8x8xf32>
    %167 = arith.truncf %166 : vector<8x8xf32> to vector<8x8xbf16>
    "tpu.trace_start"() <{level = 10 : i32, message = "qd,kd->qk"}> : () -> ()
    %cst_55 = arith.constant dense<0.000000e+00> : vector<8x8xf32>
    %168 = tpu.matmul %163, %165, %cst_55 {dimension_numbers = #tpu.dot_dimension_numbers<[1], [1], [0], [0], [0, 0, 1, 0], [], []>} : vector<8x8xbf16>, vector<8x8xbf16>, vector<8x8xf32> -> vector<8x8xf32>
    "tpu.trace_stop"() : () -> ()
    %cst_56 = arith.constant dense<0xFF800000> : vector<8xf32>
    %169 = vector.multi_reduction <maximumf>, %168, %cst_56 [1] : vector<8x8xf32> to vector<8xf32>
    %170 = vector.shape_cast %169 : vector<8xf32> to vector<8x1xf32>
    %171 = vector.broadcast %170 : vector<8x1xf32> to vector<8x8xf32>
    %172 = arith.subf %168, %171 : vector<8x8xf32>
    %173 = math.exp %172 : vector<8x8xf32>
    %cst_57 = arith.constant dense<0.000000e+00> : vector<8xf32>
    %174 = vector.multi_reduction <add>, %173, %cst_57 [1] : vector<8x8xf32> to vector<8xf32>
    %175 = vector.shape_cast %174 : vector<8xf32> to vector<8x1xf32>
    %176 = tpu.reciprocal %175 {approx = true} : vector<8x1xf32> -> vector<8x1xf32>
    %177 = vector.broadcast %176 : vector<8x1xf32> to vector<8x8xf32>
    %178 = arith.mulf %173, %177 : vector<8x8xf32>
    %179 = arith.truncf %178 : vector<8x8xf32> to vector<8x8xbf16>
    %cst_58 = arith.constant dense<0.000000e+00> : vector<8x8xf32>
    %180 = tpu.matmul %179, %167, %cst_58 {dimension_numbers = #tpu.dot_dimension_numbers<[1], [0], [0], [1], [0, 0, 1, 1], [], []>} : vector<8x8xbf16>, vector<8x8xbf16>, vector<8x8xf32> -> vector<8x8xf32>
    %181 = vector.extract_strided_slice %134 {offsets = [0, 16], sizes = [8, 8], strides = [1, 1]} : vector<8x32xf32> to vector<8x8xf32>
    %182 = arith.truncf %181 : vector<8x8xf32> to vector<8x8xbf16>
    %183 = vector.extract_strided_slice %141 {offsets = [0, 16], sizes = [8, 8], strides = [1, 1]} : vector<8x32xf32> to vector<8x8xf32>
    %184 = arith.truncf %183 : vector<8x8xf32> to vector<8x8xbf16>
    %185 = vector.extract_strided_slice %142 {offsets = [0, 16], sizes = [8, 8], strides = [1, 1]} : vector<8x32xf32> to vector<8x8xf32>
    %186 = arith.truncf %185 : vector<8x8xf32> to vector<8x8xbf16>
    "tpu.trace_start"() <{level = 10 : i32, message = "qd,kd->qk"}> : () -> ()
    %cst_59 = arith.constant dense<0.000000e+00> : vector<8x8xf32>
    %187 = tpu.matmul %182, %184, %cst_59 {dimension_numbers = #tpu.dot_dimension_numbers<[1], [1], [0], [0], [0, 0, 1, 0], [], []>} : vector<8x8xbf16>, vector<8x8xbf16>, vector<8x8xf32> -> vector<8x8xf32>
    "tpu.trace_stop"() : () -> ()
    %cst_60 = arith.constant dense<0xFF800000> : vector<8xf32>
    %188 = vector.multi_reduction <maximumf>, %187, %cst_60 [1] : vector<8x8xf32> to vector<8xf32>
    %189 = vector.shape_cast %188 : vector<8xf32> to vector<8x1xf32>
    %190 = vector.broadcast %189 : vector<8x1xf32> to vector<8x8xf32>
    %191 = arith.subf %187, %190 : vector<8x8xf32>
    %192 = math.exp %191 : vector<8x8xf32>
    %cst_61 = arith.constant dense<0.000000e+00> : vector<8xf32>
    %193 = vector.multi_reduction <add>, %192, %cst_61 [1] : vector<8x8xf32> to vector<8xf32>
    %194 = vector.shape_cast %193 : vector<8xf32> to vector<8x1xf32>
    %195 = tpu.reciprocal %194 {approx = true} : vector<8x1xf32> -> vector<8x1xf32>
    %196 = vector.broadcast %195 : vector<8x1xf32> to vector<8x8xf32>
    %197 = arith.mulf %192, %196 : vector<8x8xf32>
    %198 = arith.truncf %197 : vector<8x8xf32> to vector<8x8xbf16>
    %cst_62 = arith.constant dense<0.000000e+00> : vector<8x8xf32>
    %199 = tpu.matmul %198, %186, %cst_62 {dimension_numbers = #tpu.dot_dimension_numbers<[1], [0], [0], [1], [0, 0, 1, 1], [], []>} : vector<8x8xbf16>, vector<8x8xbf16>, vector<8x8xf32> -> vector<8x8xf32>
    %200 = vector.extract_strided_slice %134 {offsets = [0, 24], sizes = [8, 8], strides = [1, 1]} : vector<8x32xf32> to vector<8x8xf32>
    %201 = arith.truncf %200 : vector<8x8xf32> to vector<8x8xbf16>
    %202 = vector.extract_strided_slice %141 {offsets = [0, 24], sizes = [8, 8], strides = [1, 1]} : vector<8x32xf32> to vector<8x8xf32>
    %203 = arith.truncf %202 : vector<8x8xf32> to vector<8x8xbf16>
    %204 = vector.extract_strided_slice %142 {offsets = [0, 24], sizes = [8, 8], strides = [1, 1]} : vector<8x32xf32> to vector<8x8xf32>
    %205 = arith.truncf %204 : vector<8x8xf32> to vector<8x8xbf16>
    "tpu.trace_start"() <{level = 10 : i32, message = "qd,kd->qk"}> : () -> ()
    %cst_63 = arith.constant dense<0.000000e+00> : vector<8x8xf32>
    %206 = tpu.matmul %201, %203, %cst_63 {dimension_numbers = #tpu.dot_dimension_numbers<[1], [1], [0], [0], [0, 0, 1, 0], [], []>} : vector<8x8xbf16>, vector<8x8xbf16>, vector<8x8xf32> -> vector<8x8xf32>
    "tpu.trace_stop"() : () -> ()
    %cst_64 = arith.constant dense<0xFF800000> : vector<8xf32>
    %207 = vector.multi_reduction <maximumf>, %206, %cst_64 [1] : vector<8x8xf32> to vector<8xf32>
    %208 = vector.shape_cast %207 : vector<8xf32> to vector<8x1xf32>
    %209 = vector.broadcast %208 : vector<8x1xf32> to vector<8x8xf32>
    %210 = arith.subf %206, %209 : vector<8x8xf32>
    %211 = math.exp %210 : vector<8x8xf32>
    %cst_65 = arith.constant dense<0.000000e+00> : vector<8xf32>
    %212 = vector.multi_reduction <add>, %211, %cst_65 [1] : vector<8x8xf32> to vector<8xf32>
    %213 = vector.shape_cast %212 : vector<8xf32> to vector<8x1xf32>
    %214 = tpu.reciprocal %213 {approx = true} : vector<8x1xf32> -> vector<8x1xf32>
    %215 = vector.broadcast %214 : vector<8x1xf32> to vector<8x8xf32>
    %216 = arith.mulf %211, %215 : vector<8x8xf32>
    %217 = arith.truncf %216 : vector<8x8xf32> to vector<8x8xbf16>
    %cst_66 = arith.constant dense<0.000000e+00> : vector<8x8xf32>
    %218 = tpu.matmul %217, %205, %cst_66 {dimension_numbers = #tpu.dot_dimension_numbers<[1], [0], [0], [1], [0, 0, 1, 1], [], []>} : vector<8x8xbf16>, vector<8x8xbf16>, vector<8x8xf32> -> vector<8x8xf32>
    %219 = tpu.concatenate %161, %180, %199, %218 in 1 : vector<8x8xf32>, vector<8x8xf32>, vector<8x8xf32>, vector<8x8xf32> -> vector<8x32xf32>
    %220 = arith.truncf %219 : vector<8x32xf32> to vector<8x32xbf16>
    %c0_67 = arith.constant 0 : index
    %c0_68 = arith.constant 0 : index
    %221 = vector.load %arg13[%c0_67, %c0_68] : memref<32x32xbf16, #tpu.memory_space<vmem>>, vector<32x32xbf16>
    %cst_69 = arith.constant dense<0.000000e+00> : vector<8x32xf32>
    %222 = tpu.matmul %220, %221, %cst_69 {dimension_numbers = #tpu.dot_dimension_numbers<[1], [0], [0], [1], [0, 0, 1, 1], [], []>} : vector<8x32xbf16>, vector<32x32xbf16>, vector<8x32xf32> -> vector<8x32xf32>
    %c0_70 = arith.constant 0 : index
    %c0_71 = arith.constant 0 : index
    %223 = vector.load %arg14[%c0_70, %c0_71] : memref<1x32xf32, #tpu.memory_space<vmem>>, vector<1x32xf32>
    %224 = vector.broadcast %223 : vector<1x32xf32> to vector<8x32xf32>
    %225 = arith.addf %222, %224 : vector<8x32xf32>
    %226 = arith.addf %128, %225 : vector<8x32xf32>
    %c0_72 = arith.constant 0 : index
    %c0_73 = arith.constant 0 : index
    %227 = vector.load %arg15[%c0_72, %c0_73] : memref<1x32xf32, #tpu.memory_space<vmem>>, vector<1x32xf32>
    %c0_74 = arith.constant 0 : index
    %c0_75 = arith.constant 0 : index
    %228 = vector.load %arg16[%c0_74, %c0_75] : memref<1x32xf32, #tpu.memory_space<vmem>>, vector<1x32xf32>
    %cst_76 = arith.constant dense<0.000000e+00> : vector<8xf32>
    %229 = vector.multi_reduction <add>, %226, %cst_76 [1] : vector<8x32xf32> to vector<8xf32>
    %230 = vector.shape_cast %229 : vector<8xf32> to vector<8x1xf32>
    %cst_77 = arith.constant 3.200000e+01 : f32
    %231 = vector.broadcast %cst_77 : f32 to vector<8x1xf32>
    %232 = arith.divf %230, %231 : vector<8x1xf32>
    %233 = vector.broadcast %232 : vector<8x1xf32> to vector<8x32xf32>
    %234 = arith.subf %226, %233 : vector<8x32xf32>
    %235 = arith.mulf %234, %234 : vector<8x32xf32>
    %cst_78 = arith.constant dense<0.000000e+00> : vector<8xf32>
    %236 = vector.multi_reduction <add>, %235, %cst_78 [1] : vector<8x32xf32> to vector<8xf32>
    %237 = vector.shape_cast %236 : vector<8xf32> to vector<8x1xf32>
    %cst_79 = arith.constant 3.200000e+01 : f32
    %238 = vector.broadcast %cst_79 : f32 to vector<8x1xf32>
    %239 = arith.divf %237, %238 : vector<8x1xf32>
    %cst_80 = arith.constant 9.99999974E-6 : f32
    %240 = vector.broadcast %cst_80 : f32 to vector<8x1xf32>
    %241 = arith.addf %239, %240 : vector<8x1xf32>
    %242 = math.rsqrt %241 : vector<8x1xf32>
    %243 = vector.broadcast %242 : vector<8x1xf32> to vector<8x32xf32>
    %244 = arith.mulf %234, %243 : vector<8x32xf32>
    %245 = vector.broadcast %227 : vector<1x32xf32> to vector<8x32xf32>
    %246 = arith.mulf %244, %245 : vector<8x32xf32>
    %247 = vector.broadcast %228 : vector<1x32xf32> to vector<8x32xf32>
    %248 = arith.addf %246, %247 : vector<8x32xf32>
    %249 = arith.truncf %248 : vector<8x32xf32> to vector<8x32xbf16>
    %c0_81 = arith.constant 0 : index
    %c0_82 = arith.constant 0 : index
    %250 = vector.load %arg17[%c0_81, %c0_82] : memref<32x128xbf16, #tpu.memory_space<vmem>>, vector<32x128xbf16>
    %cst_83 = arith.constant dense<0.000000e+00> : vector<8x128xf32>
    %251 = tpu.matmul %249, %250, %cst_83 {dimension_numbers = #tpu.dot_dimension_numbers<[1], [0], [0], [1], [0, 0, 1, 1], [], []>} : vector<8x32xbf16>, vector<32x128xbf16>, vector<8x128xf32> -> vector<8x128xf32>
    %c0_84 = arith.constant 0 : index
    %c0_85 = arith.constant 0 : index
    %252 = vector.load %arg18[%c0_84, %c0_85] : memref<1x128xf32, #tpu.memory_space<vmem>>, vector<1x128xf32>
    %253 = vector.broadcast %252 : vector<1x128xf32> to vector<8x128xf32>
    %254 = arith.addf %251, %253 : vector<8x128xf32>
    %cst_86 = arith.constant 0.000000e+00 : f32
    %255 = vector.broadcast %cst_86 : f32 to vector<8x128xf32>
    %256 = arith.maximumf %254, %255 : vector<8x128xf32>
    %257 = arith.truncf %256 : vector<8x128xf32> to vector<8x128xbf16>
    %c0_87 = arith.constant 0 : index
    %c0_88 = arith.constant 0 : index
    %258 = vector.load %arg19[%c0_87, %c0_88] : memref<128x32xbf16, #tpu.memory_space<vmem>>, vector<128x32xbf16>
    %cst_89 = arith.constant dense<0.000000e+00> : vector<8x32xf32>
    %259 = tpu.matmul %257, %258, %cst_89 {dimension_numbers = #tpu.dot_dimension_numbers<[1], [0], [0], [1], [0, 0, 1, 1], [], []>} : vector<8x128xbf16>, vector<128x32xbf16>, vector<8x32xf32> -> vector<8x32xf32>
    %c0_90 = arith.constant 0 : index
    %c0_91 = arith.constant 0 : index
    %260 = vector.load %arg20[%c0_90, %c0_91] : memref<1x32xf32, #tpu.memory_space<vmem>>, vector<1x32xf32>
    %261 = vector.broadcast %260 : vector<1x32xf32> to vector<8x32xf32>
    %262 = arith.addf %259, %261 : vector<8x32xf32>
    %263 = arith.addf %248, %262 : vector<8x32xf32>
    %c0_92 = arith.constant 0 : index
    %c0_93 = arith.constant 0 : index
    %264 = vector.load %arg21[%c0_92, %c0_93] : memref<1x32xf32, #tpu.memory_space<vmem>>, vector<1x32xf32>
    %c0_94 = arith.constant 0 : index
    %c0_95 = arith.constant 0 : index
    %265 = vector.load %arg22[%c0_94, %c0_95] : memref<1x32xf32, #tpu.memory_space<vmem>>, vector<1x32xf32>
    %cst_96 = arith.constant dense<0.000000e+00> : vector<8xf32>
    %266 = vector.multi_reduction <add>, %263, %cst_96 [1] : vector<8x32xf32> to vector<8xf32>
    %267 = vector.shape_cast %266 : vector<8xf32> to vector<8x1xf32>
    %cst_97 = arith.constant 3.200000e+01 : f32
    %268 = vector.broadcast %cst_97 : f32 to vector<8x1xf32>
    %269 = arith.divf %267, %268 : vector<8x1xf32>
    %270 = vector.broadcast %269 : vector<8x1xf32> to vector<8x32xf32>
    %271 = arith.subf %263, %270 : vector<8x32xf32>
    %272 = arith.mulf %271, %271 : vector<8x32xf32>
    %cst_98 = arith.constant dense<0.000000e+00> : vector<8xf32>
    %273 = vector.multi_reduction <add>, %272, %cst_98 [1] : vector<8x32xf32> to vector<8xf32>
    %274 = vector.shape_cast %273 : vector<8xf32> to vector<8x1xf32>
    %cst_99 = arith.constant 3.200000e+01 : f32
    %275 = vector.broadcast %cst_99 : f32 to vector<8x1xf32>
    %276 = arith.divf %274, %275 : vector<8x1xf32>
    %cst_100 = arith.constant 9.99999974E-6 : f32
    %277 = vector.broadcast %cst_100 : f32 to vector<8x1xf32>
    %278 = arith.addf %276, %277 : vector<8x1xf32>
    %279 = math.rsqrt %278 : vector<8x1xf32>
    %280 = vector.broadcast %279 : vector<8x1xf32> to vector<8x32xf32>
    %281 = arith.mulf %271, %280 : vector<8x32xf32>
    %282 = vector.broadcast %264 : vector<1x32xf32> to vector<8x32xf32>
    %283 = arith.mulf %281, %282 : vector<8x32xf32>
    %284 = vector.broadcast %265 : vector<1x32xf32> to vector<8x32xf32>
    %285 = arith.addf %283, %284 : vector<8x32xf32>
    %c0_101 = arith.constant 0 : index
    %c0_102 = arith.constant 0 : index
    %c0_103 = arith.constant 0 : index
    %286 = vector.load %arg23[%c0_101, %c0_102, %c0_103] : memref<1x8x32xf32, #tpu.memory_space<vmem>>, vector<1x8x32xf32>
    %287 = vector.shape_cast %286 : vector<1x8x32xf32> to vector<8x32xf32>
    %288 = vector.shape_cast %285 : vector<8x32xf32> to vector<1x8x32xf32>
    tpu.vector_store %arg23[%c0_101, %c0_102, %c0_103], %288 {strides = array<i32>} : memref<1x8x32xf32, #tpu.memory_space<vmem>>, vector<1x8x32xf32>,
    return
  }
  func.func @transform_0(%arg0: i32) -> (i32, i32, i32) {
    %c0_i32 = arith.constant 0 : i32
    %c0_i32_0 = arith.constant 0 : i32
    %c0_i32_1 = arith.constant 0 : i32
    return %arg0, %c0_i32, %c0_i32_0 : i32, i32, i32
  }
  func.func @transform_1(%arg0: i32) -> (i32, i32, i32) {
    %c0_i32 = arith.constant 0 : i32
    %c0_i32_0 = arith.constant 0 : i32
    %c0_i32_1 = arith.constant 0 : i32
    return %arg0, %c0_i32, %c0_i32_0 : i32, i32, i32
  }
  func.func @transform_2(%arg0: i32) -> (i32, i32) {
    %c0_i32 = arith.constant 0 : i32
    %c0_i32_0 = arith.constant 0 : i32
    %c0_i32_1 = arith.constant 0 : i32
    return %c0_i32, %c0_i32_0 : i32, i32
  }
  func.func @transform_3(%arg0: i32) -> (i32, i32) {
    %c0_i32 = arith.constant 0 : i32
    %c0_i32_0 = arith.constant 0 : i32
    %c0_i32_1 = arith.constant 0 : i32
    return %c0_i32, %c0_i32_0 : i32, i32
  }
  func.func @transform_4(%arg0: i32) -> (i32, i32) {
    %c0_i32 = arith.constant 0 : i32
    %c0_i32_0 = arith.constant 0 : i32
    %c0_i32_1 = arith.constant 0 : i32
    return %c0_i32, %c0_i32_0 : i32, i32
  }
  func.func @transform_5(%arg0: i32) -> (i32, i32) {
    %c0_i32 = arith.constant 0 : i32
    %c0_i32_0 = arith.constant 0 : i32
    %c0_i32_1 = arith.constant 0 : i32
    return %c0_i32, %c0_i32_0 : i32, i32
  }
  func.func @transform_6(%arg0: i32) -> (i32, i32) {
    %c0_i32 = arith.constant 0 : i32
    %c0_i32_0 = arith.constant 0 : i32
    %c0_i32_1 = arith.constant 0 : i32
    return %c0_i32, %c0_i32_0 : i32, i32
  }
  func.func @transform_7(%arg0: i32) -> (i32, i32) {
    %c0_i32 = arith.constant 0 : i32
    %c0_i32_0 = arith.constant 0 : i32
    %c0_i32_1 = arith.constant 0 : i32
    return %c0_i32, %c0_i32_0 : i32, i32
  }
  func.func @transform_8(%arg0: i32) -> (i32, i32) {
    %c0_i32 = arith.constant 0 : i32
    %c0_i32_0 = arith.constant 0 : i32
    %c0_i32_1 = arith.constant 0 : i32
    return %c0_i32, %c0_i32_0 : i32, i32
  }
  func.func @transform_9(%arg0: i32) -> (i32, i32) {
    %c0_i32 = arith.constant 0 : i32
    %c0_i32_0 = arith.constant 0 : i32
    %c0_i32_1 = arith.constant 0 : i32
    return %c0_i32, %c0_i32_0 : i32, i32
  }
  func.func @transform_10(%arg0: i32) -> (i32, i32) {
    %c0_i32 = arith.constant 0 : i32
    %c0_i32_0 = arith.constant 0 : i32
    %c0_i32_1 = arith.constant 0 : i32
    return %c0_i32, %c0_i32_0 : i32, i32
  }
  func.func @transform_11(%arg0: i32) -> (i32, i32) {
    %c0_i32 = arith.constant 0 : i32
    %c0_i32_0 = arith.constant 0 : i32
    %c0_i32_1 = arith.constant 0 : i32
    return %c0_i32, %c0_i32_0 : i32, i32
  }
  func.func @transform_12(%arg0: i32) -> (i32, i32) {
    %c0_i32 = arith.constant 0 : i32
    %c0_i32_0 = arith.constant 0 : i32
    %c0_i32_1 = arith.constant 0 : i32
    return %c0_i32, %c0_i32_0 : i32, i32
  }
  func.func @transform_13(%arg0: i32) -> (i32, i32) {
    %c0_i32 = arith.constant 0 : i32
    %c0_i32_0 = arith.constant 0 : i32
    %c0_i32_1 = arith.constant 0 : i32
    return %c0_i32, %c0_i32_0 : i32, i32
  }
  func.func @transform_14(%arg0: i32) -> (i32, i32) {
    %c0_i32 = arith.constant 0 : i32
    %c0_i32_0 = arith.constant 0 : i32
    %c0_i32_1 = arith.constant 0 : i32
    return %c0_i32, %c0_i32_0 : i32, i32
  }
  func.func @transform_15(%arg0: i32) -> (i32, i32) {
    %c0_i32 = arith.constant 0 : i32
    %c0_i32_0 = arith.constant 0 : i32
    %c0_i32_1 = arith.constant 0 : i32
    return %c0_i32, %c0_i32_0 : i32, i32
  }
  func.func @transform_16(%arg0: i32) -> (i32, i32) {
    %c0_i32 = arith.constant 0 : i32
    %c0_i32_0 = arith.constant 0 : i32
    %c0_i32_1 = arith.constant 0 : i32
    return %c0_i32, %c0_i32_0 : i32, i32
  }
  func.func @transform_17(%arg0: i32) -> (i32, i32) {
    %c0_i32 = arith.constant 0 : i32
    %c0_i32_0 = arith.constant 0 : i32
    %c0_i32_1 = arith.constant 0 : i32
    return %c0_i32, %c0_i32_0 : i32, i32
  }
  func.func @transform_18(%arg0: i32) -> (i32, i32) {
    %c0_i32 = arith.constant 0 : i32
    %c0_i32_0 = arith.constant 0 : i32
    %c0_i32_1 = arith.constant 0 : i32
    return %c0_i32, %c0_i32_0 : i32, i32
  }
  func.func @transform_19(%arg0: i32) -> (i32, i32) {
    %c0_i32 = arith.constant 0 : i32
    %c0_i32_0 = arith.constant 0 : i32
    %c0_i32_1 = arith.constant 0 : i32
    return %c0_i32, %c0_i32_0 : i32, i32
  }
  func.func @transform_20(%arg0: i32) -> (i32, i32) {
    %c0_i32 = arith.constant 0 : i32
    %c0_i32_0 = arith.constant 0 : i32
    %c0_i32_1 = arith.constant 0 : i32
    return %c0_i32, %c0_i32_0 : i32, i32
  }
  func.func @transform_21(%arg0: i32) -> (i32, i32) {
    %c0_i32 = arith.constant 0 : i32
    %c0_i32_0 = arith.constant 0 : i32
    %c0_i32_1 = arith.constant 0 : i32
    return %c0_i32, %c0_i32_0 : i32, i32
  }
  func.func @transform_22(%arg0: i32) -> (i32, i32, i32) {
    %c0_i32 = arith.constant 0 : i32
    %c0_i32_0 = arith.constant 0 : i32
    %c0_i32_1 = arith.constant 0 : i32
    return %arg0, %c0_i32, %c0_i32_0 : i32, i32, i32
  }
}

module attributes {stable_mosaic.version = 11 : i64} {
  func.func @_decoder_block_kernel(%arg0: i32, %arg1: memref<1x8x32xf32, #tpu.memory_space<vmem>>, %arg2: memref<1x8x32xf32, #tpu.memory_space<vmem>>, %arg3: memref<32x96xbf16, #tpu.memory_space<vmem>>, %arg4: memref<1x96xf32, #tpu.memory_space<vmem>>, %arg5: memref<32x32xbf16, #tpu.memory_space<vmem>>, %arg6: memref<1x32xf32, #tpu.memory_space<vmem>>, %arg7: memref<1x32xf32, #tpu.memory_space<vmem>>, %arg8: memref<1x32xf32, #tpu.memory_space<vmem>>, %arg9: memref<32x32xbf16, #tpu.memory_space<vmem>>, %arg10: memref<1x32xf32, #tpu.memory_space<vmem>>, %arg11: memref<32x64xbf16, #tpu.memory_space<vmem>>, %arg12: memref<1x64xf32, #tpu.memory_space<vmem>>, %arg13: memref<32x32xbf16, #tpu.memory_space<vmem>>, %arg14: memref<1x32xf32, #tpu.memory_space<vmem>>, %arg15: memref<1x32xf32, #tpu.memory_space<vmem>>, %arg16: memref<1x32xf32, #tpu.memory_space<vmem>>, %arg17: memref<32x128xbf16, #tpu.memory_space<vmem>>, %arg18: memref<1x128xf32, #tpu.memory_space<vmem>>, %arg19: memref<128x32xbf16, #tpu.memory_space<vmem>>, %arg20: memref<1x32xf32, #tpu.memory_space<vmem>>, %arg21: memref<1x32xf32, #tpu.memory_space<vmem>>, %arg22: memref<1x32xf32, #tpu.memory_space<vmem>>, %arg23: memref<1x8x32xf32, #tpu.memory_space<vmem>>) attributes {dimension_semantics = [#tpu.dimension_semantics<parallel>], iteration_bounds = array<i64: 2>, scalar_prefetch = 0 : i64, scratch_operands = 0 : i64, tpu.core_type = #tpu.core_type<tc>, window_params = [{transform_indices = @transform_0, window_bounds = array<i64: 1, 8, 32>}, {transform_indices = @transform_1, window_bounds = array<i64: 1, 8, 32>}, {pipeline_mode = #tpu.pipeline_mode<synchronous>, transform_indices = @transform_2, window_bounds = array<i64: 32, 96>}, {pipeline_mode = #tpu.pipeline_mode<synchronous>, transform_indices = @transform_3, window_bounds = array<i64: 1, 96>}, {pipeline_mode = #tpu.pipeline_mode<synchronous>, transform_indices = @transform_4, window_bounds = array<i64: 32, 32>}, {pipeline_mode = #tpu.pipeline_mode<synchronous>, transform_indices = @transform_5, window_bounds = array<i64: 1, 32>}, {pipeline_mode = #tpu.pipeline_mode<synchronous>, transform_indices = @transform_6, window_bounds = array<i64: 1, 32>}, {pipeline_mode = #tpu.pipeline_mode<synchronous>, transform_indices = @transform_7, window_bounds = array<i64: 1, 32>}, {pipeline_mode = #tpu.pipeline_mode<synchronous>, transform_indices = @transform_8, window_bounds = array<i64: 32, 32>}, {pipeline_mode = #tpu.pipeline_mode<synchronous>, transform_indices = @transform_9, window_bounds = array<i64: 1, 32>}, {pipeline_mode = #tpu.pipeline_mode<synchronous>, transform_indices = @transform_10, window_bounds = array<i64: 32, 64>}, {pipeline_mode = #tpu.pipeline_mode<synchronous>, transform_indices = @transform_11, window_bounds = array<i64: 1, 64>}, {pipeline_mode = #tpu.pipeline_mode<synchronous>, transform_indices = @transform_12, window_bounds = array<i64: 32, 32>}, {pipeline_mode = #tpu.pipeline_mode<synchronous>, transform_indices = @transform_13, window_bounds = array<i64: 1, 32>}, {pipeline_mode = #tpu.pipeline_mode<synchronous>, transform_indices = @transform_14, window_bounds = array<i64: 1, 32>}, {pipeline_mode = #tpu.pipeline_mode<synchronous>, transform_indices = @transform_15, window_bounds = array<i64: 1, 32>}, {pipeline_mode = #tpu.pipeline_mode<synchronous>, transform_indices = @transform_16, window_bounds = array<i64: 32, 128>}, {pipeline_mode = #tpu.pipeline_mode<synchronous>, transform_indices = @transform_17, window_bounds = array<i64: 1, 128>}, {pipeline_mode = #tpu.pipeline_mode<synchronous>, transform_indices = @transform_18, window_bounds = array<i64: 128, 32>}, {pipeline_mode = #tpu.pipeline_mode<synchronous>, transform_indices = @transform_19, window_bounds = array<i64: 1, 32>}, {pipeline_mode = #tpu.pipeline_mode<synchronous>, transform_indices = @transform_20, window_bounds = array<i64: 1, 32>}, {pipeline_mode = #tpu.pipeline_mode<synchronous>, transform_indices = @transform_21, window_bounds = array<i64: 1, 32>}, {transform_indices = @transform_22, window_bounds = array<i64: 1, 8, 32>}]} {
    %c0 = arith.constant 0 : index
    %c0_0 = arith.constant 0 : index
    %c0_1 = arith.constant 0 : index
    %0 = vector.load %arg1[%c0, %c0_0, %c0_1] : memref<1x8x32xf32, #tpu.memory_space<vmem>>, vector<1x8x32xf32>
    %1 = vector.shape_cast %0 : vector<1x8x32xf32> to vector<8x32xf32>
    %c0_2 = arith.constant 0 : index
    %c0_3 = arith.constant 0 : index
    %c0_4 = arith.constant 0 : index
    %2 = vector.load %arg2[%c0_2, %c0_3, %c0_4] : memref<1x8x32xf32, #tpu.memory_space<vmem>>, vector<1x8x32xf32>
    %3 = vector.shape_cast %2 : vector<1x8x32xf32> to vector<8x32xf32>
    %4 = arith.truncf %1 : vector<8x32xf32> to vector<8x32xbf16>
    %c0_5 = arith.constant 0 : index
    %c0_6 = arith.constant 0 : index
    %5 = vector.load %arg3[%c0_5, %c0_6] : memref<32x96xbf16, #tpu.memory_space<vmem>>, vector<32x96xbf16>
    %cst = arith.constant dense<0.000000e+00> : vector<8x96xf32>
    %6 = tpu.matmul %4, %5, %cst {dimension_numbers = #tpu.dot_dimension_numbers<[1], [0], [0], [1], [0, 0, 1, 1], [], []>} : vector<8x32xbf16>, vector<32x96xbf16>, vector<8x96xf32> -> vector<8x96xf32>
    %c0_7 = arith.constant 0 : index
    %c0_8 = arith.constant 0 : index
    %7 = vector.load %arg4[%c0_7, %c0_8] : memref<1x96xf32, #tpu.memory_space<vmem>>, vector<1x96xf32>
    %8 = vector.broadcast %7 : vector<1x96xf32> to vector<8x96xf32>
    %9 = arith.addf %6, %8 : vector<8x96xf32>
    %10 = vector.extract_strided_slice %9 {offsets = [0, 0], sizes = [8, 32], strides = [1, 1]} : vector<8x96xf32> to vector<8x32xf32>
    %11 = vector.extract_strided_slice %9 {offsets = [0, 32], sizes = [8, 32], strides = [1, 1]} : vector<8x96xf32> to vector<8x32xf32>
    %12 = vector.extract_strided_slice %9 {offsets = [0, 64], sizes = [8, 32], strides = [1, 1]} : vector<8x96xf32> to vector<8x32xf32>
    %13 = tpu.iota {dimensions = array<i32: 0>} : vector<8x8xi32>
    %14 = tpu.iota {dimensions = array<i32: 1>} : vector<8x8xi32>
    %15 = arith.cmpi sgt, %14, %13 : vector<8x8xi32>
    %cst_9 = arith.constant -1.000000e+30 : f32
    %cst_10 = arith.constant 0.000000e+00 : f32
    %16 = vector.broadcast %cst_9 : f32 to vector<8x8xf32>
    %17 = vector.broadcast %cst_10 : f32 to vector<8x8xf32>
    %18 = arith.select %15, %16, %17 : vector<8x8xi1>, vector<8x8xf32>
    %19 = vector.extract_strided_slice %10 {offsets = [0, 0], sizes = [8, 8], strides = [1, 1]} : vector<8x32xf32> to vector<8x8xf32>
    %20 = arith.truncf %19 : vector<8x8xf32> to vector<8x8xbf16>
    %21 = vector.extract_strided_slice %11 {offsets = [0, 0], sizes = [8, 8], strides = [1, 1]} : vector<8x32xf32> to vector<8x8xf32>
    %22 = arith.truncf %21 : vector<8x8xf32> to vector<8x8xbf16>
    %23 = vector.extract_strided_slice %12 {offsets = [0, 0], sizes = [8, 8], strides = [1, 1]} : vector<8x32xf32> to vector<8x8xf32>
    %24 = arith.truncf %23 : vector<8x8xf32> to vector<8x8xbf16>
    "tpu.trace_start"() <{level = 10 : i32, message = "qd,kd->qk"}> : () -> ()
    %cst_11 = arith.constant dense<0.000000e+00> : vector<8x8xf32>
    %25 = tpu.matmul %20, %22, %cst_11 {dimension_numbers = #tpu.dot_dimension_numbers<[1], [1], [0], [0], [0, 0, 1, 0], [], []>} : vector<8x8xbf16>, vector<8x8xbf16>, vector<8x8xf32> -> vector<8x8xf32>
    "tpu.trace_stop"() : () -> ()
    %26 = arith.addf %25, %18 : vector<8x8xf32>
    %cst_12 = arith.constant dense<0xFF800000> : vector<8xf32>
    %27 = vector.multi_reduction <maximumf>, %26, %cst_12 [1] : vector<8x8xf32> to vector<8xf32>
    %28 = vector.shape_cast %27 : vector<8xf32> to vector<8x1xf32>
    %29 = vector.broadcast %28 : vector<8x1xf32> to vector<8x8xf32>
    %30 = arith.subf %26, %29 : vector<8x8xf32>
    %31 = math.exp %30 : vector<8x8xf32>
    %cst_13 = arith.constant dense<0.000000e+00> : vector<8xf32>
    %32 = vector.multi_reduction <add>, %31, %cst_13 [1] : vector<8x8xf32> to vector<8xf32>
    %33 = vector.shape_cast %32 : vector<8xf32> to vector<8x1xf32>
    %34 = tpu.reciprocal %33 {approx = true} : vector<8x1xf32> -> vector<8x1xf32>
    %35 = vector.broadcast %34 : vector<8x1xf32> to vector<8x8xf32>
    %36 = arith.mulf %31, %35 : vector<8x8xf32>
    %37 = arith.truncf %36 : vector<8x8xf32> to vector<8x8xbf16>
    %cst_14 = arith.constant dense<0.000000e+00> : vector<8x8xf32>
    %38 = tpu.matmul %37, %24, %cst_14 {dimension_numbers = #tpu.dot_dimension_numbers<[1], [0], [0], [1], [0, 0, 1, 1], [], []>} : vector<8x8xbf16>, vector<8x8xbf16>, vector<8x8xf32> -> vector<8x8xf32>
    %39 = vector.extract_strided_slice %10 {offsets = [0, 8], sizes = [8, 8], strides = [1, 1]} : vector<8x32xf32> to vector<8x8xf32>
    %40 = arith.truncf %39 : vector<8x8xf32> to vector<8x8xbf16>
    %41 = vector.extract_strided_slice %11 {offsets = [0, 8], sizes = [8, 8], strides = [1, 1]} : vector<8x32xf32> to vector<8x8xf32>
    %42 = arith.truncf %41 : vector<8x8xf32> to vector<8x8xbf16>
    %43 = vector.extract_strided_slice %12 {offsets = [0, 8], sizes = [8, 8], strides = [1, 1]} : vector<8x32xf32> to vector<8x8xf32>
    %44 = arith.truncf %43 : vector<8x8xf32> to vector<8x8xbf16>
    "tpu.trace_start"() <{level = 10 : i32, message = "qd,kd->qk"}> : () -> ()
    %cst_15 = arith.constant dense<0.000000e+00> : vector<8x8xf32>
    %45 = tpu.matmul %40, %42, %cst_15 {dimension_numbers = #tpu.dot_dimension_numbers<[1], [1], [0], [0], [0, 0, 1, 0], [], []>} : vector<8x8xbf16>, vector<8x8xbf16>, vector<8x8xf32> -> vector<8x8xf32>
    "tpu.trace_stop"() : () -> ()
    %46 = arith.addf %45, %18 : vector<8x8xf32>
    %cst_16 = arith.constant dense<0xFF800000> : vector<8xf32>
    %47 = vector.multi_reduction <maximumf>, %46, %cst_16 [1] : vector<8x8xf32> to vector<8xf32>
    %48 = vector.shape_cast %47 : vector<8xf32> to vector<8x1xf32>
    %49 = vector.broadcast %48 : vector<8x1xf32> to vector<8x8xf32>
    %50 = arith.subf %46, %49 : vector<8x8xf32>
    %51 = math.exp %50 : vector<8x8xf32>
    %cst_17 = arith.constant dense<0.000000e+00> : vector<8xf32>
    %52 = vector.multi_reduction <add>, %51, %cst_17 [1] : vector<8x8xf32> to vector<8xf32>
    %53 = vector.shape_cast %52 : vector<8xf32> to vector<8x1xf32>
    %54 = tpu.reciprocal %53 {approx = true} : vector<8x1xf32> -> vector<8x1xf32>
    %55 = vector.broadcast %54 : vector<8x1xf32> to vector<8x8xf32>
    %56 = arith.mulf %51, %55 : vector<8x8xf32>
    %57 = arith.truncf %56 : vector<8x8xf32> to vector<8x8xbf16>
    %cst_18 = arith.constant dense<0.000000e+00> : vector<8x8xf32>
    %58 = tpu.matmul %57, %44, %cst_18 {dimension_numbers = #tpu.dot_dimension_numbers<[1], [0], [0], [1], [0, 0, 1, 1], [], []>} : vector<8x8xbf16>, vector<8x8xbf16>, vector<8x8xf32> -> vector<8x8xf32>
    %59 = vector.extract_strided_slice %10 {offsets = [0, 16], sizes = [8, 8], strides = [1, 1]} : vector<8x32xf32> to vector<8x8xf32>
    %60 = arith.truncf %59 : vector<8x8xf32> to vector<8x8xbf16>
    %61 = vector.extract_strided_slice %11 {offsets = [0, 16], sizes = [8, 8], strides = [1, 1]} : vector<8x32xf32> to vector<8x8xf32>
    %62 = arith.truncf %61 : vector<8x8xf32> to vector<8x8xbf16>
    %63 = vector.extract_strided_slice %12 {offsets = [0, 16], sizes = [8, 8], strides = [1, 1]} : vector<8x32xf32> to vector<8x8xf32>
    %64 = arith.truncf %63 : vector<8x8xf32> to vector<8x8xbf16>
    "tpu.trace_start"() <{level = 10 : i32, message = "qd,kd->qk"}> : () -> ()
    %cst_19 = arith.constant dense<0.000000e+00> : vector<8x8xf32>
    %65 = tpu.matmul %60, %62, %cst_19 {dimension_numbers = #tpu.dot_dimension_numbers<[1], [1], [0], [0], [0, 0, 1, 0], [], []>} : vector<8x8xbf16>, vector<8x8xbf16>, vector<8x8xf32> -> vector<8x8xf32>
    "tpu.trace_stop"() : () -> ()
    %66 = arith.addf %65, %18 : vector<8x8xf32>
    %cst_20 = arith.constant dense<0xFF800000> : vector<8xf32>
    %67 = vector.multi_reduction <maximumf>, %66, %cst_20 [1] : vector<8x8xf32> to vector<8xf32>
    %68 = vector.shape_cast %67 : vector<8xf32> to vector<8x1xf32>
    %69 = vector.broadcast %68 : vector<8x1xf32> to vector<8x8xf32>
    %70 = arith.subf %66, %69 : vector<8x8xf32>
    %71 = math.exp %70 : vector<8x8xf32>
    %cst_21 = arith.constant dense<0.000000e+00> : vector<8xf32>
    %72 = vector.multi_reduction <add>, %71, %cst_21 [1] : vector<8x8xf32> to vector<8xf32>
    %73 = vector.shape_cast %72 : vector<8xf32> to vector<8x1xf32>
    %74 = tpu.reciprocal %73 {approx = true} : vector<8x1xf32> -> vector<8x1xf32>
    %75 = vector.broadcast %74 : vector<8x1xf32> to vector<8x8xf32>
    %76 = arith.mulf %71, %75 : vector<8x8xf32>
    %77 = arith.truncf %76 : vector<8x8xf32> to vector<8x8xbf16>
    %cst_22 = arith.constant dense<0.000000e+00> : vector<8x8xf32>
    %78 = tpu.matmul %77, %64, %cst_22 {dimension_numbers = #tpu.dot_dimension_numbers<[1], [0], [0], [1], [0, 0, 1, 1], [], []>} : vector<8x8xbf16>, vector<8x8xbf16>, vector<8x8xf32> -> vector<8x8xf32>
    %79 = vector.extract_strided_slice %10 {offsets = [0, 24], sizes = [8, 8], strides = [1, 1]} : vector<8x32xf32> to vector<8x8xf32>
    %80 = arith.truncf %79 : vector<8x8xf32> to vector<8x8xbf16>
    %81 = vector.extract_strided_slice %11 {offsets = [0, 24], sizes = [8, 8], strides = [1, 1]} : vector<8x32xf32> to vector<8x8xf32>
    %82 = arith.truncf %81 : vector<8x8xf32> to vector<8x8xbf16>
    %83 = vector.extract_strided_slice %12 {offsets = [0, 24], sizes = [8, 8], strides = [1, 1]} : vector<8x32xf32> to vector<8x8xf32>
    %84 = arith.truncf %83 : vector<8x8xf32> to vector<8x8xbf16>
    "tpu.trace_start"() <{level = 10 : i32, message = "qd,kd->qk"}> : () -> ()
    %cst_23 = arith.constant dense<0.000000e+00> : vector<8x8xf32>
    %85 = tpu.matmul %80, %82, %cst_23 {dimension_numbers = #tpu.dot_dimension_numbers<[1], [1], [0], [0], [0, 0, 1, 0], [], []>} : vector<8x8xbf16>, vector<8x8xbf16>, vector<8x8xf32> -> vector<8x8xf32>
    "tpu.trace_stop"() : () -> ()
    %86 = arith.addf %85, %18 : vector<8x8xf32>
    %cst_24 = arith.constant dense<0xFF800000> : vector<8xf32>
    %87 = vector.multi_reduction <maximumf>, %86, %cst_24 [1] : vector<8x8xf32> to vector<8xf32>
    %88 = vector.shape_cast %87 : vector<8xf32> to vector<8x1xf32>
    %89 = vector.broadcast %88 : vector<8x1xf32> to vector<8x8xf32>
    %90 = arith.subf %86, %89 : vector<8x8xf32>
    %91 = math.exp %90 : vector<8x8xf32>
    %cst_25 = arith.constant dense<0.000000e+00> : vector<8xf32>
    %92 = vector.multi_reduction <add>, %91, %cst_25 [1] : vector<8x8xf32> to vector<8xf32>
    %93 = vector.shape_cast %92 : vector<8xf32> to vector<8x1xf32>
    %94 = tpu.reciprocal %93 {approx = true} : vector<8x1xf32> -> vector<8x1xf32>
    %95 = vector.broadcast %94 : vector<8x1xf32> to vector<8x8xf32>
    %96 = arith.mulf %91, %95 : vector<8x8xf32>
    %97 = arith.truncf %96 : vector<8x8xf32> to vector<8x8xbf16>
    %cst_26 = arith.constant dense<0.000000e+00> : vector<8x8xf32>
    %98 = tpu.matmul %97, %84, %cst_26 {dimension_numbers = #tpu.dot_dimension_numbers<[1], [0], [0], [1], [0, 0, 1, 1], [], []>} : vector<8x8xbf16>, vector<8x8xbf16>, vector<8x8xf32> -> vector<8x8xf32>
    %99 = tpu.concatenate %38, %58, %78, %98 in 1 : vector<8x8xf32>, vector<8x8xf32>, vector<8x8xf32>, vector<8x8xf32> -> vector<8x32xf32>
    %100 = arith.truncf %99 : vector<8x32xf32> to vector<8x32xbf16>
    %c0_27 = arith.constant 0 : index
    %c0_28 = arith.constant 0 : index
    %101 = vector.load %arg5[%c0_27, %c0_28] : memref<32x32xbf16, #tpu.memory_space<vmem>>, vector<32x32xbf16>
    %cst_29 = arith.constant dense<0.000000e+00> : vector<8x32xf32>
    %102 = tpu.matmul %100, %101, %cst_29 {dimension_numbers = #tpu.dot_dimension_numbers<[1], [0], [0], [1], [0, 0, 1, 1], [], []>} : vector<8x32xbf16>, vector<32x32xbf16>, vector<8x32xf32> -> vector<8x32xf32>
    %c0_30 = arith.constant 0 : index
    %c0_31 = arith.constant 0 : index
    %103 = vector.load %arg6[%c0_30, %c0_31] : memref<1x32xf32, #tpu.memory_space<vmem>>, vector<1x32xf32>
    %104 = vector.broadcast %103 : vector<1x32xf32> to vector<8x32xf32>
    %105 = arith.addf %102, %104 : vector<8x32xf32>
    %106 = arith.addf %1, %105 : vector<8x32xf32>
    %c0_32 = arith.constant 0 : index
    %c0_33 = arith.constant 0 : index
    %107 = vector.load %arg7[%c0_32, %c0_33] : memref<1x32xf32, #tpu.memory_space<vmem>>, vector<1x32xf32>
    %c0_34 = arith.constant 0 : index
    %c0_35 = arith.constant 0 : index
    %108 = vector.load %arg8[%c0_34, %c0_35] : memref<1x32xf32, #tpu.memory_space<vmem>>, vector<1x32xf32>
    %cst_36 = arith.constant dense<0.000000e+00> : vector<8xf32>
    %109 = vector.multi_reduction <add>, %106, %cst_36 [1] : vector<8x32xf32> to vector<8xf32>
    %110 = vector.shape_cast %109 : vector<8xf32> to vector<8x1xf32>
    %cst_37 = arith.constant 3.200000e+01 : f32
    %111 = vector.broadcast %cst_37 : f32 to vector<8x1xf32>
    %112 = arith.divf %110, %111 : vector<8x1xf32>
    %113 = vector.broadcast %112 : vector<8x1xf32> to vector<8x32xf32>
    %114 = arith.subf %106, %113 : vector<8x32xf32>
    %115 = arith.mulf %114, %114 : vector<8x32xf32>
    %cst_38 = arith.constant dense<0.000000e+00> : vector<8xf32>
    %116 = vector.multi_reduction <add>, %115, %cst_38 [1] : vector<8x32xf32> to vector<8xf32>
    %117 = vector.shape_cast %116 : vector<8xf32> to vector<8x1xf32>
    %cst_39 = arith.constant 3.200000e+01 : f32
    %118 = vector.broadcast %cst_39 : f32 to vector<8x1xf32>
    %119 = arith.divf %117, %118 : vector<8x1xf32>
    %cst_40 = arith.constant 9.99999974E-6 : f32
    %120 = vector.broadcast %cst_40 : f32 to vector<8x1xf32>
    %121 = arith.addf %119, %120 : vector<8x1xf32>
    %122 = math.rsqrt %121 : vector<8x1xf32>
    %123 = vector.broadcast %122 : vector<8x1xf32> to vector<8x32xf32>
    %124 = arith.mulf %114, %123 : vector<8x32xf32>
    %125 = vector.broadcast %107 : vector<1x32xf32> to vector<8x32xf32>
    %126 = arith.mulf %124, %125 : vector<8x32xf32>
    %127 = vector.broadcast %108 : vector<1x32xf32> to vector<8x32xf32>
    %128 = arith.addf %126, %127 : vector<8x32xf32>
    %129 = arith.truncf %128 : vector<8x32xf32> to vector<8x32xbf16>
    %c0_41 = arith.constant 0 : index
    %c0_42 = arith.constant 0 : index
    %130 = vector.load %arg9[%c0_41, %c0_42] : memref<32x32xbf16, #tpu.memory_space<vmem>>, vector<32x32xbf16>
    %cst_43 = arith.constant dense<0.000000e+00> : vector<8x32xf32>
    %131 = tpu.matmul %129, %130, %cst_43 {dimension_numbers = #tpu.dot_dimension_numbers<[1], [0], [0], [1], [0, 0, 1, 1], [], []>} : vector<8x32xbf16>, vector<32x32xbf16>, vector<8x32xf32> -> vector<8x32xf32>
    %c0_44 = arith.constant 0 : index
    %c0_45 = arith.constant 0 : index
    %132 = vector.load %arg10[%c0_44, %c0_45] : memref<1x32xf32, #tpu.memory_space<vmem>>, vector<1x32xf32>
    %133 = vector.broadcast %132 : vector<1x32xf32> to vector<8x32xf32>
    %134 = arith.addf %131, %133 : vector<8x32xf32>
    %135 = arith.truncf %3 : vector<8x32xf32> to vector<8x32xbf16>
    %c0_46 = arith.constant 0 : index
    %c0_47 = arith.constant 0 : index
    %136 = vector.load %arg11[%c0_46, %c0_47] : memref<32x64xbf16, #tpu.memory_space<vmem>>, vector<32x64xbf16>
    %cst_48 = arith.constant dense<0.000000e+00> : vector<8x64xf32>
    %137 = tpu.matmul %135, %136, %cst_48 {dimension_numbers = #tpu.dot_dimension_numbers<[1], [0], [0], [1], [0, 0, 1, 1], [], []>} : vector<8x32xbf16>, vector<32x64xbf16>, vector<8x64xf32> -> vector<8x64xf32>
    %c0_49 = arith.constant 0 : index
    %c0_50 = arith.constant 0 : index
    %138 = vector.load %arg12[%c0_49, %c0_50] : memref<1x64xf32, #tpu.memory_space<vmem>>, vector<1x64xf32>
    %139 = vector.broadcast %138 : vector<1x64xf32> to vector<8x64xf32>
    %140 = arith.addf %137, %139 : vector<8x64xf32>
    %141 = vector.extract_strided_slice %140 {offsets = [0, 0], sizes = [8, 32], strides = [1, 1]} : vector<8x64xf32> to vector<8x32xf32>
    %142 = vector.extract_strided_slice %140 {offsets = [0, 32], sizes = [8, 32], strides = [1, 1]} : vector<8x64xf32> to vector<8x32xf32>
    %143 = vector.extract_strided_slice %134 {offsets = [0, 0], sizes = [8, 8], strides = [1, 1]} : vector<8x32xf32> to vector<8x8xf32>
    %144 = arith.truncf %143 : vector<8x8xf32> to vector<8x8xbf16>
    %145 = vector.extract_strided_slice %141 {offsets = [0, 0], sizes = [8, 8], strides = [1, 1]} : vector<8x32xf32> to vector<8x8xf32>
    %146 = arith.truncf %145 : vector<8x8xf32> to vector<8x8xbf16>
    %147 = vector.extract_strided_slice %142 {offsets = [0, 0], sizes = [8, 8], strides = [1, 1]} : vector<8x32xf32> to vector<8x8xf32>
    %148 = arith.truncf %147 : vector<8x8xf32> to vector<8x8xbf16>
    "tpu.trace_start"() <{level = 10 : i32, message = "qd,kd->qk"}> : () -> ()
    %cst_51 = arith.constant dense<0.000000e+00> : vector<8x8xf32>
    %149 = tpu.matmul %144, %146, %cst_51 {dimension_numbers = #tpu.dot_dimension_numbers<[1], [1], [0], [0], [0, 0, 1, 0], [], []>} : vector<8x8xbf16>, vector<8x8xbf16>, vector<8x8xf32> -> vector<8x8xf32>
    "tpu.trace_stop"() : () -> ()
    %cst_52 = arith.constant dense<0xFF800000> : vector<8xf32>
    %150 = vector.multi_reduction <maximumf>, %149, %cst_52 [1] : vector<8x8xf32> to vector<8xf32>
    %151 = vector.shape_cast %150 : vector<8xf32> to vector<8x1xf32>
    %152 = vector.broadcast %151 : vector<8x1xf32> to vector<8x8xf32>
    %153 = arith.subf %149, %152 : vector<8x8xf32>
    %154 = math.exp %153 : vector<8x8xf32>
    %cst_53 = arith.constant dense<0.000000e+00> : vector<8xf32>
    %155 = vector.multi_reduction <add>, %154, %cst_53 [1] : vector<8x8xf32> to vector<8xf32>
    %156 = vector.shape_cast %155 : vector<8xf32> to vector<8x1xf32>
    %157 = tpu.reciprocal %156 {approx = true} : vector<8x1xf32> -> vector<8x1xf32>
    %158 = vector.broadcast %157 : vector<8x1xf32> to vector<8x8xf32>
    %159 = arith.mulf %154, %158 : vector<8x8xf32>
    %160 = arith.truncf %159 : vector<8x8xf32> to vector<8x8xbf16>
    %cst_54 = arith.constant dense<0.000000e+00> : vector<8x8xf32>
    %161 = tpu.matmul %160, %148, %cst_54 {dimension_numbers = #tpu.dot_dimension_numbers<[1], [0], [0], [1], [0, 0, 1, 1], [], []>} : vector<8x8xbf16>, vector<8x8xbf16>, vector<8x8xf32> -> vector<8x8xf32>
    %162 = vector.extract_strided_slice %134 {offsets = [0, 8], sizes = [8, 8], strides = [1, 1]} : vector<8x32xf32> to vector<8x8xf32>
    %163 = arith.truncf %162 : vector<8x8xf32> to vector<8x8xbf16>
    %164 = vector.extract_strided_slice %141 {offsets = [0, 8], sizes = [8, 8], strides = [1, 1]} : vector<8x32xf32> to vector<8x8xf32>
    %165 = arith.truncf %164 : vector<8x8xf32> to vector<8x8xbf16>
    %166 = vector.extract_strided_slice %142 {offsets = [0, 8], sizes = [8, 8], strides = [1, 1]} : vector<8x32xf32> to vector<8x8xf32>
    %167 = arith.truncf %166 : vector<8x8xf32> to vector<8x8xbf16>
    "tpu.trace_start"() <{level = 10 : i32, message = "qd,kd->qk"}> : () -> ()
    %cst_55 = arith.constant dense<0.000000e+00> : vector<8x8xf32>
    %168 = tpu.matmul %163, %165, %cst_55 {dimension_numbers = #tpu.dot_dimension_numbers<[1], [1], [0], [0], [0, 0, 1, 0], [], []>} : vector<8x8xbf16>, vector<8x8xbf16>, vector<8x8xf32> -> vector<8x8xf32>
    "tpu.trace_stop"() : () -> ()
    %cst_56 = arith.constant dense<0xFF800000> : vector<8xf32>
    %169 = vector.multi_reduction <maximumf>, %168, %cst_56 [1] : vector<8x8xf32> to vector<8xf32>
    %170 = vector.shape_cast %169 : vector<8xf32> to vector<8x1xf32>
    %171 = vector.broadcast %170 : vector<8x1xf32> to vector<8x8xf32>
    %172 = arith.subf %168, %171 : vector<8x8xf32>
    %173 = math.exp %172 : vector<8x8xf32>
    %cst_57 = arith.constant dense<0.000000e+00> : vector<8xf32>
    %174 = vector.multi_reduction <add>, %173, %cst_57 [1] : vector<8x8xf32> to vector<8xf32>
    %175 = vector.shape_cast %174 : vector<8xf32> to vector<8x1xf32>
    %176 = tpu.reciprocal %175 {approx = true} : vector<8x1xf32> -> vector<8x1xf32>
    %177 = vector.broadcast %176 : vector<8x1xf32> to vector<8x8xf32>
    %178 = arith.mulf %173, %177 : vector<8x8xf32>
    %179 = arith.truncf %178 : vector<8x8xf32> to vector<8x8xbf16>
    %cst_58 = arith.constant dense<0.000000e+00> : vector<8x8xf32>
    %180 = tpu.matmul %179, %167, %cst_58 {dimension_numbers = #tpu.dot_dimension_numbers<[1], [0], [0], [1], [0, 0, 1, 1], [], []>} : vector<8x8xbf16>, vector<8x8xbf16>, vector<8x8xf32> -> vector<8x8xf32>
    %181 = vector.extract_strided_slice %134 {offsets = [0, 16], sizes = [8, 8], strides = [1, 1]} : vector<8x32xf32> to vector<8x8xf32>
    %182 = arith.truncf %181 : vector<8x8xf32> to vector<8x8xbf16>
    %183 = vector.extract_strided_slice %141 {offsets = [0, 16], sizes = [8, 8], strides = [1, 1]} : vector<8x32xf32> to vector<8x8xf32>
    %184 = arith.truncf %183 : vector<8x8xf32> to vector<8x8xbf16>
    %185 = vector.extract_strided_slice %142 {offsets = [0, 16], sizes = [8, 8], strides = [1, 1]} : vector<8x32xf32> to vector<8x8xf32>
    %186 = arith.truncf %185 : vector<8x8xf32> to vector<8x8xbf16>
    "tpu.trace_start"() <{level = 10 : i32, message = "qd,kd->qk"}> : () -> ()
    %cst_59 = arith.constant dense<0.000000e+00> : vector<8x8xf32>
    %187 = tpu.matmul %182, %184, %cst_59 {dimension_numbers = #tpu.dot_dimension_numbers<[1], [1], [0], [0], [0, 0, 1, 0], [], []>} : vector<8x8xbf16>, vector<8x8xbf16>, vector<8x8xf32> -> vector<8x8xf32>
    "tpu.trace_stop"() : () -> ()
    %cst_60 = arith.constant dense<0xFF800000> : vector<8xf32>
    %188 = vector.multi_reduction <maximumf>, %187, %cst_60 [1] : vector<8x8xf32> to vector<8xf32>
    %189 = vector.shape_cast %188 : vector<8xf32> to vector<8x1xf32>
    %190 = vector.broadcast %189 : vector<8x1xf32> to vector<8x8xf32>
    %191 = arith.subf %187, %190 : vector<8x8xf32>
    %192 = math.exp %191 : vector<8x8xf32>
    %cst_61 = arith.constant dense<0.000000e+00> : vector<8xf32>
    %193 = vector.multi_reduction <add>, %192, %cst_61 [1] : vector<8x8xf32> to vector<8xf32>
    %194 = vector.shape_cast %193 : vector<8xf32> to vector<8x1xf32>
    %195 = tpu.reciprocal %194 {approx = true} : vector<8x1xf32> -> vector<8x1xf32>
    %196 = vector.broadcast %195 : vector<8x1xf32> to vector<8x8xf32>
    %197 = arith.mulf %192, %196 : vector<8x8xf32>
    %198 = arith.truncf %197 : vector<8x8xf32> to vector<8x8xbf16>
    %cst_62 = arith.constant dense<0.000000e+00> : vector<8x8xf32>
    %199 = tpu.matmul %198, %186, %cst_62 {dimension_numbers = #tpu.dot_dimension_numbers<[1], [0], [0], [1], [0, 0, 1, 1], [], []>} : vector<8x8xbf16>, vector<8x8xbf16>, vector<8x8xf32> -> vector<8x8xf32>
    %200 = vector.extract_strided_slice %134 {offsets = [0, 24], sizes = [8, 8], strides = [1, 1]} : vector<8x32xf32> to vector<8x8xf32>
    %201 = arith.truncf %200 : vector<8x8xf32> to vector<8x8xbf16>
    %202 = vector.extract_strided_slice %141 {offsets = [0, 24], sizes = [8, 8], strides = [1, 1]} : vector<8x32xf32> to vector<8x8xf32>
    %203 = arith.truncf %202 : vector<8x8xf32> to vector<8x8xbf16>
    %204 = vector.extract_strided_slice %142 {offsets = [0, 24], sizes = [8, 8], strides = [1, 1]} : vector<8x32xf32> to vector<8x8xf32>
    %205 = arith.truncf %204 : vector<8x8xf32> to vector<8x8xbf16>
    "tpu.trace_start"() <{level = 10 : i32, message = "qd,kd->qk"}> : () -> ()
    %cst_63 = arith.constant dense<0.000000e+00> : vector<8x8xf32>
    %206 = tpu.matmul %201, %203, %cst_63 {dimension_numbers = #tpu.dot_dimension_numbers<[1], [1], [0], [0], [0, 0, 1, 0], [], []>} : vector<8x8xbf16>, vector<8x8xbf16>, vector<8x8xf32> -> vector<8x8xf32>
    "tpu.trace_stop"() : () -> ()
    %cst_64 = arith.constant dense<0xFF800000> : vector<8xf32>
    %207 = vector.multi_reduction <maximumf>, %206, %cst_64 [1] : vector<8x8xf32> to vector<8xf32>
    %208 = vector.shape_cast %207 : vector<8xf32> to vector<8x1xf32>
    %209 = vector.broadcast %208 : vector<8x1xf32> to vector<8x8xf32>
    %210 = arith.subf %206, %209 : vector<8x8xf32>
    %211 = math.exp %210 : vector<8x8xf32>
    %cst_65 = arith.constant dense<0.000000e+00> : vector<8xf32>
    %212 = vector.multi_reduction <add>, %211, %cst_65 [1] : vector<8x8xf32> to vector<8xf32>
    %213 = vector.shape_cast %212 : vector<8xf32> to vector<8x1xf32>
    %214 = tpu.reciprocal %213 {approx = true} : vector<8x1xf32> -> vector<8x1xf32>
    %215 = vector.broadcast %214 : vector<8x1xf32> to vector<8x8xf32>
    %216 = arith.mulf %211, %215 : vector<8x8xf32>
    %217 = arith.truncf %216 : vector<8x8xf32> to vector<8x8xbf16>
    %cst_66 = arith.constant dense<0.000000e+00> : vector<8x8xf32>
    %218 = tpu.matmul %217, %205, %cst_66 {dimension_numbers = #tpu.dot_dimension_numbers<[1], [0], [0], [1], [0, 0, 1, 1], [], []>} : vector<8x8xbf16>, vector<8x8xbf16>, vector<8x8xf32> -> vector<8x8xf32>
    %219 = tpu.concatenate %161, %180, %199, %218 in 1 : vector<8x8xf32>, vector<8x8xf32>, vector<8x8xf32>, vector<8x8xf32> -> vector<8x32xf32>
    %220 = arith.truncf %219 : vector<8x32xf32> to vector<8x32xbf16>
    %c0_67 = arith.constant 0 : index
    %c0_68 = arith.constant 0 : index
    %221 = vector.load %arg13[%c0_67, %c0_68] : memref<32x32xbf16, #tpu.memory_space<vmem>>, vector<32x32xbf16>
    %cst_69 = arith.constant dense<0.000000e+00> : vector<8x32xf32>
    %222 = tpu.matmul %220, %221, %cst_69 {dimension_numbers = #tpu.dot_dimension_numbers<[1], [0], [0], [1], [0, 0, 1, 1], [], []>} : vector<8x32xbf16>, vector<32x32xbf16>, vector<8x32xf32> -> vector<8x32xf32>
    %c0_70 = arith.constant 0 : index
    %c0_71 = arith.constant 0 : index
    %223 = vector.load %arg14[%c0_70, %c0_71] : memref<1x32xf32, #tpu.memory_space<vmem>>, vector<1x32xf32>
    %224 = vector.broadcast %223 : vector<1x32xf32> to vector<8x32xf32>
    %225 = arith.addf %222, %224 : vector<8x32xf32>
    %226 = arith.addf %128, %225 : vector<8x32xf32>
    %c0_72 = arith.constant 0 : index
    %c0_73 = arith.constant 0 : index
    %227 = vector.load %arg15[%c0_72, %c0_73] : memref<1x32xf32, #tpu.memory_space<vmem>>, vector<1x32xf32>
    %c0_74 = arith.constant 0 : index
    %c0_75 = arith.constant 0 : index
    %228 = vector.load %arg16[%c0_74, %c0_75] : memref<1x32xf32, #tpu.memory_space<vmem>>, vector<1x32xf32>
    %cst_76 = arith.constant dense<0.000000e+00> : vector<8xf32>
    %229 = vector.multi_reduction <add>, %226, %cst_76 [1] : vector<8x32xf32> to vector<8xf32>
    %230 = vector.shape_cast %229 : vector<8xf32> to vector<8x1xf32>
    %cst_77 = arith.constant 3.200000e+01 : f32
    %231 = vector.broadcast %cst_77 : f32 to vector<8x1xf32>
    %232 = arith.divf %230, %231 : vector<8x1xf32>
    %233 = vector.broadcast %232 : vector<8x1xf32> to vector<8x32xf32>
    %234 = arith.subf %226, %233 : vector<8x32xf32>
    %235 = arith.mulf %234, %234 : vector<8x32xf32>
    %cst_78 = arith.constant dense<0.000000e+00> : vector<8xf32>
    %236 = vector.multi_reduction <add>, %235, %cst_78 [1] : vector<8x32xf32> to vector<8xf32>
    %237 = vector.shape_cast %236 : vector<8xf32> to vector<8x1xf32>
    %cst_79 = arith.constant 3.200000e+01 : f32
    %238 = vector.broadcast %cst_79 : f32 to vector<8x1xf32>
    %239 = arith.divf %237, %238 : vector<8x1xf32>
    %cst_80 = arith.constant 9.99999974E-6 : f32
    %240 = vector.broadcast %cst_80 : f32 to vector<8x1xf32>
    %241 = arith.addf %239, %240 : vector<8x1xf32>
    %242 = math.rsqrt %241 : vector<8x1xf32>
    %243 = vector.broadcast %242 : vector<8x1xf32> to vector<8x32xf32>
    %244 = arith.mulf %234, %243 : vector<8x32xf32>
    %245 = vector.broadcast %227 : vector<1x32xf32> to vector<8x32xf32>
    %246 = arith.mulf %244, %245 : vector<8x32xf32>
    %247 = vector.broadcast %228 : vector<1x32xf32> to vector<8x32xf32>
    %248 = arith.addf %246, %247 : vector<8x32xf32>
    %249 = arith.truncf %248 : vector<8x32xf32> to vector<8x32xbf16>
    %c0_81 = arith.constant 0 : index
    %c0_82 = arith.constant 0 : index
    %250 = vector.load %arg17[%c0_81, %c0_82] : memref<32x128xbf16, #tpu.memory_space<vmem>>, vector<32x128xbf16>
    %cst_83 = arith.constant dense<0.000000e+00> : vector<8x128xf32>
    %251 = tpu.matmul %249, %250, %cst_83 {dimension_numbers = #tpu.dot_dimension_numbers<[1], [0], [0], [1], [0, 0, 1, 1], [], []>} : vector<8x32xbf16>, vector<32x128xbf16>, vector<8x128xf32> -> vector<8x128xf32>
    %c0_84 = arith.constant 0 : index
    %c0_85 = arith.constant 0 : index
    %252 = vector.load %arg18[%c0_84, %c0_85] : memref<1x128xf32, #tpu.memory_space<vmem>>, vector<1x128xf32>
    %253 = vector.broadcast %252 : vector<1x128xf32> to vector<8x128xf32>
    %254 = arith.addf %251, %253 : vector<8x128xf32>
    %cst_86 = arith.constant 0.000000e+00 : f32
    %255 = vector.broadcast %cst_86 : f32 to vector<8x128xf32>
    %256 = arith.maximumf %254, %255 : vector<8x128xf32>
    %257 = arith.truncf %256 : vector<8x128xf32> to vector<8x128xbf16>
    %c0_87 = arith.constant 0 : index
    %c0_88 = arith.constant 0 : index
    %258 = vector.load %arg19[%c0_87, %c0_88] : memref<128x32xbf16, #tpu.memory_space<vmem>>, vector<128x32xbf16>
    %cst_89 = arith.constant dense<0.000000e+00> : vector<8x32xf32>
    %259 = tpu.matmul %257, %258, %cst_89 {dimension_numbers = #tpu.dot_dimension_numbers<[1], [0], [0], [1], [0, 0, 1, 1], [], []>} : vector<8x128xbf16>, vector<128x32xbf16>, vector<8x32xf32> -> vector<8x32xf32>
    %c0_90 = arith.constant 0 : index
    %c0_91 = arith.constant 0 : index
    %260 = vector.load %arg20[%c0_90, %c0_91] : memref<1x32xf32, #tpu.memory_space<vmem>>, vector<1x32xf32>
    %261 = vector.broadcast %260 : vector<1x32xf32> to vector<8x32xf32>
    %262 = arith.addf %259, %261 : vector<8x32xf32>
    %263 = arith.addf %248, %262 : vector<8x32xf32>
    %c0_92 = arith.constant 0 : index
    %c0_93 = arith.constant 0 : index
    %264 = vector.load %arg21[%c0_92, %c0_93] : memref<1x32xf32, #tpu.memory_space<vmem>>, vector<1x32xf32>
    %c0_94 = arith.constant 0 : index
    %c0_95 = arith.constant 0 : index
    %265 = vector.load %arg22[%c0_94, %c0_95] : memref<1x32xf32, #tpu.memory_space<vmem>>, vector<1x32xf32>
    %cst_96 = arith.constant dense<0.000000e+00> : vector<8xf32>
    %266 = vector.multi_reduction <add>, %263, %cst_96 [1] : vector<8x32xf32> to vector<8xf32>
    %267 = vector.shape_cast %266 : vector<8xf32> to vector<8x1xf32>
    %cst_97 = arith.constant 3.200000e+01 : f32
    %268 = vector.broadcast %cst_97 : f32 to vector<8x1xf32>
    %269 = arith.divf %267, %268 : vector<8x1xf32>
    %270 = vector.broadcast %269 : vector<8x1xf32> to vector<8x32xf32>
    %271 = arith.subf %263, %270 : vector<8x32xf32>
    %272 = arith.mulf %271, %271 : vector<8x32xf32>
    %cst_98 = arith.constant dense<0.000000e+00> : vector<8xf32>
    %273 = vector.multi_reduction <add>, %272, %cst_98 [1] : vector<8x32xf32> to vector<8xf32>
    %274 = vector.shape_cast %273 : vector<8xf32> to vector<8x1xf32>
    %cst_99 = arith.constant 3.200000e+01 : f32
    %275 = vector.broadcast %cst_99 : f32 to vector<8x1xf32>
    %276 = arith.divf %274, %275 : vector<8x1xf32>
    %cst_100 = arith.constant 9.99999974E-6 : f32
    %277 = vector.broadcast %cst_100 : f32 to vector<8x1xf32>
    %278 = arith.addf %276, %277 : vector<8x1xf32>
    %279 = math.rsqrt %278 : vector<8x1xf32>
    %280 = vector.broadcast %279 : vector<8x1xf32> to vector<8x32xf32>
    %281 = arith.mulf %271, %280 : vector<8x32xf32>
    %282 = vector.broadcast %264 : vector<1x32xf32> to vector<8x32xf32>
    %283 = arith.mulf %281, %282 : vector<8x32xf32>
    %284 = vector.broadcast %265 : vector<1x32xf32> to vector<8x32xf32>
    %285 = arith.addf %283, %284 : vector<8x32xf32>
    %c0_101 = arith.constant 0 : index
    %c0_102 = arith.constant 0 : index
    %c0_103 = arith.constant 0 : index
    %286 = vector.load %arg23[%c0_101, %c0_102, %c0_103] : memref<1x8x32xf32, #tpu.memory_space<vmem>>, vector<1x8x32xf32>
    %287 = vector.shape_cast %286 : vector<1x8x32xf32> to vector<8x32xf32>
    %288 = vector.shape_cast %285 : vector<8x32xf32> to vector<1x8x32xf32>
    tpu.vector_store %arg23[%c0_101, %c0_102, %c0_103], %288 {strides = array<i32>} : memref<1x8x32xf32, #tpu.memory_space<vmem>>, vector<1x8x32xf32>,
    return
  }
  func.func @transform_0(%arg0: i32) -> (i32, i32, i32) {
    %c0_i32 = arith.constant 0 : i32
    %c0_i32_0 = arith.constant 0 : i32
    %c0_i32_1 = arith.constant 0 : i32
    return %arg0, %c0_i32, %c0_i32_0 : i32, i32, i32
  }
  func.func @transform_1(%arg0: i32) -> (i32, i32, i32) {
    %c0_i32 = arith.constant 0 : i32
    %c0_i32_0 = arith.constant 0 : i32
    %c0_i32_1 = arith.constant 0 : i32
    return %arg0, %c0_i32, %c0_i32_0 : i32, i32, i32
  }
  func.func @transform_2(%arg0: i32) -> (i32, i32) {
    %c0_i32 = arith.constant 0 : i32
    %c0_i32_0 = arith.constant 0 : i32
    %c0_i32_1 = arith.constant 0 : i32
    return %c0_i32, %c0_i32_0 : i32, i32
  }
  func.func @transform_3(%arg0: i32) -> (i32, i32) {
    %c0_i32 = arith.constant 0 : i32
    %c0_i32_0 = arith.constant 0 : i32
    %c0_i32_1 = arith.constant 0 : i32
    return %c0_i32, %c0_i32_0 : i32, i32
  }
  func.func @transform_4(%arg0: i32) -> (i32, i32) {
    %c0_i32 = arith.constant 0 : i32
    %c0_i32_0 = arith.constant 0 : i32
    %c0_i32_1 = arith.constant 0 : i32
    return %c0_i32, %c0_i32_0 : i32, i32
  }
  func.func @transform_5(%arg0: i32) -> (i32, i32) {
    %c0_i32 = arith.constant 0 : i32
    %c0_i32_0 = arith.constant 0 : i32
    %c0_i32_1 = arith.constant 0 : i32
    return %c0_i32, %c0_i32_0 : i32, i32
  }
  func.func @transform_6(%arg0: i32) -> (i32, i32) {
    %c0_i32 = arith.constant 0 : i32
    %c0_i32_0 = arith.constant 0 : i32
    %c0_i32_1 = arith.constant 0 : i32
    return %c0_i32, %c0_i32_0 : i32, i32
  }
  func.func @transform_7(%arg0: i32) -> (i32, i32) {
    %c0_i32 = arith.constant 0 : i32
    %c0_i32_0 = arith.constant 0 : i32
    %c0_i32_1 = arith.constant 0 : i32
    return %c0_i32, %c0_i32_0 : i32, i32
  }
  func.func @transform_8(%arg0: i32) -> (i32, i32) {
    %c0_i32 = arith.constant 0 : i32
    %c0_i32_0 = arith.constant 0 : i32
    %c0_i32_1 = arith.constant 0 : i32
    return %c0_i32, %c0_i32_0 : i32, i32
  }
  func.func @transform_9(%arg0: i32) -> (i32, i32) {
    %c0_i32 = arith.constant 0 : i32
    %c0_i32_0 = arith.constant 0 : i32
    %c0_i32_1 = arith.constant 0 : i32
    return %c0_i32, %c0_i32_0 : i32, i32
  }
  func.func @transform_10(%arg0: i32) -> (i32, i32) {
    %c0_i32 = arith.constant 0 : i32
    %c0_i32_0 = arith.constant 0 : i32
    %c0_i32_1 = arith.constant 0 : i32
    return %c0_i32, %c0_i32_0 : i32, i32
  }
  func.func @transform_11(%arg0: i32) -> (i32, i32) {
    %c0_i32 = arith.constant 0 : i32
    %c0_i32_0 = arith.constant 0 : i32
    %c0_i32_1 = arith.constant 0 : i32
    return %c0_i32, %c0_i32_0 : i32, i32
  }
  func.func @transform_12(%arg0: i32) -> (i32, i32) {
    %c0_i32 = arith.constant 0 : i32
    %c0_i32_0 = arith.constant 0 : i32
    %c0_i32_1 = arith.constant 0 : i32
    return %c0_i32, %c0_i32_0 : i32, i32
  }
  func.func @transform_13(%arg0: i32) -> (i32, i32) {
    %c0_i32 = arith.constant 0 : i32
    %c0_i32_0 = arith.constant 0 : i32
    %c0_i32_1 = arith.constant 0 : i32
    return %c0_i32, %c0_i32_0 : i32, i32
  }
  func.func @transform_14(%arg0: i32) -> (i32, i32) {
    %c0_i32 = arith.constant 0 : i32
    %c0_i32_0 = arith.constant 0 : i32
    %c0_i32_1 = arith.constant 0 : i32
    return %c0_i32, %c0_i32_0 : i32, i32
  }
  func.func @transform_15(%arg0: i32) -> (i32, i32) {
    %c0_i32 = arith.constant 0 : i32
    %c0_i32_0 = arith.constant 0 : i32
    %c0_i32_1 = arith.constant 0 : i32
    return %c0_i32, %c0_i32_0 : i32, i32
  }
  func.func @transform_16(%arg0: i32) -> (i32, i32) {
    %c0_i32 = arith.constant 0 : i32
    %c0_i32_0 = arith.constant 0 : i32
    %c0_i32_1 = arith.constant 0 : i32
    return %c0_i32, %c0_i32_0 : i32, i32
  }
  func.func @transform_17(%arg0: i32) -> (i32, i32) {
    %c0_i32 = arith.constant 0 : i32
    %c0_i32_0 = arith.constant 0 : i32
    %c0_i32_1 = arith.constant 0 : i32
    return %c0_i32, %c0_i32_0 : i32, i32
  }
  func.func @transform_18(%arg0: i32) -> (i32, i32) {
    %c0_i32 = arith.constant 0 : i32
    %c0_i32_0 = arith.constant 0 : i32
    %c0_i32_1 = arith.constant 0 : i32
    return %c0_i32, %c0_i32_0 : i32, i32
  }
  func.func @transform_19(%arg0: i32) -> (i32, i32) {
    %c0_i32 = arith.constant 0 : i32
    %c0_i32_0 = arith.constant 0 : i32
    %c0_i32_1 = arith.constant 0 : i32
    return %c0_i32, %c0_i32_0 : i32, i32
  }
  func.func @transform_20(%arg0: i32) -> (i32, i32) {
    %c0_i32 = arith.constant 0 : i32
    %c0_i32_0 = arith.constant 0 : i32
    %c0_i32_1 = arith.constant 0 : i32
    return %c0_i32, %c0_i32_0 : i32, i32
  }
  func.func @transform_21(%arg0: i32) -> (i32, i32) {
    %c0_i32 = arith.constant 0 : i32
    %c0_i32_0 = arith.constant 0 : i32
    %c0_i32_1 = arith.constant 0 : i32
    return %c0_i32, %c0_i32_0 : i32, i32
  }
  func.func @transform_22(%arg0: i32) -> (i32, i32, i32) {
    %c0_i32 = arith.constant 0 : i32
    %c0_i32_0 = arith.constant 0 : i32
    %c0_i32_1 = arith.constant 0 : i32
    return %arg0, %c0_i32, %c0_i32_0 : i32, i32, i32
  }
}

module attributes {stable_mosaic.version = 11 : i64} {
  func.func @_mlp_kernel(%arg0: i32, %arg1: memref<8x32xf32, #tpu.memory_space<vmem>>, %arg2: memref<32x64xbf16, #tpu.memory_space<vmem>>, %arg3: memref<1x64xf32, #tpu.memory_space<vmem>>, %arg4: memref<64x16xbf16, #tpu.memory_space<vmem>>, %arg5: memref<1x16xf32, #tpu.memory_space<vmem>>, %arg6: memref<8x16xf32, #tpu.memory_space<vmem>>) attributes {dimension_semantics = [#tpu.dimension_semantics<parallel>], iteration_bounds = array<i64: 2>, scalar_prefetch = 0 : i64, scratch_operands = 0 : i64, tpu.core_type = #tpu.core_type<tc>, window_params = [{transform_indices = @transform_0, window_bounds = array<i64: 8, 32>}, {pipeline_mode = #tpu.pipeline_mode<synchronous>, transform_indices = @transform_1, window_bounds = array<i64: 32, 64>}, {pipeline_mode = #tpu.pipeline_mode<synchronous>, transform_indices = @transform_2, window_bounds = array<i64: 1, 64>}, {pipeline_mode = #tpu.pipeline_mode<synchronous>, transform_indices = @transform_3, window_bounds = array<i64: 64, 16>}, {pipeline_mode = #tpu.pipeline_mode<synchronous>, transform_indices = @transform_4, window_bounds = array<i64: 1, 16>}, {transform_indices = @transform_5, window_bounds = array<i64: 8, 16>}]} {
    %c0 = arith.constant 0 : index
    %c0_0 = arith.constant 0 : index
    %0 = vector.load %arg1[%c0, %c0_0] : memref<8x32xf32, #tpu.memory_space<vmem>>, vector<8x32xf32>
    %1 = arith.truncf %0 : vector<8x32xf32> to vector<8x32xbf16>
    %c0_1 = arith.constant 0 : index
    %c0_2 = arith.constant 0 : index
    %2 = vector.load %arg2[%c0_1, %c0_2] : memref<32x64xbf16, #tpu.memory_space<vmem>>, vector<32x64xbf16>
    %cst = arith.constant dense<0.000000e+00> : vector<8x64xf32>
    %3 = tpu.matmul %1, %2, %cst {dimension_numbers = #tpu.dot_dimension_numbers<[1], [0], [0], [1], [0, 0, 1, 1], [], []>} : vector<8x32xbf16>, vector<32x64xbf16>, vector<8x64xf32> -> vector<8x64xf32>
    %c0_3 = arith.constant 0 : index
    %c0_4 = arith.constant 0 : index
    %4 = vector.load %arg3[%c0_3, %c0_4] : memref<1x64xf32, #tpu.memory_space<vmem>>, vector<1x64xf32>
    %5 = vector.broadcast %4 : vector<1x64xf32> to vector<8x64xf32>
    %6 = arith.addf %3, %5 : vector<8x64xf32>
    %cst_5 = arith.constant 0.000000e+00 : f32
    %7 = vector.broadcast %cst_5 : f32 to vector<8x64xf32>
    %8 = arith.maximumf %6, %7 : vector<8x64xf32>
    %9 = arith.truncf %8 : vector<8x64xf32> to vector<8x64xbf16>
    %c0_6 = arith.constant 0 : index
    %c0_7 = arith.constant 0 : index
    %10 = vector.load %arg4[%c0_6, %c0_7] : memref<64x16xbf16, #tpu.memory_space<vmem>>, vector<64x16xbf16>
    %cst_8 = arith.constant dense<0.000000e+00> : vector<8x16xf32>
    %11 = tpu.matmul %9, %10, %cst_8 {dimension_numbers = #tpu.dot_dimension_numbers<[1], [0], [0], [1], [0, 0, 1, 1], [], []>} : vector<8x64xbf16>, vector<64x16xbf16>, vector<8x16xf32> -> vector<8x16xf32>
    %c0_9 = arith.constant 0 : index
    %c0_10 = arith.constant 0 : index
    %12 = vector.load %arg5[%c0_9, %c0_10] : memref<1x16xf32, #tpu.memory_space<vmem>>, vector<1x16xf32>
    %13 = vector.broadcast %12 : vector<1x16xf32> to vector<8x16xf32>
    %14 = arith.addf %11, %13 : vector<8x16xf32>
    %c0_11 = arith.constant 0 : index
    %c0_12 = arith.constant 0 : index
    %15 = vector.load %arg6[%c0_11, %c0_12] : memref<8x16xf32, #tpu.memory_space<vmem>>, vector<8x16xf32>
    tpu.vector_store %arg6[%c0_11, %c0_12], %14 {strides = array<i32>} : memref<8x16xf32, #tpu.memory_space<vmem>>, vector<8x16xf32>,
    return
  }
  func.func @transform_0(%arg0: i32) -> (i32, i32) {
    %c0_i32 = arith.constant 0 : i32
    %c0_i32_0 = arith.constant 0 : i32
    return %arg0, %c0_i32 : i32, i32
  }
  func.func @transform_1(%arg0: i32) -> (i32, i32) {
    %c0_i32 = arith.constant 0 : i32
    %c0_i32_0 = arith.constant 0 : i32
    %c0_i32_1 = arith.constant 0 : i32
    return %c0_i32, %c0_i32_0 : i32, i32
  }
  func.func @transform_2(%arg0: i32) -> (i32, i32) {
    %c0_i32 = arith.constant 0 : i32
    %c0_i32_0 = arith.constant 0 : i32
    %c0_i32_1 = arith.constant 0 : i32
    return %c0_i32, %c0_i32_0 : i32, i32
  }
  func.func @transform_3(%arg0: i32) -> (i32, i32) {
    %c0_i32 = arith.constant 0 : i32
    %c0_i32_0 = arith.constant 0 : i32
    %c0_i32_1 = arith.constant 0 : i32
    return %c0_i32, %c0_i32_0 : i32, i32
  }
  func.func @transform_4(%arg0: i32) -> (i32, i32) {
    %c0_i32 = arith.constant 0 : i32
    %c0_i32_0 = arith.constant 0 : i32
    %c0_i32_1 = arith.constant 0 : i32
    return %c0_i32, %c0_i32_0 : i32, i32
  }
  func.func @transform_5(%arg0: i32) -> (i32, i32) {
    %c0_i32 = arith.constant 0 : i32
    %c0_i32_0 = arith.constant 0 : i32
    return %arg0, %c0_i32 : i32, i32
  }
}

</mosaic_0001>

<llo_original>
// kernel: transformer_forward.9
$region0: #{transformer_forward.9}
  #allocation0 [shape = 'u32[]', space=smem, size = 0x4, offset = 0x4, fixed_abs, tag = 'smem constant byte address 0x4 - core index']
  #allocation1 [shape = 'u32[144,128]{1,0:T(1,128)}', space=vmem, size = 0x12000, scoped, tag = 'internal scratch']
  %s0 = inlined_call_operand.vmem [shape: f32[16,32], index: 0, kind: input, shape index: {}]
  %s1 = inlined_call_operand.vmem [shape: bf16[32,64], index: 1, kind: input, shape index: {}]
  %s2 = inlined_call_operand.vmem [shape: f32[1,64], index: 2, kind: input, shape index: {}]
  %s3 = inlined_call_operand.vmem [shape: bf16[64,16], index: 3, kind: input, shape index: {}]
  %s4 = inlined_call_operand.vmem [shape: f32[1,16], index: 4, kind: input, shape index: {}]
  %s5 = inlined_call_operand.hbm [shape: f32[16,16], index: 5, kind: output, shape index: {}]
  %s6 = sld [smem:[#allocation0]]
  $region53: #{transformer_forward.9} parent=0
    _
  %s8 = ssub.s32 1, %s6
  %s9 = scalar_select 0, %s8, %s6
  $region1: #{transformer_forward.9} parent=0
    #allocation2 [shape = 'u8[8192]{0}', space=vmem, size = 0x2000, scoped, tag = 'output window, operand 0']
    #allocation3 [shape = 's32[2]{0}', space=sflag, size = 0x8, scoped, tag = 'scoped memory for transformer_forward.9']
    %10 = vsyncpa [#allocation3], 0
    %s11 = scalar_lea.sflag [#allocation3], 1
    %12 = vsyncpa %s11, 0
    loop: start=0, step=1, limit=4
    $region2: #{transformer_forward.9} parent=1 // loop_pre_header
      _
    $region3: #{transformer_forward.9} parent=1 // loop_header
      %s14 = sphi 0, %s18
      %p15 = scmp.ge.s32.totalorder %s14, 4
      %s24 = sphi 0, %s26
      %s27 = sphi 0, %s24
      %s28 = sphi 0, %s27
      %s44 = sphi 0, %s28
      %s48 = sphi 0, %s48
      %s50 = sphi 0, %s48
      %s51 = sphi 0, %s50
      %s65 = sphi 0, %s51
      %s69 = sphi 0, %s69
      %s71 = sphi 0, %s69
      %s72 = sphi 0, %s71
      %s86 = sphi 0, %s72
      %s90 = sphi 0, %s90
      %s92 = sphi 0, %s90
      %s93 = sphi 0, %s92
      %s107 = sphi 0, %s93
      %s111 = sphi 0, %s111
      %s113 = sphi 0, %s111
      %s114 = sphi 0, %s113
      %s128 = sphi 0, %s114
      %s134 = sphi 0, %s136
      %s137 = sphi 0, %s134
      %s138 = sphi 0, %s137
      %s154 = sphi 0, %s138
    $region4: #{transformer_forward.9} parent=1 // loop_header_branch
      %17 = sbr.rel (%p15) target = $region8
    $region5: #{transformer_forward.9} parent=1 // loop_body
      %s19 = ssub.s32 %s14, 1
      %s20 = ssub.s32 %s14, 2
      %s21 = sadd.s32 %s14, 1
      %s22 = ssub.s32 %s14, %s21
      %p23 = scmp.eq.s32.totalorder %s22, 0
      %s25 = sadd.s32 %s24, 1
      %s26 = scalar_select %p23, %s24, %s25
      %p29 = pneg %p23
      %p30 = scmp.eq.s32.totalorder %s14, 1
      %p31 = por %p29, %p30
      %p32 = scmp.ne.s32.totalorder %s24, %s27
      %p33 = scmp.eq.s32.totalorder %s14, 0
      %p34 = por %p32, %p33
      %p35 = scmp.ne.s32.totalorder %s24, %s27
      %p36 = scmp.eq.s32.totalorder %s19, 1
      %p37 = por %p35, %p36
      %p38 = scmp.ne.s32.totalorder %s27, %s28
      %p39 = scmp.eq.s32.totalorder %s19, 0
      %p40 = por %p38, %p39
      %p41 = scmp.ne.s32.totalorder %s27, %s28
      %p42 = scmp.eq.s32.totalorder %s20, 1
      %p43 = por %p41, %p42
      %p45 = scmp.ne.s32.totalorder %s28, %s44
      %p46 = scmp.eq.s32.totalorder %s20, 0
      %p47 = por %p45, %p46
      %s49 = sadd.s32 %s48, 1
      %p52 = scmp.eq.s32.totalorder %s14, 1
      %p53 = scmp.ne.s32.totalorder %s48, %s50
      %p54 = scmp.eq.s32.totalorder %s14, 0
      %p55 = por %p53, %p54
      %p56 = scmp.ne.s32.totalorder %s48, %s50
      %p57 = scmp.eq.s32.totalorder %s19, 1
      %p58 = por %p56, %p57
      %p59 = scmp.ne.s32.totalorder %s50, %s51
      %p60 = scmp.eq.s32.totalorder %s19, 0
      %p61 = por %p59, %p60
      %p62 = scmp.ne.s32.totalorder %s50, %s51
      %p63 = scmp.eq.s32.totalorder %s20, 1
      %p64 = por %p62, %p63
      %p66 = scmp.ne.s32.totalorder %s51, %s65
      %p67 = scmp.eq.s32.totalorder %s20, 0
      %p68 = por %p66, %p67
      %s70 = sadd.s32 %s69, 1
      %p73 = scmp.eq.s32.totalorder %s14, 1
      %p74 = scmp.ne.s32.totalorder %s69, %s71
      %p75 = scmp.eq.s32.totalorder %s14, 0
      %p76 = por %p74, %p75
      %p77 = scmp.ne.s32.totalorder %s69, %s71
      %p78 = scmp.eq.s32.totalorder %s19, 1
      %p79 = por %p77, %p78
      %p80 = scmp.ne.s32.totalorder %s71, %s72
      %p81 = scmp.eq.s32.totalorder %s19, 0
      %p82 = por %p80, %p81
      %p83 = scmp.ne.s32.totalorder %s71, %s72
      %p84 = scmp.eq.s32.totalorder %s20, 1
      %p85 = por %p83, %p84
      %p87 = scmp.ne.s32.totalorder %s72, %s86
      %p88 = scmp.eq.s32.totalorder %s20, 0
      %p89 = por %p87, %p88
      %s91 = sadd.s32 %s90, 1
      %p94 = scmp.eq.s32.totalorder %s14, 1
      %p95 = scmp.ne.s32.totalorder %s90, %s92
      %p96 = scmp.eq.s32.totalorder %s14, 0
      %p97 = por %p95, %p96
      %p98 = scmp.ne.s32.totalorder %s90, %s92
      %p99 = scmp.eq.s32.totalorder %s19, 1
      %p100 = por %p98, %p99
      %p101 = scmp.ne.s32.totalorder %s92, %s93
      %p102 = scmp.eq.s32.totalorder %s19, 0
      %p103 = por %p101, %p102
      %p104 = scmp.ne.s32.totalorder %s92, %s93
      %p105 = scmp.eq.s32.totalorder %s20, 1
      %p106 = por %p104, %p105
      %p108 = scmp.ne.s32.totalorder %s93, %s107
      %p109 = scmp.eq.s32.totalorder %s20, 0
      %p110 = por %p108, %p109
      %s112 = sadd.s32 %s111, 1
      %p115 = scmp.eq.s32.totalorder %s14, 1
      %p116 = scmp.ne.s32.totalorder %s111, %s113
      %p117 = scmp.eq.s32.totalorder %s14, 0
      %p118 = por %p116, %p117
      %p119 = scmp.ne.s32.totalorder %s111, %s113
      %p120 = scmp.eq.s32.totalorder %s19, 1
      %p121 = por %p119, %p120
      %p122 = scmp.ne.s32.totalorder %s113, %s114
      %p123 = scmp.eq.s32.totalorder %s19, 0
      %p124 = por %p122, %p123
      %p125 = scmp.ne.s32.totalorder %s113, %s114
      %p126 = scmp.eq.s32.totalorder %s20, 1
      %p127 = por %p125, %p126
      %p129 = scmp.ne.s32.totalorder %s114, %s128
      %p130 = scmp.eq.s32.totalorder %s20, 0
      %p131 = por %p129, %p130
      %s132 = ssub.s32 %s14, %s21
      %p133 = scmp.eq.s32.totalorder %s132, 0
      %s135 = sadd.s32 %s134, 1
      %s136 = scalar_select %p133, %s134, %s135
      %p139 = pneg %p133
      %p140 = scmp.eq.s32.totalorder %s14, 1
      %p141 = por %p139, %p140
      %p142 = scmp.ne.s32.totalorder %s134, %s137
      %p143 = scmp.eq.s32.totalorder %s14, 0
      %p144 = por %p142, %p143
      %p145 = scmp.ne.s32.totalorder %s134, %s137
      %p146 = scmp.eq.s32.totalorder %s19, 1
      %p147 = por %p145, %p146
      %p148 = scmp.ne.s32.totalorder %s137, %s138
      %p149 = scmp.eq.s32.totalorder %s19, 0
      %p150 = por %p148, %p149
      %p151 = scmp.ne.s32.totalorder %s137, %s138
      %p152 = scmp.eq.s32.totalorder %s20, 1
      %p153 = por %p151, %p152
      %p155 = scmp.ne.s32.totalorder %s138, %s154
      %p156 = scmp.eq.s32.totalorder %s20, 0
      %p157 = por %p155, %p156
      %p158 = scmp.le.s32.totalorder 1, %s14
      %p159 = scmp.lt.s32.totalorder %s14, 3
      %p160 = pnand %p158, %p159
      %p161 = pneg %p160
      // Predicated region
      $region9: #{transformer_forward.9} parent=5 // pred_check
        _
      $region10: #{transformer_forward.9} parent=5 // pred_check_branch
        %163 = sbr.rel (%p160) target = $region12
      $region11: #{transformer_forward.9} parent=5 // pred_region
        %s164 = ssub.s32 %s14, 1
        // Predicated region
        $region13: #{transformer_forward.9} parent=11 // pred_check
          %p165 = pneg %p61
        $region14: #{transformer_forward.9} parent=11 // pred_check_branch
          %167 = sbr.rel (%p165) target = $region16
        $region15: #{transformer_forward.9} parent=11 // pred_region
          _
        $region16: #{transformer_forward.9} parent=11 // pred_fallthru
          _
        // Predicated region
        $region17: #{transformer_forward.9} parent=11 // pred_check
          %p168 = pneg %p82
        $region18: #{transformer_forward.9} parent=11 // pred_check_branch
          %170 = sbr.rel (%p168) target = $region20
        $region19: #{transformer_forward.9} parent=11 // pred_region
          _
        $region20: #{transformer_forward.9} parent=11 // pred_fallthru
          _
        // Predicated region
        $region21: #{transformer_forward.9} parent=11 // pred_check
          %p171 = pneg %p103
        $region22: #{transformer_forward.9} parent=11 // pred_check_branch
          %173 = sbr.rel (%p171) target = $region24
        $region23: #{transformer_forward.9} parent=11 // pred_region
          _
        $region24: #{transformer_forward.9} parent=11 // pred_fallthru
          _
        // Predicated region
        $region25: #{transformer_forward.9} parent=11 // pred_check
          %p174 = pneg %p124
        $region26: #{transformer_forward.9} parent=11 // pred_check_branch
          %176 = sbr.rel (%p174) target = $region28
        $region27: #{transformer_forward.9} parent=11 // pred_region
          _
        $region28: #{transformer_forward.9} parent=11 // pred_fallthru
          _
      $region12: #{transformer_forward.9} parent=5 // pred_fallthru
        _
      %p177 = scmp.lt.s32.totalorder %s14, 2
      // Predicated region
      $region29: #{transformer_forward.9} parent=5 // pred_check
        %p178 = pneg %p177
      $region30: #{transformer_forward.9} parent=5 // pred_check_branch
        %180 = sbr.rel (%p178) target = $region32
      $region31: #{transformer_forward.9} parent=5 // pred_region
        // Predicated region
        $region33: #{transformer_forward.9} parent=31 // pred_check
          %p181 = pneg %p34
        $region34: #{transformer_forward.9} parent=31 // pred_check_branch
          %183 = sbr.rel (%p181) target = $region36
        $region35: #{transformer_forward.9} parent=31 // pred_region
          %p184 = scmp.lt.s32.totalorder %s14, 1
          %s185 = scalar_select %p184, %s14, 1
          %s186 = smul.addr %s185, 8
          %s187 = scalar_lea.vmem %s0, %s186
        $region36: #{transformer_forward.9} parent=31 // pred_fallthru
          _
      $region32: #{transformer_forward.9} parent=5 // pred_fallthru
        _
      %p188 = scmp.le.s32.totalorder 1, %s14
      %p189 = scmp.lt.s32.totalorder %s14, 3
      %p190 = pnand %p188, %p189
      %p191 = pneg %p190
      // Predicated region
      $region37: #{transformer_forward.9} parent=5 // pred_check
        _
      $region38: #{transformer_forward.9} parent=5 // pred_check_branch
        %193 = sbr.rel (%p190) target = $region40
      $region39: #{transformer_forward.9} parent=5 // pred_region
        %s194 = ssub.s32 %s14, 1
        %p195 = scmp.lt.s32.totalorder %s19, 1
        %s196 = scalar_select %p195, %s19, 1
        %s197 = smul.addr %s196, 8
        %s198 = scalar_lea.vmem %s0, %s197
        %p199 = pneg %p40
        %p200 = pneg %p37
        %p201 = pneg %p61
        %p202 = pneg %p58
        %p203 = pneg %p82
        %p204 = pneg %p79
        %p205 = pneg %p103
        %p206 = pneg %p100
        %p207 = pneg %p124
        %p208 = pneg %p121
        %p209 = pneg %p150
        %p210 = pneg %p147
        %s211 = sand.u32 %s137, 1
        %s212 = scalar_lea.sflag [#allocation3], %s211
        %s213 = sand.u32 %s137, 1
        %s214 = smul.addr %s213, 8
        %s215 = scalar_lea.vmem [#allocation2], %s214
        %p216 = scmp.lt.s32.totalorder %s19, 1
        %s217 = scalar_select %p216, %s19, 1
        %s218 = smul.addr %s217, 8
        %s219 = scalar_lea.vmem %s0, %s218
        %v221 = vld [vmem:[%s219] sm:$0xff]
        %v222 = vpack.c.bf16 %v221, %v221
        %v223 = vld [vmem:[%s1] sm:$0xf]
        %v224 = vld [vmem:[%s1 + $0x4] sm:$0xf]
        %v225 = vld [vmem:[%s1 + $0x8] sm:$0xf]
        %v226 = vld [vmem:[%s1 + $0xc] sm:$0xf]
        %v227 = vld [vmem:[%s2] sm:$0x1]
        %v229 = vlaneseq
        %v230 = vshrl.u32 %v229, 7
        %v231 = vsub.s32 0, %v230
        %v232 = vrot.slane %v227, %v231
        %v238 = vunpack.c.l.b16 %v223
        %v239 = vunpack.c.l.b16 %v224
        %v240 = vunpack.c.l.b16 %v225
        %v241 = vunpack.c.l.b16 %v226
        %v242 = vpack.c.b16 %v239, %v238
        %v243 = vpack.c.b16 %v241, %v240
        %vm246 = vcmask 261120
        %v248 = vsel %vm246, %v222, 0
        %250 = vmatprep.subr.bf16.mxu0 0
        %251 = vmatpush1.bf16.msra.mxu0 %v242
        %252 = vmatprep.subr.bf16.mxu0 0
        %253 = vmatpush1.bf16.msra.mxu0 %v243
        %254 = vmatprep.subr.bf16.mxu0 0
        %255 = vmatpush1.bf16.msra.mxu0 0
        %256 = vmatprep.subr.bf16.mxu0 0
        %257 = vmatpush1.bf16.msra.mxu0 0
        %258 = vmatprep.subr.bf16.mxu0 0
        %259 = vmatpush1.bf16.msra.mxu0 0
        %260 = vmatprep.subr.bf16.mxu0 0
        %261 = vmatpush1.bf16.msra.mxu0 0
        %262 = vmatprep.subr.bf16.mxu0 0
        %263 = vmatpush1.bf16.msra.mxu0 0
        %264 = vmatprep.subr.bf16.mxu0 0
        %265 = vmatpush1.bf16.msra.mxu0 0
        %266 = vmatprep.subr.bf16.mxu0 0
        %267 = vmatpush1.bf16.msra.mxu0 0
        %268 = vmatprep.subr.bf16.mxu0 0
        %269 = vmatpush1.bf16.msra.mxu0 0
        %270 = vmatprep.subr.bf16.mxu0 0
        %271 = vmatpush1.bf16.msra.mxu0 0
        %272 = vmatprep.subr.bf16.mxu0 0
        %273 = vmatpush1.bf16.msra.mxu0 0
        %274 = vmatprep.subr.bf16.mxu0 0
        %275 = vmatpush1.bf16.msra.mxu0 0
        %276 = vmatprep.subr.bf16.mxu0 0
        %277 = vmatpush1.bf16.msra.mxu0 0
        %278 = vmatprep.subr.bf16.mxu0 0
        %279 = vmatpush1.bf16.msra.mxu0 0
        %280 = vmatprep.subr.bf16.mxu0 0
        %281 = vmatpush1.bf16.msra.mxu0 0
        %282 = vmatprep.mubr.bf16.mxu0 0
        %283 = vmatmul.mubr.bf16.gmra.mrb[0].mxu0 %v248
        %v284 = vpop.f32.mrb[0].mxu0
        %v285 = vadd.f32 %v232, %v284
        %v286 = vpop.f32.mrb[0].mxu0
        %v287 = vpop.f32.mrb[0].mxu0
        %v288 = vpop.f32.mrb[0].mxu0
        %289 = vdwg.mxu0
        %v290 = vmax.f32 %v285, 0.0
        %v291 = vpack.c.bf16 %v290, %v290
        %v292 = vld [vmem:[%s3] sm:$0xf]
        %v293 = vld [vmem:[%s3 + $0x4] sm:$0xf]
        %v294 = vld [vmem:[%s3 + $0x8] sm:$0xf]
        %v295 = vld [vmem:[%s3 + $0xc] sm:$0xf]
        %v296 = vld [vmem:[%s3 + $0x10] sm:$0xf]
        %v297 = vld [vmem:[%s3 + $0x14] sm:$0xf]
        %v298 = vld [vmem:[%s3 + $0x18] sm:$0xf]
        %v299 = vld [vmem:[%s3 + $0x1c] sm:$0xf]
        %v300 = vld [vmem:[%s4] sm:$0x1]
        %v302 = vlaneseq
        %v303 = vshrl.u32 %v302, 7
        %v304 = vsub.s32 0, %v303
        %v305 = vrot.slane %v300, %v304
        %v315 = vunpack.c.l.b16 %v292
        %v316 = vunpack.c.l.b16 %v293
        %v317 = vunpack.c.l.b16 %v294
        %v318 = vunpack.c.l.b16 %v295
        %v319 = vunpack.c.l.b16 %v296
        %v320 = vunpack.c.l.b16 %v297
        %v321 = vunpack.c.l.b16 %v298
        %v322 = vunpack.c.l.b16 %v299
        %v323 = vpack.c.b16 %v316, %v315
        %v324 = vpack.c.b16 %v318, %v317
        %v325 = vpack.c.b16 %v320, %v319
        %v326 = vpack.c.b16 %v322, %v321
        %vm331 = vcmask 523264
        %v333 = vsel %vm331, %v291, 0
        %335 = vmatprep.subr.bf16.mxu0 0
        %336 = vmatpush1.bf16.msra.mxu0 %v323
        %337 = vmatprep.subr.bf16.mxu0 0
        %338 = vmatpush1.bf16.msra.mxu0 %v324
        %339 = vmatprep.subr.bf16.mxu0 0
        %340 = vmatpush1.bf16.msra.mxu0 %v325
        %341 = vmatprep.subr.bf16.mxu0 0
        %342 = vmatpush1.bf16.msra.mxu0 %v326
        %343 = vmatprep.subr.bf16.mxu0 0
        %344 = vmatpush1.bf16.msra.mxu0 0
        %345 = vmatprep.subr.bf16.mxu0 0
        %346 = vmatpush1.bf16.msra.mxu0 0
        %347 = vmatprep.subr.bf16.mxu0 0
        %348 = vmatpush1.bf16.msra.mxu0 0
        %349 = vmatprep.subr.bf16.mxu0 0
        %350 = vmatpush1.bf16.msra.mxu0 0
        %351 = vmatprep.subr.bf16.mxu0 0
        %352 = vmatpush1.bf16.msra.mxu0 0
        %353 = vmatprep.subr.bf16.mxu0 0
        %354 = vmatpush1.bf16.msra.mxu0 0
        %355 = vmatprep.subr.bf16.mxu0 0
        %356 = vmatpush1.bf16.msra.mxu0 0
        %357 = vmatprep.subr.bf16.mxu0 0
        %358 = vmatpush1.bf16.msra.mxu0 0
        %359 = vmatprep.subr.bf16.mxu0 0
        %360 = vmatpush1.bf16.msra.mxu0 0
        %361 = vmatprep.subr.bf16.mxu0 0
        %362 = vmatpush1.bf16.msra.mxu0 0
        %363 = vmatprep.subr.bf16.mxu0 0
        %364 = vmatpush1.bf16.msra.mxu0 0
        %365 = vmatprep.subr.bf16.mxu0 0
        %366 = vmatpush1.bf16.msra.mxu0 0
        %367 = vmatprep.mubr.bf16.mxu0 0
        %368 = vmatmul.mubr.bf16.gmra.mrb[0].mxu0 %v333
        %v369 = vpop.f32.mrb[0].mxu0
        %v370 = vadd.f32 %v305, %v369
        %v371 = vpop.f32.mrb[0].mxu0
        %v372 = vpop.f32.mrb[0].mxu0
        %v373 = vpop.f32.mrb[0].mxu0
        %374 = vdwg.mxu0
        %vm375 = vcmask 130048
        %376 = vst.msk [vmem:[%s215] sm:$0xff] %vm375, %v370
        %s377 = sand.u32 %s137, 1
        %s378 = scalar_lea.sflag [#allocation3], %s377
        %s379 = sand.u32 %s137, 1
        %s380 = smul.addr %s379, 8
        %s381 = scalar_lea.vmem [#allocation2], %s380
        // Predicated region
        $region41: #{transformer_forward.9} parent=39 // pred_check
          %p382 = pneg %p147
        $region42: #{transformer_forward.9} parent=39 // pred_check_branch
          %384 = sbr.rel (%p382) target = $region44
        $region43: #{transformer_forward.9} parent=39 // pred_region
          %s386 = ssub.s32 128, 128
          %387 = vsyncadd %s378, %s386
          %s388 = smul.addr %s19, 128
          %s389 = scalar_lea.hbm %s5, %s388
          %s391 = sshll.u32 %s381, 4
          %s392 = int_to_ptr.vmem [resolvable:$true] %s391
          %394 = dma.vmem_to_hbm [thread:$0]  %s392, 128, %s389, %s378
        $region44: #{transformer_forward.9} parent=39 // pred_fallthru
          _
      $region40: #{transformer_forward.9} parent=5 // pred_fallthru
        _
      %p395 = scmp.le.s32.totalorder 2, %s14
      // Predicated region
      $region45: #{transformer_forward.9} parent=5 // pred_check
        %p396 = pneg %p395
      $region46: #{transformer_forward.9} parent=5 // pred_check_branch
        %398 = sbr.rel (%p396) target = $region48
      $region47: #{transformer_forward.9} parent=5 // pred_region
        %s399 = ssub.s32 %s14, 2
        // Predicated region
        $region49: #{transformer_forward.9} parent=47 // pred_check
          %p400 = pneg %p153
        $region50: #{transformer_forward.9} parent=47 // pred_check_branch
          %402 = sbr.rel (%p400) target = $region52
        $region51: #{transformer_forward.9} parent=47 // pred_region
          %s403 = sand.u32 %s138, 1
          %s404 = scalar_lea.sflag [#allocation3], %s403
          %s405 = sand.u32 %s138, 1
          %s406 = smul.addr %s405, 8
          %s407 = scalar_lea.vmem [#allocation2], %s406
          %408 = dma.done %s404, 128
        $region52: #{transformer_forward.9} parent=47 // pred_fallthru
          _
      $region48: #{transformer_forward.9} parent=5 // pred_fallthru
        _
    $region6: #{transformer_forward.9} parent=1 // loop_footer
      %s18 = sadd.s32 1, %s14
    $region7: #{transformer_forward.9} parent=1 // loop_footer_branch
      %13 = sbr.rel target = $region3
    $region8: #{transformer_forward.9} parent=1 // loop_exit
      _
    %409 = vsyncpa [#allocation3], 1
    %s410 = scalar_lea.sflag [#allocation3], 1
    %411 = vsyncpa %s410, 1

// kernel: transformer_forward.5
$region0: #{transformer_forward.5}
  #allocation0 [shape = 'u32[]', space=smem, size = 0x4, offset = 0x4, fixed_abs, tag = 'smem constant byte address 0x4 - core index']
  #allocation1 [shape = 'u32[144,128]{1,0:T(1,128)}', space=vmem, size = 0x12000, scoped, tag = 'internal scratch']
  %s0 = inlined_call_operand.vmem [shape: f32[2,8,32], index: 0, kind: input, shape index: {}]
  %s1 = inlined_call_operand.vmem [shape: bf16[32,96], index: 1, kind: input, shape index: {}]
  %s2 = inlined_call_operand.vmem [shape: f32[1,96], index: 2, kind: input, shape index: {}]
  %s3 = inlined_call_operand.vmem [shape: bf16[32,32], index: 3, kind: input, shape index: {}]
  %s4 = inlined_call_operand.vmem [shape: f32[1,32], index: 4, kind: input, shape index: {}]
  %s5 = inlined_call_operand.vmem [shape: f32[1,32], index: 5, kind: input, shape index: {}]
  %s6 = inlined_call_operand.vmem [shape: f32[1,32], index: 6, kind: input, shape index: {}]
  %s7 = inlined_call_operand.vmem [shape: bf16[32,128], index: 7, kind: input, shape index: {}]
  %s8 = inlined_call_operand.vmem [shape: f32[1,128], index: 8, kind: input, shape index: {}]
  %s9 = inlined_call_operand.vmem [shape: bf16[128,32], index: 9, kind: input, shape index: {}]
  %s10 = inlined_call_operand.vmem [shape: f32[1,32], index: 10, kind: input, shape index: {}]
  %s11 = inlined_call_operand.vmem [shape: f32[1,32], index: 11, kind: input, shape index: {}]
  %s12 = inlined_call_operand.vmem [shape: f32[1,32], index: 12, kind: input, shape index: {}]
  %s13 = inlined_call_operand.vmem [shape: f32[2,8,32], index: 13, kind: output, shape index: {}]
  %s14 = sld [smem:[#allocation0]]
  $region85: #{transformer_forward.5} parent=0
    _
  %s16 = ssub.s32 1, %s14
  %s17 = scalar_select 0, %s16, %s14
  loop: start=0, step=1, limit=4
  $region2: #{transformer_forward.5} parent=0 // loop_pre_header
    _
  $region3: #{transformer_forward.5} parent=0 // loop_header
    %s19 = sphi 0, %s23
    %p20 = scmp.ge.s32.totalorder %s19, 4
    %s29 = sphi 0, %s31
    %s32 = sphi 0, %s29
    %s33 = sphi 0, %s32
    %s49 = sphi 0, %s33
    %s53 = sphi 0, %s53
    %s55 = sphi 0, %s53
    %s56 = sphi 0, %s55
    %s70 = sphi 0, %s56
    %s74 = sphi 0, %s74
    %s76 = sphi 0, %s74
    %s77 = sphi 0, %s76
    %s91 = sphi 0, %s77
    %s95 = sphi 0, %s95
    %s97 = sphi 0, %s95
    %s98 = sphi 0, %s97
    %s112 = sphi 0, %s98
    %s116 = sphi 0, %s116
    %s118 = sphi 0, %s116
    %s119 = sphi 0, %s118
    %s133 = sphi 0, %s119
    %s137 = sphi 0, %s137
    %s139 = sphi 0, %s137
    %s140 = sphi 0, %s139
    %s154 = sphi 0, %s140
    %s158 = sphi 0, %s158
    %s160 = sphi 0, %s158
    %s161 = sphi 0, %s160
    %s175 = sphi 0, %s161
    %s179 = sphi 0, %s179
    %s181 = sphi 0, %s179
    %s182 = sphi 0, %s181
    %s196 = sphi 0, %s182
    %s200 = sphi 0, %s200
    %s202 = sphi 0, %s200
    %s203 = sphi 0, %s202
    %s217 = sphi 0, %s203
    %s221 = sphi 0, %s221
    %s223 = sphi 0, %s221
    %s224 = sphi 0, %s223
    %s238 = sphi 0, %s224
    %s242 = sphi 0, %s242
    %s244 = sphi 0, %s242
    %s245 = sphi 0, %s244
    %s259 = sphi 0, %s245
    %s263 = sphi 0, %s263
    %s265 = sphi 0, %s263
    %s266 = sphi 0, %s265
    %s280 = sphi 0, %s266
    %s284 = sphi 0, %s284
    %s286 = sphi 0, %s284
    %s287 = sphi 0, %s286
    %s301 = sphi 0, %s287
    %s307 = sphi 0, %s309
    %s310 = sphi 0, %s307
    %s311 = sphi 0, %s310
    %s327 = sphi 0, %s311
  $region4: #{transformer_forward.5} parent=0 // loop_header_branch
    %22 = sbr.rel (%p20) target = $region8
  $region5: #{transformer_forward.5} parent=0 // loop_body
    %s24 = ssub.s32 %s19, 1
    %s25 = ssub.s32 %s19, 2
    %s26 = sadd.s32 %s19, 1
    %s27 = ssub.s32 %s19, %s26
    %p28 = scmp.eq.s32.totalorder %s27, 0
    %s30 = sadd.s32 %s29, 1
    %s31 = scalar_select %p28, %s29, %s30
    %p34 = pneg %p28
    %p35 = scmp.eq.s32.totalorder %s19, 1
    %p36 = por %p34, %p35
    %p37 = scmp.ne.s32.totalorder %s29, %s32
    %p38 = scmp.eq.s32.totalorder %s19, 0
    %p39 = por %p37, %p38
    %p40 = scmp.ne.s32.totalorder %s29, %s32
    %p41 = scmp.eq.s32.totalorder %s24, 1
    %p42 = por %p40, %p41
    %p43 = scmp.ne.s32.totalorder %s32, %s33
    %p44 = scmp.eq.s32.totalorder %s24, 0
    %p45 = por %p43, %p44
    %p46 = scmp.ne.s32.totalorder %s32, %s33
    %p47 = scmp.eq.s32.totalorder %s25, 1
    %p48 = por %p46, %p47
    %p50 = scmp.ne.s32.totalorder %s33, %s49
    %p51 = scmp.eq.s32.totalorder %s25, 0
    %p52 = por %p50, %p51
    %s54 = sadd.s32 %s53, 1
    %p57 = scmp.eq.s32.totalorder %s19, 1
    %p58 = scmp.ne.s32.totalorder %s53, %s55
    %p59 = scmp.eq.s32.totalorder %s19, 0
    %p60 = por %p58, %p59
    %p61 = scmp.ne.s32.totalorder %s53, %s55
    %p62 = scmp.eq.s32.totalorder %s24, 1
    %p63 = por %p61, %p62
    %p64 = scmp.ne.s32.totalorder %s55, %s56
    %p65 = scmp.eq.s32.totalorder %s24, 0
    %p66 = por %p64, %p65
    %p67 = scmp.ne.s32.totalorder %s55, %s56
    %p68 = scmp.eq.s32.totalorder %s25, 1
    %p69 = por %p67, %p68
    %p71 = scmp.ne.s32.totalorder %s56, %s70
    %p72 = scmp.eq.s32.totalorder %s25, 0
    %p73 = por %p71, %p72
    %s75 = sadd.s32 %s74, 1
    %p78 = scmp.eq.s32.totalorder %s19, 1
    %p79 = scmp.ne.s32.totalorder %s74, %s76
    %p80 = scmp.eq.s32.totalorder %s19, 0
    %p81 = por %p79, %p80
    %p82 = scmp.ne.s32.totalorder %s74, %s76
    %p83 = scmp.eq.s32.totalorder %s24, 1
    %p84 = por %p82, %p83
    %p85 = scmp.ne.s32.totalorder %s76, %s77
    %p86 = scmp.eq.s32.totalorder %s24, 0
    %p87 = por %p85, %p86
    %p88 = scmp.ne.s32.totalorder %s76, %s77
    %p89 = scmp.eq.s32.totalorder %s25, 1
    %p90 = por %p88, %p89
    %p92 = scmp.ne.s32.totalorder %s77, %s91
    %p93 = scmp.eq.s32.totalorder %s25, 0
    %p94 = por %p92, %p93
    %s96 = sadd.s32 %s95, 1
    %p99 = scmp.eq.s32.totalorder %s19, 1
    %p100 = scmp.ne.s32.totalorder %s95, %s97
    %p101 = scmp.eq.s32.totalorder %s19, 0
    %p102 = por %p100, %p101
    %p103 = scmp.ne.s32.totalorder %s95, %s97
    %p104 = scmp.eq.s32.totalorder %s24, 1
    %p105 = por %p103, %p104
    %p106 = scmp.ne.s32.totalorder %s97, %s98
    %p107 = scmp.eq.s32.totalorder %s24, 0
    %p108 = por %p106, %p107
    %p109 = scmp.ne.s32.totalorder %s97, %s98
    %p110 = scmp.eq.s32.totalorder %s25, 1
    %p111 = por %p109, %p110
    %p113 = scmp.ne.s32.totalorder %s98, %s112
    %p114 = scmp.eq.s32.totalorder %s25, 0
    %p115 = por %p113, %p114
    %s117 = sadd.s32 %s116, 1
    %p120 = scmp.eq.s32.totalorder %s19, 1
    %p121 = scmp.ne.s32.totalorder %s116, %s118
    %p122 = scmp.eq.s32.totalorder %s19, 0
    %p123 = por %p121, %p122
    %p124 = scmp.ne.s32.totalorder %s116, %s118
    %p125 = scmp.eq.s32.totalorder %s24, 1
    %p126 = por %p124, %p125
    %p127 = scmp.ne.s32.totalorder %s118, %s119
    %p128 = scmp.eq.s32.totalorder %s24, 0
    %p129 = por %p127, %p128
    %p130 = scmp.ne.s32.totalorder %s118, %s119
    %p131 = scmp.eq.s32.totalorder %s25, 1
    %p132 = por %p130, %p131
    %p134 = scmp.ne.s32.totalorder %s119, %s133
    %p135 = scmp.eq.s32.totalorder %s25, 0
    %p136 = por %p134, %p135
    %s138 = sadd.s32 %s137, 1
    %p141 = scmp.eq.s32.totalorder %s19, 1
    %p142 = scmp.ne.s32.totalorder %s137, %s139
    %p143 = scmp.eq.s32.totalorder %s19, 0
    %p144 = por %p142, %p143
    %p145 = scmp.ne.s32.totalorder %s137, %s139
    %p146 = scmp.eq.s32.totalorder %s24, 1
    %p147 = por %p145, %p146
    %p148 = scmp.ne.s32.totalorder %s139, %s140
    %p149 = scmp.eq.s32.totalorder %s24, 0
    %p150 = por %p148, %p149
    %p151 = scmp.ne.s32.totalorder %s139, %s140
    %p152 = scmp.eq.s32.totalorder %s25, 1
    %p153 = por %p151, %p152
    %p155 = scmp.ne.s32.totalorder %s140, %s154
    %p156 = scmp.eq.s32.totalorder %s25, 0
    %p157 = por %p155, %p156
    %s159 = sadd.s32 %s158, 1
    %p162 = scmp.eq.s32.totalorder %s19, 1
    %p163 = scmp.ne.s32.totalorder %s158, %s160
    %p164 = scmp.eq.s32.totalorder %s19, 0
    %p165 = por %p163, %p164
    %p166 = scmp.ne.s32.totalorder %s158, %s160
    %p167 = scmp.eq.s32.totalorder %s24, 1
    %p168 = por %p166, %p167
    %p169 = scmp.ne.s32.totalorder %s160, %s161
    %p170 = scmp.eq.s32.totalorder %s24, 0
    %p171 = por %p169, %p170
    %p172 = scmp.ne.s32.totalorder %s160, %s161
    %p173 = scmp.eq.s32.totalorder %s25, 1
    %p174 = por %p172, %p173
    %p176 = scmp.ne.s32.totalorder %s161, %s175
    %p177 = scmp.eq.s32.totalorder %s25, 0
    %p178 = por %p176, %p177
    %s180 = sadd.s32 %s179, 1
    %p183 = scmp.eq.s32.totalorder %s19, 1
    %p184 = scmp.ne.s32.totalorder %s179, %s181
    %p185 = scmp.eq.s32.totalorder %s19, 0
    %p186 = por %p184, %p185
    %p187 = scmp.ne.s32.totalorder %s179, %s181
    %p188 = scmp.eq.s32.totalorder %s24, 1
    %p189 = por %p187, %p188
    %p190 = scmp.ne.s32.totalorder %s181, %s182
    %p191 = scmp.eq.s32.totalorder %s24, 0
    %p192 = por %p190, %p191
    %p193 = scmp.ne.s32.totalorder %s181, %s182
    %p194 = scmp.eq.s32.totalorder %s25, 1
    %p195 = por %p193, %p194
    %p197 = scmp.ne.s32.totalorder %s182, %s196
    %p198 = scmp.eq.s32.totalorder %s25, 0
    %p199 = por %p197, %p198
    %s201 = sadd.s32 %s200, 1
    %p204 = scmp.eq.s32.totalorder %s19, 1
    %p205 = scmp.ne.s32.totalorder %s200, %s202
    %p206 = scmp.eq.s32.totalorder %s19, 0
    %p207 = por %p205, %p206
    %p208 = scmp.ne.s32.totalorder %s200, %s202
    %p209 = scmp.eq.s32.totalorder %s24, 1
    %p210 = por %p208, %p209
    %p211 = scmp.ne.s32.totalorder %s202, %s203
    %p212 = scmp.eq.s32.totalorder %s24, 0
    %p213 = por %p211, %p212
    %p214 = scmp.ne.s32.totalorder %s202, %s203
    %p215 = scmp.eq.s32.totalorder %s25, 1
    %p216 = por %p214, %p215
    %p218 = scmp.ne.s32.totalorder %s203, %s217
    %p219 = scmp.eq.s32.totalorder %s25, 0
    %p220 = por %p218, %p219
    %s222 = sadd.s32 %s221, 1
    %p225 = scmp.eq.s32.totalorder %s19, 1
    %p226 = scmp.ne.s32.totalorder %s221, %s223
    %p227 = scmp.eq.s32.totalorder %s19, 0
    %p228 = por %p226, %p227
    %p229 = scmp.ne.s32.totalorder %s221, %s223
    %p230 = scmp.eq.s32.totalorder %s24, 1
    %p231 = por %p229, %p230
    %p232 = scmp.ne.s32.totalorder %s223, %s224
    %p233 = scmp.eq.s32.totalorder %s24, 0
    %p234 = por %p232, %p233
    %p235 = scmp.ne.s32.totalorder %s223, %s224
    %p236 = scmp.eq.s32.totalorder %s25, 1
    %p237 = por %p235, %p236
    %p239 = scmp.ne.s32.totalorder %s224, %s238
    %p240 = scmp.eq.s32.totalorder %s25, 0
    %p241 = por %p239, %p240
    %s243 = sadd.s32 %s242, 1
    %p246 = scmp.eq.s32.totalorder %s19, 1
    %p247 = scmp.ne.s32.totalorder %s242, %s244
    %p248 = scmp.eq.s32.totalorder %s19, 0
    %p249 = por %p247, %p248
    %p250 = scmp.ne.s32.totalorder %s242, %s244
    %p251 = scmp.eq.s32.totalorder %s24, 1
    %p252 = por %p250, %p251
    %p253 = scmp.ne.s32.totalorder %s244, %s245
    %p254 = scmp.eq.s32.totalorder %s24, 0
    %p255 = por %p253, %p254
    %p256 = scmp.ne.s32.totalorder %s244, %s245
    %p257 = scmp.eq.s32.totalorder %s25, 1
    %p258 = por %p256, %p257
    %p260 = scmp.ne.s32.totalorder %s245, %s259
    %p261 = scmp.eq.s32.totalorder %s25, 0
    %p262 = por %p260, %p261
    %s264 = sadd.s32 %s263, 1
    %p267 = scmp.eq.s32.totalorder %s19, 1
    %p268 = scmp.ne.s32.totalorder %s263, %s265
    %p269 = scmp.eq.s32.totalorder %s19, 0
    %p270 = por %p268, %p269
    %p271 = scmp.ne.s32.totalorder %s263, %s265
    %p272 = scmp.eq.s32.totalorder %s24, 1
    %p273 = por %p271, %p272
    %p274 = scmp.ne.s32.totalorder %s265, %s266
    %p275 = scmp.eq.s32.totalorder %s24, 0
    %p276 = por %p274, %p275
    %p277 = scmp.ne.s32.totalorder %s265, %s266
    %p278 = scmp.eq.s32.totalorder %s25, 1
    %p279 = por %p277, %p278
    %p281 = scmp.ne.s32.totalorder %s266, %s280
    %p282 = scmp.eq.s32.totalorder %s25, 0
    %p283 = por %p281, %p282
    %s285 = sadd.s32 %s284, 1
    %p288 = scmp.eq.s32.totalorder %s19, 1
    %p289 = scmp.ne.s32.totalorder %s284, %s286
    %p290 = scmp.eq.s32.totalorder %s19, 0
    %p291 = por %p289, %p290
    %p292 = scmp.ne.s32.totalorder %s284, %s286
    %p293 = scmp.eq.s32.totalorder %s24, 1
    %p294 = por %p292, %p293
    %p295 = scmp.ne.s32.totalorder %s286, %s287
    %p296 = scmp.eq.s32.totalorder %s24, 0
    %p297 = por %p295, %p296
    %p298 = scmp.ne.s32.totalorder %s286, %s287
    %p299 = scmp.eq.s32.totalorder %s25, 1
    %p300 = por %p298, %p299
    %p302 = scmp.ne.s32.totalorder %s287, %s301
    %p303 = scmp.eq.s32.totalorder %s25, 0
    %p304 = por %p302, %p303
    %s305 = ssub.s32 %s19, %s26
    %p306 = scmp.eq.s32.totalorder %s305, 0
    %s308 = sadd.s32 %s307, 1
    %s309 = scalar_select %p306, %s307, %s308
    %p312 = pneg %p306
    %p313 = scmp.eq.s32.totalorder %s19, 1
    %p314 = por %p312, %p313
    %p315 = scmp.ne.s32.totalorder %s307, %s310
    %p316 = scmp.eq.s32.totalorder %s19, 0
    %p317 = por %p315, %p316
    %p318 = scmp.ne.s32.totalorder %s307, %s310
    %p319 = scmp.eq.s32.totalorder %s24, 1
    %p320 = por %p318, %p319
    %p321 = scmp.ne.s32.totalorder %s310, %s311
    %p322 = scmp.eq.s32.totalorder %s24, 0
    %p323 = por %p321, %p322
    %p324 = scmp.ne.s32.totalorder %s310, %s311
    %p325 = scmp.eq.s32.totalorder %s25, 1
    %p326 = por %p324, %p325
    %p328 = scmp.ne.s32.totalorder %s311, %s327
    %p329 = scmp.eq.s32.totalorder %s25, 0
    %p330 = por %p328, %p329
    %p331 = scmp.le.s32.totalorder 1, %s19
    %p332 = scmp.lt.s32.totalorder %s19, 3
    %p333 = pnand %p331, %p332
    %p334 = pneg %p333
    // Predicated region
    $region9: #{transformer_forward.5} parent=5 // pred_check
      _
    $region10: #{transformer_forward.5} parent=5 // pred_check_branch
      %336 = sbr.rel (%p333) target = $region12
    $region11: #{transformer_forward.5} parent=5 // pred_region
      %s337 = ssub.s32 %s19, 1
      // Predicated region
      $region13: #{transformer_forward.5} parent=11 // pred_check
        %p338 = pneg %p66
      $region14: #{transformer_forward.5} parent=11 // pred_check_branch
        %340 = sbr.rel (%p338) target = $region16
      $region15: #{transformer_forward.5} parent=11 // pred_region
        _
      $region16: #{transformer_forward.5} parent=11 // pred_fallthru
        _
      // Predicated region
      $region17: #{transformer_forward.5} parent=11 // pred_check
        %p341 = pneg %p87
      $region18: #{transformer_forward.5} parent=11 // pred_check_branch
        %343 = sbr.rel (%p341) target = $region20
      $region19: #{transformer_forward.5} parent=11 // pred_region
        _
      $region20: #{transformer_forward.5} parent=11 // pred_fallthru
        _
      // Predicated region
      $region21: #{transformer_forward.5} parent=11 // pred_check
        %p344 = pneg %p108
      $region22: #{transformer_forward.5} parent=11 // pred_check_branch
        %346 = sbr.rel (%p344) target = $region24
      $region23: #{transformer_forward.5} parent=11 // pred_region
        _
      $region24: #{transformer_forward.5} parent=11 // pred_fallthru
        _
      // Predicated region
      $region25: #{transformer_forward.5} parent=11 // pred_check
        %p347 = pneg %p129
      $region26: #{transformer_forward.5} parent=11 // pred_check_branch
        %349 = sbr.rel (%p347) target = $region28
      $region27: #{transformer_forward.5} parent=11 // pred_region
        _
      $region28: #{transformer_forward.5} parent=11 // pred_fallthru
        _
      // Predicated region
      $region29: #{transformer_forward.5} parent=11 // pred_check
        %p350 = pneg %p150
      $region30: #{transformer_forward.5} parent=11 // pred_check_branch
        %352 = sbr.rel (%p350) target = $region32
      $region31: #{transformer_forward.5} parent=11 // pred_region
        _
      $region32: #{transformer_forward.5} parent=11 // pred_fallthru
        _
      // Predicated region
      $region33: #{transformer_forward.5} parent=11 // pred_check
        %p353 = pneg %p171
      $region34: #{transformer_forward.5} parent=11 // pred_check_branch
        %355 = sbr.rel (%p353) target = $region36
      $region35: #{transformer_forward.5} parent=11 // pred_region
        _
      $region36: #{transformer_forward.5} parent=11 // pred_fallthru
        _
      // Predicated region
      $region37: #{transformer_forward.5} parent=11 // pred_check
        %p356 = pneg %p192
      $region38: #{transformer_forward.5} parent=11 // pred_check_branch
        %358 = sbr.rel (%p356) target = $region40
      $region39: #{transformer_forward.5} parent=11 // pred_region
        _
      $region40: #{transformer_forward.5} parent=11 // pred_fallthru
        _
      // Predicated region
      $region41: #{transformer_forward.5} parent=11 // pred_check
        %p359 = pneg %p213
      $region42: #{transformer_forward.5} parent=11 // pred_check_branch
        %361 = sbr.rel (%p359) target = $region44
      $region43: #{transformer_forward.5} parent=11 // pred_region
        _
      $region44: #{transformer_forward.5} parent=11 // pred_fallthru
        _
      // Predicated region
      $region45: #{transformer_forward.5} parent=11 // pred_check
        %p362 = pneg %p234
      $region46: #{transformer_forward.5} parent=11 // pred_check_branch
        %364 = sbr.rel (%p362) target = $region48
      $region47: #{transformer_forward.5} parent=11 // pred_region
        _
      $region48: #{transformer_forward.5} parent=11 // pred_fallthru
        _
      // Predicated region
      $region49: #{transformer_forward.5} parent=11 // pred_check
        %p365 = pneg %p255
      $region50: #{transformer_forward.5} parent=11 // pred_check_branch
        %367 = sbr.rel (%p365) target = $region52
      $region51: #{transformer_forward.5} parent=11 // pred_region
        _
      $region52: #{transformer_forward.5} parent=11 // pred_fallthru
        _
      // Predicated region
      $region53: #{transformer_forward.5} parent=11 // pred_check
        %p368 = pneg %p276
      $region54: #{transformer_forward.5} parent=11 // pred_check_branch
        %370 = sbr.rel (%p368) target = $region56
      $region55: #{transformer_forward.5} parent=11 // pred_region
        _
      $region56: #{transformer_forward.5} parent=11 // pred_fallthru
        _
      // Predicated region
      $region57: #{transformer_forward.5} parent=11 // pred_check
        %p371 = pneg %p297
      $region58: #{transformer_forward.5} parent=11 // pred_check_branch
        %373 = sbr.rel (%p371) target = $region60
      $region59: #{transformer_forward.5} parent=11 // pred_region
        _
      $region60: #{transformer_forward.5} parent=11 // pred_fallthru
        _
    $region12: #{transformer_forward.5} parent=5 // pred_fallthru
      _
    %p374 = scmp.lt.s32.totalorder %s19, 2
    // Predicated region
    $region61: #{transformer_forward.5} parent=5 // pred_check
      %p375 = pneg %p374
    $region62: #{transformer_forward.5} parent=5 // pred_check_branch
      %377 = sbr.rel (%p375) target = $region64
    $region63: #{transformer_forward.5} parent=5 // pred_region
      // Predicated region
      $region65: #{transformer_forward.5} parent=63 // pred_check
        %p378 = pneg %p39
      $region66: #{transformer_forward.5} parent=63 // pred_check_branch
        %380 = sbr.rel (%p378) target = $region68
      $region67: #{transformer_forward.5} parent=63 // pred_region
        %p381 = scmp.lt.s32.totalorder %s19, 1
        %s382 = scalar_select %p381, %s19, 1
        %s383 = smul.addr %s382, 8
        %s384 = scalar_lea.vmem %s0, %s383
      $region68: #{transformer_forward.5} parent=63 // pred_fallthru
        _
    $region64: #{transformer_forward.5} parent=5 // pred_fallthru
      _
    %p385 = scmp.le.s32.totalorder 1, %s19
    %p386 = scmp.lt.s32.totalorder %s19, 3
    %p387 = pnand %p385, %p386
    %p388 = pneg %p387
    // Predicated region
    $region69: #{transformer_forward.5} parent=5 // pred_check
      _
    $region70: #{transformer_forward.5} parent=5 // pred_check_branch
      %390 = sbr.rel (%p387) target = $region72
    $region71: #{transformer_forward.5} parent=5 // pred_region
      %s391 = ssub.s32 %s19, 1
      %p392 = scmp.lt.s32.totalorder %s24, 1
      %s393 = scalar_select %p392, %s24, 1
      %s394 = smul.addr %s393, 8
      %s395 = scalar_lea.vmem %s0, %s394
      %p396 = pneg %p45
      %p397 = pneg %p42
      %p398 = pneg %p66
      %p399 = pneg %p63
      %p400 = pneg %p87
      %p401 = pneg %p84
      %p402 = pneg %p108
      %p403 = pneg %p105
      %p404 = pneg %p129
      %p405 = pneg %p126
      %p406 = pneg %p150
      %p407 = pneg %p147
      %p408 = pneg %p171
      %p409 = pneg %p168
      %p410 = pneg %p192
      %p411 = pneg %p189
      %p412 = pneg %p213
      %p413 = pneg %p210
      %p414 = pneg %p234
      %p415 = pneg %p231
      %p416 = pneg %p255
      %p417 = pneg %p252
      %p418 = pneg %p276
      %p419 = pneg %p273
      %p420 = pneg %p297
      %p421 = pneg %p294
      %p422 = pneg %p323
      %p423 = pneg %p320
      %p424 = scmp.lt.s32.totalorder %s24, 1
      %s425 = scalar_select %p424, %s24, 1
      %s426 = smul.addr %s425, 8
      %s427 = scalar_lea.vmem %s13, %s426
      %p428 = scmp.lt.s32.totalorder %s24, 1
      %s429 = scalar_select %p428, %s24, 1
      %s430 = smul.addr %s429, 8
      %s431 = scalar_lea.vmem %s0, %s430
      %p432 = scmp.lt.s32.totalorder %s24, 1
      %s433 = scalar_select %p432, %s24, 1
      %s434 = smul.addr %s433, 8
      %s435 = scalar_lea.vmem %s13, %s434
      %v437 = vld [vmem:[%s431] sm:$0xff]
      %v438 = vpack.c.bf16 %v437, %v437
      %v439 = vld [vmem:[%s1] sm:$0xf]
      %v440 = vld [vmem:[%s1 + $0x4] sm:$0xf]
      %v441 = vld [vmem:[%s1 + $0x8] sm:$0xf]
      %v442 = vld [vmem:[%s1 + $0xc] sm:$0xf]
      %v443 = vld [vmem:[%s2] sm:$0x1]
      %v445 = vlaneseq
      %v446 = vshrl.u32 %v445, 7
      %v447 = vsub.s32 0, %v446
      %v448 = vrot.slane %v443, %v447
      %v454 = vunpack.c.l.b16 %v439
      %v455 = vunpack.c.l.b16 %v440
      %v456 = vunpack.c.l.b16 %v441
      %v457 = vunpack.c.l.b16 %v442
      %v458 = vpack.c.b16 %v455, %v454
      %v459 = vpack.c.b16 %v457, %v456
      %vm462 = vcmask 261120
      %v464 = vsel %vm462, %v438, 0
      %466 = vmatprep.subr.bf16.mxu0 0
      %467 = vmatpush1.bf16.msra.mxu0 %v458
      %468 = vmatprep.subr.bf16.mxu0 0
      %469 = vmatpush1.bf16.msra.mxu0 %v459
      %470 = vmatprep.subr.bf16.mxu0 0
      %471 = vmatpush1.bf16.msra.mxu0 0
      %472 = vmatprep.subr.bf16.mxu0 0
      %473 = vmatpush1.bf16.msra.mxu0 0
      %474 = vmatprep.subr.bf16.mxu0 0
      %475 = vmatpush1.bf16.msra.mxu0 0
      %476 = vmatprep.subr.bf16.mxu0 0
      %477 = vmatpush1.bf16.msra.mxu0 0
      %478 = vmatprep.subr.bf16.mxu0 0
      %479 = vmatpush1.bf16.msra.mxu0 0
      %480 = vmatprep.subr.bf16.mxu0 0
      %481 = vmatpush1.bf16.msra.mxu0 0
      %482 = vmatprep.subr.bf16.mxu0 0
      %483 = vmatpush1.bf16.msra.mxu0 0
      %484 = vmatprep.subr.bf16.mxu0 0
      %485 = vmatpush1.bf16.msra.mxu0 0
      %486 = vmatprep.subr.bf16.mxu0 0
      %487 = vmatpush1.bf16.msra.mxu0 0
      %488 = vmatprep.subr.bf16.mxu0 0
      %489 = vmatpush1.bf16.msra.mxu0 0
      %490 = vmatprep.subr.bf16.mxu0 0
      %491 = vmatpush1.bf16.msra.mxu0 0
      %492 = vmatprep.subr.bf16.mxu0 0
      %493 = vmatpush1.bf16.msra.mxu0 0
      %494 = vmatprep.subr.bf16.mxu0 0
      %495 = vmatpush1.bf16.msra.mxu0 0
      %496 = vmatprep.subr.bf16.mxu0 0
      %497 = vmatpush1.bf16.msra.mxu0 0
      %498 = vmatprep.mubr.bf16.mxu0 0
      %499 = vmatmul.mubr.bf16.gmra.mrb[0].mxu0 %v464
      %v500 = vpop.f32.mrb[0].mxu0
      %v501 = vadd.f32 %v448, %v500
      %v502 = vpop.f32.mrb[0].mxu0
      %v503 = vpop.f32.mrb[0].mxu0
      %v504 = vpop.f32.mrb[0].mxu0
      %505 = vdwg.mxu0
      %v506 = vpack.c.bf16 %v501, %v501
      %508 = vrot.lane.b32.xlu0 %v506, 96
      %v509 = vpop.permute.xlu0 %508
      %vm510 = vcmask 64512
      %v512 = vsel %vm510, %v506, 0
      %v515 = vsel %vm510, %v509, 0
      %517 = vmatprep.subr.bf16.mxu0 0
      %518 = vmatpush1.bf16.xpose.msra.mxu0 %v515
      %519 = vmatprep.subr.bf16.mxu0 0
      %520 = vmatpush1.bf16.xpose.msra.mxu0 0
      %521 = vmatprep.subr.bf16.mxu0 0
      %522 = vmatpush1.bf16.xpose.msra.mxu0 0
      %523 = vmatprep.subr.bf16.mxu0 0
      %524 = vmatpush1.bf16.xpose.msra.mxu0 0
      %525 = vmatprep.subr.bf16.mxu0 0
      %526 = vmatpush1.bf16.xpose.msra.mxu0 0
      %527 = vmatprep.subr.bf16.mxu0 0
      %528 = vmatpush1.bf16.xpose.msra.mxu0 0
      %529 = vmatprep.subr.bf16.mxu0 0
      %530 = vmatpush1.bf16.xpose.msra.mxu0 0
      %531 = vmatprep.subr.bf16.mxu0 0
      %532 = vmatpush1.bf16.xpose.msra.mxu0 0
      %533 = vmatprep.subr.bf16.mxu0 0
      %534 = vmatpush1.bf16.xpose.msra.mxu0 0
      %535 = vmatprep.subr.bf16.mxu0 0
      %536 = vmatpush1.bf16.xpose.msra.mxu0 0
      %537 = vmatprep.subr.bf16.mxu0 0
      %538 = vmatpush1.bf16.xpose.msra.mxu0 0
      %539 = vmatprep.subr.bf16.mxu0 0
      %540 = vmatpush1.bf16.xpose.msra.mxu0 0
      %541 = vmatprep.subr.bf16.mxu0 0
      %542 = vmatpush1.bf16.xpose.msra.mxu0 0
      %543 = vmatprep.subr.bf16.mxu0 0
      %544 = vmatpush1.bf16.xpose.msra.mxu0 0
      %545 = vmatprep.subr.bf16.mxu0 0
      %546 = vmatpush1.bf16.xpose.msra.mxu0 0
      %547 = vmatprep.subr.bf16.mxu0 0
      %548 = vmatpush1.bf16.xpose.msra.mxu0 0
      %549 = vmatprep.mubr.bf16.mxu0 0
      %550 = vmatmul.mubr.bf16.gmra.mrb[0].mxu0 %v512
      %v551 = vpop.f32.mrb[0].mxu0
      %v552 = vadd.f32 0.0, %v551
      %v553 = vpop.f32.mrb[0].mxu0
      %v554 = vpop.f32.mrb[0].mxu0
      %v555 = vpop.f32.mrb[0].mxu0
      %556 = vdwg.mxu0
      %v557 = vsel %vm510, %v552, -inf
      %558 = vmax.xlane.f32.xlu0 %v557
      %v559 = vpop.xlane.xlu0 %558
      %v560 = vsub.f32 %v552, %v559
      %v561 = vmul.f32 %v560, 1.442695
      %v562 = vpow.pop %v561
      %v563 = vsel %vm510, %v562, 0.0
      %564 = vadd.xlane.f32.xlu0 %v563
      %v565 = vpop.xlane.xlu0 %564
      %v566 = vrcp.pop %v565
      %v567 = vmul.f32 %v562, %v566
      %v568 = vpack.c.bf16 %v567, %v567
      %569 = vrot.lane.b32.xlu0 %v506, 64
      %v570 = vpop.permute.xlu0 %569
      %v572 = vsel %vm510, %v568, 0
      %vm574 = vcmask 1043456
      %v576 = vsel %vm574, %v570, 0
      %578 = vmatprep.subr.bf16.mxu0 0
      %579 = vmatpush1.bf16.msra.mxu0 %v576
      %580 = vmatprep.subr.bf16.mxu0 0
      %581 = vmatpush1.bf16.msra.mxu0 0
      %582 = vmatprep.subr.bf16.mxu0 0
      %583 = vmatpush1.bf16.msra.mxu0 0
      %584 = vmatprep.subr.bf16.mxu0 0
      %585 = vmatpush1.bf16.msra.mxu0 0
      %586 = vmatprep.subr.bf16.mxu0 0
      %587 = vmatpush1.bf16.msra.mxu0 0
      %588 = vmatprep.subr.bf16.mxu0 0
      %589 = vmatpush1.bf16.msra.mxu0 0
      %590 = vmatprep.subr.bf16.mxu0 0
      %591 = vmatpush1.bf16.msra.mxu0 0
      %592 = vmatprep.subr.bf16.mxu0 0
      %593 = vmatpush1.bf16.msra.mxu0 0
      %594 = vmatprep.subr.bf16.mxu0 0
      %595 = vmatpush1.bf16.msra.mxu0 0
      %596 = vmatprep.subr.bf16.mxu0 0
      %597 = vmatpush1.bf16.msra.mxu0 0
      %598 = vmatprep.subr.bf16.mxu0 0
      %599 = vmatpush1.bf16.msra.mxu0 0
      %600 = vmatprep.subr.bf16.mxu0 0
      %601 = vmatpush1.bf16.msra.mxu0 0
      %602 = vmatprep.subr.bf16.mxu0 0
      %603 = vmatpush1.bf16.msra.mxu0 0
      %604 = vmatprep.subr.bf16.mxu0 0
      %605 = vmatpush1.bf16.msra.mxu0 0
      %606 = vmatprep.subr.bf16.mxu0 0
      %607 = vmatpush1.bf16.msra.mxu0 0
      %608 = vmatprep.subr.bf16.mxu0 0
      %609 = vmatpush1.bf16.msra.mxu0 0
      %610 = vmatprep.mubr.bf16.mxu0 0
      %611 = vmatmul.mubr.bf16.gmra.mrb[0].mxu0 %v572
      %v612 = vpop.f32.mrb[0].mxu0
      %v613 = vadd.f32 0.0, %v612
      %v614 = vpop.f32.mrb[0].mxu0
      %v615 = vpop.f32.mrb[0].mxu0
      %v616 = vpop.f32.mrb[0].mxu0
      %617 = vdwg.mxu0
      %618 = vrot.lane.b32.xlu0 %v506, 120
      %v619 = vpop.permute.xlu0 %618
      %620 = vrot.lane.b32.xlu0 %v506, 88
      %v621 = vpop.permute.xlu0 %620
      %v623 = vsel %vm510, %v619, 0
      %v626 = vsel %vm510, %v621, 0
      %628 = vmatprep.subr.bf16.mxu0 0
      %629 = vmatpush1.bf16.xpose.msra.mxu0 %v626
      %630 = vmatprep.subr.bf16.mxu0 0
      %631 = vmatpush1.bf16.xpose.msra.mxu0 0
      %632 = vmatprep.subr.bf16.mxu0 0
      %633 = vmatpush1.bf16.xpose.msra.mxu0 0
      %634 = vmatprep.subr.bf16.mxu0 0
      %635 = vmatpush1.bf16.xpose.msra.mxu0 0
      %636 = vmatprep.subr.bf16.mxu0 0
      %637 = vmatpush1.bf16.xpose.msra.mxu0 0
      %638 = vmatprep.subr.bf16.mxu0 0
      %639 = vmatpush1.bf16.xpose.msra.mxu0 0
      %640 = vmatprep.subr.bf16.mxu0 0
      %641 = vmatpush1.bf16.xpose.msra.mxu0 0
      %642 = vmatprep.subr.bf16.mxu0 0
      %643 = vmatpush1.bf16.xpose.msra.mxu0 0
      %644 = vmatprep.subr.bf16.mxu0 0
      %645 = vmatpush1.bf16.xpose.msra.mxu0 0
      %646 = vmatprep.subr.bf16.mxu0 0
      %647 = vmatpush1.bf16.xpose.msra.mxu0 0
      %648 = vmatprep.subr.bf16.mxu0 0
      %649 = vmatpush1.bf16.xpose.msra.mxu0 0
      %650 = vmatprep.subr.bf16.mxu0 0
      %651 = vmatpush1.bf16.xpose.msra.mxu0 0
      %652 = vmatprep.subr.bf16.mxu0 0
      %653 = vmatpush1.bf16.xpose.msra.mxu0 0
      %654 = vmatprep.subr.bf16.mxu0 0
      %655 = vmatpush1.bf16.xpose.msra.mxu0 0
      %656 = vmatprep.subr.bf16.mxu0 0
      %657 = vmatpush1.bf16.xpose.msra.mxu0 0
      %658 = vmatprep.subr.bf16.mxu0 0
      %659 = vmatpush1.bf16.xpose.msra.mxu0 0
      %660 = vmatprep.mubr.bf16.mxu0 0
      %661 = vmatmul.mubr.bf16.gmra.mrb[0].mxu0 %v623
      %v662 = vpop.f32.mrb[0].mxu0
      %v663 = vadd.f32 0.0, %v662
      %v664 = vpop.f32.mrb[0].mxu0
      %v665 = vpop.f32.mrb[0].mxu0
      %v666 = vpop.f32.mrb[0].mxu0
      %667 = vdwg.mxu0
      %v668 = vsel %vm510, %v663, -inf
      %669 = vmax.xlane.f32.xlu0 %v668
      %v670 = vpop.xlane.xlu0 %669
      %v671 = vsub.f32 %v663, %v670
      %v672 = vmul.f32 %v671, 1.442695
      %v673 = vpow.pop %v672
      %v674 = vsel %vm510, %v673, 0.0
      %675 = vadd.xlane.f32.xlu0 %v674
      %v676 = vpop.xlane.xlu0 %675
      %v677 = vrcp.pop %v676
      %v678 = vmul.f32 %v673, %v677
      %v679 = vpack.c.bf16 %v678, %v678
      %680 = vrot.lane.b32.xlu0 %v506, 56
      %v681 = vpop.permute.xlu0 %680
      %v683 = vsel %vm510, %v679, 0
      %v686 = vsel %vm574, %v681, 0
      %688 = vmatprep.subr.bf16.mxu0 0
      %689 = vmatpush1.bf16.msra.mxu0 %v686
      %690 = vmatprep.subr.bf16.mxu0 0
      %691 = vmatpush1.bf16.msra.mxu0 0
      %692 = vmatprep.subr.bf16.mxu0 0
      %693 = vmatpush1.bf16.msra.mxu0 0
      %694 = vmatprep.subr.bf16.mxu0 0
      %695 = vmatpush1.bf16.msra.mxu0 0
      %696 = vmatprep.subr.bf16.mxu0 0
      %697 = vmatpush1.bf16.msra.mxu0 0
      %698 = vmatprep.subr.bf16.mxu0 0
      %699 = vmatpush1.bf16.msra.mxu0 0
      %700 = vmatprep.subr.bf16.mxu0 0
      %701 = vmatpush1.bf16.msra.mxu0 0
      %702 = vmatprep.subr.bf16.mxu0 0
      %703 = vmatpush1.bf16.msra.mxu0 0
      %704 = vmatprep.subr.bf16.mxu0 0
      %705 = vmatpush1.bf16.msra.mxu0 0
      %706 = vmatprep.subr.bf16.mxu0 0
      %707 = vmatpush1.bf16.msra.mxu0 0
      %708 = vmatprep.subr.bf16.mxu0 0
      %709 = vmatpush1.bf16.msra.mxu0 0
      %710 = vmatprep.subr.bf16.mxu0 0
      %711 = vmatpush1.bf16.msra.mxu0 0
      %712 = vmatprep.subr.bf16.mxu0 0
      %713 = vmatpush1.bf16.msra.mxu0 0
      %714 = vmatprep.subr.bf16.mxu0 0
      %715 = vmatpush1.bf16.msra.mxu0 0
      %716 = vmatprep.subr.bf16.mxu0 0
      %717 = vmatpush1.bf16.msra.mxu0 0
      %718 = vmatprep.subr.bf16.mxu0 0
      %719 = vmatpush1.bf16.msra.mxu0 0
      %720 = vmatprep.mubr.bf16.mxu0 0
      %721 = vmatmul.mubr.bf16.gmra.mrb[0].mxu0 %v683
      %v722 = vpop.f32.mrb[0].mxu0
      %v723 = vadd.f32 0.0, %v722
      %v724 = vpop.f32.mrb[0].mxu0
      %v725 = vpop.f32.mrb[0].mxu0
      %v726 = vpop.f32.mrb[0].mxu0
      %727 = vdwg.mxu0
      %728 = vrot.lane.b32.xlu0 %v506, 112
      %v729 = vpop.permute.xlu0 %728
      %730 = vrot.lane.b32.xlu0 %v506, 80
      %v731 = vpop.permute.xlu0 %730
      %v733 = vsel %vm510, %v729, 0
      %v736 = vsel %vm510, %v731, 0
      %738 = vmatprep.subr.bf16.mxu0 0
      %739 = vmatpush1.bf16.xpose.msra.mxu0 %v736
      %740 = vmatprep.subr.bf16.mxu0 0
      %741 = vmatpush1.bf16.xpose.msra.mxu0 0
      %742 = vmatprep.subr.bf16.mxu0 0
      %743 = vmatpush1.bf16.xpose.msra.mxu0 0
      %744 = vmatprep.subr.bf16.mxu0 0
      %745 = vmatpush1.bf16.xpose.msra.mxu0 0
      %746 = vmatprep.subr.bf16.mxu0 0
      %747 = vmatpush1.bf16.xpose.msra.mxu0 0
      %748 = vmatprep.subr.bf16.mxu0 0
      %749 = vmatpush1.bf16.xpose.msra.mxu0 0
      %750 = vmatprep.subr.bf16.mxu0 0
      %751 = vmatpush1.bf16.xpose.msra.mxu0 0
      %752 = vmatprep.subr.bf16.mxu0 0
      %753 = vmatpush1.bf16.xpose.msra.mxu0 0
      %754 = vmatprep.subr.bf16.mxu0 0
      %755 = vmatpush1.bf16.xpose.msra.mxu0 0
      %756 = vmatprep.subr.bf16.mxu0 0
      %757 = vmatpush1.bf16.xpose.msra.mxu0 0
      %758 = vmatprep.subr.bf16.mxu0 0
      %759 = vmatpush1.bf16.xpose.msra.mxu0 0
      %760 = vmatprep.subr.bf16.mxu0 0
      %761 = vmatpush1.bf16.xpose.msra.mxu0 0
      %762 = vmatprep.subr.bf16.mxu0 0
      %763 = vmatpush1.bf16.xpose.msra.mxu0 0
      %764 = vmatprep.subr.bf16.mxu0 0
      %765 = vmatpush1.bf16.xpose.msra.mxu0 0
      %766 = vmatprep.subr.bf16.mxu0 0
      %767 = vmatpush1.bf16.xpose.msra.mxu0 0
      %768 = vmatprep.subr.bf16.mxu0 0
      %769 = vmatpush1.bf16.xpose.msra.mxu0 0
      %770 = vmatprep.mubr.bf16.mxu0 0
      %771 = vmatmul.mubr.bf16.gmra.mrb[0].mxu0 %v733
      %v772 = vpop.f32.mrb[0].mxu0
      %v773 = vadd.f32 0.0, %v772
      %v774 = vpop.f32.mrb[0].mxu0
      %v775 = vpop.f32.mrb[0].mxu0
      %v776 = vpop.f32.mrb[0].mxu0
      %777 = vdwg.mxu0
      %v778 = vsel %vm510, %v773, -inf
      %779 = vmax.xlane.f32.xlu0 %v778
      %v780 = vpop.xlane.xlu0 %779
      %v781 = vsub.f32 %v773, %v780
      %v782 = vmul.f32 %v781, 1.442695
      %v783 = vpow.pop %v782
      %v784 = vsel %vm510, %v783, 0.0
      %785 = vadd.xlane.f32.xlu0 %v784
      %v786 = vpop.xlane.xlu0 %785
      %v787 = vrcp.pop %v786
      %v788 = vmul.f32 %v783, %v787
      %v789 = vpack.c.bf16 %v788, %v788
      %790 = vrot.lane.b32.xlu0 %v506, 48
      %v791 = vpop.permute.xlu0 %790
      %v793 = vsel %vm510, %v789, 0
      %v796 = vsel %vm574, %v791, 0
      %798 = vmatprep.subr.bf16.mxu0 0
      %799 = vmatpush1.bf16.msra.mxu0 %v796
      %800 = vmatprep.subr.bf16.mxu0 0
      %801 = vmatpush1.bf16.msra.mxu0 0
      %802 = vmatprep.subr.bf16.mxu0 0
      %803 = vmatpush1.bf16.msra.mxu0 0
      %804 = vmatprep.subr.bf16.mxu0 0
      %805 = vmatpush1.bf16.msra.mxu0 0
      %806 = vmatprep.subr.bf16.mxu0 0
      %807 = vmatpush1.bf16.msra.mxu0 0
      %808 = vmatprep.subr.bf16.mxu0 0
      %809 = vmatpush1.bf16.msra.mxu0 0
      %810 = vmatprep.subr.bf16.mxu0 0
      %811 = vmatpush1.bf16.msra.mxu0 0
      %812 = vmatprep.subr.bf16.mxu0 0
      %813 = vmatpush1.bf16.msra.mxu0 0
      %814 = vmatprep.subr.bf16.mxu0 0
      %815 = vmatpush1.bf16.msra.mxu0 0
      %816 = vmatprep.subr.bf16.mxu0 0
      %817 = vmatpush1.bf16.msra.mxu0 0
      %818 = vmatprep.subr.bf16.mxu0 0
      %819 = vmatpush1.bf16.msra.mxu0 0
      %820 = vmatprep.subr.bf16.mxu0 0
      %821 = vmatpush1.bf16.msra.mxu0 0
      %822 = vmatprep.subr.bf16.mxu0 0
      %823 = vmatpush1.bf16.msra.mxu0 0
      %824 = vmatprep.subr.bf16.mxu0 0
      %825 = vmatpush1.bf16.msra.mxu0 0
      %826 = vmatprep.subr.bf16.mxu0 0
      %827 = vmatpush1.bf16.msra.mxu0 0
      %828 = vmatprep.subr.bf16.mxu0 0
      %829 = vmatpush1.bf16.msra.mxu0 0
      %830 = vmatprep.mubr.bf16.mxu0 0
      %831 = vmatmul.mubr.bf16.gmra.mrb[0].mxu0 %v793
      %v832 = vpop.f32.mrb[0].mxu0
      %v833 = vadd.f32 0.0, %v832
      %v834 = vpop.f32.mrb[0].mxu0
      %v835 = vpop.f32.mrb[0].mxu0
      %v836 = vpop.f32.mrb[0].mxu0
      %837 = vdwg.mxu0
      %838 = vrot.lane.b32.xlu0 %v506, 104
      %v839 = vpop.permute.xlu0 %838
      %840 = vrot.lane.b32.xlu0 %v506, 72
      %v841 = vpop.permute.xlu0 %840
      %v843 = vsel %vm510, %v839, 0
      %v846 = vsel %vm510, %v841, 0
      %848 = vmatprep.subr.bf16.mxu0 0
      %849 = vmatpush1.bf16.xpose.msra.mxu0 %v846
      %850 = vmatprep.subr.bf16.mxu0 0
      %851 = vmatpush1.bf16.xpose.msra.mxu0 0
      %852 = vmatprep.subr.bf16.mxu0 0
      %853 = vmatpush1.bf16.xpose.msra.mxu0 0
      %854 = vmatprep.subr.bf16.mxu0 0
      %855 = vmatpush1.bf16.xpose.msra.mxu0 0
      %856 = vmatprep.subr.bf16.mxu0 0
      %857 = vmatpush1.bf16.xpose.msra.mxu0 0
      %858 = vmatprep.subr.bf16.mxu0 0
      %859 = vmatpush1.bf16.xpose.msra.mxu0 0
      %860 = vmatprep.subr.bf16.mxu0 0
      %861 = vmatpush1.bf16.xpose.msra.mxu0 0
      %862 = vmatprep.subr.bf16.mxu0 0
      %863 = vmatpush1.bf16.xpose.msra.mxu0 0
      %864 = vmatprep.subr.bf16.mxu0 0
      %865 = vmatpush1.bf16.xpose.msra.mxu0 0
      %866 = vmatprep.subr.bf16.mxu0 0
      %867 = vmatpush1.bf16.xpose.msra.mxu0 0
      %868 = vmatprep.subr.bf16.mxu0 0
      %869 = vmatpush1.bf16.xpose.msra.mxu0 0
      %870 = vmatprep.subr.bf16.mxu0 0
      %871 = vmatpush1.bf16.xpose.msra.mxu0 0
      %872 = vmatprep.subr.bf16.mxu0 0
      %873 = vmatpush1.bf16.xpose.msra.mxu0 0
      %874 = vmatprep.subr.bf16.mxu0 0
      %875 = vmatpush1.bf16.xpose.msra.mxu0 0
      %876 = vmatprep.subr.bf16.mxu0 0
      %877 = vmatpush1.bf16.xpose.msra.mxu0 0
      %878 = vmatprep.subr.bf16.mxu0 0
      %879 = vmatpush1.bf16.xpose.msra.mxu0 0
      %880 = vmatprep.mubr.bf16.mxu0 0
      %881 = vmatmul.mubr.bf16.gmra.mrb[0].mxu0 %v843
      %v882 = vpop.f32.mrb[0].mxu0
      %v883 = vadd.f32 0.0, %v882
      %v884 = vpop.f32.mrb[0].mxu0
      %v885 = vpop.f32.mrb[0].mxu0
      %v886 = vpop.f32.mrb[0].mxu0
      %887 = vdwg.mxu0
      %v888 = vsel %vm510, %v883, -inf
      %889 = vmax.xlane.f32.xlu0 %v888
      %v890 = vpop.xlane.xlu0 %889
      %v891 = vsub.f32 %v883, %v890
      %v892 = vmul.f32 %v891, 1.442695
      %v893 = vpow.pop %v892
      %v894 = vsel %vm510, %v893, 0.0
      %895 = vadd.xlane.f32.xlu0 %v894
      %v896 = vpop.xlane.xlu0 %895
      %v897 = vrcp.pop %v896
      %v898 = vmul.f32 %v893, %v897
      %v899 = vpack.c.bf16 %v898, %v898
      %900 = vrot.lane.b32.xlu0 %v506, 40
      %v901 = vpop.permute.xlu0 %900
      %v903 = vsel %vm510, %v899, 0
      %v906 = vsel %vm574, %v901, 0
      %908 = vmatprep.subr.bf16.mxu0 0
      %909 = vmatpush1.bf16.msra.mxu0 %v906
      %910 = vmatprep.subr.bf16.mxu0 0
      %911 = vmatpush1.bf16.msra.mxu0 0
      %912 = vmatprep.subr.bf16.mxu0 0
      %913 = vmatpush1.bf16.msra.mxu0 0
      %914 = vmatprep.subr.bf16.mxu0 0
      %915 = vmatpush1.bf16.msra.mxu0 0
      %916 = vmatprep.subr.bf16.mxu0 0
      %917 = vmatpush1.bf16.msra.mxu0 0
      %918 = vmatprep.subr.bf16.mxu0 0
      %919 = vmatpush1.bf16.msra.mxu0 0
      %920 = vmatprep.subr.bf16.mxu0 0
      %921 = vmatpush1.bf16.msra.mxu0 0
      %922 = vmatprep.subr.bf16.mxu0 0
      %923 = vmatpush1.bf16.msra.mxu0 0
      %924 = vmatprep.subr.bf16.mxu0 0
      %925 = vmatpush1.bf16.msra.mxu0 0
      %926 = vmatprep.subr.bf16.mxu0 0
      %927 = vmatpush1.bf16.msra.mxu0 0
      %928 = vmatprep.subr.bf16.mxu0 0
      %929 = vmatpush1.bf16.msra.mxu0 0
      %930 = vmatprep.subr.bf16.mxu0 0
      %931 = vmatpush1.bf16.msra.mxu0 0
      %932 = vmatprep.subr.bf16.mxu0 0
      %933 = vmatpush1.bf16.msra.mxu0 0
      %934 = vmatprep.subr.bf16.mxu0 0
      %935 = vmatpush1.bf16.msra.mxu0 0
      %936 = vmatprep.subr.bf16.mxu0 0
      %937 = vmatpush1.bf16.msra.mxu0 0
      %938 = vmatprep.subr.bf16.mxu0 0
      %939 = vmatpush1.bf16.msra.mxu0 0
      %940 = vmatprep.mubr.bf16.mxu0 0
      %941 = vmatmul.mubr.bf16.gmra.mrb[0].mxu0 %v903
      %v942 = vpop.f32.mrb[0].mxu0
      %v943 = vadd.f32 0.0, %v942
      %v944 = vpop.f32.mrb[0].mxu0
      %v945 = vpop.f32.mrb[0].mxu0
      %v946 = vpop.f32.mrb[0].mxu0
      %947 = vdwg.mxu0
      %949 = vrot.lane.b32.xlu0 %v723, 8
      %v950 = vpop.permute.xlu0 %949
      %953 = vrot.lane.b32.xlu0 %v833, 16
      %v954 = vpop.permute.xlu0 %953
      %957 = vrot.lane.b32.xlu0 %v943, 24
      %v958 = vpop.permute.xlu0 %957
      %v960 = vsel %vm510, %v613, %v950
      %vm961 = vcmask 130048
      %v962 = vsel %vm961, %v960, %v954
      %vm963 = vcmask 195584
      %v964 = vsel %vm963, %v962, %v958
      %v965 = vpack.c.bf16 %v964, %v964
      %v966 = vld [vmem:[%s3] sm:$0xf]
      %v967 = vld [vmem:[%s3 + $0x4] sm:$0xf]
      %v968 = vld [vmem:[%s3 + $0x8] sm:$0xf]
      %v969 = vld [vmem:[%s3 + $0xc] sm:$0xf]
      %v970 = vld [vmem:[%s4] sm:$0x1]
      %v972 = vlaneseq
      %v973 = vshrl.u32 %v972, 7
      %v974 = vsub.s32 0, %v973
      %v975 = vrot.slane %v970, %v974
      %v981 = vunpack.c.l.b16 %v966
      %v982 = vunpack.c.l.b16 %v967
      %v983 = vunpack.c.l.b16 %v968
      %v984 = vunpack.c.l.b16 %v969
      %v985 = vpack.c.b16 %v982, %v981
      %v986 = vpack.c.b16 %v984, %v983
      %v990 = vsel %vm462, %v965, 0
      %992 = vmatprep.subr.bf16.mxu0 0
      %993 = vmatpush1.bf16.msra.mxu0 %v985
      %994 = vmatprep.subr.bf16.mxu0 0
      %995 = vmatpush1.bf16.msra.mxu0 %v986
      %996 = vmatprep.subr.bf16.mxu0 0
      %997 = vmatpush1.bf16.msra.mxu0 0
      %998 = vmatprep.subr.bf16.mxu0 0
      %999 = vmatpush1.bf16.msra.mxu0 0
      %1000 = vmatprep.subr.bf16.mxu0 0
      %1001 = vmatpush1.bf16.msra.mxu0 0
      %1002 = vmatprep.subr.bf16.mxu0 0
      %1003 = vmatpush1.bf16.msra.mxu0 0
      %1004 = vmatprep.subr.bf16.mxu0 0
      %1005 = vmatpush1.bf16.msra.mxu0 0
      %1006 = vmatprep.subr.bf16.mxu0 0
      %1007 = vmatpush1.bf16.msra.mxu0 0
      %1008 = vmatprep.subr.bf16.mxu0 0
      %1009 = vmatpush1.bf16.msra.mxu0 0
      %1010 = vmatprep.subr.bf16.mxu0 0
      %1011 = vmatpush1.bf16.msra.mxu0 0
      %1012 = vmatprep.subr.bf16.mxu0 0
      %1013 = vmatpush1.bf16.msra.mxu0 0
      %1014 = vmatprep.subr.bf16.mxu0 0
      %1015 = vmatpush1.bf16.msra.mxu0 0
      %1016 = vmatprep.subr.bf16.mxu0 0
      %1017 = vmatpush1.bf16.msra.mxu0 0
      %1018 = vmatprep.subr.bf16.mxu0 0
      %1019 = vmatpush1.bf16.msra.mxu0 0
      %1020 = vmatprep.subr.bf16.mxu0 0
      %1021 = vmatpush1.bf16.msra.mxu0 0
      %1022 = vmatprep.subr.bf16.mxu0 0
      %1023 = vmatpush1.bf16.msra.mxu0 0
      %1024 = vmatprep.mubr.bf16.mxu0 0
      %1025 = vmatmul.mubr.bf16.gmra.mrb[0].mxu0 %v990
      %v1026 = vpop.f32.mrb[0].mxu0
      %v1027 = vadd.f32 %v975, %v1026
      %v1028 = vpop.f32.mrb[0].mxu0
      %v1029 = vpop.f32.mrb[0].mxu0
      %v1030 = vpop.f32.mrb[0].mxu0
      %1031 = vdwg.mxu0
      %v1032 = vadd.f32 %v437, %v1027
      %v1033 = vld [vmem:[%s5] sm:$0x1]
      %v1034 = vld [vmem:[%s6] sm:$0x1]
      %v1035 = vsel %vm462, %v1032, 0.0
      %1036 = vadd.xlane.f32.xlu0 %v1035
      %v1037 = vpop.xlane.xlu0 %1036
      %v1038 = vrcp.pop 32.0
      %v1039 = vmul.f32 %v1037, %v1038
      %v1040 = vsub.f32 %v1032, %v1039
      %v1041 = vmul.f32 %v1040, %v1040
      %v1042 = vsel %vm462, %v1041, 0.0
      %1043 = vadd.xlane.f32.xlu0 %v1042
      %v1044 = vpop.xlane.xlu0 %1043
      %v1045 = vmul.f32 %v1044, %v1038
      %v1046 = vadd.f32 %v1045, 1e-05
      %v1047 = vrsqrt.pop %v1046
      %v1048 = vmul.f32 %v1040, %v1047
      %v1050 = vlaneseq
      %v1051 = vshrl.u32 %v1050, 7
      %v1052 = vsub.s32 0, %v1051
      %v1053 = vrot.slane %v1033, %v1052
      %v1055 = vmul.f32 %v1048, %v1053
      %v1057 = vlaneseq
      %v1058 = vshrl.u32 %v1057, 7
      %v1059 = vsub.s32 0, %v1058
      %v1060 = vrot.slane %v1034, %v1059
      %v1062 = vadd.f32 %v1055, %v1060
      %v1063 = vpack.c.bf16 %v1062, %v1062
      %v1064 = vld [vmem:[%s7] sm:$0xf]
      %v1065 = vld [vmem:[%s7 + $0x4] sm:$0xf]
      %v1066 = vld [vmem:[%s7 + $0x8] sm:$0xf]
      %v1067 = vld [vmem:[%s7 + $0xc] sm:$0xf]
      %v1068 = vld [vmem:[%s8] sm:$0x1]
      %v1070 = vlaneseq
      %v1071 = vshrl.u32 %v1070, 7
      %v1072 = vsub.s32 0, %v1071
      %v1073 = vrot.slane %v1068, %v1072
      %v1079 = vunpack.c.l.b16 %v1064
      %v1080 = vunpack.c.l.b16 %v1065
      %v1081 = vunpack.c.l.b16 %v1066
      %v1082 = vunpack.c.l.b16 %v1067
      %v1083 = vpack.c.b16 %v1080, %v1079
      %v1084 = vpack.c.b16 %v1082, %v1081
      %v1088 = vsel %vm462, %v1063, 0
      %1090 = vmatprep.subr.bf16.mxu0 0
      %1091 = vmatpush1.bf16.msra.mxu0 %v1083
      %1092 = vmatprep.subr.bf16.mxu0 0
      %1093 = vmatpush1.bf16.msra.mxu0 %v1084
      %1094 = vmatprep.subr.bf16.mxu0 0
      %1095 = vmatpush1.bf16.msra.mxu0 0
      %1096 = vmatprep.subr.bf16.mxu0 0
      %1097 = vmatpush1.bf16.msra.mxu0 0
      %1098 = vmatprep.subr.bf16.mxu0 0
      %1099 = vmatpush1.bf16.msra.mxu0 0
      %1100 = vmatprep.subr.bf16.mxu0 0
      %1101 = vmatpush1.bf16.msra.mxu0 0
      %1102 = vmatprep.subr.bf16.mxu0 0
      %1103 = vmatpush1.bf16.msra.mxu0 0
      %1104 = vmatprep.subr.bf16.mxu0 0
      %1105 = vmatpush1.bf16.msra.mxu0 0
      %1106 = vmatprep.subr.bf16.mxu0 0
      %1107 = vmatpush1.bf16.msra.mxu0 0
      %1108 = vmatprep.subr.bf16.mxu0 0
      %1109 = vmatpush1.bf16.msra.mxu0 0
      %1110 = vmatprep.subr.bf16.mxu0 0
      %1111 = vmatpush1.bf16.msra.mxu0 0
      %1112 = vmatprep.subr.bf16.mxu0 0
      %1113 = vmatpush1.bf16.msra.mxu0 0
      %1114 = vmatprep.subr.bf16.mxu0 0
      %1115 = vmatpush1.bf16.msra.mxu0 0
      %1116 = vmatprep.subr.bf16.mxu0 0
      %1117 = vmatpush1.bf16.msra.mxu0 0
      %1118 = vmatprep.subr.bf16.mxu0 0
      %1119 = vmatpush1.bf16.msra.mxu0 0
      %1120 = vmatprep.subr.bf16.mxu0 0
      %1121 = vmatpush1.bf16.msra.mxu0 0
      %1122 = vmatprep.mubr.bf16.mxu0 0
      %1123 = vmatmul.mubr.bf16.gmra.mrb[0].mxu0 %v1088
      %v1124 = vpop.f32.mrb[0].mxu0
      %v1125 = vadd.f32 %v1073, %v1124
      %v1126 = vpop.f32.mrb[0].mxu0
      %v1127 = vpop.f32.mrb[0].mxu0
      %v1128 = vpop.f32.mrb[0].mxu0
      %1129 = vdwg.mxu0
      %v1130 = vmax.f32 %v1125, 0.0
      %v1131 = vpack.c.bf16 %v1130, %v1130
      %v1132 = vld [vmem:[%s9] sm:$0xf]
      %v1133 = vld [vmem:[%s9 + $0x4] sm:$0xf]
      %v1134 = vld [vmem:[%s9 + $0x8] sm:$0xf]
      %v1135 = vld [vmem:[%s9 + $0xc] sm:$0xf]
      %v1136 = vld [vmem:[%s9 + $0x10] sm:$0xf]
      %v1137 = vld [vmem:[%s9 + $0x14] sm:$0xf]
      %v1138 = vld [vmem:[%s9 + $0x18] sm:$0xf]
      %v1139 = vld [vmem:[%s9 + $0x1c] sm:$0xf]
      %v1140 = vld [vmem:[%s9 + $0x20] sm:$0xf]
      %v1141 = vld [vmem:[%s9 + $0x24] sm:$0xf]
      %v1142 = vld [vmem:[%s9 + $0x28] sm:$0xf]
      %v1143 = vld [vmem:[%s9 + $0x2c] sm:$0xf]
      %v1144 = vld [vmem:[%s9 + $0x30] sm:$0xf]
      %v1145 = vld [vmem:[%s9 + $0x34] sm:$0xf]
      %v1146 = vld [vmem:[%s9 + $0x38] sm:$0xf]
      %v1147 = vld [vmem:[%s9 + $0x3c] sm:$0xf]
      %v1148 = vld [vmem:[%s10] sm:$0x1]
      %v1150 = vlaneseq
      %v1151 = vshrl.u32 %v1150, 7
      %v1152 = vsub.s32 0, %v1151
      %v1153 = vrot.slane %v1148, %v1152
      %v1171 = vunpack.c.l.b16 %v1132
      %v1172 = vunpack.c.l.b16 %v1133
      %v1173 = vunpack.c.l.b16 %v1134
      %v1174 = vunpack.c.l.b16 %v1135
      %v1175 = vunpack.c.l.b16 %v1136
      %v1176 = vunpack.c.l.b16 %v1137
      %v1177 = vunpack.c.l.b16 %v1138
      %v1178 = vunpack.c.l.b16 %v1139
      %v1179 = vunpack.c.l.b16 %v1140
      %v1180 = vunpack.c.l.b16 %v1141
      %v1181 = vunpack.c.l.b16 %v1142
      %v1182 = vunpack.c.l.b16 %v1143
      %v1183 = vunpack.c.l.b16 %v1144
      %v1184 = vunpack.c.l.b16 %v1145
      %v1185 = vunpack.c.l.b16 %v1146
      %v1186 = vunpack.c.l.b16 %v1147
      %v1187 = vpack.c.b16 %v1172, %v1171
      %v1188 = vpack.c.b16 %v1174, %v1173
      %v1189 = vpack.c.b16 %v1176, %v1175
      %v1190 = vpack.c.b16 %v1178, %v1177
      %v1191 = vpack.c.b16 %v1180, %v1179
      %v1192 = vpack.c.b16 %v1182, %v1181
      %v1193 = vpack.c.b16 %v1184, %v1183
      %v1194 = vpack.c.b16 %v1186, %v1185
      %1203 = vmatprep.subr.bf16.mxu0 0
      %1204 = vmatpush1.bf16.msra.mxu0 %v1187
      %1205 = vmatprep.subr.bf16.mxu0 0
      %1206 = vmatpush1.bf16.msra.mxu0 %v1188
      %1207 = vmatprep.subr.bf16.mxu0 0
      %1208 = vmatpush1.bf16.msra.mxu0 %v1189
      %1209 = vmatprep.subr.bf16.mxu0 0
      %1210 = vmatpush1.bf16.msra.mxu0 %v1190
      %1211 = vmatprep.subr.bf16.mxu0 0
      %1212 = vmatpush1.bf16.msra.mxu0 %v1191
      %1213 = vmatprep.subr.bf16.mxu0 0
      %1214 = vmatpush1.bf16.msra.mxu0 %v1192
      %1215 = vmatprep.subr.bf16.mxu0 0
      %1216 = vmatpush1.bf16.msra.mxu0 %v1193
      %1217 = vmatprep.subr.bf16.mxu0 0
      %1218 = vmatpush1.bf16.msra.mxu0 %v1194
      %1219 = vmatprep.subr.bf16.mxu0 0
      %1220 = vmatpush1.bf16.msra.mxu0 0
      %1221 = vmatprep.subr.bf16.mxu0 0
      %1222 = vmatpush1.bf16.msra.mxu0 0
      %1223 = vmatprep.subr.bf16.mxu0 0
      %1224 = vmatpush1.bf16.msra.mxu0 0
      %1225 = vmatprep.subr.bf16.mxu0 0
      %1226 = vmatpush1.bf16.msra.mxu0 0
      %1227 = vmatprep.subr.bf16.mxu0 0
      %1228 = vmatpush1.bf16.msra.mxu0 0
      %1229 = vmatprep.subr.bf16.mxu0 0
      %1230 = vmatpush1.bf16.msra.mxu0 0
      %1231 = vmatprep.subr.bf16.mxu0 0
      %1232 = vmatpush1.bf16.msra.mxu0 0
      %1233 = vmatprep.subr.bf16.mxu0 0
      %1234 = vmatpush1.bf16.msra.mxu0 0
      %1235 = vmatprep.mubr.bf16.mxu0 0
      %1236 = vmatmul.mubr.bf16.gmra.mrb[0].mxu0 %v1131
      %v1237 = vpop.f32.mrb[0].mxu0
      %v1238 = vadd.f32 %v1153, %v1237
      %v1239 = vpop.f32.mrb[0].mxu0
      %v1240 = vpop.f32.mrb[0].mxu0
      %v1241 = vpop.f32.mrb[0].mxu0
      %1242 = vdwg.mxu0
      %v1243 = vadd.f32 %v1062, %v1238
      %v1244 = vld [vmem:[%s11] sm:$0x1]
      %v1245 = vld [vmem:[%s12] sm:$0x1]
      %v1246 = vsel %vm462, %v1243, 0.0
      %1247 = vadd.xlane.f32.xlu0 %v1246
      %v1248 = vpop.xlane.xlu0 %1247
      %v1249 = vmul.f32 %v1248, %v1038
      %v1250 = vsub.f32 %v1243, %v1249
      %v1251 = vmul.f32 %v1250, %v1250
      %v1252 = vsel %vm462, %v1251, 0.0
      %1253 = vadd.xlane.f32.xlu0 %v1252
      %v1254 = vpop.xlane.xlu0 %1253
      %v1255 = vmul.f32 %v1254, %v1038
      %v1256 = vadd.f32 %v1255, 1e-05
      %v1257 = vrsqrt.pop %v1256
      %v1258 = vmul.f32 %v1250, %v1257
      %v1260 = vlaneseq
      %v1261 = vshrl.u32 %v1260, 7
      %v1262 = vsub.s32 0, %v1261
      %v1263 = vrot.slane %v1244, %v1262
      %v1265 = vmul.f32 %v1258, %v1263
      %v1267 = vlaneseq
      %v1268 = vshrl.u32 %v1267, 7
      %v1269 = vsub.s32 0, %v1268
      %v1270 = vrot.slane %v1245, %v1269
      %v1272 = vadd.f32 %v1265, %v1270
      %1273 = vst.msk [vmem:[%s435] sm:$0xff] %vm462, %v1272
      %p1274 = scmp.lt.s32.totalorder %s24, 1
      %s1275 = scalar_select %p1274, %s24, 1
      %s1276 = smul.addr %s1275, 8
      %s1277 = scalar_lea.vmem %s13, %s1276
      // Predicated region
      $region73: #{transformer_forward.5} parent=71 // pred_check
        %p1278 = pneg %p320
      $region74: #{transformer_forward.5} parent=71 // pred_check_branch
        %1280 = sbr.rel (%p1278) target = $region76
      $region75: #{transformer_forward.5} parent=71 // pred_region
        _
      $region76: #{transformer_forward.5} parent=71 // pred_fallthru
        _
    $region72: #{transformer_forward.5} parent=5 // pred_fallthru
      _
    %p1281 = scmp.le.s32.totalorder 2, %s19
    // Predicated region
    $region77: #{transformer_forward.5} parent=5 // pred_check
      %p1282 = pneg %p1281
    $region78: #{transformer_forward.5} parent=5 // pred_check_branch
      %1284 = sbr.rel (%p1282) target = $region80
    $region79: #{transformer_forward.5} parent=5 // pred_region
      %s1285 = ssub.s32 %s19, 2
      // Predicated region
      $region81: #{transformer_forward.5} parent=79 // pred_check
        %p1286 = pneg %p326
      $region82: #{transformer_forward.5} parent=79 // pred_check_branch
        %1288 = sbr.rel (%p1286) target = $region84
      $region83: #{transformer_forward.5} parent=79 // pred_region
        %p1289 = scmp.lt.s32.totalorder %s25, 1
        %s1290 = scalar_select %p1289, %s25, 1
        %s1291 = smul.addr %s1290, 8
        %s1292 = scalar_lea.vmem %s13, %s1291
      $region84: #{transformer_forward.5} parent=79 // pred_fallthru
        _
    $region80: #{transformer_forward.5} parent=5 // pred_fallthru
      _
  $region6: #{transformer_forward.5} parent=0 // loop_footer
    %s23 = sadd.s32 1, %s19
  $region7: #{transformer_forward.5} parent=0 // loop_footer_branch
    %18 = sbr.rel target = $region3
  $region8: #{transformer_forward.5} parent=0 // loop_exit
    _

// kernel: transformer_forward.7
$region0: #{transformer_forward.7}
  #allocation0 [shape = 'u32[]', space=smem, size = 0x4, offset = 0x4, fixed_abs, tag = 'smem constant byte address 0x4 - core index']
  #allocation1 [shape = 'u32[144,128]{1,0:T(1,128)}', space=vmem, size = 0x12000, scoped, tag = 'internal scratch']
  %s0 = inlined_call_operand.vmem [shape: f32[2,8,32], index: 0, kind: input, shape index: {}]
  %s1 = inlined_call_operand.vmem [shape: f32[2,8,32], index: 1, kind: input, shape index: {}]
  %s2 = inlined_call_operand.vmem [shape: bf16[32,96], index: 2, kind: input, shape index: {}]
  %s3 = inlined_call_operand.vmem [shape: f32[1,96], index: 3, kind: input, shape index: {}]
  %s4 = inlined_call_operand.vmem [shape: bf16[32,32], index: 4, kind: input, shape index: {}]
  %s5 = inlined_call_operand.vmem [shape: f32[1,32], index: 5, kind: input, shape index: {}]
  %s6 = inlined_call_operand.vmem [shape: f32[1,32], index: 6, kind: input, shape index: {}]
  %s7 = inlined_call_operand.vmem [shape: f32[1,32], index: 7, kind: input, shape index: {}]
  %s8 = inlined_call_operand.vmem [shape: bf16[32,32], index: 8, kind: input, shape index: {}]
  %s9 = inlined_call_operand.vmem [shape: f32[1,32], index: 9, kind: input, shape index: {}]
  %s10 = inlined_call_operand.vmem [shape: bf16[32,64], index: 10, kind: input, shape index: {}]
  %s11 = inlined_call_operand.vmem [shape: f32[1,64], index: 11, kind: input, shape index: {}]
  %s12 = inlined_call_operand.vmem [shape: bf16[32,32], index: 12, kind: input, shape index: {}]
  %s13 = inlined_call_operand.vmem [shape: f32[1,32], index: 13, kind: input, shape index: {}]
  %s14 = inlined_call_operand.vmem [shape: f32[1,32], index: 14, kind: input, shape index: {}]
  %s15 = inlined_call_operand.vmem [shape: f32[1,32], index: 15, kind: input, shape index: {}]
  %s16 = inlined_call_operand.vmem [shape: bf16[32,128], index: 16, kind: input, shape index: {}]
  %s17 = inlined_call_operand.vmem [shape: f32[1,128], index: 17, kind: input, shape index: {}]
  %s18 = inlined_call_operand.vmem [shape: bf16[128,32], index: 18, kind: input, shape index: {}]
  %s19 = inlined_call_operand.vmem [shape: f32[1,32], index: 19, kind: input, shape index: {}]
  %s20 = inlined_call_operand.vmem [shape: f32[1,32], index: 20, kind: input, shape index: {}]
  %s21 = inlined_call_operand.vmem [shape: f32[1,32], index: 21, kind: input, shape index: {}]
  %s22 = inlined_call_operand.vmem [shape: f32[2,8,32], index: 22, kind: output, shape index: {}]
  %s23 = sld [smem:[#allocation0]]
  $region121: #{transformer_forward.7} parent=0
    _
  %s25 = ssub.s32 1, %s23
  %s26 = scalar_select 0, %s25, %s23
  loop: start=0, step=1, limit=4
  $region2: #{transformer_forward.7} parent=0 // loop_pre_header
    _
  $region3: #{transformer_forward.7} parent=0 // loop_header
    %s28 = sphi 0, %s32
    %p29 = scmp.ge.s32.totalorder %s28, 4
    %s38 = sphi 0, %s40
    %s41 = sphi 0, %s38
    %s42 = sphi 0, %s41
    %s58 = sphi 0, %s42
    %s64 = sphi 0, %s66
    %s67 = sphi 0, %s64
    %s68 = sphi 0, %s67
    %s84 = sphi 0, %s68
    %s88 = sphi 0, %s88
    %s90 = sphi 0, %s88
    %s91 = sphi 0, %s90
    %s105 = sphi 0, %s91
    %s109 = sphi 0, %s109
    %s111 = sphi 0, %s109
    %s112 = sphi 0, %s111
    %s126 = sphi 0, %s112
    %s130 = sphi 0, %s130
    %s132 = sphi 0, %s130
    %s133 = sphi 0, %s132
    %s147 = sphi 0, %s133
    %s151 = sphi 0, %s151
    %s153 = sphi 0, %s151
    %s154 = sphi 0, %s153
    %s168 = sphi 0, %s154
    %s172 = sphi 0, %s172
    %s174 = sphi 0, %s172
    %s175 = sphi 0, %s174
    %s189 = sphi 0, %s175
    %s193 = sphi 0, %s193
    %s195 = sphi 0, %s193
    %s196 = sphi 0, %s195
    %s210 = sphi 0, %s196
    %s214 = sphi 0, %s214
    %s216 = sphi 0, %s214
    %s217 = sphi 0, %s216
    %s231 = sphi 0, %s217
    %s235 = sphi 0, %s235
    %s237 = sphi 0, %s235
    %s238 = sphi 0, %s237
    %s252 = sphi 0, %s238
    %s256 = sphi 0, %s256
    %s258 = sphi 0, %s256
    %s259 = sphi 0, %s258
    %s273 = sphi 0, %s259
    %s277 = sphi 0, %s277
    %s279 = sphi 0, %s277
    %s280 = sphi 0, %s279
    %s294 = sphi 0, %s280
    %s298 = sphi 0, %s298
    %s300 = sphi 0, %s298
    %s301 = sphi 0, %s300
    %s315 = sphi 0, %s301
    %s319 = sphi 0, %s319
    %s321 = sphi 0, %s319
    %s322 = sphi 0, %s321
    %s336 = sphi 0, %s322
    %s340 = sphi 0, %s340
    %s342 = sphi 0, %s340
    %s343 = sphi 0, %s342
    %s357 = sphi 0, %s343
    %s361 = sphi 0, %s361
    %s363 = sphi 0, %s361
    %s364 = sphi 0, %s363
    %s378 = sphi 0, %s364
    %s382 = sphi 0, %s382
    %s384 = sphi 0, %s382
    %s385 = sphi 0, %s384
    %s399 = sphi 0, %s385
    %s403 = sphi 0, %s403
    %s405 = sphi 0, %s403
    %s406 = sphi 0, %s405
    %s420 = sphi 0, %s406
    %s424 = sphi 0, %s424
    %s426 = sphi 0, %s424
    %s427 = sphi 0, %s426
    %s441 = sphi 0, %s427
    %s445 = sphi 0, %s445
    %s447 = sphi 0, %s445
    %s448 = sphi 0, %s447
    %s462 = sphi 0, %s448
    %s466 = sphi 0, %s466
    %s468 = sphi 0, %s466
    %s469 = sphi 0, %s468
    %s483 = sphi 0, %s469
    %s487 = sphi 0, %s487
    %s489 = sphi 0, %s487
    %s490 = sphi 0, %s489
    %s504 = sphi 0, %s490
    %s510 = sphi 0, %s512
    %s513 = sphi 0, %s510
    %s514 = sphi 0, %s513
    %s530 = sphi 0, %s514
  $region4: #{transformer_forward.7} parent=0 // loop_header_branch
    %31 = sbr.rel (%p29) target = $region8
  $region5: #{transformer_forward.7} parent=0 // loop_body
    %s33 = ssub.s32 %s28, 1
    %s34 = ssub.s32 %s28, 2
    %s35 = sadd.s32 %s28, 1
    %s36 = ssub.s32 %s28, %s35
    %p37 = scmp.eq.s32.totalorder %s36, 0
    %s39 = sadd.s32 %s38, 1
    %s40 = scalar_select %p37, %s38, %s39
    %p43 = pneg %p37
    %p44 = scmp.eq.s32.totalorder %s28, 1
    %p45 = por %p43, %p44
    %p46 = scmp.ne.s32.totalorder %s38, %s41
    %p47 = scmp.eq.s32.totalorder %s28, 0
    %p48 = por %p46, %p47
    %p49 = scmp.ne.s32.totalorder %s38, %s41
    %p50 = scmp.eq.s32.totalorder %s33, 1
    %p51 = por %p49, %p50
    %p52 = scmp.ne.s32.totalorder %s41, %s42
    %p53 = scmp.eq.s32.totalorder %s33, 0
    %p54 = por %p52, %p53
    %p55 = scmp.ne.s32.totalorder %s41, %s42
    %p56 = scmp.eq.s32.totalorder %s34, 1
    %p57 = por %p55, %p56
    %p59 = scmp.ne.s32.totalorder %s42, %s58
    %p60 = scmp.eq.s32.totalorder %s34, 0
    %p61 = por %p59, %p60
    %s62 = ssub.s32 %s28, %s35
    %p63 = scmp.eq.s32.totalorder %s62, 0
    %s65 = sadd.s32 %s64, 1
    %s66 = scalar_select %p63, %s64, %s65
    %p69 = pneg %p63
    %p70 = scmp.eq.s32.totalorder %s28, 1
    %p71 = por %p69, %p70
    %p72 = scmp.ne.s32.totalorder %s64, %s67
    %p73 = scmp.eq.s32.totalorder %s28, 0
    %p74 = por %p72, %p73
    %p75 = scmp.ne.s32.totalorder %s64, %s67
    %p76 = scmp.eq.s32.totalorder %s33, 1
    %p77 = por %p75, %p76
    %p78 = scmp.ne.s32.totalorder %s67, %s68
    %p79 = scmp.eq.s32.totalorder %s33, 0
    %p80 = por %p78, %p79
    %p81 = scmp.ne.s32.totalorder %s67, %s68
    %p82 = scmp.eq.s32.totalorder %s34, 1
    %p83 = por %p81, %p82
    %p85 = scmp.ne.s32.totalorder %s68, %s84
    %p86 = scmp.eq.s32.totalorder %s34, 0
    %p87 = por %p85, %p86
    %s89 = sadd.s32 %s88, 1
    %p92 = scmp.eq.s32.totalorder %s28, 1
    %p93 = scmp.ne.s32.totalorder %s88, %s90
    %p94 = scmp.eq.s32.totalorder %s28, 0
    %p95 = por %p93, %p94
    %p96 = scmp.ne.s32.totalorder %s88, %s90
    %p97 = scmp.eq.s32.totalorder %s33, 1
    %p98 = por %p96, %p97
    %p99 = scmp.ne.s32.totalorder %s90, %s91
    %p100 = scmp.eq.s32.totalorder %s33, 0
    %p101 = por %p99, %p100
    %p102 = scmp.ne.s32.totalorder %s90, %s91
    %p103 = scmp.eq.s32.totalorder %s34, 1
    %p104 = por %p102, %p103
    %p106 = scmp.ne.s32.totalorder %s91, %s105
    %p107 = scmp.eq.s32.totalorder %s34, 0
    %p108 = por %p106, %p107
    %s110 = sadd.s32 %s109, 1
    %p113 = scmp.eq.s32.totalorder %s28, 1
    %p114 = scmp.ne.s32.totalorder %s109, %s111
    %p115 = scmp.eq.s32.totalorder %s28, 0
    %p116 = por %p114, %p115
    %p117 = scmp.ne.s32.totalorder %s109, %s111
    %p118 = scmp.eq.s32.totalorder %s33, 1
    %p119 = por %p117, %p118
    %p120 = scmp.ne.s32.totalorder %s111, %s112
    %p121 = scmp.eq.s32.totalorder %s33, 0
    %p122 = por %p120, %p121
    %p123 = scmp.ne.s32.totalorder %s111, %s112
    %p124 = scmp.eq.s32.totalorder %s34, 1
    %p125 = por %p123, %p124
    %p127 = scmp.ne.s32.totalorder %s112, %s126
    %p128 = scmp.eq.s32.totalorder %s34, 0
    %p129 = por %p127, %p128
    %s131 = sadd.s32 %s130, 1
    %p134 = scmp.eq.s32.totalorder %s28, 1
    %p135 = scmp.ne.s32.totalorder %s130, %s132
    %p136 = scmp.eq.s32.totalorder %s28, 0
    %p137 = por %p135, %p136
    %p138 = scmp.ne.s32.totalorder %s130, %s132
    %p139 = scmp.eq.s32.totalorder %s33, 1
    %p140 = por %p138, %p139
    %p141 = scmp.ne.s32.totalorder %s132, %s133
    %p142 = scmp.eq.s32.totalorder %s33, 0
    %p143 = por %p141, %p142
    %p144 = scmp.ne.s32.totalorder %s132, %s133
    %p145 = scmp.eq.s32.totalorder %s34, 1
    %p146 = por %p144, %p145
    %p148 = scmp.ne.s32.totalorder %s133, %s147
    %p149 = scmp.eq.s32.totalorder %s34, 0
    %p150 = por %p148, %p149
    %s152 = sadd.s32 %s151, 1
    %p155 = scmp.eq.s32.totalorder %s28, 1
    %p156 = scmp.ne.s32.totalorder %s151, %s153
    %p157 = scmp.eq.s32.totalorder %s28, 0
    %p158 = por %p156, %p157
    %p159 = scmp.ne.s32.totalorder %s151, %s153
    %p160 = scmp.eq.s32.totalorder %s33, 1
    %p161 = por %p159, %p160
    %p162 = scmp.ne.s32.totalorder %s153, %s154
    %p163 = scmp.eq.s32.totalorder %s33, 0
    %p164 = por %p162, %p163
    %p165 = scmp.ne.s32.totalorder %s153, %s154
    %p166 = scmp.eq.s32.totalorder %s34, 1
    %p167 = por %p165, %p166
    %p169 = scmp.ne.s32.totalorder %s154, %s168
    %p170 = scmp.eq.s32.totalorder %s34, 0
    %p171 = por %p169, %p170
    %s173 = sadd.s32 %s172, 1
    %p176 = scmp.eq.s32.totalorder %s28, 1
    %p177 = scmp.ne.s32.totalorder %s172, %s174
    %p178 = scmp.eq.s32.totalorder %s28, 0
    %p179 = por %p177, %p178
    %p180 = scmp.ne.s32.totalorder %s172, %s174
    %p181 = scmp.eq.s32.totalorder %s33, 1
    %p182 = por %p180, %p181
    %p183 = scmp.ne.s32.totalorder %s174, %s175
    %p184 = scmp.eq.s32.totalorder %s33, 0
    %p185 = por %p183, %p184
    %p186 = scmp.ne.s32.totalorder %s174, %s175
    %p187 = scmp.eq.s32.totalorder %s34, 1
    %p188 = por %p186, %p187
    %p190 = scmp.ne.s32.totalorder %s175, %s189
    %p191 = scmp.eq.s32.totalorder %s34, 0
    %p192 = por %p190, %p191
    %s194 = sadd.s32 %s193, 1
    %p197 = scmp.eq.s32.totalorder %s28, 1
    %p198 = scmp.ne.s32.totalorder %s193, %s195
    %p199 = scmp.eq.s32.totalorder %s28, 0
    %p200 = por %p198, %p199
    %p201 = scmp.ne.s32.totalorder %s193, %s195
    %p202 = scmp.eq.s32.totalorder %s33, 1
    %p203 = por %p201, %p202
    %p204 = scmp.ne.s32.totalorder %s195, %s196
    %p205 = scmp.eq.s32.totalorder %s33, 0
    %p206 = por %p204, %p205
    %p207 = scmp.ne.s32.totalorder %s195, %s196
    %p208 = scmp.eq.s32.totalorder %s34, 1
    %p209 = por %p207, %p208
    %p211 = scmp.ne.s32.totalorder %s196, %s210
    %p212 = scmp.eq.s32.totalorder %s34, 0
    %p213 = por %p211, %p212
    %s215 = sadd.s32 %s214, 1
    %p218 = scmp.eq.s32.totalorder %s28, 1
    %p219 = scmp.ne.s32.totalorder %s214, %s216
    %p220 = scmp.eq.s32.totalorder %s28, 0
    %p221 = por %p219, %p220
    %p222 = scmp.ne.s32.totalorder %s214, %s216
    %p223 = scmp.eq.s32.totalorder %s33, 1
    %p224 = por %p222, %p223
    %p225 = scmp.ne.s32.totalorder %s216, %s217
    %p226 = scmp.eq.s32.totalorder %s33, 0
    %p227 = por %p225, %p226
    %p228 = scmp.ne.s32.totalorder %s216, %s217
    %p229 = scmp.eq.s32.totalorder %s34, 1
    %p230 = por %p228, %p229
    %p232 = scmp.ne.s32.totalorder %s217, %s231
    %p233 = scmp.eq.s32.totalorder %s34, 0
    %p234 = por %p232, %p233
    %s236 = sadd.s32 %s235, 1
    %p239 = scmp.eq.s32.totalorder %s28, 1
    %p240 = scmp.ne.s32.totalorder %s235, %s237
    %p241 = scmp.eq.s32.totalorder %s28, 0
    %p242 = por %p240, %p241
    %p243 = scmp.ne.s32.totalorder %s235, %s237
    %p244 = scmp.eq.s32.totalorder %s33, 1
    %p245 = por %p243, %p244
    %p246 = scmp.ne.s32.totalorder %s237, %s238
    %p247 = scmp.eq.s32.totalorder %s33, 0
    %p248 = por %p246, %p247
    %p249 = scmp.ne.s32.totalorder %s237, %s238
    %p250 = scmp.eq.s32.totalorder %s34, 1
    %p251 = por %p249, %p250
    %p253 = scmp.ne.s32.totalorder %s238, %s252
    %p254 = scmp.eq.s32.totalorder %s34, 0
    %p255 = por %p253, %p254
    %s257 = sadd.s32 %s256, 1
    %p260 = scmp.eq.s32.totalorder %s28, 1
    %p261 = scmp.ne.s32.totalorder %s256, %s258
    %p262 = scmp.eq.s32.totalorder %s28, 0
    %p263 = por %p261, %p262
    %p264 = scmp.ne.s32.totalorder %s256, %s258
    %p265 = scmp.eq.s32.totalorder %s33, 1
    %p266 = por %p264, %p265
    %p267 = scmp.ne.s32.totalorder %s258, %s259
    %p268 = scmp.eq.s32.totalorder %s33, 0
    %p269 = por %p267, %p268
    %p270 = scmp.ne.s32.totalorder %s258, %s259
    %p271 = scmp.eq.s32.totalorder %s34, 1
    %p272 = por %p270, %p271
    %p274 = scmp.ne.s32.totalorder %s259, %s273
    %p275 = scmp.eq.s32.totalorder %s34, 0
    %p276 = por %p274, %p275
    %s278 = sadd.s32 %s277, 1
    %p281 = scmp.eq.s32.totalorder %s28, 1
    %p282 = scmp.ne.s32.totalorder %s277, %s279
    %p283 = scmp.eq.s32.totalorder %s28, 0
    %p284 = por %p282, %p283
    %p285 = scmp.ne.s32.totalorder %s277, %s279
    %p286 = scmp.eq.s32.totalorder %s33, 1
    %p287 = por %p285, %p286
    %p288 = scmp.ne.s32.totalorder %s279, %s280
    %p289 = scmp.eq.s32.totalorder %s33, 0
    %p290 = por %p288, %p289
    %p291 = scmp.ne.s32.totalorder %s279, %s280
    %p292 = scmp.eq.s32.totalorder %s34, 1
    %p293 = por %p291, %p292
    %p295 = scmp.ne.s32.totalorder %s280, %s294
    %p296 = scmp.eq.s32.totalorder %s34, 0
    %p297 = por %p295, %p296
    %s299 = sadd.s32 %s298, 1
    %p302 = scmp.eq.s32.totalorder %s28, 1
    %p303 = scmp.ne.s32.totalorder %s298, %s300
    %p304 = scmp.eq.s32.totalorder %s28, 0
    %p305 = por %p303, %p304
    %p306 = scmp.ne.s32.totalorder %s298, %s300
    %p307 = scmp.eq.s32.totalorder %s33, 1
    %p308 = por %p306, %p307
    %p309 = scmp.ne.s32.totalorder %s300, %s301
    %p310 = scmp.eq.s32.totalorder %s33, 0
    %p311 = por %p309, %p310
    %p312 = scmp.ne.s32.totalorder %s300, %s301
    %p313 = scmp.eq.s32.totalorder %s34, 1
    %p314 = por %p312, %p313
    %p316 = scmp.ne.s32.totalorder %s301, %s315
    %p317 = scmp.eq.s32.totalorder %s34, 0
    %p318 = por %p316, %p317
    %s320 = sadd.s32 %s319, 1
    %p323 = scmp.eq.s32.totalorder %s28, 1
    %p324 = scmp.ne.s32.totalorder %s319, %s321
    %p325 = scmp.eq.s32.totalorder %s28, 0
    %p326 = por %p324, %p325
    %p327 = scmp.ne.s32.totalorder %s319, %s321
    %p328 = scmp.eq.s32.totalorder %s33, 1
    %p329 = por %p327, %p328
    %p330 = scmp.ne.s32.totalorder %s321, %s322
    %p331 = scmp.eq.s32.totalorder %s33, 0
    %p332 = por %p330, %p331
    %p333 = scmp.ne.s32.totalorder %s321, %s322
    %p334 = scmp.eq.s32.totalorder %s34, 1
    %p335 = por %p333, %p334
    %p337 = scmp.ne.s32.totalorder %s322, %s336
    %p338 = scmp.eq.s32.totalorder %s34, 0
    %p339 = por %p337, %p338
    %s341 = sadd.s32 %s340, 1
    %p344 = scmp.eq.s32.totalorder %s28, 1
    %p345 = scmp.ne.s32.totalorder %s340, %s342
    %p346 = scmp.eq.s32.totalorder %s28, 0
    %p347 = por %p345, %p346
    %p348 = scmp.ne.s32.totalorder %s340, %s342
    %p349 = scmp.eq.s32.totalorder %s33, 1
    %p350 = por %p348, %p349
    %p351 = scmp.ne.s32.totalorder %s342, %s343
    %p352 = scmp.eq.s32.totalorder %s33, 0
    %p353 = por %p351, %p352
    %p354 = scmp.ne.s32.totalorder %s342, %s343
    %p355 = scmp.eq.s32.totalorder %s34, 1
    %p356 = por %p354, %p355
    %p358 = scmp.ne.s32.totalorder %s343, %s357
    %p359 = scmp.eq.s32.totalorder %s34, 0
    %p360 = por %p358, %p359
    %s362 = sadd.s32 %s361, 1
    %p365 = scmp.eq.s32.totalorder %s28, 1
    %p366 = scmp.ne.s32.totalorder %s361, %s363
    %p367 = scmp.eq.s32.totalorder %s28, 0
    %p368 = por %p366, %p367
    %p369 = scmp.ne.s32.totalorder %s361, %s363
    %p370 = scmp.eq.s32.totalorder %s33, 1
    %p371 = por %p369, %p370
    %p372 = scmp.ne.s32.totalorder %s363, %s364
    %p373 = scmp.eq.s32.totalorder %s33, 0
    %p374 = por %p372, %p373
    %p375 = scmp.ne.s32.totalorder %s363, %s364
    %p376 = scmp.eq.s32.totalorder %s34, 1
    %p377 = por %p375, %p376
    %p379 = scmp.ne.s32.totalorder %s364, %s378
    %p380 = scmp.eq.s32.totalorder %s34, 0
    %p381 = por %p379, %p380
    %s383 = sadd.s32 %s382, 1
    %p386 = scmp.eq.s32.totalorder %s28, 1
    %p387 = scmp.ne.s32.totalorder %s382, %s384
    %p388 = scmp.eq.s32.totalorder %s28, 0
    %p389 = por %p387, %p388
    %p390 = scmp.ne.s32.totalorder %s382, %s384
    %p391 = scmp.eq.s32.totalorder %s33, 1
    %p392 = por %p390, %p391
    %p393 = scmp.ne.s32.totalorder %s384, %s385
    %p394 = scmp.eq.s32.totalorder %s33, 0
    %p395 = por %p393, %p394
    %p396 = scmp.ne.s32.totalorder %s384, %s385
    %p397 = scmp.eq.s32.totalorder %s34, 1
    %p398 = por %p396, %p397
    %p400 = scmp.ne.s32.totalorder %s385, %s399
    %p401 = scmp.eq.s32.totalorder %s34, 0
    %p402 = por %p400, %p401
    %s404 = sadd.s32 %s403, 1
    %p407 = scmp.eq.s32.totalorder %s28, 1
    %p408 = scmp.ne.s32.totalorder %s403, %s405
    %p409 = scmp.eq.s32.totalorder %s28, 0
    %p410 = por %p408, %p409
    %p411 = scmp.ne.s32.totalorder %s403, %s405
    %p412 = scmp.eq.s32.totalorder %s33, 1
    %p413 = por %p411, %p412
    %p414 = scmp.ne.s32.totalorder %s405, %s406
    %p415 = scmp.eq.s32.totalorder %s33, 0
    %p416 = por %p414, %p415
    %p417 = scmp.ne.s32.totalorder %s405, %s406
    %p418 = scmp.eq.s32.totalorder %s34, 1
    %p419 = por %p417, %p418
    %p421 = scmp.ne.s32.totalorder %s406, %s420
    %p422 = scmp.eq.s32.totalorder %s34, 0
    %p423 = por %p421, %p422
    %s425 = sadd.s32 %s424, 1
    %p428 = scmp.eq.s32.totalorder %s28, 1
    %p429 = scmp.ne.s32.totalorder %s424, %s426
    %p430 = scmp.eq.s32.totalorder %s28, 0
    %p431 = por %p429, %p430
    %p432 = scmp.ne.s32.totalorder %s424, %s426
    %p433 = scmp.eq.s32.totalorder %s33, 1
    %p434 = por %p432, %p433
    %p435 = scmp.ne.s32.totalorder %s426, %s427
    %p436 = scmp.eq.s32.totalorder %s33, 0
    %p437 = por %p435, %p436
    %p438 = scmp.ne.s32.totalorder %s426, %s427
    %p439 = scmp.eq.s32.totalorder %s34, 1
    %p440 = por %p438, %p439
    %p442 = scmp.ne.s32.totalorder %s427, %s441
    %p443 = scmp.eq.s32.totalorder %s34, 0
    %p444 = por %p442, %p443
    %s446 = sadd.s32 %s445, 1
    %p449 = scmp.eq.s32.totalorder %s28, 1
    %p450 = scmp.ne.s32.totalorder %s445, %s447
    %p451 = scmp.eq.s32.totalorder %s28, 0
    %p452 = por %p450, %p451
    %p453 = scmp.ne.s32.totalorder %s445, %s447
    %p454 = scmp.eq.s32.totalorder %s33, 1
    %p455 = por %p453, %p454
    %p456 = scmp.ne.s32.totalorder %s447, %s448
    %p457 = scmp.eq.s32.totalorder %s33, 0
    %p458 = por %p456, %p457
    %p459 = scmp.ne.s32.totalorder %s447, %s448
    %p460 = scmp.eq.s32.totalorder %s34, 1
    %p461 = por %p459, %p460
    %p463 = scmp.ne.s32.totalorder %s448, %s462
    %p464 = scmp.eq.s32.totalorder %s34, 0
    %p465 = por %p463, %p464
    %s467 = sadd.s32 %s466, 1
    %p470 = scmp.eq.s32.totalorder %s28, 1
    %p471 = scmp.ne.s32.totalorder %s466, %s468
    %p472 = scmp.eq.s32.totalorder %s28, 0
    %p473 = por %p471, %p472
    %p474 = scmp.ne.s32.totalorder %s466, %s468
    %p475 = scmp.eq.s32.totalorder %s33, 1
    %p476 = por %p474, %p475
    %p477 = scmp.ne.s32.totalorder %s468, %s469
    %p478 = scmp.eq.s32.totalorder %s33, 0
    %p479 = por %p477, %p478
    %p480 = scmp.ne.s32.totalorder %s468, %s469
    %p481 = scmp.eq.s32.totalorder %s34, 1
    %p482 = por %p480, %p481
    %p484 = scmp.ne.s32.totalorder %s469, %s483
    %p485 = scmp.eq.s32.totalorder %s34, 0
    %p486 = por %p484, %p485
    %s488 = sadd.s32 %s487, 1
    %p491 = scmp.eq.s32.totalorder %s28, 1
    %p492 = scmp.ne.s32.totalorder %s487, %s489
    %p493 = scmp.eq.s32.totalorder %s28, 0
    %p494 = por %p492, %p493
    %p495 = scmp.ne.s32.totalorder %s487, %s489
    %p496 = scmp.eq.s32.totalorder %s33, 1
    %p497 = por %p495, %p496
    %p498 = scmp.ne.s32.totalorder %s489, %s490
    %p499 = scmp.eq.s32.totalorder %s33, 0
    %p500 = por %p498, %p499
    %p501 = scmp.ne.s32.totalorder %s489, %s490
    %p502 = scmp.eq.s32.totalorder %s34, 1
    %p503 = por %p501, %p502
    %p505 = scmp.ne.s32.totalorder %s490, %s504
    %p506 = scmp.eq.s32.totalorder %s34, 0
    %p507 = por %p505, %p506
    %s508 = ssub.s32 %s28, %s35
    %p509 = scmp.eq.s32.totalorder %s508, 0
    %s511 = sadd.s32 %s510, 1
    %s512 = scalar_select %p509, %s510, %s511
    %p515 = pneg %p509
    %p516 = scmp.eq.s32.totalorder %s28, 1
    %p517 = por %p515, %p516
    %p518 = scmp.ne.s32.totalorder %s510, %s513
    %p519 = scmp.eq.s32.totalorder %s28, 0
    %p520 = por %p518, %p519
    %p521 = scmp.ne.s32.totalorder %s510, %s513
    %p522 = scmp.eq.s32.totalorder %s33, 1
    %p523 = por %p521, %p522
    %p524 = scmp.ne.s32.totalorder %s513, %s514
    %p525 = scmp.eq.s32.totalorder %s33, 0
    %p526 = por %p524, %p525
    %p527 = scmp.ne.s32.totalorder %s513, %s514
    %p528 = scmp.eq.s32.totalorder %s34, 1
    %p529 = por %p527, %p528
    %p531 = scmp.ne.s32.totalorder %s514, %s530
    %p532 = scmp.eq.s32.totalorder %s34, 0
    %p533 = por %p531, %p532
    %p534 = scmp.le.s32.totalorder 1, %s28
    %p535 = scmp.lt.s32.totalorder %s28, 3
    %p536 = pnand %p534, %p535
    %p537 = pneg %p536
    // Predicated region
    $region9: #{transformer_forward.7} parent=5 // pred_check
      _
    $region10: #{transformer_forward.7} parent=5 // pred_check_branch
      %539 = sbr.rel (%p536) target = $region12
    $region11: #{transformer_forward.7} parent=5 // pred_region
      %s540 = ssub.s32 %s28, 1
      // Predicated region
      $region13: #{transformer_forward.7} parent=11 // pred_check
        %p541 = pneg %p101
      $region14: #{transformer_forward.7} parent=11 // pred_check_branch
        %543 = sbr.rel (%p541) target = $region16
      $region15: #{transformer_forward.7} parent=11 // pred_region
        _
      $region16: #{transformer_forward.7} parent=11 // pred_fallthru
        _
      // Predicated region
      $region17: #{transformer_forward.7} parent=11 // pred_check
        %p544 = pneg %p122
      $region18: #{transformer_forward.7} parent=11 // pred_check_branch
        %546 = sbr.rel (%p544) target = $region20
      $region19: #{transformer_forward.7} parent=11 // pred_region
        _
      $region20: #{transformer_forward.7} parent=11 // pred_fallthru
        _
      // Predicated region
      $region21: #{transformer_forward.7} parent=11 // pred_check
        %p547 = pneg %p143
      $region22: #{transformer_forward.7} parent=11 // pred_check_branch
        %549 = sbr.rel (%p547) target = $region24
      $region23: #{transformer_forward.7} parent=11 // pred_region
        _
      $region24: #{transformer_forward.7} parent=11 // pred_fallthru
        _
      // Predicated region
      $region25: #{transformer_forward.7} parent=11 // pred_check
        %p550 = pneg %p164
      $region26: #{transformer_forward.7} parent=11 // pred_check_branch
        %552 = sbr.rel (%p550) target = $region28
      $region27: #{transformer_forward.7} parent=11 // pred_region
        _
      $region28: #{transformer_forward.7} parent=11 // pred_fallthru
        _
      // Predicated region
      $region29: #{transformer_forward.7} parent=11 // pred_check
        %p553 = pneg %p185
      $region30: #{transformer_forward.7} parent=11 // pred_check_branch
        %555 = sbr.rel (%p553) target = $region32
      $region31: #{transformer_forward.7} parent=11 // pred_region
        _
      $region32: #{transformer_forward.7} parent=11 // pred_fallthru
        _
      // Predicated region
      $region33: #{transformer_forward.7} parent=11 // pred_check
        %p556 = pneg %p206
      $region34: #{transformer_forward.7} parent=11 // pred_check_branch
        %558 = sbr.rel (%p556) target = $region36
      $region35: #{transformer_forward.7} parent=11 // pred_region
        _
      $region36: #{transformer_forward.7} parent=11 // pred_fallthru
        _
      // Predicated region
      $region37: #{transformer_forward.7} parent=11 // pred_check
        %p559 = pneg %p227
      $region38: #{transformer_forward.7} parent=11 // pred_check_branch
        %561 = sbr.rel (%p559) target = $region40
      $region39: #{transformer_forward.7} parent=11 // pred_region
        _
      $region40: #{transformer_forward.7} parent=11 // pred_fallthru
        _
      // Predicated region
      $region41: #{transformer_forward.7} parent=11 // pred_check
        %p562 = pneg %p248
      $region42: #{transformer_forward.7} parent=11 // pred_check_branch
        %564 = sbr.rel (%p562) target = $region44
      $region43: #{transformer_forward.7} parent=11 // pred_region
        _
      $region44: #{transformer_forward.7} parent=11 // pred_fallthru
        _
      // Predicated region
      $region45: #{transformer_forward.7} parent=11 // pred_check
        %p565 = pneg %p269
      $region46: #{transformer_forward.7} parent=11 // pred_check_branch
        %567 = sbr.rel (%p565) target = $region48
      $region47: #{transformer_forward.7} parent=11 // pred_region
        _
      $region48: #{transformer_forward.7} parent=11 // pred_fallthru
        _
      // Predicated region
      $region49: #{transformer_forward.7} parent=11 // pred_check
        %p568 = pneg %p290
      $region50: #{transformer_forward.7} parent=11 // pred_check_branch
        %570 = sbr.rel (%p568) target = $region52
      $region51: #{transformer_forward.7} parent=11 // pred_region
        _
      $region52: #{transformer_forward.7} parent=11 // pred_fallthru
        _
      // Predicated region
      $region53: #{transformer_forward.7} parent=11 // pred_check
        %p571 = pneg %p311
      $region54: #{transformer_forward.7} parent=11 // pred_check_branch
        %573 = sbr.rel (%p571) target = $region56
      $region55: #{transformer_forward.7} parent=11 // pred_region
        _
      $region56: #{transformer_forward.7} parent=11 // pred_fallthru
        _
      // Predicated region
      $region57: #{transformer_forward.7} parent=11 // pred_check
        %p574 = pneg %p332
      $region58: #{transformer_forward.7} parent=11 // pred_check_branch
        %576 = sbr.rel (%p574) target = $region60
      $region59: #{transformer_forward.7} parent=11 // pred_region
        _
      $region60: #{transformer_forward.7} parent=11 // pred_fallthru
        _
      // Predicated region
      $region61: #{transformer_forward.7} parent=11 // pred_check
        %p577 = pneg %p353
      $region62: #{transformer_forward.7} parent=11 // pred_check_branch
        %579 = sbr.rel (%p577) target = $region64
      $region63: #{transformer_forward.7} parent=11 // pred_region
        _
      $region64: #{transformer_forward.7} parent=11 // pred_fallthru
        _
      // Predicated region
      $region65: #{transformer_forward.7} parent=11 // pred_check
        %p580 = pneg %p374
      $region66: #{transformer_forward.7} parent=11 // pred_check_branch
        %582 = sbr.rel (%p580) target = $region68
      $region67: #{transformer_forward.7} parent=11 // pred_region
        _
      $region68: #{transformer_forward.7} parent=11 // pred_fallthru
        _
      // Predicated region
      $region69: #{transformer_forward.7} parent=11 // pred_check
        %p583 = pneg %p395
      $region70: #{transformer_forward.7} parent=11 // pred_check_branch
        %585 = sbr.rel (%p583) target = $region72
      $region71: #{transformer_forward.7} parent=11 // pred_region
        _
      $region72: #{transformer_forward.7} parent=11 // pred_fallthru
        _
      // Predicated region
      $region73: #{transformer_forward.7} parent=11 // pred_check
        %p586 = pneg %p416
      $region74: #{transformer_forward.7} parent=11 // pred_check_branch
        %588 = sbr.rel (%p586) target = $region76
      $region75: #{transformer_forward.7} parent=11 // pred_region
        _
      $region76: #{transformer_forward.7} parent=11 // pred_fallthru
        _
      // Predicated region
      $region77: #{transformer_forward.7} parent=11 // pred_check
        %p589 = pneg %p437
      $region78: #{transformer_forward.7} parent=11 // pred_check_branch
        %591 = sbr.rel (%p589) target = $region80
      $region79: #{transformer_forward.7} parent=11 // pred_region
        _
      $region80: #{transformer_forward.7} parent=11 // pred_fallthru
        _
      // Predicated region
      $region81: #{transformer_forward.7} parent=11 // pred_check
        %p592 = pneg %p458
      $region82: #{transformer_forward.7} parent=11 // pred_check_branch
        %594 = sbr.rel (%p592) target = $region84
      $region83: #{transformer_forward.7} parent=11 // pred_region
        _
      $region84: #{transformer_forward.7} parent=11 // pred_fallthru
        _
      // Predicated region
      $region85: #{transformer_forward.7} parent=11 // pred_check
        %p595 = pneg %p479
      $region86: #{transformer_forward.7} parent=11 // pred_check_branch
        %597 = sbr.rel (%p595) target = $region88
      $region87: #{transformer_forward.7} parent=11 // pred_region
        _
      $region88: #{transformer_forward.7} parent=11 // pred_fallthru
        _
      // Predicated region
      $region89: #{transformer_forward.7} parent=11 // pred_check
        %p598 = pneg %p500
      $region90: #{transformer_forward.7} parent=11 // pred_check_branch
        %600 = sbr.rel (%p598) target = $region92
      $region91: #{transformer_forward.7} parent=11 // pred_region
        _
      $region92: #{transformer_forward.7} parent=11 // pred_fallthru
        _
    $region12: #{transformer_forward.7} parent=5 // pred_fallthru
      _
    %p601 = scmp.lt.s32.totalorder %s28, 2
    // Predicated region
    $region93: #{transformer_forward.7} parent=5 // pred_check
      %p602 = pneg %p601
    $region94: #{transformer_forward.7} parent=5 // pred_check_branch
      %604 = sbr.rel (%p602) target = $region96
    $region95: #{transformer_forward.7} parent=5 // pred_region
      // Predicated region
      $region97: #{transformer_forward.7} parent=95 // pred_check
        %p605 = pneg %p48
      $region98: #{transformer_forward.7} parent=95 // pred_check_branch
        %607 = sbr.rel (%p605) target = $region100
      $region99: #{transformer_forward.7} parent=95 // pred_region
        %p608 = scmp.lt.s32.totalorder %s28, 1
        %s609 = scalar_select %p608, %s28, 1
        %s610 = smul.addr %s609, 8
        %s611 = scalar_lea.vmem %s0, %s610
      $region100: #{transformer_forward.7} parent=95 // pred_fallthru
        _
      // Predicated region
      $region101: #{transformer_forward.7} parent=95 // pred_check
        %p612 = pneg %p74
      $region102: #{transformer_forward.7} parent=95 // pred_check_branch
        %614 = sbr.rel (%p612) target = $region104
      $region103: #{transformer_forward.7} parent=95 // pred_region
        %p615 = scmp.lt.s32.totalorder %s28, 1
        %s616 = scalar_select %p615, %s28, 1
        %s617 = smul.addr %s616, 8
        %s618 = scalar_lea.vmem %s1, %s617
      $region104: #{transformer_forward.7} parent=95 // pred_fallthru
        _
    $region96: #{transformer_forward.7} parent=5 // pred_fallthru
      _
    %p619 = scmp.le.s32.totalorder 1, %s28
    %p620 = scmp.lt.s32.totalorder %s28, 3
    %p621 = pnand %p619, %p620
    %p622 = pneg %p621
    // Predicated region
    $region105: #{transformer_forward.7} parent=5 // pred_check
      _
    $region106: #{transformer_forward.7} parent=5 // pred_check_branch
      %624 = sbr.rel (%p621) target = $region108
    $region107: #{transformer_forward.7} parent=5 // pred_region
      %s625 = ssub.s32 %s28, 1
      %p626 = scmp.lt.s32.totalorder %s33, 1
      %s627 = scalar_select %p626, %s33, 1
      %s628 = smul.addr %s627, 8
      %s629 = scalar_lea.vmem %s0, %s628
      %p630 = pneg %p54
      %p631 = pneg %p51
      %p632 = scmp.lt.s32.totalorder %s33, 1
      %s633 = scalar_select %p632, %s33, 1
      %s634 = smul.addr %s633, 8
      %s635 = scalar_lea.vmem %s1, %s634
      %p636 = pneg %p80
      %p637 = pneg %p77
      %p638 = pneg %p101
      %p639 = pneg %p98
      %p640 = pneg %p122
      %p641 = pneg %p119
      %p642 = pneg %p143
      %p643 = pneg %p140
      %p644 = pneg %p164
      %p645 = pneg %p161
      %p646 = pneg %p185
      %p647 = pneg %p182
      %p648 = pneg %p206
      %p649 = pneg %p203
      %p650 = pneg %p227
      %p651 = pneg %p224
      %p652 = pneg %p248
      %p653 = pneg %p245
      %p654 = pneg %p269
      %p655 = pneg %p266
      %p656 = pneg %p290
      %p657 = pneg %p287
      %p658 = pneg %p311
      %p659 = pneg %p308
      %p660 = pneg %p332
      %p661 = pneg %p329
      %p662 = pneg %p353
      %p663 = pneg %p350
      %p664 = pneg %p374
      %p665 = pneg %p371
      %p666 = pneg %p395
      %p667 = pneg %p392
      %p668 = pneg %p416
      %p669 = pneg %p413
      %p670 = pneg %p437
      %p671 = pneg %p434
      %p672 = pneg %p458
      %p673 = pneg %p455
      %p674 = pneg %p479
      %p675 = pneg %p476
      %p676 = pneg %p500
      %p677 = pneg %p497
      %p678 = pneg %p526
      %p679 = pneg %p523
      %p680 = scmp.lt.s32.totalorder %s33, 1
      %s681 = scalar_select %p680, %s33, 1
      %s682 = smul.addr %s681, 8
      %s683 = scalar_lea.vmem %s22, %s682
      %p684 = scmp.lt.s32.totalorder %s33, 1
      %s685 = scalar_select %p684, %s33, 1
      %s686 = smul.addr %s685, 8
      %s687 = scalar_lea.vmem %s0, %s686
      %p688 = scmp.lt.s32.totalorder %s33, 1
      %s689 = scalar_select %p688, %s33, 1
      %s690 = smul.addr %s689, 8
      %s691 = scalar_lea.vmem %s1, %s690
      %p692 = scmp.lt.s32.totalorder %s33, 1
      %s693 = scalar_select %p692, %s33, 1
      %s694 = smul.addr %s693, 8
      %s695 = scalar_lea.vmem %s22, %s694
      %v697 = vld [vmem:[%s687] sm:$0xff]
      %v698 = vld [vmem:[%s691] sm:$0xff]
      %v699 = vpack.c.bf16 %v697, %v697
      %v700 = vld [vmem:[%s2] sm:$0xf]
      %v701 = vld [vmem:[%s2 + $0x4] sm:$0xf]
      %v702 = vld [vmem:[%s2 + $0x8] sm:$0xf]
      %v703 = vld [vmem:[%s2 + $0xc] sm:$0xf]
      %v704 = vld [vmem:[%s3] sm:$0x1]
      %v706 = vlaneseq
      %v707 = vshrl.u32 %v706, 7
      %v708 = vsub.s32 0, %v707
      %v709 = vrot.slane %v704, %v708
      %v715 = vunpack.c.l.b16 %v700
      %v716 = vunpack.c.l.b16 %v701
      %v717 = vunpack.c.l.b16 %v702
      %v718 = vunpack.c.l.b16 %v703
      %v719 = vpack.c.b16 %v716, %v715
      %v720 = vpack.c.b16 %v718, %v717
      %vm723 = vcmask 261120
      %v725 = vsel %vm723, %v699, 0
      %727 = vmatprep.subr.bf16.mxu0 0
      %728 = vmatpush1.bf16.msra.mxu0 %v719
      %729 = vmatprep.subr.bf16.mxu0 0
      %730 = vmatpush1.bf16.msra.mxu0 %v720
      %731 = vmatprep.subr.bf16.mxu0 0
      %732 = vmatpush1.bf16.msra.mxu0 0
      %733 = vmatprep.subr.bf16.mxu0 0
      %734 = vmatpush1.bf16.msra.mxu0 0
      %735 = vmatprep.subr.bf16.mxu0 0
      %736 = vmatpush1.bf16.msra.mxu0 0
      %737 = vmatprep.subr.bf16.mxu0 0
      %738 = vmatpush1.bf16.msra.mxu0 0
      %739 = vmatprep.subr.bf16.mxu0 0
      %740 = vmatpush1.bf16.msra.mxu0 0
      %741 = vmatprep.subr.bf16.mxu0 0
      %742 = vmatpush1.bf16.msra.mxu0 0
      %743 = vmatprep.subr.bf16.mxu0 0
      %744 = vmatpush1.bf16.msra.mxu0 0
      %745 = vmatprep.subr.bf16.mxu0 0
      %746 = vmatpush1.bf16.msra.mxu0 0
      %747 = vmatprep.subr.bf16.mxu0 0
      %748 = vmatpush1.bf16.msra.mxu0 0
      %749 = vmatprep.subr.bf16.mxu0 0
      %750 = vmatpush1.bf16.msra.mxu0 0
      %751 = vmatprep.subr.bf16.mxu0 0
      %752 = vmatpush1.bf16.msra.mxu0 0
      %753 = vmatprep.subr.bf16.mxu0 0
      %754 = vmatpush1.bf16.msra.mxu0 0
      %755 = vmatprep.subr.bf16.mxu0 0
      %756 = vmatpush1.bf16.msra.mxu0 0
      %757 = vmatprep.subr.bf16.mxu0 0
      %758 = vmatpush1.bf16.msra.mxu0 0
      %759 = vmatprep.mubr.bf16.mxu0 0
      %760 = vmatmul.mubr.bf16.gmra.mrb[0].mxu0 %v725
      %v761 = vpop.f32.mrb[0].mxu0
      %v762 = vadd.f32 %v709, %v761
      %v763 = vpop.f32.mrb[0].mxu0
      %v764 = vpop.f32.mrb[0].mxu0
      %v765 = vpop.f32.mrb[0].mxu0
      %766 = vdwg.mxu0
      %v767 = vlaneseq
      %v768 = vshrl.u32 %v767, 7
      %v769 = vlaneseq
      %v770 = vand.u32 %v769, 127
      %vm771 = vcmp.gt.s32.totalorder %v770, %v768
      %v772 = vsel %vm771, -1e+30, 0.0
      %v773 = vpack.c.bf16 %v762, %v762
      %775 = vrot.lane.b32.xlu0 %v773, 96
      %v776 = vpop.permute.xlu0 %775
      %vm777 = vcmask 64512
      %v779 = vsel %vm777, %v773, 0
      %v782 = vsel %vm777, %v776, 0
      %784 = vmatprep.subr.bf16.mxu0 0
      %785 = vmatpush1.bf16.xpose.msra.mxu0 %v782
      %786 = vmatprep.subr.bf16.mxu0 0
      %787 = vmatpush1.bf16.xpose.msra.mxu0 0
      %788 = vmatprep.subr.bf16.mxu0 0
      %789 = vmatpush1.bf16.xpose.msra.mxu0 0
      %790 = vmatprep.subr.bf16.mxu0 0
      %791 = vmatpush1.bf16.xpose.msra.mxu0 0
      %792 = vmatprep.subr.bf16.mxu0 0
      %793 = vmatpush1.bf16.xpose.msra.mxu0 0
      %794 = vmatprep.subr.bf16.mxu0 0
      %795 = vmatpush1.bf16.xpose.msra.mxu0 0
      %796 = vmatprep.subr.bf16.mxu0 0
      %797 = vmatpush1.bf16.xpose.msra.mxu0 0
      %798 = vmatprep.subr.bf16.mxu0 0
      %799 = vmatpush1.bf16.xpose.msra.mxu0 0
      %800 = vmatprep.subr.bf16.mxu0 0
      %801 = vmatpush1.bf16.xpose.msra.mxu0 0
      %802 = vmatprep.subr.bf16.mxu0 0
      %803 = vmatpush1.bf16.xpose.msra.mxu0 0
      %804 = vmatprep.subr.bf16.mxu0 0
      %805 = vmatpush1.bf16.xpose.msra.mxu0 0
      %806 = vmatprep.subr.bf16.mxu0 0
      %807 = vmatpush1.bf16.xpose.msra.mxu0 0
      %808 = vmatprep.subr.bf16.mxu0 0
      %809 = vmatpush1.bf16.xpose.msra.mxu0 0
      %810 = vmatprep.subr.bf16.mxu0 0
      %811 = vmatpush1.bf16.xpose.msra.mxu0 0
      %812 = vmatprep.subr.bf16.mxu0 0
      %813 = vmatpush1.bf16.xpose.msra.mxu0 0
      %814 = vmatprep.subr.bf16.mxu0 0
      %815 = vmatpush1.bf16.xpose.msra.mxu0 0
      %816 = vmatprep.mubr.bf16.mxu0 0
      %817 = vmatmul.mubr.bf16.gmra.mrb[0].mxu0 %v779
      %v818 = vpop.f32.mrb[0].mxu0
      %v819 = vadd.f32 %v772, %v818
      %v820 = vpop.f32.mrb[0].mxu0
      %v821 = vpop.f32.mrb[0].mxu0
      %v822 = vpop.f32.mrb[0].mxu0
      %823 = vdwg.mxu0
      %v824 = vsel %vm777, %v819, -inf
      %825 = vmax.xlane.f32.xlu0 %v824
      %v826 = vpop.xlane.xlu0 %825
      %v827 = vsub.f32 %v819, %v826
      %v828 = vmul.f32 %v827, 1.442695
      %v829 = vpow.pop %v828
      %v830 = vsel %vm777, %v829, 0.0
      %831 = vadd.xlane.f32.xlu0 %v830
      %v832 = vpop.xlane.xlu0 %831
      %v833 = vrcp.pop %v832
      %v834 = vmul.f32 %v829, %v833
      %v835 = vpack.c.bf16 %v834, %v834
      %836 = vrot.lane.b32.xlu0 %v773, 64
      %v837 = vpop.permute.xlu0 %836
      %v839 = vsel %vm777, %v835, 0
      %vm841 = vcmask 1043456
      %v843 = vsel %vm841, %v837, 0
      %845 = vmatprep.subr.bf16.mxu0 0
      %846 = vmatpush1.bf16.msra.mxu0 %v843
      %847 = vmatprep.subr.bf16.mxu0 0
      %848 = vmatpush1.bf16.msra.mxu0 0
      %849 = vmatprep.subr.bf16.mxu0 0
      %850 = vmatpush1.bf16.msra.mxu0 0
      %851 = vmatprep.subr.bf16.mxu0 0
      %852 = vmatpush1.bf16.msra.mxu0 0
      %853 = vmatprep.subr.bf16.mxu0 0
      %854 = vmatpush1.bf16.msra.mxu0 0
      %855 = vmatprep.subr.bf16.mxu0 0
      %856 = vmatpush1.bf16.msra.mxu0 0
      %857 = vmatprep.subr.bf16.mxu0 0
      %858 = vmatpush1.bf16.msra.mxu0 0
      %859 = vmatprep.subr.bf16.mxu0 0
      %860 = vmatpush1.bf16.msra.mxu0 0
      %861 = vmatprep.subr.bf16.mxu0 0
      %862 = vmatpush1.bf16.msra.mxu0 0
      %863 = vmatprep.subr.bf16.mxu0 0
      %864 = vmatpush1.bf16.msra.mxu0 0
      %865 = vmatprep.subr.bf16.mxu0 0
      %866 = vmatpush1.bf16.msra.mxu0 0
      %867 = vmatprep.subr.bf16.mxu0 0
      %868 = vmatpush1.bf16.msra.mxu0 0
      %869 = vmatprep.subr.bf16.mxu0 0
      %870 = vmatpush1.bf16.msra.mxu0 0
      %871 = vmatprep.subr.bf16.mxu0 0
      %872 = vmatpush1.bf16.msra.mxu0 0
      %873 = vmatprep.subr.bf16.mxu0 0
      %874 = vmatpush1.bf16.msra.mxu0 0
      %875 = vmatprep.subr.bf16.mxu0 0
      %876 = vmatpush1.bf16.msra.mxu0 0
      %877 = vmatprep.mubr.bf16.mxu0 0
      %878 = vmatmul.mubr.bf16.gmra.mrb[0].mxu0 %v839
      %v879 = vpop.f32.mrb[0].mxu0
      %v880 = vadd.f32 0.0, %v879
      %v881 = vpop.f32.mrb[0].mxu0
      %v882 = vpop.f32.mrb[0].mxu0
      %v883 = vpop.f32.mrb[0].mxu0
      %884 = vdwg.mxu0
      %885 = vrot.lane.b32.xlu0 %v773, 120
      %v886 = vpop.permute.xlu0 %885
      %887 = vrot.lane.b32.xlu0 %v773, 88
      %v888 = vpop.permute.xlu0 %887
      %v890 = vsel %vm777, %v886, 0
      %v893 = vsel %vm777, %v888, 0
      %895 = vmatprep.subr.bf16.mxu0 0
      %896 = vmatpush1.bf16.xpose.msra.mxu0 %v893
      %897 = vmatprep.subr.bf16.mxu0 0
      %898 = vmatpush1.bf16.xpose.msra.mxu0 0
      %899 = vmatprep.subr.bf16.mxu0 0
      %900 = vmatpush1.bf16.xpose.msra.mxu0 0
      %901 = vmatprep.subr.bf16.mxu0 0
      %902 = vmatpush1.bf16.xpose.msra.mxu0 0
      %903 = vmatprep.subr.bf16.mxu0 0
      %904 = vmatpush1.bf16.xpose.msra.mxu0 0
      %905 = vmatprep.subr.bf16.mxu0 0
      %906 = vmatpush1.bf16.xpose.msra.mxu0 0
      %907 = vmatprep.subr.bf16.mxu0 0
      %908 = vmatpush1.bf16.xpose.msra.mxu0 0
      %909 = vmatprep.subr.bf16.mxu0 0
      %910 = vmatpush1.bf16.xpose.msra.mxu0 0
      %911 = vmatprep.subr.bf16.mxu0 0
      %912 = vmatpush1.bf16.xpose.msra.mxu0 0
      %913 = vmatprep.subr.bf16.mxu0 0
      %914 = vmatpush1.bf16.xpose.msra.mxu0 0
      %915 = vmatprep.subr.bf16.mxu0 0
      %916 = vmatpush1.bf16.xpose.msra.mxu0 0
      %917 = vmatprep.subr.bf16.mxu0 0
      %918 = vmatpush1.bf16.xpose.msra.mxu0 0
      %919 = vmatprep.subr.bf16.mxu0 0
      %920 = vmatpush1.bf16.xpose.msra.mxu0 0
      %921 = vmatprep.subr.bf16.mxu0 0
      %922 = vmatpush1.bf16.xpose.msra.mxu0 0
      %923 = vmatprep.subr.bf16.mxu0 0
      %924 = vmatpush1.bf16.xpose.msra.mxu0 0
      %925 = vmatprep.subr.bf16.mxu0 0
      %926 = vmatpush1.bf16.xpose.msra.mxu0 0
      %927 = vmatprep.mubr.bf16.mxu0 0
      %928 = vmatmul.mubr.bf16.gmra.mrb[0].mxu0 %v890
      %v929 = vpop.f32.mrb[0].mxu0
      %v930 = vadd.f32 %v772, %v929
      %v931 = vpop.f32.mrb[0].mxu0
      %v932 = vpop.f32.mrb[0].mxu0
      %v933 = vpop.f32.mrb[0].mxu0
      %934 = vdwg.mxu0
      %v935 = vsel %vm777, %v930, -inf
      %936 = vmax.xlane.f32.xlu0 %v935
      %v937 = vpop.xlane.xlu0 %936
      %v938 = vsub.f32 %v930, %v937
      %v939 = vmul.f32 %v938, 1.442695
      %v940 = vpow.pop %v939
      %v941 = vsel %vm777, %v940, 0.0
      %942 = vadd.xlane.f32.xlu0 %v941
      %v943 = vpop.xlane.xlu0 %942
      %v944 = vrcp.pop %v943
      %v945 = vmul.f32 %v940, %v944
      %v946 = vpack.c.bf16 %v945, %v945
      %947 = vrot.lane.b32.xlu0 %v773, 56
      %v948 = vpop.permute.xlu0 %947
      %v950 = vsel %vm777, %v946, 0
      %v953 = vsel %vm841, %v948, 0
      %955 = vmatprep.subr.bf16.mxu0 0
      %956 = vmatpush1.bf16.msra.mxu0 %v953
      %957 = vmatprep.subr.bf16.mxu0 0
      %958 = vmatpush1.bf16.msra.mxu0 0
      %959 = vmatprep.subr.bf16.mxu0 0
      %960 = vmatpush1.bf16.msra.mxu0 0
      %961 = vmatprep.subr.bf16.mxu0 0
      %962 = vmatpush1.bf16.msra.mxu0 0
      %963 = vmatprep.subr.bf16.mxu0 0
      %964 = vmatpush1.bf16.msra.mxu0 0
      %965 = vmatprep.subr.bf16.mxu0 0
      %966 = vmatpush1.bf16.msra.mxu0 0
      %967 = vmatprep.subr.bf16.mxu0 0
      %968 = vmatpush1.bf16.msra.mxu0 0
      %969 = vmatprep.subr.bf16.mxu0 0
      %970 = vmatpush1.bf16.msra.mxu0 0
      %971 = vmatprep.subr.bf16.mxu0 0
      %972 = vmatpush1.bf16.msra.mxu0 0
      %973 = vmatprep.subr.bf16.mxu0 0
      %974 = vmatpush1.bf16.msra.mxu0 0
      %975 = vmatprep.subr.bf16.mxu0 0
      %976 = vmatpush1.bf16.msra.mxu0 0
      %977 = vmatprep.subr.bf16.mxu0 0
      %978 = vmatpush1.bf16.msra.mxu0 0
      %979 = vmatprep.subr.bf16.mxu0 0
      %980 = vmatpush1.bf16.msra.mxu0 0
      %981 = vmatprep.subr.bf16.mxu0 0
      %982 = vmatpush1.bf16.msra.mxu0 0
      %983 = vmatprep.subr.bf16.mxu0 0
      %984 = vmatpush1.bf16.msra.mxu0 0
      %985 = vmatprep.subr.bf16.mxu0 0
      %986 = vmatpush1.bf16.msra.mxu0 0
      %987 = vmatprep.mubr.bf16.mxu0 0
      %988 = vmatmul.mubr.bf16.gmra.mrb[0].mxu0 %v950
      %v989 = vpop.f32.mrb[0].mxu0
      %v990 = vadd.f32 0.0, %v989
      %v991 = vpop.f32.mrb[0].mxu0
      %v992 = vpop.f32.mrb[0].mxu0
      %v993 = vpop.f32.mrb[0].mxu0
      %994 = vdwg.mxu0
      %995 = vrot.lane.b32.xlu0 %v773, 112
      %v996 = vpop.permute.xlu0 %995
      %997 = vrot.lane.b32.xlu0 %v773, 80
      %v998 = vpop.permute.xlu0 %997
      %v1000 = vsel %vm777, %v996, 0
      %v1003 = vsel %vm777, %v998, 0
      %1005 = vmatprep.subr.bf16.mxu0 0
      %1006 = vmatpush1.bf16.xpose.msra.mxu0 %v1003
      %1007 = vmatprep.subr.bf16.mxu0 0
      %1008 = vmatpush1.bf16.xpose.msra.mxu0 0
      %1009 = vmatprep.subr.bf16.mxu0 0
      %1010 = vmatpush1.bf16.xpose.msra.mxu0 0
      %1011 = vmatprep.subr.bf16.mxu0 0
      %1012 = vmatpush1.bf16.xpose.msra.mxu0 0
      %1013 = vmatprep.subr.bf16.mxu0 0
      %1014 = vmatpush1.bf16.xpose.msra.mxu0 0
      %1015 = vmatprep.subr.bf16.mxu0 0
      %1016 = vmatpush1.bf16.xpose.msra.mxu0 0
      %1017 = vmatprep.subr.bf16.mxu0 0
      %1018 = vmatpush1.bf16.xpose.msra.mxu0 0
      %1019 = vmatprep.subr.bf16.mxu0 0
      %1020 = vmatpush1.bf16.xpose.msra.mxu0 0
      %1021 = vmatprep.subr.bf16.mxu0 0
      %1022 = vmatpush1.bf16.xpose.msra.mxu0 0
      %1023 = vmatprep.subr.bf16.mxu0 0
      %1024 = vmatpush1.bf16.xpose.msra.mxu0 0
      %1025 = vmatprep.subr.bf16.mxu0 0
      %1026 = vmatpush1.bf16.xpose.msra.mxu0 0
      %1027 = vmatprep.subr.bf16.mxu0 0
      %1028 = vmatpush1.bf16.xpose.msra.mxu0 0
      %1029 = vmatprep.subr.bf16.mxu0 0
      %1030 = vmatpush1.bf16.xpose.msra.mxu0 0
      %1031 = vmatprep.subr.bf16.mxu0 0
      %1032 = vmatpush1.bf16.xpose.msra.mxu0 0
      %1033 = vmatprep.subr.bf16.mxu0 0
      %1034 = vmatpush1.bf16.xpose.msra.mxu0 0
      %1035 = vmatprep.subr.bf16.mxu0 0
      %1036 = vmatpush1.bf16.xpose.msra.mxu0 0
      %1037 = vmatprep.mubr.bf16.mxu0 0
      %1038 = vmatmul.mubr.bf16.gmra.mrb[0].mxu0 %v1000
      %v1039 = vpop.f32.mrb[0].mxu0
      %v1040 = vadd.f32 %v772, %v1039
      %v1041 = vpop.f32.mrb[0].mxu0
      %v1042 = vpop.f32.mrb[0].mxu0
      %v1043 = vpop.f32.mrb[0].mxu0
      %1044 = vdwg.mxu0
      %v1045 = vsel %vm777, %v1040, -inf
      %1046 = vmax.xlane.f32.xlu0 %v1045
      %v1047 = vpop.xlane.xlu0 %1046
      %v1048 = vsub.f32 %v1040, %v1047
      %v1049 = vmul.f32 %v1048, 1.442695
      %v1050 = vpow.pop %v1049
      %v1051 = vsel %vm777, %v1050, 0.0
      %1052 = vadd.xlane.f32.xlu0 %v1051
      %v1053 = vpop.xlane.xlu0 %1052
      %v1054 = vrcp.pop %v1053
      %v1055 = vmul.f32 %v1050, %v1054
      %v1056 = vpack.c.bf16 %v1055, %v1055
      %1057 = vrot.lane.b32.xlu0 %v773, 48
      %v1058 = vpop.permute.xlu0 %1057
      %v1060 = vsel %vm777, %v1056, 0
      %v1063 = vsel %vm841, %v1058, 0
      %1065 = vmatprep.subr.bf16.mxu0 0
      %1066 = vmatpush1.bf16.msra.mxu0 %v1063
      %1067 = vmatprep.subr.bf16.mxu0 0
      %1068 = vmatpush1.bf16.msra.mxu0 0
      %1069 = vmatprep.subr.bf16.mxu0 0
      %1070 = vmatpush1.bf16.msra.mxu0 0
      %1071 = vmatprep.subr.bf16.mxu0 0
      %1072 = vmatpush1.bf16.msra.mxu0 0
      %1073 = vmatprep.subr.bf16.mxu0 0
      %1074 = vmatpush1.bf16.msra.mxu0 0
      %1075 = vmatprep.subr.bf16.mxu0 0
      %1076 = vmatpush1.bf16.msra.mxu0 0
      %1077 = vmatprep.subr.bf16.mxu0 0
      %1078 = vmatpush1.bf16.msra.mxu0 0
      %1079 = vmatprep.subr.bf16.mxu0 0
      %1080 = vmatpush1.bf16.msra.mxu0 0
      %1081 = vmatprep.subr.bf16.mxu0 0
      %1082 = vmatpush1.bf16.msra.mxu0 0
      %1083 = vmatprep.subr.bf16.mxu0 0
      %1084 = vmatpush1.bf16.msra.mxu0 0
      %1085 = vmatprep.subr.bf16.mxu0 0
      %1086 = vmatpush1.bf16.msra.mxu0 0
      %1087 = vmatprep.subr.bf16.mxu0 0
      %1088 = vmatpush1.bf16.msra.mxu0 0
      %1089 = vmatprep.subr.bf16.mxu0 0
      %1090 = vmatpush1.bf16.msra.mxu0 0
      %1091 = vmatprep.subr.bf16.mxu0 0
      %1092 = vmatpush1.bf16.msra.mxu0 0
      %1093 = vmatprep.subr.bf16.mxu0 0
      %1094 = vmatpush1.bf16.msra.mxu0 0
      %1095 = vmatprep.subr.bf16.mxu0 0
      %1096 = vmatpush1.bf16.msra.mxu0 0
      %1097 = vmatprep.mubr.bf16.mxu0 0
      %1098 = vmatmul.mubr.bf16.gmra.mrb[0].mxu0 %v1060
      %v1099 = vpop.f32.mrb[0].mxu0
      %v1100 = vadd.f32 0.0, %v1099
      %v1101 = vpop.f32.mrb[0].mxu0
      %v1102 = vpop.f32.mrb[0].mxu0
      %v1103 = vpop.f32.mrb[0].mxu0
      %1104 = vdwg.mxu0
      %1105 = vrot.lane.b32.xlu0 %v773, 104
      %v1106 = vpop.permute.xlu0 %1105
      %1107 = vrot.lane.b32.xlu0 %v773, 72
      %v1108 = vpop.permute.xlu0 %1107
      %v1110 = vsel %vm777, %v1106, 0
      %v1113 = vsel %vm777, %v1108, 0
      %1115 = vmatprep.subr.bf16.mxu0 0
      %1116 = vmatpush1.bf16.xpose.msra.mxu0 %v1113
      %1117 = vmatprep.subr.bf16.mxu0 0
      %1118 = vmatpush1.bf16.xpose.msra.mxu0 0
      %1119 = vmatprep.subr.bf16.mxu0 0
      %1120 = vmatpush1.bf16.xpose.msra.mxu0 0
      %1121 = vmatprep.subr.bf16.mxu0 0
      %1122 = vmatpush1.bf16.xpose.msra.mxu0 0
      %1123 = vmatprep.subr.bf16.mxu0 0
      %1124 = vmatpush1.bf16.xpose.msra.mxu0 0
      %1125 = vmatprep.subr.bf16.mxu0 0
      %1126 = vmatpush1.bf16.xpose.msra.mxu0 0
      %1127 = vmatprep.subr.bf16.mxu0 0
      %1128 = vmatpush1.bf16.xpose.msra.mxu0 0
      %1129 = vmatprep.subr.bf16.mxu0 0
      %1130 = vmatpush1.bf16.xpose.msra.mxu0 0
      %1131 = vmatprep.subr.bf16.mxu0 0
      %1132 = vmatpush1.bf16.xpose.msra.mxu0 0
      %1133 = vmatprep.subr.bf16.mxu0 0
      %1134 = vmatpush1.bf16.xpose.msra.mxu0 0
      %1135 = vmatprep.subr.bf16.mxu0 0
      %1136 = vmatpush1.bf16.xpose.msra.mxu0 0
      %1137 = vmatprep.subr.bf16.mxu0 0
      %1138 = vmatpush1.bf16.xpose.msra.mxu0 0
      %1139 = vmatprep.subr.bf16.mxu0 0
      %1140 = vmatpush1.bf16.xpose.msra.mxu0 0
      %1141 = vmatprep.subr.bf16.mxu0 0
      %1142 = vmatpush1.bf16.xpose.msra.mxu0 0
      %1143 = vmatprep.subr.bf16.mxu0 0
      %1144 = vmatpush1.bf16.xpose.msra.mxu0 0
      %1145 = vmatprep.subr.bf16.mxu0 0
      %1146 = vmatpush1.bf16.xpose.msra.mxu0 0
      %1147 = vmatprep.mubr.bf16.mxu0 0
      %1148 = vmatmul.mubr.bf16.gmra.mrb[0].mxu0 %v1110
      %v1149 = vpop.f32.mrb[0].mxu0
      %v1150 = vadd.f32 %v772, %v1149
      %v1151 = vpop.f32.mrb[0].mxu0
      %v1152 = vpop.f32.mrb[0].mxu0
      %v1153 = vpop.f32.mrb[0].mxu0
      %1154 = vdwg.mxu0
      %v1155 = vsel %vm777, %v1150, -inf
      %1156 = vmax.xlane.f32.xlu0 %v1155
      %v1157 = vpop.xlane.xlu0 %1156
      %v1158 = vsub.f32 %v1150, %v1157
      %v1159 = vmul.f32 %v1158, 1.442695
      %v1160 = vpow.pop %v1159
      %v1161 = vsel %vm777, %v1160, 0.0
      %1162 = vadd.xlane.f32.xlu0 %v1161
      %v1163 = vpop.xlane.xlu0 %1162
      %v1164 = vrcp.pop %v1163
      %v1165 = vmul.f32 %v1160, %v1164
      %v1166 = vpack.c.bf16 %v1165, %v1165
      %1167 = vrot.lane.b32.xlu0 %v773, 40
      %v1168 = vpop.permute.xlu0 %1167
      %v1170 = vsel %vm777, %v1166, 0
      %v1173 = vsel %vm841, %v1168, 0
      %1175 = vmatprep.subr.bf16.mxu0 0
      %1176 = vmatpush1.bf16.msra.mxu0 %v1173
      %1177 = vmatprep.subr.bf16.mxu0 0
      %1178 = vmatpush1.bf16.msra.mxu0 0
      %1179 = vmatprep.subr.bf16.mxu0 0
      %1180 = vmatpush1.bf16.msra.mxu0 0
      %1181 = vmatprep.subr.bf16.mxu0 0
      %1182 = vmatpush1.bf16.msra.mxu0 0
      %1183 = vmatprep.subr.bf16.mxu0 0
      %1184 = vmatpush1.bf16.msra.mxu0 0
      %1185 = vmatprep.subr.bf16.mxu0 0
      %1186 = vmatpush1.bf16.msra.mxu0 0
      %1187 = vmatprep.subr.bf16.mxu0 0
      %1188 = vmatpush1.bf16.msra.mxu0 0
      %1189 = vmatprep.subr.bf16.mxu0 0
      %1190 = vmatpush1.bf16.msra.mxu0 0
      %1191 = vmatprep.subr.bf16.mxu0 0
      %1192 = vmatpush1.bf16.msra.mxu0 0
      %1193 = vmatprep.subr.bf16.mxu0 0
      %1194 = vmatpush1.bf16.msra.mxu0 0
      %1195 = vmatprep.subr.bf16.mxu0 0
      %1196 = vmatpush1.bf16.msra.mxu0 0
      %1197 = vmatprep.subr.bf16.mxu0 0
      %1198 = vmatpush1.bf16.msra.mxu0 0
      %1199 = vmatprep.subr.bf16.mxu0 0
      %1200 = vmatpush1.bf16.msra.mxu0 0
      %1201 = vmatprep.subr.bf16.mxu0 0
      %1202 = vmatpush1.bf16.msra.mxu0 0
      %1203 = vmatprep.subr.bf16.mxu0 0
      %1204 = vmatpush1.bf16.msra.mxu0 0
      %1205 = vmatprep.subr.bf16.mxu0 0
      %1206 = vmatpush1.bf16.msra.mxu0 0
      %1207 = vmatprep.mubr.bf16.mxu0 0
      %1208 = vmatmul.mubr.bf16.gmra.mrb[0].mxu0 %v1170
      %v1209 = vpop.f32.mrb[0].mxu0
      %v1210 = vadd.f32 0.0, %v1209
      %v1211 = vpop.f32.mrb[0].mxu0
      %v1212 = vpop.f32.mrb[0].mxu0
      %v1213 = vpop.f32.mrb[0].mxu0
      %1214 = vdwg.mxu0
      %1216 = vrot.lane.b32.xlu0 %v990, 8
      %v1217 = vpop.permute.xlu0 %1216
      %1220 = vrot.lane.b32.xlu0 %v1100, 16
      %v1221 = vpop.permute.xlu0 %1220
      %1224 = vrot.lane.b32.xlu0 %v1210, 24
      %v1225 = vpop.permute.xlu0 %1224
      %v1227 = vsel %vm777, %v880, %v1217
      %vm1228 = vcmask 130048
      %v1229 = vsel %vm1228, %v1227, %v1221
      %vm1230 = vcmask 195584
      %v1231 = vsel %vm1230, %v1229, %v1225
      %v1232 = vpack.c.bf16 %v1231, %v1231
      %v1233 = vld [vmem:[%s4] sm:$0xf]
      %v1234 = vld [vmem:[%s4 + $0x4] sm:$0xf]
      %v1235 = vld [vmem:[%s4 + $0x8] sm:$0xf]
      %v1236 = vld [vmem:[%s4 + $0xc] sm:$0xf]
      %v1237 = vld [vmem:[%s5] sm:$0x1]
      %v1239 = vlaneseq
      %v1240 = vshrl.u32 %v1239, 7
      %v1241 = vsub.s32 0, %v1240
      %v1242 = vrot.slane %v1237, %v1241
      %v1248 = vunpack.c.l.b16 %v1233
      %v1249 = vunpack.c.l.b16 %v1234
      %v1250 = vunpack.c.l.b16 %v1235
      %v1251 = vunpack.c.l.b16 %v1236
      %v1252 = vpack.c.b16 %v1249, %v1248
      %v1253 = vpack.c.b16 %v1251, %v1250
      %v1257 = vsel %vm723, %v1232, 0
      %1259 = vmatprep.subr.bf16.mxu0 0
      %1260 = vmatpush1.bf16.msra.mxu0 %v1252
      %1261 = vmatprep.subr.bf16.mxu0 0
      %1262 = vmatpush1.bf16.msra.mxu0 %v1253
      %1263 = vmatprep.subr.bf16.mxu0 0
      %1264 = vmatpush1.bf16.msra.mxu0 0
      %1265 = vmatprep.subr.bf16.mxu0 0
      %1266 = vmatpush1.bf16.msra.mxu0 0
      %1267 = vmatprep.subr.bf16.mxu0 0
      %1268 = vmatpush1.bf16.msra.mxu0 0
      %1269 = vmatprep.subr.bf16.mxu0 0
      %1270 = vmatpush1.bf16.msra.mxu0 0
      %1271 = vmatprep.subr.bf16.mxu0 0
      %1272 = vmatpush1.bf16.msra.mxu0 0
      %1273 = vmatprep.subr.bf16.mxu0 0
      %1274 = vmatpush1.bf16.msra.mxu0 0
      %1275 = vmatprep.subr.bf16.mxu0 0
      %1276 = vmatpush1.bf16.msra.mxu0 0
      %1277 = vmatprep.subr.bf16.mxu0 0
      %1278 = vmatpush1.bf16.msra.mxu0 0
      %1279 = vmatprep.subr.bf16.mxu0 0
      %1280 = vmatpush1.bf16.msra.mxu0 0
      %1281 = vmatprep.subr.bf16.mxu0 0
      %1282 = vmatpush1.bf16.msra.mxu0 0
      %1283 = vmatprep.subr.bf16.mxu0 0
      %1284 = vmatpush1.bf16.msra.mxu0 0
      %1285 = vmatprep.subr.bf16.mxu0 0
      %1286 = vmatpush1.bf16.msra.mxu0 0
      %1287 = vmatprep.subr.bf16.mxu0 0
      %1288 = vmatpush1.bf16.msra.mxu0 0
      %1289 = vmatprep.subr.bf16.mxu0 0
      %1290 = vmatpush1.bf16.msra.mxu0 0
      %1291 = vmatprep.mubr.bf16.mxu0 0
      %1292 = vmatmul.mubr.bf16.gmra.mrb[0].mxu0 %v1257
      %v1293 = vpop.f32.mrb[0].mxu0
      %v1294 = vadd.f32 %v1242, %v1293
      %v1295 = vpop.f32.mrb[0].mxu0
      %v1296 = vpop.f32.mrb[0].mxu0
      %v1297 = vpop.f32.mrb[0].mxu0
      %1298 = vdwg.mxu0
      %v1299 = vadd.f32 %v697, %v1294
      %v1300 = vld [vmem:[%s6] sm:$0x1]
      %v1301 = vld [vmem:[%s7] sm:$0x1]
      %v1302 = vsel %vm723, %v1299, 0.0
      %1303 = vadd.xlane.f32.xlu0 %v1302
      %v1304 = vpop.xlane.xlu0 %1303
      %v1305 = vrcp.pop 32.0
      %v1306 = vmul.f32 %v1304, %v1305
      %v1307 = vsub.f32 %v1299, %v1306
      %v1308 = vmul.f32 %v1307, %v1307
      %v1309 = vsel %vm723, %v1308, 0.0
      %1310 = vadd.xlane.f32.xlu0 %v1309
      %v1311 = vpop.xlane.xlu0 %1310
      %v1312 = vmul.f32 %v1311, %v1305
      %v1313 = vadd.f32 %v1312, 1e-05
      %v1314 = vrsqrt.pop %v1313
      %v1315 = vmul.f32 %v1307, %v1314
      %v1317 = vlaneseq
      %v1318 = vshrl.u32 %v1317, 7
      %v1319 = vsub.s32 0, %v1318
      %v1320 = vrot.slane %v1300, %v1319
      %v1322 = vmul.f32 %v1315, %v1320
      %v1324 = vlaneseq
      %v1325 = vshrl.u32 %v1324, 7
      %v1326 = vsub.s32 0, %v1325
      %v1327 = vrot.slane %v1301, %v1326
      %v1329 = vadd.f32 %v1322, %v1327
      %v1330 = vpack.c.bf16 %v1329, %v1329
      %v1331 = vld [vmem:[%s8] sm:$0xf]
      %v1332 = vld [vmem:[%s8 + $0x4] sm:$0xf]
      %v1333 = vld [vmem:[%s8 + $0x8] sm:$0xf]
      %v1334 = vld [vmem:[%s8 + $0xc] sm:$0xf]
      %v1335 = vld [vmem:[%s9] sm:$0x1]
      %v1337 = vlaneseq
      %v1338 = vshrl.u32 %v1337, 7
      %v1339 = vsub.s32 0, %v1338
      %v1340 = vrot.slane %v1335, %v1339
      %v1346 = vunpack.c.l.b16 %v1331
      %v1347 = vunpack.c.l.b16 %v1332
      %v1348 = vunpack.c.l.b16 %v1333
      %v1349 = vunpack.c.l.b16 %v1334
      %v1350 = vpack.c.b16 %v1347, %v1346
      %v1351 = vpack.c.b16 %v1349, %v1348
      %v1355 = vsel %vm723, %v1330, 0
      %1357 = vmatprep.subr.bf16.mxu0 0
      %1358 = vmatpush1.bf16.msra.mxu0 %v1350
      %1359 = vmatprep.subr.bf16.mxu0 0
      %1360 = vmatpush1.bf16.msra.mxu0 %v1351
      %1361 = vmatprep.subr.bf16.mxu0 0
      %1362 = vmatpush1.bf16.msra.mxu0 0
      %1363 = vmatprep.subr.bf16.mxu0 0
      %1364 = vmatpush1.bf16.msra.mxu0 0
      %1365 = vmatprep.subr.bf16.mxu0 0
      %1366 = vmatpush1.bf16.msra.mxu0 0
      %1367 = vmatprep.subr.bf16.mxu0 0
      %1368 = vmatpush1.bf16.msra.mxu0 0
      %1369 = vmatprep.subr.bf16.mxu0 0
      %1370 = vmatpush1.bf16.msra.mxu0 0
      %1371 = vmatprep.subr.bf16.mxu0 0
      %1372 = vmatpush1.bf16.msra.mxu0 0
      %1373 = vmatprep.subr.bf16.mxu0 0
      %1374 = vmatpush1.bf16.msra.mxu0 0
      %1375 = vmatprep.subr.bf16.mxu0 0
      %1376 = vmatpush1.bf16.msra.mxu0 0
      %1377 = vmatprep.subr.bf16.mxu0 0
      %1378 = vmatpush1.bf16.msra.mxu0 0
      %1379 = vmatprep.subr.bf16.mxu0 0
      %1380 = vmatpush1.bf16.msra.mxu0 0
      %1381 = vmatprep.subr.bf16.mxu0 0
      %1382 = vmatpush1.bf16.msra.mxu0 0
      %1383 = vmatprep.subr.bf16.mxu0 0
      %1384 = vmatpush1.bf16.msra.mxu0 0
      %1385 = vmatprep.subr.bf16.mxu0 0
      %1386 = vmatpush1.bf16.msra.mxu0 0
      %1387 = vmatprep.subr.bf16.mxu0 0
      %1388 = vmatpush1.bf16.msra.mxu0 0
      %1389 = vmatprep.mubr.bf16.mxu0 0
      %1390 = vmatmul.mubr.bf16.gmra.mrb[0].mxu0 %v1355
      %v1391 = vpop.f32.mrb[0].mxu0
      %v1392 = vadd.f32 %v1340, %v1391
      %v1393 = vpop.f32.mrb[0].mxu0
      %v1394 = vpop.f32.mrb[0].mxu0
      %v1395 = vpop.f32.mrb[0].mxu0
      %1396 = vdwg.mxu0
      %v1397 = vpack.c.bf16 %v698, %v698
      %v1398 = vld [vmem:[%s10] sm:$0xf]
      %v1399 = vld [vmem:[%s10 + $0x4] sm:$0xf]
      %v1400 = vld [vmem:[%s10 + $0x8] sm:$0xf]
      %v1401 = vld [vmem:[%s10 + $0xc] sm:$0xf]
      %v1402 = vld [vmem:[%s11] sm:$0x1]
      %v1404 = vlaneseq
      %v1405 = vshrl.u32 %v1404, 7
      %v1406 = vsub.s32 0, %v1405
      %v1407 = vrot.slane %v1402, %v1406
      %v1413 = vunpack.c.l.b16 %v1398
      %v1414 = vunpack.c.l.b16 %v1399
      %v1415 = vunpack.c.l.b16 %v1400
      %v1416 = vunpack.c.l.b16 %v1401
      %v1417 = vpack.c.b16 %v1414, %v1413
      %v1418 = vpack.c.b16 %v1416, %v1415
      %v1422 = vsel %vm723, %v1397, 0
      %1424 = vmatprep.subr.bf16.mxu0 0
      %1425 = vmatpush1.bf16.msra.mxu0 %v1417
      %1426 = vmatprep.subr.bf16.mxu0 0
      %1427 = vmatpush1.bf16.msra.mxu0 %v1418
      %1428 = vmatprep.subr.bf16.mxu0 0
      %1429 = vmatpush1.bf16.msra.mxu0 0
      %1430 = vmatprep.subr.bf16.mxu0 0
      %1431 = vmatpush1.bf16.msra.mxu0 0
      %1432 = vmatprep.subr.bf16.mxu0 0
      %1433 = vmatpush1.bf16.msra.mxu0 0
      %1434 = vmatprep.subr.bf16.mxu0 0
      %1435 = vmatpush1.bf16.msra.mxu0 0
      %1436 = vmatprep.subr.bf16.mxu0 0
      %1437 = vmatpush1.bf16.msra.mxu0 0
      %1438 = vmatprep.subr.bf16.mxu0 0
      %1439 = vmatpush1.bf16.msra.mxu0 0
      %1440 = vmatprep.subr.bf16.mxu0 0
      %1441 = vmatpush1.bf16.msra.mxu0 0
      %1442 = vmatprep.subr.bf16.mxu0 0
      %1443 = vmatpush1.bf16.msra.mxu0 0
      %1444 = vmatprep.subr.bf16.mxu0 0
      %1445 = vmatpush1.bf16.msra.mxu0 0
      %1446 = vmatprep.subr.bf16.mxu0 0
      %1447 = vmatpush1.bf16.msra.mxu0 0
      %1448 = vmatprep.subr.bf16.mxu0 0
      %1449 = vmatpush1.bf16.msra.mxu0 0
      %1450 = vmatprep.subr.bf16.mxu0 0
      %1451 = vmatpush1.bf16.msra.mxu0 0
      %1452 = vmatprep.subr.bf16.mxu0 0
      %1453 = vmatpush1.bf16.msra.mxu0 0
      %1454 = vmatprep.subr.bf16.mxu0 0
      %1455 = vmatpush1.bf16.msra.mxu0 0
      %1456 = vmatprep.mubr.bf16.mxu0 0
      %1457 = vmatmul.mubr.bf16.gmra.mrb[0].mxu0 %v1422
      %v1458 = vpop.f32.mrb[0].mxu0
      %v1459 = vadd.f32 %v1407, %v1458
      %v1460 = vpop.f32.mrb[0].mxu0
      %v1461 = vpop.f32.mrb[0].mxu0
      %v1462 = vpop.f32.mrb[0].mxu0
      %1463 = vdwg.mxu0
      %v1464 = vpack.c.bf16 %v1392, %v1392
      %v1465 = vpack.c.bf16 %v1459, %v1459
      %v1467 = vsel %vm777, %v1464, 0
      %v1470 = vsel %vm777, %v1465, 0
      %1472 = vmatprep.subr.bf16.mxu0 0
      %1473 = vmatpush1.bf16.xpose.msra.mxu0 %v1470
      %1474 = vmatprep.subr.bf16.mxu0 0
      %1475 = vmatpush1.bf16.xpose.msra.mxu0 0
      %1476 = vmatprep.subr.bf16.mxu0 0
      %1477 = vmatpush1.bf16.xpose.msra.mxu0 0
      %1478 = vmatprep.subr.bf16.mxu0 0
      %1479 = vmatpush1.bf16.xpose.msra.mxu0 0
      %1480 = vmatprep.subr.bf16.mxu0 0
      %1481 = vmatpush1.bf16.xpose.msra.mxu0 0
      %1482 = vmatprep.subr.bf16.mxu0 0
      %1483 = vmatpush1.bf16.xpose.msra.mxu0 0
      %1484 = vmatprep.subr.bf16.mxu0 0
      %1485 = vmatpush1.bf16.xpose.msra.mxu0 0
      %1486 = vmatprep.subr.bf16.mxu0 0
      %1487 = vmatpush1.bf16.xpose.msra.mxu0 0
      %1488 = vmatprep.subr.bf16.mxu0 0
      %1489 = vmatpush1.bf16.xpose.msra.mxu0 0
      %1490 = vmatprep.subr.bf16.mxu0 0
      %1491 = vmatpush1.bf16.xpose.msra.mxu0 0
      %1492 = vmatprep.subr.bf16.mxu0 0
      %1493 = vmatpush1.bf16.xpose.msra.mxu0 0
      %1494 = vmatprep.subr.bf16.mxu0 0
      %1495 = vmatpush1.bf16.xpose.msra.mxu0 0
      %1496 = vmatprep.subr.bf16.mxu0 0
      %1497 = vmatpush1.bf16.xpose.msra.mxu0 0
      %1498 = vmatprep.subr.bf16.mxu0 0
      %1499 = vmatpush1.bf16.xpose.msra.mxu0 0
      %1500 = vmatprep.subr.bf16.mxu0 0
      %1501 = vmatpush1.bf16.xpose.msra.mxu0 0
      %1502 = vmatprep.subr.bf16.mxu0 0
      %1503 = vmatpush1.bf16.xpose.msra.mxu0 0
      %1504 = vmatprep.mubr.bf16.mxu0 0
      %1505 = vmatmul.mubr.bf16.gmra.mrb[0].mxu0 %v1467
      %v1506 = vpop.f32.mrb[0].mxu0
      %v1507 = vadd.f32 0.0, %v1506
      %v1508 = vpop.f32.mrb[0].mxu0
      %v1509 = vpop.f32.mrb[0].mxu0
      %v1510 = vpop.f32.mrb[0].mxu0
      %1511 = vdwg.mxu0
      %v1512 = vsel %vm777, %v1507, -inf
      %1513 = vmax.xlane.f32.xlu0 %v1512
      %v1514 = vpop.xlane.xlu0 %1513
      %v1515 = vsub.f32 %v1507, %v1514
      %v1516 = vmul.f32 %v1515, 1.442695
      %v1517 = vpow.pop %v1516
      %v1518 = vsel %vm777, %v1517, 0.0
      %1519 = vadd.xlane.f32.xlu0 %v1518
      %v1520 = vpop.xlane.xlu0 %1519
      %v1521 = vrcp.pop %v1520
      %v1522 = vmul.f32 %v1517, %v1521
      %v1523 = vpack.c.bf16 %v1522, %v1522
      %1525 = vrot.lane.b32.xlu0 %v1465, 96
      %v1526 = vpop.permute.xlu0 %1525
      %v1528 = vsel %vm777, %v1523, 0
      %v1531 = vsel %vm841, %v1526, 0
      %1533 = vmatprep.subr.bf16.mxu0 0
      %1534 = vmatpush1.bf16.msra.mxu0 %v1531
      %1535 = vmatprep.subr.bf16.mxu0 0
      %1536 = vmatpush1.bf16.msra.mxu0 0
      %1537 = vmatprep.subr.bf16.mxu0 0
      %1538 = vmatpush1.bf16.msra.mxu0 0
      %1539 = vmatprep.subr.bf16.mxu0 0
      %1540 = vmatpush1.bf16.msra.mxu0 0
      %1541 = vmatprep.subr.bf16.mxu0 0
      %1542 = vmatpush1.bf16.msra.mxu0 0
      %1543 = vmatprep.subr.bf16.mxu0 0
      %1544 = vmatpush1.bf16.msra.mxu0 0
      %1545 = vmatprep.subr.bf16.mxu0 0
      %1546 = vmatpush1.bf16.msra.mxu0 0
      %1547 = vmatprep.subr.bf16.mxu0 0
      %1548 = vmatpush1.bf16.msra.mxu0 0
      %1549 = vmatprep.subr.bf16.mxu0 0
      %1550 = vmatpush1.bf16.msra.mxu0 0
      %1551 = vmatprep.subr.bf16.mxu0 0
      %1552 = vmatpush1.bf16.msra.mxu0 0
      %1553 = vmatprep.subr.bf16.mxu0 0
      %1554 = vmatpush1.bf16.msra.mxu0 0
      %1555 = vmatprep.subr.bf16.mxu0 0
      %1556 = vmatpush1.bf16.msra.mxu0 0
      %1557 = vmatprep.subr.bf16.mxu0 0
      %1558 = vmatpush1.bf16.msra.mxu0 0
      %1559 = vmatprep.subr.bf16.mxu0 0
      %1560 = vmatpush1.bf16.msra.mxu0 0
      %1561 = vmatprep.subr.bf16.mxu0 0
      %1562 = vmatpush1.bf16.msra.mxu0 0
      %1563 = vmatprep.subr.bf16.mxu0 0
      %1564 = vmatpush1.bf16.msra.mxu0 0
      %1565 = vmatprep.mubr.bf16.mxu0 0
      %1566 = vmatmul.mubr.bf16.gmra.mrb[0].mxu0 %v1528
      %v1567 = vpop.f32.mrb[0].mxu0
      %v1568 = vadd.f32 0.0, %v1567
      %v1569 = vpop.f32.mrb[0].mxu0
      %v1570 = vpop.f32.mrb[0].mxu0
      %v1571 = vpop.f32.mrb[0].mxu0
      %1572 = vdwg.mxu0
      %1574 = vrot.lane.b32.xlu0 %v1464, 120
      %v1575 = vpop.permute.xlu0 %1574
      %1576 = vrot.lane.b32.xlu0 %v1465, 120
      %v1577 = vpop.permute.xlu0 %1576
      %v1579 = vsel %vm777, %v1575, 0
      %v1582 = vsel %vm777, %v1577, 0
      %1584 = vmatprep.subr.bf16.mxu0 0
      %1585 = vmatpush1.bf16.xpose.msra.mxu0 %v1582
      %1586 = vmatprep.subr.bf16.mxu0 0
      %1587 = vmatpush1.bf16.xpose.msra.mxu0 0
      %1588 = vmatprep.subr.bf16.mxu0 0
      %1589 = vmatpush1.bf16.xpose.msra.mxu0 0
      %1590 = vmatprep.subr.bf16.mxu0 0
      %1591 = vmatpush1.bf16.xpose.msra.mxu0 0
      %1592 = vmatprep.subr.bf16.mxu0 0
      %1593 = vmatpush1.bf16.xpose.msra.mxu0 0
      %1594 = vmatprep.subr.bf16.mxu0 0
      %1595 = vmatpush1.bf16.xpose.msra.mxu0 0
      %1596 = vmatprep.subr.bf16.mxu0 0
      %1597 = vmatpush1.bf16.xpose.msra.mxu0 0
      %1598 = vmatprep.subr.bf16.mxu0 0
      %1599 = vmatpush1.bf16.xpose.msra.mxu0 0
      %1600 = vmatprep.subr.bf16.mxu0 0
      %1601 = vmatpush1.bf16.xpose.msra.mxu0 0
      %1602 = vmatprep.subr.bf16.mxu0 0
      %1603 = vmatpush1.bf16.xpose.msra.mxu0 0
      %1604 = vmatprep.subr.bf16.mxu0 0
      %1605 = vmatpush1.bf16.xpose.msra.mxu0 0
      %1606 = vmatprep.subr.bf16.mxu0 0
      %1607 = vmatpush1.bf16.xpose.msra.mxu0 0
      %1608 = vmatprep.subr.bf16.mxu0 0
      %1609 = vmatpush1.bf16.xpose.msra.mxu0 0
      %1610 = vmatprep.subr.bf16.mxu0 0
      %1611 = vmatpush1.bf16.xpose.msra.mxu0 0
      %1612 = vmatprep.subr.bf16.mxu0 0
      %1613 = vmatpush1.bf16.xpose.msra.mxu0 0
      %1614 = vmatprep.subr.bf16.mxu0 0
      %1615 = vmatpush1.bf16.xpose.msra.mxu0 0
      %1616 = vmatprep.mubr.bf16.mxu0 0
      %1617 = vmatmul.mubr.bf16.gmra.mrb[0].mxu0 %v1579
      %v1618 = vpop.f32.mrb[0].mxu0
      %v1619 = vadd.f32 0.0, %v1618
      %v1620 = vpop.f32.mrb[0].mxu0
      %v1621 = vpop.f32.mrb[0].mxu0
      %v1622 = vpop.f32.mrb[0].mxu0
      %1623 = vdwg.mxu0
      %v1624 = vsel %vm777, %v1619, -inf
      %1625 = vmax.xlane.f32.xlu0 %v1624
      %v1626 = vpop.xlane.xlu0 %1625
      %v1627 = vsub.f32 %v1619, %v1626
      %v1628 = vmul.f32 %v1627, 1.442695
      %v1629 = vpow.pop %v1628
      %v1630 = vsel %vm777, %v1629, 0.0
      %1631 = vadd.xlane.f32.xlu0 %v1630
      %v1632 = vpop.xlane.xlu0 %1631
      %v1633 = vrcp.pop %v1632
      %v1634 = vmul.f32 %v1629, %v1633
      %v1635 = vpack.c.bf16 %v1634, %v1634
      %1636 = vrot.lane.b32.xlu0 %v1465, 88
      %v1637 = vpop.permute.xlu0 %1636
      %v1639 = vsel %vm777, %v1635, 0
      %v1642 = vsel %vm841, %v1637, 0
      %1644 = vmatprep.subr.bf16.mxu0 0
      %1645 = vmatpush1.bf16.msra.mxu0 %v1642
      %1646 = vmatprep.subr.bf16.mxu0 0
      %1647 = vmatpush1.bf16.msra.mxu0 0
      %1648 = vmatprep.subr.bf16.mxu0 0
      %1649 = vmatpush1.bf16.msra.mxu0 0
      %1650 = vmatprep.subr.bf16.mxu0 0
      %1651 = vmatpush1.bf16.msra.mxu0 0
      %1652 = vmatprep.subr.bf16.mxu0 0
      %1653 = vmatpush1.bf16.msra.mxu0 0
      %1654 = vmatprep.subr.bf16.mxu0 0
      %1655 = vmatpush1.bf16.msra.mxu0 0
      %1656 = vmatprep.subr.bf16.mxu0 0
      %1657 = vmatpush1.bf16.msra.mxu0 0
      %1658 = vmatprep.subr.bf16.mxu0 0
      %1659 = vmatpush1.bf16.msra.mxu0 0
      %1660 = vmatprep.subr.bf16.mxu0 0
      %1661 = vmatpush1.bf16.msra.mxu0 0
      %1662 = vmatprep.subr.bf16.mxu0 0
      %1663 = vmatpush1.bf16.msra.mxu0 0
      %1664 = vmatprep.subr.bf16.mxu0 0
      %1665 = vmatpush1.bf16.msra.mxu0 0
      %1666 = vmatprep.subr.bf16.mxu0 0
      %1667 = vmatpush1.bf16.msra.mxu0 0
      %1668 = vmatprep.subr.bf16.mxu0 0
      %1669 = vmatpush1.bf16.msra.mxu0 0
      %1670 = vmatprep.subr.bf16.mxu0 0
      %1671 = vmatpush1.bf16.msra.mxu0 0
      %1672 = vmatprep.subr.bf16.mxu0 0
      %1673 = vmatpush1.bf16.msra.mxu0 0
      %1674 = vmatprep.subr.bf16.mxu0 0
      %1675 = vmatpush1.bf16.msra.mxu0 0
      %1676 = vmatprep.mubr.bf16.mxu0 0
      %1677 = vmatmul.mubr.bf16.gmra.mrb[0].mxu0 %v1639
      %v1678 = vpop.f32.mrb[0].mxu0
      %v1679 = vadd.f32 0.0, %v1678
      %v1680 = vpop.f32.mrb[0].mxu0
      %v1681 = vpop.f32.mrb[0].mxu0
      %v1682 = vpop.f32.mrb[0].mxu0
      %1683 = vdwg.mxu0
      %1684 = vrot.lane.b32.xlu0 %v1464, 112
      %v1685 = vpop.permute.xlu0 %1684
      %1686 = vrot.lane.b32.xlu0 %v1465, 112
      %v1687 = vpop.permute.xlu0 %1686
      %v1689 = vsel %vm777, %v1685, 0
      %v1692 = vsel %vm777, %v1687, 0
      %1694 = vmatprep.subr.bf16.mxu0 0
      %1695 = vmatpush1.bf16.xpose.msra.mxu0 %v1692
      %1696 = vmatprep.subr.bf16.mxu0 0
      %1697 = vmatpush1.bf16.xpose.msra.mxu0 0
      %1698 = vmatprep.subr.bf16.mxu0 0
      %1699 = vmatpush1.bf16.xpose.msra.mxu0 0
      %1700 = vmatprep.subr.bf16.mxu0 0
      %1701 = vmatpush1.bf16.xpose.msra.mxu0 0
      %1702 = vmatprep.subr.bf16.mxu0 0
      %1703 = vmatpush1.bf16.xpose.msra.mxu0 0
      %1704 = vmatprep.subr.bf16.mxu0 0
      %1705 = vmatpush1.bf16.xpose.msra.mxu0 0
      %1706 = vmatprep.subr.bf16.mxu0 0
      %1707 = vmatpush1.bf16.xpose.msra.mxu0 0
      %1708 = vmatprep.subr.bf16.mxu0 0
      %1709 = vmatpush1.bf16.xpose.msra.mxu0 0
      %1710 = vmatprep.subr.bf16.mxu0 0
      %1711 = vmatpush1.bf16.xpose.msra.mxu0 0
      %1712 = vmatprep.subr.bf16.mxu0 0
      %1713 = vmatpush1.bf16.xpose.msra.mxu0 0
      %1714 = vmatprep.subr.bf16.mxu0 0
      %1715 = vmatpush1.bf16.xpose.msra.mxu0 0
      %1716 = vmatprep.subr.bf16.mxu0 0
      %1717 = vmatpush1.bf16.xpose.msra.mxu0 0
      %1718 = vmatprep.subr.bf16.mxu0 0
      %1719 = vmatpush1.bf16.xpose.msra.mxu0 0
      %1720 = vmatprep.subr.bf16.mxu0 0
      %1721 = vmatpush1.bf16.xpose.msra.mxu0 0
      %1722 = vmatprep.subr.bf16.mxu0 0
      %1723 = vmatpush1.bf16.xpose.msra.mxu0 0
      %1724 = vmatprep.subr.bf16.mxu0 0
      %1725 = vmatpush1.bf16.xpose.msra.mxu0 0
      %1726 = vmatprep.mubr.bf16.mxu0 0
      %1727 = vmatmul.mubr.bf16.gmra.mrb[0].mxu0 %v1689
      %v1728 = vpop.f32.mrb[0].mxu0
      %v1729 = vadd.f32 0.0, %v1728
      %v1730 = vpop.f32.mrb[0].mxu0
      %v1731 = vpop.f32.mrb[0].mxu0
      %v1732 = vpop.f32.mrb[0].mxu0
      %1733 = vdwg.mxu0
      %v1734 = vsel %vm777, %v1729, -inf
      %1735 = vmax.xlane.f32.xlu0 %v1734
      %v1736 = vpop.xlane.xlu0 %1735
      %v1737 = vsub.f32 %v1729, %v1736
      %v1738 = vmul.f32 %v1737, 1.442695
      %v1739 = vpow.pop %v1738
      %v1740 = vsel %vm777, %v1739, 0.0
      %1741 = vadd.xlane.f32.xlu0 %v1740
      %v1742 = vpop.xlane.xlu0 %1741
      %v1743 = vrcp.pop %v1742
      %v1744 = vmul.f32 %v1739, %v1743
      %v1745 = vpack.c.bf16 %v1744, %v1744
      %1746 = vrot.lane.b32.xlu0 %v1465, 80
      %v1747 = vpop.permute.xlu0 %1746
      %v1749 = vsel %vm777, %v1745, 0
      %v1752 = vsel %vm841, %v1747, 0
      %1754 = vmatprep.subr.bf16.mxu0 0
      %1755 = vmatpush1.bf16.msra.mxu0 %v1752
      %1756 = vmatprep.subr.bf16.mxu0 0
      %1757 = vmatpush1.bf16.msra.mxu0 0
      %1758 = vmatprep.subr.bf16.mxu0 0
      %1759 = vmatpush1.bf16.msra.mxu0 0
      %1760 = vmatprep.subr.bf16.mxu0 0
      %1761 = vmatpush1.bf16.msra.mxu0 0
      %1762 = vmatprep.subr.bf16.mxu0 0
      %1763 = vmatpush1.bf16.msra.mxu0 0
      %1764 = vmatprep.subr.bf16.mxu0 0
      %1765 = vmatpush1.bf16.msra.mxu0 0
      %1766 = vmatprep.subr.bf16.mxu0 0
      %1767 = vmatpush1.bf16.msra.mxu0 0
      %1768 = vmatprep.subr.bf16.mxu0 0
      %1769 = vmatpush1.bf16.msra.mxu0 0
      %1770 = vmatprep.subr.bf16.mxu0 0
      %1771 = vmatpush1.bf16.msra.mxu0 0
      %1772 = vmatprep.subr.bf16.mxu0 0
      %1773 = vmatpush1.bf16.msra.mxu0 0
      %1774 = vmatprep.subr.bf16.mxu0 0
      %1775 = vmatpush1.bf16.msra.mxu0 0
      %1776 = vmatprep.subr.bf16.mxu0 0
      %1777 = vmatpush1.bf16.msra.mxu0 0
      %1778 = vmatprep.subr.bf16.mxu0 0
      %1779 = vmatpush1.bf16.msra.mxu0 0
      %1780 = vmatprep.subr.bf16.mxu0 0
      %1781 = vmatpush1.bf16.msra.mxu0 0
      %1782 = vmatprep.subr.bf16.mxu0 0
      %1783 = vmatpush1.bf16.msra.mxu0 0
      %1784 = vmatprep.subr.bf16.mxu0 0
      %1785 = vmatpush1.bf16.msra.mxu0 0
      %1786 = vmatprep.mubr.bf16.mxu0 0
      %1787 = vmatmul.mubr.bf16.gmra.mrb[0].mxu0 %v1749
      %v1788 = vpop.f32.mrb[0].mxu0
      %v1789 = vadd.f32 0.0, %v1788
      %v1790 = vpop.f32.mrb[0].mxu0
      %v1791 = vpop.f32.mrb[0].mxu0
      %v1792 = vpop.f32.mrb[0].mxu0
      %1793 = vdwg.mxu0
      %1794 = vrot.lane.b32.xlu0 %v1464, 104
      %v1795 = vpop.permute.xlu0 %1794
      %1796 = vrot.lane.b32.xlu0 %v1465, 104
      %v1797 = vpop.permute.xlu0 %1796
      %v1799 = vsel %vm777, %v1795, 0
      %v1802 = vsel %vm777, %v1797, 0
      %1804 = vmatprep.subr.bf16.mxu0 0
      %1805 = vmatpush1.bf16.xpose.msra.mxu0 %v1802
      %1806 = vmatprep.subr.bf16.mxu0 0
      %1807 = vmatpush1.bf16.xpose.msra.mxu0 0
      %1808 = vmatprep.subr.bf16.mxu0 0
      %1809 = vmatpush1.bf16.xpose.msra.mxu0 0
      %1810 = vmatprep.subr.bf16.mxu0 0
      %1811 = vmatpush1.bf16.xpose.msra.mxu0 0
      %1812 = vmatprep.subr.bf16.mxu0 0
      %1813 = vmatpush1.bf16.xpose.msra.mxu0 0
      %1814 = vmatprep.subr.bf16.mxu0 0
      %1815 = vmatpush1.bf16.xpose.msra.mxu0 0
      %1816 = vmatprep.subr.bf16.mxu0 0
      %1817 = vmatpush1.bf16.xpose.msra.mxu0 0
      %1818 = vmatprep.subr.bf16.mxu0 0
      %1819 = vmatpush1.bf16.xpose.msra.mxu0 0
      %1820 = vmatprep.subr.bf16.mxu0 0
      %1821 = vmatpush1.bf16.xpose.msra.mxu0 0
      %1822 = vmatprep.subr.bf16.mxu0 0
      %1823 = vmatpush1.bf16.xpose.msra.mxu0 0
      %1824 = vmatprep.subr.bf16.mxu0 0
      %1825 = vmatpush1.bf16.xpose.msra.mxu0 0
      %1826 = vmatprep.subr.bf16.mxu0 0
      %1827 = vmatpush1.bf16.xpose.msra.mxu0 0
      %1828 = vmatprep.subr.bf16.mxu0 0
      %1829 = vmatpush1.bf16.xpose.msra.mxu0 0
      %1830 = vmatprep.subr.bf16.mxu0 0
      %1831 = vmatpush1.bf16.xpose.msra.mxu0 0
      %1832 = vmatprep.subr.bf16.mxu0 0
      %1833 = vmatpush1.bf16.xpose.msra.mxu0 0
      %1834 = vmatprep.subr.bf16.mxu0 0
      %1835 = vmatpush1.bf16.xpose.msra.mxu0 0
      %1836 = vmatprep.mubr.bf16.mxu0 0
      %1837 = vmatmul.mubr.bf16.gmra.mrb[0].mxu0 %v1799
      %v1838 = vpop.f32.mrb[0].mxu0
      %v1839 = vadd.f32 0.0, %v1838
      %v1840 = vpop.f32.mrb[0].mxu0
      %v1841 = vpop.f32.mrb[0].mxu0
      %v1842 = vpop.f32.mrb[0].mxu0
      %1843 = vdwg.mxu0
      %v1844 = vsel %vm777, %v1839, -inf
      %1845 = vmax.xlane.f32.xlu0 %v1844
      %v1846 = vpop.xlane.xlu0 %1845
      %v1847 = vsub.f32 %v1839, %v1846
      %v1848 = vmul.f32 %v1847, 1.442695
      %v1849 = vpow.pop %v1848
      %v1850 = vsel %vm777, %v1849, 0.0
      %1851 = vadd.xlane.f32.xlu0 %v1850
      %v1852 = vpop.xlane.xlu0 %1851
      %v1853 = vrcp.pop %v1852
      %v1854 = vmul.f32 %v1849, %v1853
      %v1855 = vpack.c.bf16 %v1854, %v1854
      %1856 = vrot.lane.b32.xlu0 %v1465, 72
      %v1857 = vpop.permute.xlu0 %1856
      %v1859 = vsel %vm777, %v1855, 0
      %v1862 = vsel %vm841, %v1857, 0
      %1864 = vmatprep.subr.bf16.mxu0 0
      %1865 = vmatpush1.bf16.msra.mxu0 %v1862
      %1866 = vmatprep.subr.bf16.mxu0 0
      %1867 = vmatpush1.bf16.msra.mxu0 0
      %1868 = vmatprep.subr.bf16.mxu0 0
      %1869 = vmatpush1.bf16.msra.mxu0 0
      %1870 = vmatprep.subr.bf16.mxu0 0
      %1871 = vmatpush1.bf16.msra.mxu0 0
      %1872 = vmatprep.subr.bf16.mxu0 0
      %1873 = vmatpush1.bf16.msra.mxu0 0
      %1874 = vmatprep.subr.bf16.mxu0 0
      %1875 = vmatpush1.bf16.msra.mxu0 0
      %1876 = vmatprep.subr.bf16.mxu0 0
      %1877 = vmatpush1.bf16.msra.mxu0 0
      %1878 = vmatprep.subr.bf16.mxu0 0
      %1879 = vmatpush1.bf16.msra.mxu0 0
      %1880 = vmatprep.subr.bf16.mxu0 0
      %1881 = vmatpush1.bf16.msra.mxu0 0
      %1882 = vmatprep.subr.bf16.mxu0 0
      %1883 = vmatpush1.bf16.msra.mxu0 0
      %1884 = vmatprep.subr.bf16.mxu0 0
      %1885 = vmatpush1.bf16.msra.mxu0 0
      %1886 = vmatprep.subr.bf16.mxu0 0
      %1887 = vmatpush1.bf16.msra.mxu0 0
      %1888 = vmatprep.subr.bf16.mxu0 0
      %1889 = vmatpush1.bf16.msra.mxu0 0
      %1890 = vmatprep.subr.bf16.mxu0 0
      %1891 = vmatpush1.bf16.msra.mxu0 0
      %1892 = vmatprep.subr.bf16.mxu0 0
      %1893 = vmatpush1.bf16.msra.mxu0 0
      %1894 = vmatprep.subr.bf16.mxu0 0
      %1895 = vmatpush1.bf16.msra.mxu0 0
      %1896 = vmatprep.mubr.bf16.mxu0 0
      %1897 = vmatmul.mubr.bf16.gmra.mrb[0].mxu0 %v1859
      %v1898 = vpop.f32.mrb[0].mxu0
      %v1899 = vadd.f32 0.0, %v1898
      %v1900 = vpop.f32.mrb[0].mxu0
      %v1901 = vpop.f32.mrb[0].mxu0
      %v1902 = vpop.f32.mrb[0].mxu0
      %1903 = vdwg.mxu0
      %1905 = vrot.lane.b32.xlu0 %v1679, 8
      %v1906 = vpop.permute.xlu0 %1905
      %1909 = vrot.lane.b32.xlu0 %v1789, 16
      %v1910 = vpop.permute.xlu0 %1909
      %1913 = vrot.lane.b32.xlu0 %v1899, 24
      %v1914 = vpop.permute.xlu0 %1913
      %v1916 = vsel %vm777, %v1568, %v1906
      %v1917 = vsel %vm1228, %v1916, %v1910
      %v1918 = vsel %vm1230, %v1917, %v1914
      %v1919 = vpack.c.bf16 %v1918, %v1918
      %v1920 = vld [vmem:[%s12] sm:$0xf]
      %v1921 = vld [vmem:[%s12 + $0x4] sm:$0xf]
      %v1922 = vld [vmem:[%s12 + $0x8] sm:$0xf]
      %v1923 = vld [vmem:[%s12 + $0xc] sm:$0xf]
      %v1924 = vld [vmem:[%s13] sm:$0x1]
      %v1926 = vlaneseq
      %v1927 = vshrl.u32 %v1926, 7
      %v1928 = vsub.s32 0, %v1927
      %v1929 = vrot.slane %v1924, %v1928
      %v1935 = vunpack.c.l.b16 %v1920
      %v1936 = vunpack.c.l.b16 %v1921
      %v1937 = vunpack.c.l.b16 %v1922
      %v1938 = vunpack.c.l.b16 %v1923
      %v1939 = vpack.c.b16 %v1936, %v1935
      %v1940 = vpack.c.b16 %v1938, %v1937
      %v1944 = vsel %vm723, %v1919, 0
      %1946 = vmatprep.subr.bf16.mxu0 0
      %1947 = vmatpush1.bf16.msra.mxu0 %v1939
      %1948 = vmatprep.subr.bf16.mxu0 0
      %1949 = vmatpush1.bf16.msra.mxu0 %v1940
      %1950 = vmatprep.subr.bf16.mxu0 0
      %1951 = vmatpush1.bf16.msra.mxu0 0
      %1952 = vmatprep.subr.bf16.mxu0 0
      %1953 = vmatpush1.bf16.msra.mxu0 0
      %1954 = vmatprep.subr.bf16.mxu0 0
      %1955 = vmatpush1.bf16.msra.mxu0 0
      %1956 = vmatprep.subr.bf16.mxu0 0
      %1957 = vmatpush1.bf16.msra.mxu0 0
      %1958 = vmatprep.subr.bf16.mxu0 0
      %1959 = vmatpush1.bf16.msra.mxu0 0
      %1960 = vmatprep.subr.bf16.mxu0 0
      %1961 = vmatpush1.bf16.msra.mxu0 0
      %1962 = vmatprep.subr.bf16.mxu0 0
      %1963 = vmatpush1.bf16.msra.mxu0 0
      %1964 = vmatprep.subr.bf16.mxu0 0
      %1965 = vmatpush1.bf16.msra.mxu0 0
      %1966 = vmatprep.subr.bf16.mxu0 0
      %1967 = vmatpush1.bf16.msra.mxu0 0
      %1968 = vmatprep.subr.bf16.mxu0 0
      %1969 = vmatpush1.bf16.msra.mxu0 0
      %1970 = vmatprep.subr.bf16.mxu0 0
      %1971 = vmatpush1.bf16.msra.mxu0 0
      %1972 = vmatprep.subr.bf16.mxu0 0
      %1973 = vmatpush1.bf16.msra.mxu0 0
      %1974 = vmatprep.subr.bf16.mxu0 0
      %1975 = vmatpush1.bf16.msra.mxu0 0
      %1976 = vmatprep.subr.bf16.mxu0 0
      %1977 = vmatpush1.bf16.msra.mxu0 0
      %1978 = vmatprep.mubr.bf16.mxu0 0
      %1979 = vmatmul.mubr.bf16.gmra.mrb[0].mxu0 %v1944
      %v1980 = vpop.f32.mrb[0].mxu0
      %v1981 = vadd.f32 %v1929, %v1980
      %v1982 = vpop.f32.mrb[0].mxu0
      %v1983 = vpop.f32.mrb[0].mxu0
      %v1984 = vpop.f32.mrb[0].mxu0
      %1985 = vdwg.mxu0
      %v1986 = vadd.f32 %v1329, %v1981
      %v1987 = vld [vmem:[%s14] sm:$0x1]
      %v1988 = vld [vmem:[%s15] sm:$0x1]
      %v1989 = vsel %vm723, %v1986, 0.0
      %1990 = vadd.xlane.f32.xlu0 %v1989
      %v1991 = vpop.xlane.xlu0 %1990
      %v1992 = vmul.f32 %v1991, %v1305
      %v1993 = vsub.f32 %v1986, %v1992
      %v1994 = vmul.f32 %v1993, %v1993
      %v1995 = vsel %vm723, %v1994, 0.0
      %1996 = vadd.xlane.f32.xlu0 %v1995
      %v1997 = vpop.xlane.xlu0 %1996
      %v1998 = vmul.f32 %v1997, %v1305
      %v1999 = vadd.f32 %v1998, 1e-05
      %v2000 = vrsqrt.pop %v1999
      %v2001 = vmul.f32 %v1993, %v2000
      %v2003 = vlaneseq
      %v2004 = vshrl.u32 %v2003, 7
      %v2005 = vsub.s32 0, %v2004
      %v2006 = vrot.slane %v1987, %v2005
      %v2008 = vmul.f32 %v2001, %v2006
      %v2010 = vlaneseq
      %v2011 = vshrl.u32 %v2010, 7
      %v2012 = vsub.s32 0, %v2011
      %v2013 = vrot.slane %v1988, %v2012
      %v2015 = vadd.f32 %v2008, %v2013
      %v2016 = vpack.c.bf16 %v2015, %v2015
      %v2017 = vld [vmem:[%s16] sm:$0xf]
      %v2018 = vld [vmem:[%s16 + $0x4] sm:$0xf]
      %v2019 = vld [vmem:[%s16 + $0x8] sm:$0xf]
      %v2020 = vld [vmem:[%s16 + $0xc] sm:$0xf]
      %v2021 = vld [vmem:[%s17] sm:$0x1]
      %v2023 = vlaneseq
      %v2024 = vshrl.u32 %v2023, 7
      %v2025 = vsub.s32 0, %v2024
      %v2026 = vrot.slane %v2021, %v2025
      %v2032 = vunpack.c.l.b16 %v2017
      %v2033 = vunpack.c.l.b16 %v2018
      %v2034 = vunpack.c.l.b16 %v2019
      %v2035 = vunpack.c.l.b16 %v2020
      %v2036 = vpack.c.b16 %v2033, %v2032
      %v2037 = vpack.c.b16 %v2035, %v2034
      %v2041 = vsel %vm723, %v2016, 0
      %2043 = vmatprep.subr.bf16.mxu0 0
      %2044 = vmatpush1.bf16.msra.mxu0 %v2036
      %2045 = vmatprep.subr.bf16.mxu0 0
      %2046 = vmatpush1.bf16.msra.mxu0 %v2037
      %2047 = vmatprep.subr.bf16.mxu0 0
      %2048 = vmatpush1.bf16.msra.mxu0 0
      %2049 = vmatprep.subr.bf16.mxu0 0
      %2050 = vmatpush1.bf16.msra.mxu0 0
      %2051 = vmatprep.subr.bf16.mxu0 0
      %2052 = vmatpush1.bf16.msra.mxu0 0
      %2053 = vmatprep.subr.bf16.mxu0 0
      %2054 = vmatpush1.bf16.msra.mxu0 0
      %2055 = vmatprep.subr.bf16.mxu0 0
      %2056 = vmatpush1.bf16.msra.mxu0 0
      %2057 = vmatprep.subr.bf16.mxu0 0
      %2058 = vmatpush1.bf16.msra.mxu0 0
      %2059 = vmatprep.subr.bf16.mxu0 0
      %2060 = vmatpush1.bf16.msra.mxu0 0
      %2061 = vmatprep.subr.bf16.mxu0 0
      %2062 = vmatpush1.bf16.msra.mxu0 0
      %2063 = vmatprep.subr.bf16.mxu0 0
      %2064 = vmatpush1.bf16.msra.mxu0 0
      %2065 = vmatprep.subr.bf16.mxu0 0
      %2066 = vmatpush1.bf16.msra.mxu0 0
      %2067 = vmatprep.subr.bf16.mxu0 0
      %2068 = vmatpush1.bf16.msra.mxu0 0
      %2069 = vmatprep.subr.bf16.mxu0 0
      %2070 = vmatpush1.bf16.msra.mxu0 0
      %2071 = vmatprep.subr.bf16.mxu0 0
      %2072 = vmatpush1.bf16.msra.mxu0 0
      %2073 = vmatprep.subr.bf16.mxu0 0
      %2074 = vmatpush1.bf16.msra.mxu0 0
      %2075 = vmatprep.mubr.bf16.mxu0 0
      %2076 = vmatmul.mubr.bf16.gmra.mrb[0].mxu0 %v2041
      %v2077 = vpop.f32.mrb[0].mxu0
      %v2078 = vadd.f32 %v2026, %v2077
      %v2079 = vpop.f32.mrb[0].mxu0
      %v2080 = vpop.f32.mrb[0].mxu0
      %v2081 = vpop.f32.mrb[0].mxu0
      %2082 = vdwg.mxu0
      %v2083 = vmax.f32 %v2078, 0.0
      %v2084 = vpack.c.bf16 %v2083, %v2083
      %v2085 = vld [vmem:[%s18] sm:$0xf]
      %v2086 = vld [vmem:[%s18 + $0x4] sm:$0xf]
      %v2087 = vld [vmem:[%s18 + $0x8] sm:$0xf]
      %v2088 = vld [vmem:[%s18 + $0xc] sm:$0xf]
      %v2089 = vld [vmem:[%s18 + $0x10] sm:$0xf]
      %v2090 = vld [vmem:[%s18 + $0x14] sm:$0xf]
      %v2091 = vld [vmem:[%s18 + $0x18] sm:$0xf]
      %v2092 = vld [vmem:[%s18 + $0x1c] sm:$0xf]
      %v2093 = vld [vmem:[%s18 + $0x20] sm:$0xf]
      %v2094 = vld [vmem:[%s18 + $0x24] sm:$0xf]
      %v2095 = vld [vmem:[%s18 + $0x28] sm:$0xf]
      %v2096 = vld [vmem:[%s18 + $0x2c] sm:$0xf]
      %v2097 = vld [vmem:[%s18 + $0x30] sm:$0xf]
      %v2098 = vld [vmem:[%s18 + $0x34] sm:$0xf]
      %v2099 = vld [vmem:[%s18 + $0x38] sm:$0xf]
      %v2100 = vld [vmem:[%s18 + $0x3c] sm:$0xf]
      %v2101 = vld [vmem:[%s19] sm:$0x1]
      %v2103 = vlaneseq
      %v2104 = vshrl.u32 %v2103, 7
      %v2105 = vsub.s32 0, %v2104
      %v2106 = vrot.slane %v2101, %v2105
      %v2124 = vunpack.c.l.b16 %v2085
      %v2125 = vunpack.c.l.b16 %v2086
      %v2126 = vunpack.c.l.b16 %v2087
      %v2127 = vunpack.c.l.b16 %v2088
      %v2128 = vunpack.c.l.b16 %v2089
      %v2129 = vunpack.c.l.b16 %v2090
      %v2130 = vunpack.c.l.b16 %v2091
      %v2131 = vunpack.c.l.b16 %v2092
      %v2132 = vunpack.c.l.b16 %v2093
      %v2133 = vunpack.c.l.b16 %v2094
      %v2134 = vunpack.c.l.b16 %v2095
      %v2135 = vunpack.c.l.b16 %v2096
      %v2136 = vunpack.c.l.b16 %v2097
      %v2137 = vunpack.c.l.b16 %v2098
      %v2138 = vunpack.c.l.b16 %v2099
      %v2139 = vunpack.c.l.b16 %v2100
      %v2140 = vpack.c.b16 %v2125, %v2124
      %v2141 = vpack.c.b16 %v2127, %v2126
      %v2142 = vpack.c.b16 %v2129, %v2128
      %v2143 = vpack.c.b16 %v2131, %v2130
      %v2144 = vpack.c.b16 %v2133, %v2132
      %v2145 = vpack.c.b16 %v2135, %v2134
      %v2146 = vpack.c.b16 %v2137, %v2136
      %v2147 = vpack.c.b16 %v2139, %v2138
      %2156 = vmatprep.subr.bf16.mxu0 0
      %2157 = vmatpush1.bf16.msra.mxu0 %v2140
      %2158 = vmatprep.subr.bf16.mxu0 0
      %2159 = vmatpush1.bf16.msra.mxu0 %v2141
      %2160 = vmatprep.subr.bf16.mxu0 0
      %2161 = vmatpush1.bf16.msra.mxu0 %v2142
      %2162 = vmatprep.subr.bf16.mxu0 0
      %2163 = vmatpush1.bf16.msra.mxu0 %v2143
      %2164 = vmatprep.subr.bf16.mxu0 0
      %2165 = vmatpush1.bf16.msra.mxu0 %v2144
      %2166 = vmatprep.subr.bf16.mxu0 0
      %2167 = vmatpush1.bf16.msra.mxu0 %v2145
      %2168 = vmatprep.subr.bf16.mxu0 0
      %2169 = vmatpush1.bf16.msra.mxu0 %v2146
      %2170 = vmatprep.subr.bf16.mxu0 0
      %2171 = vmatpush1.bf16.msra.mxu0 %v2147
      %2172 = vmatprep.subr.bf16.mxu0 0
      %2173 = vmatpush1.bf16.msra.mxu0 0
      %2174 = vmatprep.subr.bf16.mxu0 0
      %2175 = vmatpush1.bf16.msra.mxu0 0
      %2176 = vmatprep.subr.bf16.mxu0 0
      %2177 = vmatpush1.bf16.msra.mxu0 0
      %2178 = vmatprep.subr.bf16.mxu0 0
      %2179 = vmatpush1.bf16.msra.mxu0 0
      %2180 = vmatprep.subr.bf16.mxu0 0
      %2181 = vmatpush1.bf16.msra.mxu0 0
      %2182 = vmatprep.subr.bf16.mxu0 0
      %2183 = vmatpush1.bf16.msra.mxu0 0
      %2184 = vmatprep.subr.bf16.mxu0 0
      %2185 = vmatpush1.bf16.msra.mxu0 0
      %2186 = vmatprep.subr.bf16.mxu0 0
      %2187 = vmatpush1.bf16.msra.mxu0 0
      %2188 = vmatprep.mubr.bf16.mxu0 0
      %2189 = vmatmul.mubr.bf16.gmra.mrb[0].mxu0 %v2084
      %v2190 = vpop.f32.mrb[0].mxu0
      %v2191 = vadd.f32 %v2106, %v2190
      %v2192 = vpop.f32.mrb[0].mxu0
      %v2193 = vpop.f32.mrb[0].mxu0
      %v2194 = vpop.f32.mrb[0].mxu0
      %2195 = vdwg.mxu0
      %v2196 = vadd.f32 %v2015, %v2191
      %v2197 = vld [vmem:[%s20] sm:$0x1]
      %v2198 = vld [vmem:[%s21] sm:$0x1]
      %v2199 = vsel %vm723, %v2196, 0.0
      %2200 = vadd.xlane.f32.xlu0 %v2199
      %v2201 = vpop.xlane.xlu0 %2200
      %v2202 = vmul.f32 %v2201, %v1305
      %v2203 = vsub.f32 %v2196, %v2202
      %v2204 = vmul.f32 %v2203, %v2203
      %v2205 = vsel %vm723, %v2204, 0.0
      %2206 = vadd.xlane.f32.xlu0 %v2205
      %v2207 = vpop.xlane.xlu0 %2206
      %v2208 = vmul.f32 %v2207, %v1305
      %v2209 = vadd.f32 %v2208, 1e-05
      %v2210 = vrsqrt.pop %v2209
      %v2211 = vmul.f32 %v2203, %v2210
      %v2213 = vlaneseq
      %v2214 = vshrl.u32 %v2213, 7
      %v2215 = vsub.s32 0, %v2214
      %v2216 = vrot.slane %v2197, %v2215
      %v2218 = vmul.f32 %v2211, %v2216
      %v2220 = vlaneseq
      %v2221 = vshrl.u32 %v2220, 7
      %v2222 = vsub.s32 0, %v2221
      %v2223 = vrot.slane %v2198, %v2222
      %v2225 = vadd.f32 %v2218, %v2223
      %2226 = vst.msk [vmem:[%s695] sm:$0xff] %vm723, %v2225
      %p2227 = scmp.lt.s32.totalorder %s33, 1
      %s2228 = scalar_select %p2227, %s33, 1
      %s2229 = smul.addr %s2228, 8
      %s2230 = scalar_lea.vmem %s22, %s2229
      // Predicated region
      $region109: #{transformer_forward.7} parent=107 // pred_check
        %p2231 = pneg %p523
      $region110: #{transformer_forward.7} parent=107 // pred_check_branch
        %2233 = sbr.rel (%p2231) target = $region112
      $region111: #{transformer_forward.7} parent=107 // pred_region
        _
      $region112: #{transformer_forward.7} parent=107 // pred_fallthru
        _
    $region108: #{transformer_forward.7} parent=5 // pred_fallthru
      _
    %p2234 = scmp.le.s32.totalorder 2, %s28
    // Predicated region
    $region113: #{transformer_forward.7} parent=5 // pred_check
      %p2235 = pneg %p2234
    $region114: #{transformer_forward.7} parent=5 // pred_check_branch
      %2237 = sbr.rel (%p2235) target = $region116
    $region115: #{transformer_forward.7} parent=5 // pred_region
      %s2238 = ssub.s32 %s28, 2
      // Predicated region
      $region117: #{transformer_forward.7} parent=115 // pred_check
        %p2239 = pneg %p529
      $region118: #{transformer_forward.7} parent=115 // pred_check_branch
        %2241 = sbr.rel (%p2239) target = $region120
      $region119: #{transformer_forward.7} parent=115 // pred_region
        %p2242 = scmp.lt.s32.totalorder %s34, 1
        %s2243 = scalar_select %p2242, %s34, 1
        %s2244 = smul.addr %s2243, 8
        %s2245 = scalar_lea.vmem %s22, %s2244
      $region120: #{transformer_forward.7} parent=115 // pred_fallthru
        _
    $region116: #{transformer_forward.7} parent=5 // pred_fallthru
      _
  $region6: #{transformer_forward.7} parent=0 // loop_footer
    %s32 = sadd.s32 1, %s28
  $region7: #{transformer_forward.7} parent=0 // loop_footer_branch
    %27 = sbr.rel target = $region3
  $region8: #{transformer_forward.7} parent=0 // loop_exit
    _

// kernel: transformer_forward.8
$region0: #{transformer_forward.8}
  #allocation0 [shape = 'u32[]', space=smem, size = 0x4, offset = 0x4, fixed_abs, tag = 'smem constant byte address 0x4 - core index']
  #allocation1 [shape = 'u32[144,128]{1,0:T(1,128)}', space=vmem, size = 0x12000, scoped, tag = 'internal scratch']
  %s0 = inlined_call_operand.vmem [shape: f32[2,8,32], index: 0, kind: input, shape index: {}]
  %s1 = inlined_call_operand.vmem [shape: f32[2,8,32], index: 1, kind: input, shape index: {}]
  %s2 = inlined_call_operand.vmem [shape: bf16[32,96], index: 2, kind: input, shape index: {}]
  %s3 = inlined_call_operand.vmem [shape: f32[1,96], index: 3, kind: input, shape index: {}]
  %s4 = inlined_call_operand.vmem [shape: bf16[32,32], index: 4, kind: input, shape index: {}]
  %s5 = inlined_call_operand.vmem [shape: f32[1,32], index: 5, kind: input, shape index: {}]
  %s6 = inlined_call_operand.vmem [shape: f32[1,32], index: 6, kind: input, shape index: {}]
  %s7 = inlined_call_operand.vmem [shape: f32[1,32], index: 7, kind: input, shape index: {}]
  %s8 = inlined_call_operand.vmem [shape: bf16[32,32], index: 8, kind: input, shape index: {}]
  %s9 = inlined_call_operand.vmem [shape: f32[1,32], index: 9, kind: input, shape index: {}]
  %s10 = inlined_call_operand.vmem [shape: bf16[32,64], index: 10, kind: input, shape index: {}]
  %s11 = inlined_call_operand.vmem [shape: f32[1,64], index: 11, kind: input, shape index: {}]
  %s12 = inlined_call_operand.vmem [shape: bf16[32,32], index: 12, kind: input, shape index: {}]
  %s13 = inlined_call_operand.vmem [shape: f32[1,32], index: 13, kind: input, shape index: {}]
  %s14 = inlined_call_operand.vmem [shape: f32[1,32], index: 14, kind: input, shape index: {}]
  %s15 = inlined_call_operand.vmem [shape: f32[1,32], index: 15, kind: input, shape index: {}]
  %s16 = inlined_call_operand.vmem [shape: bf16[32,128], index: 16, kind: input, shape index: {}]
  %s17 = inlined_call_operand.vmem [shape: f32[1,128], index: 17, kind: input, shape index: {}]
  %s18 = inlined_call_operand.vmem [shape: bf16[128,32], index: 18, kind: input, shape index: {}]
  %s19 = inlined_call_operand.vmem [shape: f32[1,32], index: 19, kind: input, shape index: {}]
  %s20 = inlined_call_operand.vmem [shape: f32[1,32], index: 20, kind: input, shape index: {}]
  %s21 = inlined_call_operand.hbm [shape: f32[1,32], index: 21, kind: input, shape index: {}]
  %s22 = inlined_call_operand.vmem [shape: f32[2,8,32], index: 22, kind: output, shape index: {}]
  %s23 = sld [smem:[#allocation0]]
  $region125: #{transformer_forward.8} parent=0
    _
  %s25 = ssub.s32 1, %s23
  %s26 = scalar_select 0, %s25, %s23
  $region1: #{transformer_forward.8} parent=0
    #allocation2 [shape = 'u8[512]{0}', space=vmem, size = 0x400, scoped, tag = 'input window, operand 21, single buffered']
    #allocation3 [shape = 's32[2]{0}', space=sflag, size = 0x8, scoped, tag = 'scoped memory for transformer_forward.8']
    %27 = vsyncpa [#allocation3], 0
    loop: start=0, step=1, limit=4
    $region2: #{transformer_forward.8} parent=1 // loop_pre_header
      _
    $region3: #{transformer_forward.8} parent=1 // loop_header
      %s29 = sphi 0, %s33
      %p30 = scmp.ge.s32.totalorder %s29, 4
      %s39 = sphi 0, %s41
      %s42 = sphi 0, %s39
      %s43 = sphi 0, %s42
      %s59 = sphi 0, %s43
      %s65 = sphi 0, %s67
      %s68 = sphi 0, %s65
      %s69 = sphi 0, %s68
      %s85 = sphi 0, %s69
      %s89 = sphi 0, %s89
      %s91 = sphi 0, %s89
      %s92 = sphi 0, %s91
      %s106 = sphi 0, %s92
      %s110 = sphi 0, %s110
      %s112 = sphi 0, %s110
      %s113 = sphi 0, %s112
      %s127 = sphi 0, %s113
      %s131 = sphi 0, %s131
      %s133 = sphi 0, %s131
      %s134 = sphi 0, %s133
      %s148 = sphi 0, %s134
      %s152 = sphi 0, %s152
      %s154 = sphi 0, %s152
      %s155 = sphi 0, %s154
      %s169 = sphi 0, %s155
      %s173 = sphi 0, %s173
      %s175 = sphi 0, %s173
      %s176 = sphi 0, %s175
      %s190 = sphi 0, %s176
      %s194 = sphi 0, %s194
      %s196 = sphi 0, %s194
      %s197 = sphi 0, %s196
      %s211 = sphi 0, %s197
      %s215 = sphi 0, %s215
      %s217 = sphi 0, %s215
      %s218 = sphi 0, %s217
      %s232 = sphi 0, %s218
      %s236 = sphi 0, %s236
      %s238 = sphi 0, %s236
      %s239 = sphi 0, %s238
      %s253 = sphi 0, %s239
      %s257 = sphi 0, %s257
      %s259 = sphi 0, %s257
      %s260 = sphi 0, %s259
      %s274 = sphi 0, %s260
      %s278 = sphi 0, %s278
      %s280 = sphi 0, %s278
      %s281 = sphi 0, %s280
      %s295 = sphi 0, %s281
      %s299 = sphi 0, %s299
      %s301 = sphi 0, %s299
      %s302 = sphi 0, %s301
      %s316 = sphi 0, %s302
      %s320 = sphi 0, %s320
      %s322 = sphi 0, %s320
      %s323 = sphi 0, %s322
      %s337 = sphi 0, %s323
      %s341 = sphi 0, %s341
      %s343 = sphi 0, %s341
      %s344 = sphi 0, %s343
      %s358 = sphi 0, %s344
      %s362 = sphi 0, %s362
      %s364 = sphi 0, %s362
      %s365 = sphi 0, %s364
      %s379 = sphi 0, %s365
      %s383 = sphi 0, %s383
      %s385 = sphi 0, %s383
      %s386 = sphi 0, %s385
      %s400 = sphi 0, %s386
      %s404 = sphi 0, %s404
      %s406 = sphi 0, %s404
      %s407 = sphi 0, %s406
      %s421 = sphi 0, %s407
      %s425 = sphi 0, %s425
      %s427 = sphi 0, %s425
      %s428 = sphi 0, %s427
      %s442 = sphi 0, %s428
      %s446 = sphi 0, %s446
      %s448 = sphi 0, %s446
      %s449 = sphi 0, %s448
      %s463 = sphi 0, %s449
      %s467 = sphi 0, %s467
      %s469 = sphi 0, %s467
      %s470 = sphi 0, %s469
      %s484 = sphi 0, %s470
      %s488 = sphi 0, %s488
      %s490 = sphi 0, %s488
      %s491 = sphi 0, %s490
      %s505 = sphi 0, %s491
      %s511 = sphi 0, %s513
      %s514 = sphi 0, %s511
      %s515 = sphi 0, %s514
      %s531 = sphi 0, %s515
    $region4: #{transformer_forward.8} parent=1 // loop_header_branch
      %32 = sbr.rel (%p30) target = $region8
    $region5: #{transformer_forward.8} parent=1 // loop_body
      %s34 = ssub.s32 %s29, 1
      %s35 = ssub.s32 %s29, 2
      %s36 = sadd.s32 %s29, 1
      %s37 = ssub.s32 %s29, %s36
      %p38 = scmp.eq.s32.totalorder %s37, 0
      %s40 = sadd.s32 %s39, 1
      %s41 = scalar_select %p38, %s39, %s40
      %p44 = pneg %p38
      %p45 = scmp.eq.s32.totalorder %s29, 1
      %p46 = por %p44, %p45
      %p47 = scmp.ne.s32.totalorder %s39, %s42
      %p48 = scmp.eq.s32.totalorder %s29, 0
      %p49 = por %p47, %p48
      %p50 = scmp.ne.s32.totalorder %s39, %s42
      %p51 = scmp.eq.s32.totalorder %s34, 1
      %p52 = por %p50, %p51
      %p53 = scmp.ne.s32.totalorder %s42, %s43
      %p54 = scmp.eq.s32.totalorder %s34, 0
      %p55 = por %p53, %p54
      %p56 = scmp.ne.s32.totalorder %s42, %s43
      %p57 = scmp.eq.s32.totalorder %s35, 1
      %p58 = por %p56, %p57
      %p60 = scmp.ne.s32.totalorder %s43, %s59
      %p61 = scmp.eq.s32.totalorder %s35, 0
      %p62 = por %p60, %p61
      %s63 = ssub.s32 %s29, %s36
      %p64 = scmp.eq.s32.totalorder %s63, 0
      %s66 = sadd.s32 %s65, 1
      %s67 = scalar_select %p64, %s65, %s66
      %p70 = pneg %p64
      %p71 = scmp.eq.s32.totalorder %s29, 1
      %p72 = por %p70, %p71
      %p73 = scmp.ne.s32.totalorder %s65, %s68
      %p74 = scmp.eq.s32.totalorder %s29, 0
      %p75 = por %p73, %p74
      %p76 = scmp.ne.s32.totalorder %s65, %s68
      %p77 = scmp.eq.s32.totalorder %s34, 1
      %p78 = por %p76, %p77
      %p79 = scmp.ne.s32.totalorder %s68, %s69
      %p80 = scmp.eq.s32.totalorder %s34, 0
      %p81 = por %p79, %p80
      %p82 = scmp.ne.s32.totalorder %s68, %s69
      %p83 = scmp.eq.s32.totalorder %s35, 1
      %p84 = por %p82, %p83
      %p86 = scmp.ne.s32.totalorder %s69, %s85
      %p87 = scmp.eq.s32.totalorder %s35, 0
      %p88 = por %p86, %p87
      %s90 = sadd.s32 %s89, 1
      %p93 = scmp.eq.s32.totalorder %s29, 1
      %p94 = scmp.ne.s32.totalorder %s89, %s91
      %p95 = scmp.eq.s32.totalorder %s29, 0
      %p96 = por %p94, %p95
      %p97 = scmp.ne.s32.totalorder %s89, %s91
      %p98 = scmp.eq.s32.totalorder %s34, 1
      %p99 = por %p97, %p98
      %p100 = scmp.ne.s32.totalorder %s91, %s92
      %p101 = scmp.eq.s32.totalorder %s34, 0
      %p102 = por %p100, %p101
      %p103 = scmp.ne.s32.totalorder %s91, %s92
      %p104 = scmp.eq.s32.totalorder %s35, 1
      %p105 = por %p103, %p104
      %p107 = scmp.ne.s32.totalorder %s92, %s106
      %p108 = scmp.eq.s32.totalorder %s35, 0
      %p109 = por %p107, %p108
      %s111 = sadd.s32 %s110, 1
      %p114 = scmp.eq.s32.totalorder %s29, 1
      %p115 = scmp.ne.s32.totalorder %s110, %s112
      %p116 = scmp.eq.s32.totalorder %s29, 0
      %p117 = por %p115, %p116
      %p118 = scmp.ne.s32.totalorder %s110, %s112
      %p119 = scmp.eq.s32.totalorder %s34, 1
      %p120 = por %p118, %p119
      %p121 = scmp.ne.s32.totalorder %s112, %s113
      %p122 = scmp.eq.s32.totalorder %s34, 0
      %p123 = por %p121, %p122
      %p124 = scmp.ne.s32.totalorder %s112, %s113
      %p125 = scmp.eq.s32.totalorder %s35, 1
      %p126 = por %p124, %p125
      %p128 = scmp.ne.s32.totalorder %s113, %s127
      %p129 = scmp.eq.s32.totalorder %s35, 0
      %p130 = por %p128, %p129
      %s132 = sadd.s32 %s131, 1
      %p135 = scmp.eq.s32.totalorder %s29, 1
      %p136 = scmp.ne.s32.totalorder %s131, %s133
      %p137 = scmp.eq.s32.totalorder %s29, 0
      %p138 = por %p136, %p137
      %p139 = scmp.ne.s32.totalorder %s131, %s133
      %p140 = scmp.eq.s32.totalorder %s34, 1
      %p141 = por %p139, %p140
      %p142 = scmp.ne.s32.totalorder %s133, %s134
      %p143 = scmp.eq.s32.totalorder %s34, 0
      %p144 = por %p142, %p143
      %p145 = scmp.ne.s32.totalorder %s133, %s134
      %p146 = scmp.eq.s32.totalorder %s35, 1
      %p147 = por %p145, %p146
      %p149 = scmp.ne.s32.totalorder %s134, %s148
      %p150 = scmp.eq.s32.totalorder %s35, 0
      %p151 = por %p149, %p150
      %s153 = sadd.s32 %s152, 1
      %p156 = scmp.eq.s32.totalorder %s29, 1
      %p157 = scmp.ne.s32.totalorder %s152, %s154
      %p158 = scmp.eq.s32.totalorder %s29, 0
      %p159 = por %p157, %p158
      %p160 = scmp.ne.s32.totalorder %s152, %s154
      %p161 = scmp.eq.s32.totalorder %s34, 1
      %p162 = por %p160, %p161
      %p163 = scmp.ne.s32.totalorder %s154, %s155
      %p164 = scmp.eq.s32.totalorder %s34, 0
      %p165 = por %p163, %p164
      %p166 = scmp.ne.s32.totalorder %s154, %s155
      %p167 = scmp.eq.s32.totalorder %s35, 1
      %p168 = por %p166, %p167
      %p170 = scmp.ne.s32.totalorder %s155, %s169
      %p171 = scmp.eq.s32.totalorder %s35, 0
      %p172 = por %p170, %p171
      %s174 = sadd.s32 %s173, 1
      %p177 = scmp.eq.s32.totalorder %s29, 1
      %p178 = scmp.ne.s32.totalorder %s173, %s175
      %p179 = scmp.eq.s32.totalorder %s29, 0
      %p180 = por %p178, %p179
      %p181 = scmp.ne.s32.totalorder %s173, %s175
      %p182 = scmp.eq.s32.totalorder %s34, 1
      %p183 = por %p181, %p182
      %p184 = scmp.ne.s32.totalorder %s175, %s176
      %p185 = scmp.eq.s32.totalorder %s34, 0
      %p186 = por %p184, %p185
      %p187 = scmp.ne.s32.totalorder %s175, %s176
      %p188 = scmp.eq.s32.totalorder %s35, 1
      %p189 = por %p187, %p188
      %p191 = scmp.ne.s32.totalorder %s176, %s190
      %p192 = scmp.eq.s32.totalorder %s35, 0
      %p193 = por %p191, %p192
      %s195 = sadd.s32 %s194, 1
      %p198 = scmp.eq.s32.totalorder %s29, 1
      %p199 = scmp.ne.s32.totalorder %s194, %s196
      %p200 = scmp.eq.s32.totalorder %s29, 0
      %p201 = por %p199, %p200
      %p202 = scmp.ne.s32.totalorder %s194, %s196
      %p203 = scmp.eq.s32.totalorder %s34, 1
      %p204 = por %p202, %p203
      %p205 = scmp.ne.s32.totalorder %s196, %s197
      %p206 = scmp.eq.s32.totalorder %s34, 0
      %p207 = por %p205, %p206
      %p208 = scmp.ne.s32.totalorder %s196, %s197
      %p209 = scmp.eq.s32.totalorder %s35, 1
      %p210 = por %p208, %p209
      %p212 = scmp.ne.s32.totalorder %s197, %s211
      %p213 = scmp.eq.s32.totalorder %s35, 0
      %p214 = por %p212, %p213
      %s216 = sadd.s32 %s215, 1
      %p219 = scmp.eq.s32.totalorder %s29, 1
      %p220 = scmp.ne.s32.totalorder %s215, %s217
      %p221 = scmp.eq.s32.totalorder %s29, 0
      %p222 = por %p220, %p221
      %p223 = scmp.ne.s32.totalorder %s215, %s217
      %p224 = scmp.eq.s32.totalorder %s34, 1
      %p225 = por %p223, %p224
      %p226 = scmp.ne.s32.totalorder %s217, %s218
      %p227 = scmp.eq.s32.totalorder %s34, 0
      %p228 = por %p226, %p227
      %p229 = scmp.ne.s32.totalorder %s217, %s218
      %p230 = scmp.eq.s32.totalorder %s35, 1
      %p231 = por %p229, %p230
      %p233 = scmp.ne.s32.totalorder %s218, %s232
      %p234 = scmp.eq.s32.totalorder %s35, 0
      %p235 = por %p233, %p234
      %s237 = sadd.s32 %s236, 1
      %p240 = scmp.eq.s32.totalorder %s29, 1
      %p241 = scmp.ne.s32.totalorder %s236, %s238
      %p242 = scmp.eq.s32.totalorder %s29, 0
      %p243 = por %p241, %p242
      %p244 = scmp.ne.s32.totalorder %s236, %s238
      %p245 = scmp.eq.s32.totalorder %s34, 1
      %p246 = por %p244, %p245
      %p247 = scmp.ne.s32.totalorder %s238, %s239
      %p248 = scmp.eq.s32.totalorder %s34, 0
      %p249 = por %p247, %p248
      %p250 = scmp.ne.s32.totalorder %s238, %s239
      %p251 = scmp.eq.s32.totalorder %s35, 1
      %p252 = por %p250, %p251
      %p254 = scmp.ne.s32.totalorder %s239, %s253
      %p255 = scmp.eq.s32.totalorder %s35, 0
      %p256 = por %p254, %p255
      %s258 = sadd.s32 %s257, 1
      %p261 = scmp.eq.s32.totalorder %s29, 1
      %p262 = scmp.ne.s32.totalorder %s257, %s259
      %p263 = scmp.eq.s32.totalorder %s29, 0
      %p264 = por %p262, %p263
      %p265 = scmp.ne.s32.totalorder %s257, %s259
      %p266 = scmp.eq.s32.totalorder %s34, 1
      %p267 = por %p265, %p266
      %p268 = scmp.ne.s32.totalorder %s259, %s260
      %p269 = scmp.eq.s32.totalorder %s34, 0
      %p270 = por %p268, %p269
      %p271 = scmp.ne.s32.totalorder %s259, %s260
      %p272 = scmp.eq.s32.totalorder %s35, 1
      %p273 = por %p271, %p272
      %p275 = scmp.ne.s32.totalorder %s260, %s274
      %p276 = scmp.eq.s32.totalorder %s35, 0
      %p277 = por %p275, %p276
      %s279 = sadd.s32 %s278, 1
      %p282 = scmp.eq.s32.totalorder %s29, 1
      %p283 = scmp.ne.s32.totalorder %s278, %s280
      %p284 = scmp.eq.s32.totalorder %s29, 0
      %p285 = por %p283, %p284
      %p286 = scmp.ne.s32.totalorder %s278, %s280
      %p287 = scmp.eq.s32.totalorder %s34, 1
      %p288 = por %p286, %p287
      %p289 = scmp.ne.s32.totalorder %s280, %s281
      %p290 = scmp.eq.s32.totalorder %s34, 0
      %p291 = por %p289, %p290
      %p292 = scmp.ne.s32.totalorder %s280, %s281
      %p293 = scmp.eq.s32.totalorder %s35, 1
      %p294 = por %p292, %p293
      %p296 = scmp.ne.s32.totalorder %s281, %s295
      %p297 = scmp.eq.s32.totalorder %s35, 0
      %p298 = por %p296, %p297
      %s300 = sadd.s32 %s299, 1
      %p303 = scmp.eq.s32.totalorder %s29, 1
      %p304 = scmp.ne.s32.totalorder %s299, %s301
      %p305 = scmp.eq.s32.totalorder %s29, 0
      %p306 = por %p304, %p305
      %p307 = scmp.ne.s32.totalorder %s299, %s301
      %p308 = scmp.eq.s32.totalorder %s34, 1
      %p309 = por %p307, %p308
      %p310 = scmp.ne.s32.totalorder %s301, %s302
      %p311 = scmp.eq.s32.totalorder %s34, 0
      %p312 = por %p310, %p311
      %p313 = scmp.ne.s32.totalorder %s301, %s302
      %p314 = scmp.eq.s32.totalorder %s35, 1
      %p315 = por %p313, %p314
      %p317 = scmp.ne.s32.totalorder %s302, %s316
      %p318 = scmp.eq.s32.totalorder %s35, 0
      %p319 = por %p317, %p318
      %s321 = sadd.s32 %s320, 1
      %p324 = scmp.eq.s32.totalorder %s29, 1
      %p325 = scmp.ne.s32.totalorder %s320, %s322
      %p326 = scmp.eq.s32.totalorder %s29, 0
      %p327 = por %p325, %p326
      %p328 = scmp.ne.s32.totalorder %s320, %s322
      %p329 = scmp.eq.s32.totalorder %s34, 1
      %p330 = por %p328, %p329
      %p331 = scmp.ne.s32.totalorder %s322, %s323
      %p332 = scmp.eq.s32.totalorder %s34, 0
      %p333 = por %p331, %p332
      %p334 = scmp.ne.s32.totalorder %s322, %s323
      %p335 = scmp.eq.s32.totalorder %s35, 1
      %p336 = por %p334, %p335
      %p338 = scmp.ne.s32.totalorder %s323, %s337
      %p339 = scmp.eq.s32.totalorder %s35, 0
      %p340 = por %p338, %p339
      %s342 = sadd.s32 %s341, 1
      %p345 = scmp.eq.s32.totalorder %s29, 1
      %p346 = scmp.ne.s32.totalorder %s341, %s343
      %p347 = scmp.eq.s32.totalorder %s29, 0
      %p348 = por %p346, %p347
      %p349 = scmp.ne.s32.totalorder %s341, %s343
      %p350 = scmp.eq.s32.totalorder %s34, 1
      %p351 = por %p349, %p350
      %p352 = scmp.ne.s32.totalorder %s343, %s344
      %p353 = scmp.eq.s32.totalorder %s34, 0
      %p354 = por %p352, %p353
      %p355 = scmp.ne.s32.totalorder %s343, %s344
      %p356 = scmp.eq.s32.totalorder %s35, 1
      %p357 = por %p355, %p356
      %p359 = scmp.ne.s32.totalorder %s344, %s358
      %p360 = scmp.eq.s32.totalorder %s35, 0
      %p361 = por %p359, %p360
      %s363 = sadd.s32 %s362, 1
      %p366 = scmp.eq.s32.totalorder %s29, 1
      %p367 = scmp.ne.s32.totalorder %s362, %s364
      %p368 = scmp.eq.s32.totalorder %s29, 0
      %p369 = por %p367, %p368
      %p370 = scmp.ne.s32.totalorder %s362, %s364
      %p371 = scmp.eq.s32.totalorder %s34, 1
      %p372 = por %p370, %p371
      %p373 = scmp.ne.s32.totalorder %s364, %s365
      %p374 = scmp.eq.s32.totalorder %s34, 0
      %p375 = por %p373, %p374
      %p376 = scmp.ne.s32.totalorder %s364, %s365
      %p377 = scmp.eq.s32.totalorder %s35, 1
      %p378 = por %p376, %p377
      %p380 = scmp.ne.s32.totalorder %s365, %s379
      %p381 = scmp.eq.s32.totalorder %s35, 0
      %p382 = por %p380, %p381
      %s384 = sadd.s32 %s383, 1
      %p387 = scmp.eq.s32.totalorder %s29, 1
      %p388 = scmp.ne.s32.totalorder %s383, %s385
      %p389 = scmp.eq.s32.totalorder %s29, 0
      %p390 = por %p388, %p389
      %p391 = scmp.ne.s32.totalorder %s383, %s385
      %p392 = scmp.eq.s32.totalorder %s34, 1
      %p393 = por %p391, %p392
      %p394 = scmp.ne.s32.totalorder %s385, %s386
      %p395 = scmp.eq.s32.totalorder %s34, 0
      %p396 = por %p394, %p395
      %p397 = scmp.ne.s32.totalorder %s385, %s386
      %p398 = scmp.eq.s32.totalorder %s35, 1
      %p399 = por %p397, %p398
      %p401 = scmp.ne.s32.totalorder %s386, %s400
      %p402 = scmp.eq.s32.totalorder %s35, 0
      %p403 = por %p401, %p402
      %s405 = sadd.s32 %s404, 1
      %p408 = scmp.eq.s32.totalorder %s29, 1
      %p409 = scmp.ne.s32.totalorder %s404, %s406
      %p410 = scmp.eq.s32.totalorder %s29, 0
      %p411 = por %p409, %p410
      %p412 = scmp.ne.s32.totalorder %s404, %s406
      %p413 = scmp.eq.s32.totalorder %s34, 1
      %p414 = por %p412, %p413
      %p415 = scmp.ne.s32.totalorder %s406, %s407
      %p416 = scmp.eq.s32.totalorder %s34, 0
      %p417 = por %p415, %p416
      %p418 = scmp.ne.s32.totalorder %s406, %s407
      %p419 = scmp.eq.s32.totalorder %s35, 1
      %p420 = por %p418, %p419
      %p422 = scmp.ne.s32.totalorder %s407, %s421
      %p423 = scmp.eq.s32.totalorder %s35, 0
      %p424 = por %p422, %p423
      %s426 = sadd.s32 %s425, 1
      %p429 = scmp.eq.s32.totalorder %s29, 1
      %p430 = scmp.ne.s32.totalorder %s425, %s427
      %p431 = scmp.eq.s32.totalorder %s29, 0
      %p432 = por %p430, %p431
      %p433 = scmp.ne.s32.totalorder %s425, %s427
      %p434 = scmp.eq.s32.totalorder %s34, 1
      %p435 = por %p433, %p434
      %p436 = scmp.ne.s32.totalorder %s427, %s428
      %p437 = scmp.eq.s32.totalorder %s34, 0
      %p438 = por %p436, %p437
      %p439 = scmp.ne.s32.totalorder %s427, %s428
      %p440 = scmp.eq.s32.totalorder %s35, 1
      %p441 = por %p439, %p440
      %p443 = scmp.ne.s32.totalorder %s428, %s442
      %p444 = scmp.eq.s32.totalorder %s35, 0
      %p445 = por %p443, %p444
      %s447 = sadd.s32 %s446, 1
      %p450 = scmp.eq.s32.totalorder %s29, 1
      %p451 = scmp.ne.s32.totalorder %s446, %s448
      %p452 = scmp.eq.s32.totalorder %s29, 0
      %p453 = por %p451, %p452
      %p454 = scmp.ne.s32.totalorder %s446, %s448
      %p455 = scmp.eq.s32.totalorder %s34, 1
      %p456 = por %p454, %p455
      %p457 = scmp.ne.s32.totalorder %s448, %s449
      %p458 = scmp.eq.s32.totalorder %s34, 0
      %p459 = por %p457, %p458
      %p460 = scmp.ne.s32.totalorder %s448, %s449
      %p461 = scmp.eq.s32.totalorder %s35, 1
      %p462 = por %p460, %p461
      %p464 = scmp.ne.s32.totalorder %s449, %s463
      %p465 = scmp.eq.s32.totalorder %s35, 0
      %p466 = por %p464, %p465
      %s468 = sadd.s32 %s467, 1
      %p471 = scmp.eq.s32.totalorder %s29, 1
      %p472 = scmp.ne.s32.totalorder %s467, %s469
      %p473 = scmp.eq.s32.totalorder %s29, 0
      %p474 = por %p472, %p473
      %p475 = scmp.ne.s32.totalorder %s467, %s469
      %p476 = scmp.eq.s32.totalorder %s34, 1
      %p477 = por %p475, %p476
      %p478 = scmp.ne.s32.totalorder %s469, %s470
      %p479 = scmp.eq.s32.totalorder %s34, 0
      %p480 = por %p478, %p479
      %p481 = scmp.ne.s32.totalorder %s469, %s470
      %p482 = scmp.eq.s32.totalorder %s35, 1
      %p483 = por %p481, %p482
      %p485 = scmp.ne.s32.totalorder %s470, %s484
      %p486 = scmp.eq.s32.totalorder %s35, 0
      %p487 = por %p485, %p486
      %s489 = sadd.s32 %s488, 1
      %p492 = scmp.eq.s32.totalorder %s29, 1
      %p493 = scmp.ne.s32.totalorder %s488, %s490
      %p494 = scmp.eq.s32.totalorder %s29, 0
      %p495 = por %p493, %p494
      %p496 = scmp.ne.s32.totalorder %s488, %s490
      %p497 = scmp.eq.s32.totalorder %s34, 1
      %p498 = por %p496, %p497
      %p499 = scmp.ne.s32.totalorder %s490, %s491
      %p500 = scmp.eq.s32.totalorder %s34, 0
      %p501 = por %p499, %p500
      %p502 = scmp.ne.s32.totalorder %s490, %s491
      %p503 = scmp.eq.s32.totalorder %s35, 1
      %p504 = por %p502, %p503
      %p506 = scmp.ne.s32.totalorder %s491, %s505
      %p507 = scmp.eq.s32.totalorder %s35, 0
      %p508 = por %p506, %p507
      %s509 = ssub.s32 %s29, %s36
      %p510 = scmp.eq.s32.totalorder %s509, 0
      %s512 = sadd.s32 %s511, 1
      %s513 = scalar_select %p510, %s511, %s512
      %p516 = pneg %p510
      %p517 = scmp.eq.s32.totalorder %s29, 1
      %p518 = por %p516, %p517
      %p519 = scmp.ne.s32.totalorder %s511, %s514
      %p520 = scmp.eq.s32.totalorder %s29, 0
      %p521 = por %p519, %p520
      %p522 = scmp.ne.s32.totalorder %s511, %s514
      %p523 = scmp.eq.s32.totalorder %s34, 1
      %p524 = por %p522, %p523
      %p525 = scmp.ne.s32.totalorder %s514, %s515
      %p526 = scmp.eq.s32.totalorder %s34, 0
      %p527 = por %p525, %p526
      %p528 = scmp.ne.s32.totalorder %s514, %s515
      %p529 = scmp.eq.s32.totalorder %s35, 1
      %p530 = por %p528, %p529
      %p532 = scmp.ne.s32.totalorder %s515, %s531
      %p533 = scmp.eq.s32.totalorder %s35, 0
      %p534 = por %p532, %p533
      %p535 = scmp.le.s32.totalorder 1, %s29
      %p536 = scmp.lt.s32.totalorder %s29, 3
      %p537 = pnand %p535, %p536
      %p538 = pneg %p537
      // Predicated region
      $region9: #{transformer_forward.8} parent=5 // pred_check
        _
      $region10: #{transformer_forward.8} parent=5 // pred_check_branch
        %540 = sbr.rel (%p537) target = $region12
      $region11: #{transformer_forward.8} parent=5 // pred_region
        %s541 = ssub.s32 %s29, 1
        // Predicated region
        $region13: #{transformer_forward.8} parent=11 // pred_check
          %p542 = pneg %p102
        $region14: #{transformer_forward.8} parent=11 // pred_check_branch
          %544 = sbr.rel (%p542) target = $region16
        $region15: #{transformer_forward.8} parent=11 // pred_region
          _
        $region16: #{transformer_forward.8} parent=11 // pred_fallthru
          _
        // Predicated region
        $region17: #{transformer_forward.8} parent=11 // pred_check
          %p545 = pneg %p123
        $region18: #{transformer_forward.8} parent=11 // pred_check_branch
          %547 = sbr.rel (%p545) target = $region20
        $region19: #{transformer_forward.8} parent=11 // pred_region
          _
        $region20: #{transformer_forward.8} parent=11 // pred_fallthru
          _
        // Predicated region
        $region21: #{transformer_forward.8} parent=11 // pred_check
          %p548 = pneg %p144
        $region22: #{transformer_forward.8} parent=11 // pred_check_branch
          %550 = sbr.rel (%p548) target = $region24
        $region23: #{transformer_forward.8} parent=11 // pred_region
          _
        $region24: #{transformer_forward.8} parent=11 // pred_fallthru
          _
        // Predicated region
        $region25: #{transformer_forward.8} parent=11 // pred_check
          %p551 = pneg %p165
        $region26: #{transformer_forward.8} parent=11 // pred_check_branch
          %553 = sbr.rel (%p551) target = $region28
        $region27: #{transformer_forward.8} parent=11 // pred_region
          _
        $region28: #{transformer_forward.8} parent=11 // pred_fallthru
          _
        // Predicated region
        $region29: #{transformer_forward.8} parent=11 // pred_check
          %p554 = pneg %p186
        $region30: #{transformer_forward.8} parent=11 // pred_check_branch
          %556 = sbr.rel (%p554) target = $region32
        $region31: #{transformer_forward.8} parent=11 // pred_region
          _
        $region32: #{transformer_forward.8} parent=11 // pred_fallthru
          _
        // Predicated region
        $region33: #{transformer_forward.8} parent=11 // pred_check
          %p557 = pneg %p207
        $region34: #{transformer_forward.8} parent=11 // pred_check_branch
          %559 = sbr.rel (%p557) target = $region36
        $region35: #{transformer_forward.8} parent=11 // pred_region
          _
        $region36: #{transformer_forward.8} parent=11 // pred_fallthru
          _
        // Predicated region
        $region37: #{transformer_forward.8} parent=11 // pred_check
          %p560 = pneg %p228
        $region38: #{transformer_forward.8} parent=11 // pred_check_branch
          %562 = sbr.rel (%p560) target = $region40
        $region39: #{transformer_forward.8} parent=11 // pred_region
          _
        $region40: #{transformer_forward.8} parent=11 // pred_fallthru
          _
        // Predicated region
        $region41: #{transformer_forward.8} parent=11 // pred_check
          %p563 = pneg %p249
        $region42: #{transformer_forward.8} parent=11 // pred_check_branch
          %565 = sbr.rel (%p563) target = $region44
        $region43: #{transformer_forward.8} parent=11 // pred_region
          _
        $region44: #{transformer_forward.8} parent=11 // pred_fallthru
          _
        // Predicated region
        $region45: #{transformer_forward.8} parent=11 // pred_check
          %p566 = pneg %p270
        $region46: #{transformer_forward.8} parent=11 // pred_check_branch
          %568 = sbr.rel (%p566) target = $region48
        $region47: #{transformer_forward.8} parent=11 // pred_region
          _
        $region48: #{transformer_forward.8} parent=11 // pred_fallthru
          _
        // Predicated region
        $region49: #{transformer_forward.8} parent=11 // pred_check
          %p569 = pneg %p291
        $region50: #{transformer_forward.8} parent=11 // pred_check_branch
          %571 = sbr.rel (%p569) target = $region52
        $region51: #{transformer_forward.8} parent=11 // pred_region
          _
        $region52: #{transformer_forward.8} parent=11 // pred_fallthru
          _
        // Predicated region
        $region53: #{transformer_forward.8} parent=11 // pred_check
          %p572 = pneg %p312
        $region54: #{transformer_forward.8} parent=11 // pred_check_branch
          %574 = sbr.rel (%p572) target = $region56
        $region55: #{transformer_forward.8} parent=11 // pred_region
          _
        $region56: #{transformer_forward.8} parent=11 // pred_fallthru
          _
        // Predicated region
        $region57: #{transformer_forward.8} parent=11 // pred_check
          %p575 = pneg %p333
        $region58: #{transformer_forward.8} parent=11 // pred_check_branch
          %577 = sbr.rel (%p575) target = $region60
        $region59: #{transformer_forward.8} parent=11 // pred_region
          _
        $region60: #{transformer_forward.8} parent=11 // pred_fallthru
          _
        // Predicated region
        $region61: #{transformer_forward.8} parent=11 // pred_check
          %p578 = pneg %p354
        $region62: #{transformer_forward.8} parent=11 // pred_check_branch
          %580 = sbr.rel (%p578) target = $region64
        $region63: #{transformer_forward.8} parent=11 // pred_region
          _
        $region64: #{transformer_forward.8} parent=11 // pred_fallthru
          _
        // Predicated region
        $region65: #{transformer_forward.8} parent=11 // pred_check
          %p581 = pneg %p375
        $region66: #{transformer_forward.8} parent=11 // pred_check_branch
          %583 = sbr.rel (%p581) target = $region68
        $region67: #{transformer_forward.8} parent=11 // pred_region
          _
        $region68: #{transformer_forward.8} parent=11 // pred_fallthru
          _
        // Predicated region
        $region69: #{transformer_forward.8} parent=11 // pred_check
          %p584 = pneg %p396
        $region70: #{transformer_forward.8} parent=11 // pred_check_branch
          %586 = sbr.rel (%p584) target = $region72
        $region71: #{transformer_forward.8} parent=11 // pred_region
          _
        $region72: #{transformer_forward.8} parent=11 // pred_fallthru
          _
        // Predicated region
        $region73: #{transformer_forward.8} parent=11 // pred_check
          %p587 = pneg %p417
        $region74: #{transformer_forward.8} parent=11 // pred_check_branch
          %589 = sbr.rel (%p587) target = $region76
        $region75: #{transformer_forward.8} parent=11 // pred_region
          _
        $region76: #{transformer_forward.8} parent=11 // pred_fallthru
          _
        // Predicated region
        $region77: #{transformer_forward.8} parent=11 // pred_check
          %p590 = pneg %p438
        $region78: #{transformer_forward.8} parent=11 // pred_check_branch
          %592 = sbr.rel (%p590) target = $region80
        $region79: #{transformer_forward.8} parent=11 // pred_region
          _
        $region80: #{transformer_forward.8} parent=11 // pred_fallthru
          _
        // Predicated region
        $region81: #{transformer_forward.8} parent=11 // pred_check
          %p593 = pneg %p459
        $region82: #{transformer_forward.8} parent=11 // pred_check_branch
          %595 = sbr.rel (%p593) target = $region84
        $region83: #{transformer_forward.8} parent=11 // pred_region
          _
        $region84: #{transformer_forward.8} parent=11 // pred_fallthru
          _
        // Predicated region
        $region85: #{transformer_forward.8} parent=11 // pred_check
          %p596 = pneg %p480
        $region86: #{transformer_forward.8} parent=11 // pred_check_branch
          %598 = sbr.rel (%p596) target = $region88
        $region87: #{transformer_forward.8} parent=11 // pred_region
          _
        $region88: #{transformer_forward.8} parent=11 // pred_fallthru
          _
        // Predicated region
        $region89: #{transformer_forward.8} parent=11 // pred_check
          %p599 = pneg %p501
        $region90: #{transformer_forward.8} parent=11 // pred_check_branch
          %601 = sbr.rel (%p599) target = $region92
        $region91: #{transformer_forward.8} parent=11 // pred_region
          %s603 = ssub.s32 16, 16
          %604 = vsyncadd [#allocation3], %s603
          %s606 = sshll.u32 [#allocation2], 4
          %s607 = int_to_ptr.vmem [resolvable:$true] %s606
          %609 = dma.hbm_to_vmem [thread:$0]  %s21, 16, %s607, [#allocation3]
        $region92: #{transformer_forward.8} parent=11 // pred_fallthru
          _
      $region12: #{transformer_forward.8} parent=5 // pred_fallthru
        _
      %p610 = scmp.lt.s32.totalorder %s29, 2
      // Predicated region
      $region93: #{transformer_forward.8} parent=5 // pred_check
        %p611 = pneg %p610
      $region94: #{transformer_forward.8} parent=5 // pred_check_branch
        %613 = sbr.rel (%p611) target = $region96
      $region95: #{transformer_forward.8} parent=5 // pred_region
        // Predicated region
        $region97: #{transformer_forward.8} parent=95 // pred_check
          %p614 = pneg %p49
        $region98: #{transformer_forward.8} parent=95 // pred_check_branch
          %616 = sbr.rel (%p614) target = $region100
        $region99: #{transformer_forward.8} parent=95 // pred_region
          %p617 = scmp.lt.s32.totalorder %s29, 1
          %s618 = scalar_select %p617, %s29, 1
          %s619 = smul.addr %s618, 8
          %s620 = scalar_lea.vmem %s0, %s619
        $region100: #{transformer_forward.8} parent=95 // pred_fallthru
          _
        // Predicated region
        $region101: #{transformer_forward.8} parent=95 // pred_check
          %p621 = pneg %p75
        $region102: #{transformer_forward.8} parent=95 // pred_check_branch
          %623 = sbr.rel (%p621) target = $region104
        $region103: #{transformer_forward.8} parent=95 // pred_region
          %p624 = scmp.lt.s32.totalorder %s29, 1
          %s625 = scalar_select %p624, %s29, 1
          %s626 = smul.addr %s625, 8
          %s627 = scalar_lea.vmem %s1, %s626
        $region104: #{transformer_forward.8} parent=95 // pred_fallthru
          _
      $region96: #{transformer_forward.8} parent=5 // pred_fallthru
        _
      %p628 = scmp.le.s32.totalorder 1, %s29
      %p629 = scmp.lt.s32.totalorder %s29, 3
      %p630 = pnand %p628, %p629
      %p631 = pneg %p630
      // Predicated region
      $region105: #{transformer_forward.8} parent=5 // pred_check
        _
      $region106: #{transformer_forward.8} parent=5 // pred_check_branch
        %633 = sbr.rel (%p630) target = $region108
      $region107: #{transformer_forward.8} parent=5 // pred_region
        %s634 = ssub.s32 %s29, 1
        // Predicated region
        $region109: #{transformer_forward.8} parent=107 // pred_check
          %p635 = pneg %p501
        $region110: #{transformer_forward.8} parent=107 // pred_check_branch
          %637 = sbr.rel (%p635) target = $region112
        $region111: #{transformer_forward.8} parent=107 // pred_region
          %638 = dma.done [#allocation3], 16
        $region112: #{transformer_forward.8} parent=107 // pred_fallthru
          _
        %p639 = scmp.lt.s32.totalorder %s34, 1
        %s640 = scalar_select %p639, %s34, 1
        %s641 = smul.addr %s640, 8
        %s642 = scalar_lea.vmem %s0, %s641
        %p643 = pneg %p55
        %p644 = pneg %p52
        %p645 = scmp.lt.s32.totalorder %s34, 1
        %s646 = scalar_select %p645, %s34, 1
        %s647 = smul.addr %s646, 8
        %s648 = scalar_lea.vmem %s1, %s647
        %p649 = pneg %p81
        %p650 = pneg %p78
        %p651 = pneg %p102
        %p652 = pneg %p99
        %p653 = pneg %p123
        %p654 = pneg %p120
        %p655 = pneg %p144
        %p656 = pneg %p141
        %p657 = pneg %p165
        %p658 = pneg %p162
        %p659 = pneg %p186
        %p660 = pneg %p183
        %p661 = pneg %p207
        %p662 = pneg %p204
        %p663 = pneg %p228
        %p664 = pneg %p225
        %p665 = pneg %p249
        %p666 = pneg %p246
        %p667 = pneg %p270
        %p668 = pneg %p267
        %p669 = pneg %p291
        %p670 = pneg %p288
        %p671 = pneg %p312
        %p672 = pneg %p309
        %p673 = pneg %p333
        %p674 = pneg %p330
        %p675 = pneg %p354
        %p676 = pneg %p351
        %p677 = pneg %p375
        %p678 = pneg %p372
        %p679 = pneg %p396
        %p680 = pneg %p393
        %p681 = pneg %p417
        %p682 = pneg %p414
        %p683 = pneg %p438
        %p684 = pneg %p435
        %p685 = pneg %p459
        %p686 = pneg %p456
        %p687 = pneg %p480
        %p688 = pneg %p477
        %p689 = pneg %p501
        %p690 = pneg %p498
        %p691 = pneg %p527
        %p692 = pneg %p524
        %p693 = scmp.lt.s32.totalorder %s34, 1
        %s694 = scalar_select %p693, %s34, 1
        %s695 = smul.addr %s694, 8
        %s696 = scalar_lea.vmem %s22, %s695
        %p697 = scmp.lt.s32.totalorder %s34, 1
        %s698 = scalar_select %p697, %s34, 1
        %s699 = smul.addr %s698, 8
        %s700 = scalar_lea.vmem %s0, %s699
        %p701 = scmp.lt.s32.totalorder %s34, 1
        %s702 = scalar_select %p701, %s34, 1
        %s703 = smul.addr %s702, 8
        %s704 = scalar_lea.vmem %s1, %s703
        %p705 = scmp.lt.s32.totalorder %s34, 1
        %s706 = scalar_select %p705, %s34, 1
        %s707 = smul.addr %s706, 8
        %s708 = scalar_lea.vmem %s22, %s707
        %v710 = vld [vmem:[%s700] sm:$0xff]
        %v711 = vld [vmem:[%s704] sm:$0xff]
        %v712 = vpack.c.bf16 %v710, %v710
        %v713 = vld [vmem:[%s2] sm:$0xf]
        %v714 = vld [vmem:[%s2 + $0x4] sm:$0xf]
        %v715 = vld [vmem:[%s2 + $0x8] sm:$0xf]
        %v716 = vld [vmem:[%s2 + $0xc] sm:$0xf]
        %v717 = vld [vmem:[%s3] sm:$0x1]
        %v719 = vlaneseq
        %v720 = vshrl.u32 %v719, 7
        %v721 = vsub.s32 0, %v720
        %v722 = vrot.slane %v717, %v721
        %v728 = vunpack.c.l.b16 %v713
        %v729 = vunpack.c.l.b16 %v714
        %v730 = vunpack.c.l.b16 %v715
        %v731 = vunpack.c.l.b16 %v716
        %v732 = vpack.c.b16 %v729, %v728
        %v733 = vpack.c.b16 %v731, %v730
        %vm736 = vcmask 261120
        %v738 = vsel %vm736, %v712, 0
        %740 = vmatprep.subr.bf16.mxu0 0
        %741 = vmatpush1.bf16.msra.mxu0 %v732
        %742 = vmatprep.subr.bf16.mxu0 0
        %743 = vmatpush1.bf16.msra.mxu0 %v733
        %744 = vmatprep.subr.bf16.mxu0 0
        %745 = vmatpush1.bf16.msra.mxu0 0
        %746 = vmatprep.subr.bf16.mxu0 0
        %747 = vmatpush1.bf16.msra.mxu0 0
        %748 = vmatprep.subr.bf16.mxu0 0
        %749 = vmatpush1.bf16.msra.mxu0 0
        %750 = vmatprep.subr.bf16.mxu0 0
        %751 = vmatpush1.bf16.msra.mxu0 0
        %752 = vmatprep.subr.bf16.mxu0 0
        %753 = vmatpush1.bf16.msra.mxu0 0
        %754 = vmatprep.subr.bf16.mxu0 0
        %755 = vmatpush1.bf16.msra.mxu0 0
        %756 = vmatprep.subr.bf16.mxu0 0
        %757 = vmatpush1.bf16.msra.mxu0 0
        %758 = vmatprep.subr.bf16.mxu0 0
        %759 = vmatpush1.bf16.msra.mxu0 0
        %760 = vmatprep.subr.bf16.mxu0 0
        %761 = vmatpush1.bf16.msra.mxu0 0
        %762 = vmatprep.subr.bf16.mxu0 0
        %763 = vmatpush1.bf16.msra.mxu0 0
        %764 = vmatprep.subr.bf16.mxu0 0
        %765 = vmatpush1.bf16.msra.mxu0 0
        %766 = vmatprep.subr.bf16.mxu0 0
        %767 = vmatpush1.bf16.msra.mxu0 0
        %768 = vmatprep.subr.bf16.mxu0 0
        %769 = vmatpush1.bf16.msra.mxu0 0
        %770 = vmatprep.subr.bf16.mxu0 0
        %771 = vmatpush1.bf16.msra.mxu0 0
        %772 = vmatprep.mubr.bf16.mxu0 0
        %773 = vmatmul.mubr.bf16.gmra.mrb[0].mxu0 %v738
        %v774 = vpop.f32.mrb[0].mxu0
        %v775 = vadd.f32 %v722, %v774
        %v776 = vpop.f32.mrb[0].mxu0
        %v777 = vpop.f32.mrb[0].mxu0
        %v778 = vpop.f32.mrb[0].mxu0
        %779 = vdwg.mxu0
        %v780 = vlaneseq
        %v781 = vshrl.u32 %v780, 7
        %v782 = vlaneseq
        %v783 = vand.u32 %v782, 127
        %vm784 = vcmp.gt.s32.totalorder %v783, %v781
        %v785 = vsel %vm784, -1e+30, 0.0
        %v786 = vpack.c.bf16 %v775, %v775
        %788 = vrot.lane.b32.xlu0 %v786, 96
        %v789 = vpop.permute.xlu0 %788
        %vm790 = vcmask 64512
        %v792 = vsel %vm790, %v786, 0
        %v795 = vsel %vm790, %v789, 0
        %797 = vmatprep.subr.bf16.mxu0 0
        %798 = vmatpush1.bf16.xpose.msra.mxu0 %v795
        %799 = vmatprep.subr.bf16.mxu0 0
        %800 = vmatpush1.bf16.xpose.msra.mxu0 0
        %801 = vmatprep.subr.bf16.mxu0 0
        %802 = vmatpush1.bf16.xpose.msra.mxu0 0
        %803 = vmatprep.subr.bf16.mxu0 0
        %804 = vmatpush1.bf16.xpose.msra.mxu0 0
        %805 = vmatprep.subr.bf16.mxu0 0
        %806 = vmatpush1.bf16.xpose.msra.mxu0 0
        %807 = vmatprep.subr.bf16.mxu0 0
        %808 = vmatpush1.bf16.xpose.msra.mxu0 0
        %809 = vmatprep.subr.bf16.mxu0 0
        %810 = vmatpush1.bf16.xpose.msra.mxu0 0
        %811 = vmatprep.subr.bf16.mxu0 0
        %812 = vmatpush1.bf16.xpose.msra.mxu0 0
        %813 = vmatprep.subr.bf16.mxu0 0
        %814 = vmatpush1.bf16.xpose.msra.mxu0 0
        %815 = vmatprep.subr.bf16.mxu0 0
        %816 = vmatpush1.bf16.xpose.msra.mxu0 0
        %817 = vmatprep.subr.bf16.mxu0 0
        %818 = vmatpush1.bf16.xpose.msra.mxu0 0
        %819 = vmatprep.subr.bf16.mxu0 0
        %820 = vmatpush1.bf16.xpose.msra.mxu0 0
        %821 = vmatprep.subr.bf16.mxu0 0
        %822 = vmatpush1.bf16.xpose.msra.mxu0 0
        %823 = vmatprep.subr.bf16.mxu0 0
        %824 = vmatpush1.bf16.xpose.msra.mxu0 0
        %825 = vmatprep.subr.bf16.mxu0 0
        %826 = vmatpush1.bf16.xpose.msra.mxu0 0
        %827 = vmatprep.subr.bf16.mxu0 0
        %828 = vmatpush1.bf16.xpose.msra.mxu0 0
        %829 = vmatprep.mubr.bf16.mxu0 0
        %830 = vmatmul.mubr.bf16.gmra.mrb[0].mxu0 %v792
        %v831 = vpop.f32.mrb[0].mxu0
        %v832 = vadd.f32 %v785, %v831
        %v833 = vpop.f32.mrb[0].mxu0
        %v834 = vpop.f32.mrb[0].mxu0
        %v835 = vpop.f32.mrb[0].mxu0
        %836 = vdwg.mxu0
        %v837 = vsel %vm790, %v832, -inf
        %838 = vmax.xlane.f32.xlu0 %v837
        %v839 = vpop.xlane.xlu0 %838
        %v840 = vsub.f32 %v832, %v839
        %v841 = vmul.f32 %v840, 1.442695
        %v842 = vpow.pop %v841
        %v843 = vsel %vm790, %v842, 0.0
        %844 = vadd.xlane.f32.xlu0 %v843
        %v845 = vpop.xlane.xlu0 %844
        %v846 = vrcp.pop %v845
        %v847 = vmul.f32 %v842, %v846
        %v848 = vpack.c.bf16 %v847, %v847
        %849 = vrot.lane.b32.xlu0 %v786, 64
        %v850 = vpop.permute.xlu0 %849
        %v852 = vsel %vm790, %v848, 0
        %vm854 = vcmask 1043456
        %v856 = vsel %vm854, %v850, 0
        %858 = vmatprep.subr.bf16.mxu0 0
        %859 = vmatpush1.bf16.msra.mxu0 %v856
        %860 = vmatprep.subr.bf16.mxu0 0
        %861 = vmatpush1.bf16.msra.mxu0 0
        %862 = vmatprep.subr.bf16.mxu0 0
        %863 = vmatpush1.bf16.msra.mxu0 0
        %864 = vmatprep.subr.bf16.mxu0 0
        %865 = vmatpush1.bf16.msra.mxu0 0
        %866 = vmatprep.subr.bf16.mxu0 0
        %867 = vmatpush1.bf16.msra.mxu0 0
        %868 = vmatprep.subr.bf16.mxu0 0
        %869 = vmatpush1.bf16.msra.mxu0 0
        %870 = vmatprep.subr.bf16.mxu0 0
        %871 = vmatpush1.bf16.msra.mxu0 0
        %872 = vmatprep.subr.bf16.mxu0 0
        %873 = vmatpush1.bf16.msra.mxu0 0
        %874 = vmatprep.subr.bf16.mxu0 0
        %875 = vmatpush1.bf16.msra.mxu0 0
        %876 = vmatprep.subr.bf16.mxu0 0
        %877 = vmatpush1.bf16.msra.mxu0 0
        %878 = vmatprep.subr.bf16.mxu0 0
        %879 = vmatpush1.bf16.msra.mxu0 0
        %880 = vmatprep.subr.bf16.mxu0 0
        %881 = vmatpush1.bf16.msra.mxu0 0
        %882 = vmatprep.subr.bf16.mxu0 0
        %883 = vmatpush1.bf16.msra.mxu0 0
        %884 = vmatprep.subr.bf16.mxu0 0
        %885 = vmatpush1.bf16.msra.mxu0 0
        %886 = vmatprep.subr.bf16.mxu0 0
        %887 = vmatpush1.bf16.msra.mxu0 0
        %888 = vmatprep.subr.bf16.mxu0 0
        %889 = vmatpush1.bf16.msra.mxu0 0
        %890 = vmatprep.mubr.bf16.mxu0 0
        %891 = vmatmul.mubr.bf16.gmra.mrb[0].mxu0 %v852
        %v892 = vpop.f32.mrb[0].mxu0
        %v893 = vadd.f32 0.0, %v892
        %v894 = vpop.f32.mrb[0].mxu0
        %v895 = vpop.f32.mrb[0].mxu0
        %v896 = vpop.f32.mrb[0].mxu0
        %897 = vdwg.mxu0
        %898 = vrot.lane.b32.xlu0 %v786, 120
        %v899 = vpop.permute.xlu0 %898
        %900 = vrot.lane.b32.xlu0 %v786, 88
        %v901 = vpop.permute.xlu0 %900
        %v903 = vsel %vm790, %v899, 0
        %v906 = vsel %vm790, %v901, 0
        %908 = vmatprep.subr.bf16.mxu0 0
        %909 = vmatpush1.bf16.xpose.msra.mxu0 %v906
        %910 = vmatprep.subr.bf16.mxu0 0
        %911 = vmatpush1.bf16.xpose.msra.mxu0 0
        %912 = vmatprep.subr.bf16.mxu0 0
        %913 = vmatpush1.bf16.xpose.msra.mxu0 0
        %914 = vmatprep.subr.bf16.mxu0 0
        %915 = vmatpush1.bf16.xpose.msra.mxu0 0
        %916 = vmatprep.subr.bf16.mxu0 0
        %917 = vmatpush1.bf16.xpose.msra.mxu0 0
        %918 = vmatprep.subr.bf16.mxu0 0
        %919 = vmatpush1.bf16.xpose.msra.mxu0 0
        %920 = vmatprep.subr.bf16.mxu0 0
        %921 = vmatpush1.bf16.xpose.msra.mxu0 0
        %922 = vmatprep.subr.bf16.mxu0 0
        %923 = vmatpush1.bf16.xpose.msra.mxu0 0
        %924 = vmatprep.subr.bf16.mxu0 0
        %925 = vmatpush1.bf16.xpose.msra.mxu0 0
        %926 = vmatprep.subr.bf16.mxu0 0
        %927 = vmatpush1.bf16.xpose.msra.mxu0 0
        %928 = vmatprep.subr.bf16.mxu0 0
        %929 = vmatpush1.bf16.xpose.msra.mxu0 0
        %930 = vmatprep.subr.bf16.mxu0 0
        %931 = vmatpush1.bf16.xpose.msra.mxu0 0
        %932 = vmatprep.subr.bf16.mxu0 0
        %933 = vmatpush1.bf16.xpose.msra.mxu0 0
        %934 = vmatprep.subr.bf16.mxu0 0
        %935 = vmatpush1.bf16.xpose.msra.mxu0 0
        %936 = vmatprep.subr.bf16.mxu0 0
        %937 = vmatpush1.bf16.xpose.msra.mxu0 0
        %938 = vmatprep.subr.bf16.mxu0 0
        %939 = vmatpush1.bf16.xpose.msra.mxu0 0
        %940 = vmatprep.mubr.bf16.mxu0 0
        %941 = vmatmul.mubr.bf16.gmra.mrb[0].mxu0 %v903
        %v942 = vpop.f32.mrb[0].mxu0
        %v943 = vadd.f32 %v785, %v942
        %v944 = vpop.f32.mrb[0].mxu0
        %v945 = vpop.f32.mrb[0].mxu0
        %v946 = vpop.f32.mrb[0].mxu0
        %947 = vdwg.mxu0
        %v948 = vsel %vm790, %v943, -inf
        %949 = vmax.xlane.f32.xlu0 %v948
        %v950 = vpop.xlane.xlu0 %949
        %v951 = vsub.f32 %v943, %v950
        %v952 = vmul.f32 %v951, 1.442695
        %v953 = vpow.pop %v952
        %v954 = vsel %vm790, %v953, 0.0
        %955 = vadd.xlane.f32.xlu0 %v954
        %v956 = vpop.xlane.xlu0 %955
        %v957 = vrcp.pop %v956
        %v958 = vmul.f32 %v953, %v957
        %v959 = vpack.c.bf16 %v958, %v958
        %960 = vrot.lane.b32.xlu0 %v786, 56
        %v961 = vpop.permute.xlu0 %960
        %v963 = vsel %vm790, %v959, 0
        %v966 = vsel %vm854, %v961, 0
        %968 = vmatprep.subr.bf16.mxu0 0
        %969 = vmatpush1.bf16.msra.mxu0 %v966
        %970 = vmatprep.subr.bf16.mxu0 0
        %971 = vmatpush1.bf16.msra.mxu0 0
        %972 = vmatprep.subr.bf16.mxu0 0
        %973 = vmatpush1.bf16.msra.mxu0 0
        %974 = vmatprep.subr.bf16.mxu0 0
        %975 = vmatpush1.bf16.msra.mxu0 0
        %976 = vmatprep.subr.bf16.mxu0 0
        %977 = vmatpush1.bf16.msra.mxu0 0
        %978 = vmatprep.subr.bf16.mxu0 0
        %979 = vmatpush1.bf16.msra.mxu0 0
        %980 = vmatprep.subr.bf16.mxu0 0
        %981 = vmatpush1.bf16.msra.mxu0 0
        %982 = vmatprep.subr.bf16.mxu0 0
        %983 = vmatpush1.bf16.msra.mxu0 0
        %984 = vmatprep.subr.bf16.mxu0 0
        %985 = vmatpush1.bf16.msra.mxu0 0
        %986 = vmatprep.subr.bf16.mxu0 0
        %987 = vmatpush1.bf16.msra.mxu0 0
        %988 = vmatprep.subr.bf16.mxu0 0
        %989 = vmatpush1.bf16.msra.mxu0 0
        %990 = vmatprep.subr.bf16.mxu0 0
        %991 = vmatpush1.bf16.msra.mxu0 0
        %992 = vmatprep.subr.bf16.mxu0 0
        %993 = vmatpush1.bf16.msra.mxu0 0
        %994 = vmatprep.subr.bf16.mxu0 0
        %995 = vmatpush1.bf16.msra.mxu0 0
        %996 = vmatprep.subr.bf16.mxu0 0
        %997 = vmatpush1.bf16.msra.mxu0 0
        %998 = vmatprep.subr.bf16.mxu0 0
        %999 = vmatpush1.bf16.msra.mxu0 0
        %1000 = vmatprep.mubr.bf16.mxu0 0
        %1001 = vmatmul.mubr.bf16.gmra.mrb[0].mxu0 %v963
        %v1002 = vpop.f32.mrb[0].mxu0
        %v1003 = vadd.f32 0.0, %v1002
        %v1004 = vpop.f32.mrb[0].mxu0
        %v1005 = vpop.f32.mrb[0].mxu0
        %v1006 = vpop.f32.mrb[0].mxu0
        %1007 = vdwg.mxu0
        %1008 = vrot.lane.b32.xlu0 %v786, 112
        %v1009 = vpop.permute.xlu0 %1008
        %1010 = vrot.lane.b32.xlu0 %v786, 80
        %v1011 = vpop.permute.xlu0 %1010
        %v1013 = vsel %vm790, %v1009, 0
        %v1016 = vsel %vm790, %v1011, 0
        %1018 = vmatprep.subr.bf16.mxu0 0
        %1019 = vmatpush1.bf16.xpose.msra.mxu0 %v1016
        %1020 = vmatprep.subr.bf16.mxu0 0
        %1021 = vmatpush1.bf16.xpose.msra.mxu0 0
        %1022 = vmatprep.subr.bf16.mxu0 0
        %1023 = vmatpush1.bf16.xpose.msra.mxu0 0
        %1024 = vmatprep.subr.bf16.mxu0 0
        %1025 = vmatpush1.bf16.xpose.msra.mxu0 0
        %1026 = vmatprep.subr.bf16.mxu0 0
        %1027 = vmatpush1.bf16.xpose.msra.mxu0 0
        %1028 = vmatprep.subr.bf16.mxu0 0
        %1029 = vmatpush1.bf16.xpose.msra.mxu0 0
        %1030 = vmatprep.subr.bf16.mxu0 0
        %1031 = vmatpush1.bf16.xpose.msra.mxu0 0
        %1032 = vmatprep.subr.bf16.mxu0 0
        %1033 = vmatpush1.bf16.xpose.msra.mxu0 0
        %1034 = vmatprep.subr.bf16.mxu0 0
        %1035 = vmatpush1.bf16.xpose.msra.mxu0 0
        %1036 = vmatprep.subr.bf16.mxu0 0
        %1037 = vmatpush1.bf16.xpose.msra.mxu0 0
        %1038 = vmatprep.subr.bf16.mxu0 0
        %1039 = vmatpush1.bf16.xpose.msra.mxu0 0
        %1040 = vmatprep.subr.bf16.mxu0 0
        %1041 = vmatpush1.bf16.xpose.msra.mxu0 0
        %1042 = vmatprep.subr.bf16.mxu0 0
        %1043 = vmatpush1.bf16.xpose.msra.mxu0 0
        %1044 = vmatprep.subr.bf16.mxu0 0
        %1045 = vmatpush1.bf16.xpose.msra.mxu0 0
        %1046 = vmatprep.subr.bf16.mxu0 0
        %1047 = vmatpush1.bf16.xpose.msra.mxu0 0
        %1048 = vmatprep.subr.bf16.mxu0 0
        %1049 = vmatpush1.bf16.xpose.msra.mxu0 0
        %1050 = vmatprep.mubr.bf16.mxu0 0
        %1051 = vmatmul.mubr.bf16.gmra.mrb[0].mxu0 %v1013
        %v1052 = vpop.f32.mrb[0].mxu0
        %v1053 = vadd.f32 %v785, %v1052
        %v1054 = vpop.f32.mrb[0].mxu0
        %v1055 = vpop.f32.mrb[0].mxu0
        %v1056 = vpop.f32.mrb[0].mxu0
        %1057 = vdwg.mxu0
        %v1058 = vsel %vm790, %v1053, -inf
        %1059 = vmax.xlane.f32.xlu0 %v1058
        %v1060 = vpop.xlane.xlu0 %1059
        %v1061 = vsub.f32 %v1053, %v1060
        %v1062 = vmul.f32 %v1061, 1.442695
        %v1063 = vpow.pop %v1062
        %v1064 = vsel %vm790, %v1063, 0.0
        %1065 = vadd.xlane.f32.xlu0 %v1064
        %v1066 = vpop.xlane.xlu0 %1065
        %v1067 = vrcp.pop %v1066
        %v1068 = vmul.f32 %v1063, %v1067
        %v1069 = vpack.c.bf16 %v1068, %v1068
        %1070 = vrot.lane.b32.xlu0 %v786, 48
        %v1071 = vpop.permute.xlu0 %1070
        %v1073 = vsel %vm790, %v1069, 0
        %v1076 = vsel %vm854, %v1071, 0
        %1078 = vmatprep.subr.bf16.mxu0 0
        %1079 = vmatpush1.bf16.msra.mxu0 %v1076
        %1080 = vmatprep.subr.bf16.mxu0 0
        %1081 = vmatpush1.bf16.msra.mxu0 0
        %1082 = vmatprep.subr.bf16.mxu0 0
        %1083 = vmatpush1.bf16.msra.mxu0 0
        %1084 = vmatprep.subr.bf16.mxu0 0
        %1085 = vmatpush1.bf16.msra.mxu0 0
        %1086 = vmatprep.subr.bf16.mxu0 0
        %1087 = vmatpush1.bf16.msra.mxu0 0
        %1088 = vmatprep.subr.bf16.mxu0 0
        %1089 = vmatpush1.bf16.msra.mxu0 0
        %1090 = vmatprep.subr.bf16.mxu0 0
        %1091 = vmatpush1.bf16.msra.mxu0 0
        %1092 = vmatprep.subr.bf16.mxu0 0
        %1093 = vmatpush1.bf16.msra.mxu0 0
        %1094 = vmatprep.subr.bf16.mxu0 0
        %1095 = vmatpush1.bf16.msra.mxu0 0
        %1096 = vmatprep.subr.bf16.mxu0 0
        %1097 = vmatpush1.bf16.msra.mxu0 0
        %1098 = vmatprep.subr.bf16.mxu0 0
        %1099 = vmatpush1.bf16.msra.mxu0 0
        %1100 = vmatprep.subr.bf16.mxu0 0
        %1101 = vmatpush1.bf16.msra.mxu0 0
        %1102 = vmatprep.subr.bf16.mxu0 0
        %1103 = vmatpush1.bf16.msra.mxu0 0
        %1104 = vmatprep.subr.bf16.mxu0 0
        %1105 = vmatpush1.bf16.msra.mxu0 0
        %1106 = vmatprep.subr.bf16.mxu0 0
        %1107 = vmatpush1.bf16.msra.mxu0 0
        %1108 = vmatprep.subr.bf16.mxu0 0
        %1109 = vmatpush1.bf16.msra.mxu0 0
        %1110 = vmatprep.mubr.bf16.mxu0 0
        %1111 = vmatmul.mubr.bf16.gmra.mrb[0].mxu0 %v1073
        %v1112 = vpop.f32.mrb[0].mxu0
        %v1113 = vadd.f32 0.0, %v1112
        %v1114 = vpop.f32.mrb[0].mxu0
        %v1115 = vpop.f32.mrb[0].mxu0
        %v1116 = vpop.f32.mrb[0].mxu0
        %1117 = vdwg.mxu0
        %1118 = vrot.lane.b32.xlu0 %v786, 104
        %v1119 = vpop.permute.xlu0 %1118
        %1120 = vrot.lane.b32.xlu0 %v786, 72
        %v1121 = vpop.permute.xlu0 %1120
        %v1123 = vsel %vm790, %v1119, 0
        %v1126 = vsel %vm790, %v1121, 0
        %1128 = vmatprep.subr.bf16.mxu0 0
        %1129 = vmatpush1.bf16.xpose.msra.mxu0 %v1126
        %1130 = vmatprep.subr.bf16.mxu0 0
        %1131 = vmatpush1.bf16.xpose.msra.mxu0 0
        %1132 = vmatprep.subr.bf16.mxu0 0
        %1133 = vmatpush1.bf16.xpose.msra.mxu0 0
        %1134 = vmatprep.subr.bf16.mxu0 0
        %1135 = vmatpush1.bf16.xpose.msra.mxu0 0
        %1136 = vmatprep.subr.bf16.mxu0 0
        %1137 = vmatpush1.bf16.xpose.msra.mxu0 0
        %1138 = vmatprep.subr.bf16.mxu0 0
        %1139 = vmatpush1.bf16.xpose.msra.mxu0 0
        %1140 = vmatprep.subr.bf16.mxu0 0
        %1141 = vmatpush1.bf16.xpose.msra.mxu0 0
        %1142 = vmatprep.subr.bf16.mxu0 0
        %1143 = vmatpush1.bf16.xpose.msra.mxu0 0
        %1144 = vmatprep.subr.bf16.mxu0 0
        %1145 = vmatpush1.bf16.xpose.msra.mxu0 0
        %1146 = vmatprep.subr.bf16.mxu0 0
        %1147 = vmatpush1.bf16.xpose.msra.mxu0 0
        %1148 = vmatprep.subr.bf16.mxu0 0
        %1149 = vmatpush1.bf16.xpose.msra.mxu0 0
        %1150 = vmatprep.subr.bf16.mxu0 0
        %1151 = vmatpush1.bf16.xpose.msra.mxu0 0
        %1152 = vmatprep.subr.bf16.mxu0 0
        %1153 = vmatpush1.bf16.xpose.msra.mxu0 0
        %1154 = vmatprep.subr.bf16.mxu0 0
        %1155 = vmatpush1.bf16.xpose.msra.mxu0 0
        %1156 = vmatprep.subr.bf16.mxu0 0
        %1157 = vmatpush1.bf16.xpose.msra.mxu0 0
        %1158 = vmatprep.subr.bf16.mxu0 0
        %1159 = vmatpush1.bf16.xpose.msra.mxu0 0
        %1160 = vmatprep.mubr.bf16.mxu0 0
        %1161 = vmatmul.mubr.bf16.gmra.mrb[0].mxu0 %v1123
        %v1162 = vpop.f32.mrb[0].mxu0
        %v1163 = vadd.f32 %v785, %v1162
        %v1164 = vpop.f32.mrb[0].mxu0
        %v1165 = vpop.f32.mrb[0].mxu0
        %v1166 = vpop.f32.mrb[0].mxu0
        %1167 = vdwg.mxu0
        %v1168 = vsel %vm790, %v1163, -inf
        %1169 = vmax.xlane.f32.xlu0 %v1168
        %v1170 = vpop.xlane.xlu0 %1169
        %v1171 = vsub.f32 %v1163, %v1170
        %v1172 = vmul.f32 %v1171, 1.442695
        %v1173 = vpow.pop %v1172
        %v1174 = vsel %vm790, %v1173, 0.0
        %1175 = vadd.xlane.f32.xlu0 %v1174
        %v1176 = vpop.xlane.xlu0 %1175
        %v1177 = vrcp.pop %v1176
        %v1178 = vmul.f32 %v1173, %v1177
        %v1179 = vpack.c.bf16 %v1178, %v1178
        %1180 = vrot.lane.b32.xlu0 %v786, 40
        %v1181 = vpop.permute.xlu0 %1180
        %v1183 = vsel %vm790, %v1179, 0
        %v1186 = vsel %vm854, %v1181, 0
        %1188 = vmatprep.subr.bf16.mxu0 0
        %1189 = vmatpush1.bf16.msra.mxu0 %v1186
        %1190 = vmatprep.subr.bf16.mxu0 0
        %1191 = vmatpush1.bf16.msra.mxu0 0
        %1192 = vmatprep.subr.bf16.mxu0 0
        %1193 = vmatpush1.bf16.msra.mxu0 0
        %1194 = vmatprep.subr.bf16.mxu0 0
        %1195 = vmatpush1.bf16.msra.mxu0 0
        %1196 = vmatprep.subr.bf16.mxu0 0
        %1197 = vmatpush1.bf16.msra.mxu0 0
        %1198 = vmatprep.subr.bf16.mxu0 0
        %1199 = vmatpush1.bf16.msra.mxu0 0
        %1200 = vmatprep.subr.bf16.mxu0 0
        %1201 = vmatpush1.bf16.msra.mxu0 0
        %1202 = vmatprep.subr.bf16.mxu0 0
        %1203 = vmatpush1.bf16.msra.mxu0 0
        %1204 = vmatprep.subr.bf16.mxu0 0
        %1205 = vmatpush1.bf16.msra.mxu0 0
        %1206 = vmatprep.subr.bf16.mxu0 0
        %1207 = vmatpush1.bf16.msra.mxu0 0
        %1208 = vmatprep.subr.bf16.mxu0 0
        %1209 = vmatpush1.bf16.msra.mxu0 0
        %1210 = vmatprep.subr.bf16.mxu0 0
        %1211 = vmatpush1.bf16.msra.mxu0 0
        %1212 = vmatprep.subr.bf16.mxu0 0
        %1213 = vmatpush1.bf16.msra.mxu0 0
        %1214 = vmatprep.subr.bf16.mxu0 0
        %1215 = vmatpush1.bf16.msra.mxu0 0
        %1216 = vmatprep.subr.bf16.mxu0 0
        %1217 = vmatpush1.bf16.msra.mxu0 0
        %1218 = vmatprep.subr.bf16.mxu0 0
        %1219 = vmatpush1.bf16.msra.mxu0 0
        %1220 = vmatprep.mubr.bf16.mxu0 0
        %1221 = vmatmul.mubr.bf16.gmra.mrb[0].mxu0 %v1183
        %v1222 = vpop.f32.mrb[0].mxu0
        %v1223 = vadd.f32 0.0, %v1222
        %v1224 = vpop.f32.mrb[0].mxu0
        %v1225 = vpop.f32.mrb[0].mxu0
        %v1226 = vpop.f32.mrb[0].mxu0
        %1227 = vdwg.mxu0
        %1229 = vrot.lane.b32.xlu0 %v1003, 8
        %v1230 = vpop.permute.xlu0 %1229
        %1233 = vrot.lane.b32.xlu0 %v1113, 16
        %v1234 = vpop.permute.xlu0 %1233
        %1237 = vrot.lane.b32.xlu0 %v1223, 24
        %v1238 = vpop.permute.xlu0 %1237
        %v1240 = vsel %vm790, %v893, %v1230
        %vm1241 = vcmask 130048
        %v1242 = vsel %vm1241, %v1240, %v1234
        %vm1243 = vcmask 195584
        %v1244 = vsel %vm1243, %v1242, %v1238
        %v1245 = vpack.c.bf16 %v1244, %v1244
        %v1246 = vld [vmem:[%s4] sm:$0xf]
        %v1247 = vld [vmem:[%s4 + $0x4] sm:$0xf]
        %v1248 = vld [vmem:[%s4 + $0x8] sm:$0xf]
        %v1249 = vld [vmem:[%s4 + $0xc] sm:$0xf]
        %v1250 = vld [vmem:[%s5] sm:$0x1]
        %v1252 = vlaneseq
        %v1253 = vshrl.u32 %v1252, 7
        %v1254 = vsub.s32 0, %v1253
        %v1255 = vrot.slane %v1250, %v1254
        %v1261 = vunpack.c.l.b16 %v1246
        %v1262 = vunpack.c.l.b16 %v1247
        %v1263 = vunpack.c.l.b16 %v1248
        %v1264 = vunpack.c.l.b16 %v1249
        %v1265 = vpack.c.b16 %v1262, %v1261
        %v1266 = vpack.c.b16 %v1264, %v1263
        %v1270 = vsel %vm736, %v1245, 0
        %1272 = vmatprep.subr.bf16.mxu0 0
        %1273 = vmatpush1.bf16.msra.mxu0 %v1265
        %1274 = vmatprep.subr.bf16.mxu0 0
        %1275 = vmatpush1.bf16.msra.mxu0 %v1266
        %1276 = vmatprep.subr.bf16.mxu0 0
        %1277 = vmatpush1.bf16.msra.mxu0 0
        %1278 = vmatprep.subr.bf16.mxu0 0
        %1279 = vmatpush1.bf16.msra.mxu0 0
        %1280 = vmatprep.subr.bf16.mxu0 0
        %1281 = vmatpush1.bf16.msra.mxu0 0
        %1282 = vmatprep.subr.bf16.mxu0 0
        %1283 = vmatpush1.bf16.msra.mxu0 0
        %1284 = vmatprep.subr.bf16.mxu0 0
        %1285 = vmatpush1.bf16.msra.mxu0 0
        %1286 = vmatprep.subr.bf16.mxu0 0
        %1287 = vmatpush1.bf16.msra.mxu0 0
        %1288 = vmatprep.subr.bf16.mxu0 0
        %1289 = vmatpush1.bf16.msra.mxu0 0
        %1290 = vmatprep.subr.bf16.mxu0 0
        %1291 = vmatpush1.bf16.msra.mxu0 0
        %1292 = vmatprep.subr.bf16.mxu0 0
        %1293 = vmatpush1.bf16.msra.mxu0 0
        %1294 = vmatprep.subr.bf16.mxu0 0
        %1295 = vmatpush1.bf16.msra.mxu0 0
        %1296 = vmatprep.subr.bf16.mxu0 0
        %1297 = vmatpush1.bf16.msra.mxu0 0
        %1298 = vmatprep.subr.bf16.mxu0 0
        %1299 = vmatpush1.bf16.msra.mxu0 0
        %1300 = vmatprep.subr.bf16.mxu0 0
        %1301 = vmatpush1.bf16.msra.mxu0 0
        %1302 = vmatprep.subr.bf16.mxu0 0
        %1303 = vmatpush1.bf16.msra.mxu0 0
        %1304 = vmatprep.mubr.bf16.mxu0 0
        %1305 = vmatmul.mubr.bf16.gmra.mrb[0].mxu0 %v1270
        %v1306 = vpop.f32.mrb[0].mxu0
        %v1307 = vadd.f32 %v1255, %v1306
        %v1308 = vpop.f32.mrb[0].mxu0
        %v1309 = vpop.f32.mrb[0].mxu0
        %v1310 = vpop.f32.mrb[0].mxu0
        %1311 = vdwg.mxu0
        %v1312 = vadd.f32 %v710, %v1307
        %v1313 = vld [vmem:[%s6] sm:$0x1]
        %v1314 = vld [vmem:[%s7] sm:$0x1]
        %v1315 = vsel %vm736, %v1312, 0.0
        %1316 = vadd.xlane.f32.xlu0 %v1315
        %v1317 = vpop.xlane.xlu0 %1316
        %v1318 = vrcp.pop 32.0
        %v1319 = vmul.f32 %v1317, %v1318
        %v1320 = vsub.f32 %v1312, %v1319
        %v1321 = vmul.f32 %v1320, %v1320
        %v1322 = vsel %vm736, %v1321, 0.0
        %1323 = vadd.xlane.f32.xlu0 %v1322
        %v1324 = vpop.xlane.xlu0 %1323
        %v1325 = vmul.f32 %v1324, %v1318
        %v1326 = vadd.f32 %v1325, 1e-05
        %v1327 = vrsqrt.pop %v1326
        %v1328 = vmul.f32 %v1320, %v1327
        %v1330 = vlaneseq
        %v1331 = vshrl.u32 %v1330, 7
        %v1332 = vsub.s32 0, %v1331
        %v1333 = vrot.slane %v1313, %v1332
        %v1335 = vmul.f32 %v1328, %v1333
        %v1337 = vlaneseq
        %v1338 = vshrl.u32 %v1337, 7
        %v1339 = vsub.s32 0, %v1338
        %v1340 = vrot.slane %v1314, %v1339
        %v1342 = vadd.f32 %v1335, %v1340
        %v1343 = vpack.c.bf16 %v1342, %v1342
        %v1344 = vld [vmem:[%s8] sm:$0xf]
        %v1345 = vld [vmem:[%s8 + $0x4] sm:$0xf]
        %v1346 = vld [vmem:[%s8 + $0x8] sm:$0xf]
        %v1347 = vld [vmem:[%s8 + $0xc] sm:$0xf]
        %v1348 = vld [vmem:[%s9] sm:$0x1]
        %v1350 = vlaneseq
        %v1351 = vshrl.u32 %v1350, 7
        %v1352 = vsub.s32 0, %v1351
        %v1353 = vrot.slane %v1348, %v1352
        %v1359 = vunpack.c.l.b16 %v1344
        %v1360 = vunpack.c.l.b16 %v1345
        %v1361 = vunpack.c.l.b16 %v1346
        %v1362 = vunpack.c.l.b16 %v1347
        %v1363 = vpack.c.b16 %v1360, %v1359
        %v1364 = vpack.c.b16 %v1362, %v1361
        %v1368 = vsel %vm736, %v1343, 0
        %1370 = vmatprep.subr.bf16.mxu0 0
        %1371 = vmatpush1.bf16.msra.mxu0 %v1363
        %1372 = vmatprep.subr.bf16.mxu0 0
        %1373 = vmatpush1.bf16.msra.mxu0 %v1364
        %1374 = vmatprep.subr.bf16.mxu0 0
        %1375 = vmatpush1.bf16.msra.mxu0 0
        %1376 = vmatprep.subr.bf16.mxu0 0
        %1377 = vmatpush1.bf16.msra.mxu0 0
        %1378 = vmatprep.subr.bf16.mxu0 0
        %1379 = vmatpush1.bf16.msra.mxu0 0
        %1380 = vmatprep.subr.bf16.mxu0 0
        %1381 = vmatpush1.bf16.msra.mxu0 0
        %1382 = vmatprep.subr.bf16.mxu0 0
        %1383 = vmatpush1.bf16.msra.mxu0 0
        %1384 = vmatprep.subr.bf16.mxu0 0
        %1385 = vmatpush1.bf16.msra.mxu0 0
        %1386 = vmatprep.subr.bf16.mxu0 0
        %1387 = vmatpush1.bf16.msra.mxu0 0
        %1388 = vmatprep.subr.bf16.mxu0 0
        %1389 = vmatpush1.bf16.msra.mxu0 0
        %1390 = vmatprep.subr.bf16.mxu0 0
        %1391 = vmatpush1.bf16.msra.mxu0 0
        %1392 = vmatprep.subr.bf16.mxu0 0
        %1393 = vmatpush1.bf16.msra.mxu0 0
        %1394 = vmatprep.subr.bf16.mxu0 0
        %1395 = vmatpush1.bf16.msra.mxu0 0
        %1396 = vmatprep.subr.bf16.mxu0 0
        %1397 = vmatpush1.bf16.msra.mxu0 0
        %1398 = vmatprep.subr.bf16.mxu0 0
        %1399 = vmatpush1.bf16.msra.mxu0 0
        %1400 = vmatprep.subr.bf16.mxu0 0
        %1401 = vmatpush1.bf16.msra.mxu0 0
        %1402 = vmatprep.mubr.bf16.mxu0 0
        %1403 = vmatmul.mubr.bf16.gmra.mrb[0].mxu0 %v1368
        %v1404 = vpop.f32.mrb[0].mxu0
        %v1405 = vadd.f32 %v1353, %v1404
        %v1406 = vpop.f32.mrb[0].mxu0
        %v1407 = vpop.f32.mrb[0].mxu0
        %v1408 = vpop.f32.mrb[0].mxu0
        %1409 = vdwg.mxu0
        %v1410 = vpack.c.bf16 %v711, %v711
        %v1411 = vld [vmem:[%s10] sm:$0xf]
        %v1412 = vld [vmem:[%s10 + $0x4] sm:$0xf]
        %v1413 = vld [vmem:[%s10 + $0x8] sm:$0xf]
        %v1414 = vld [vmem:[%s10 + $0xc] sm:$0xf]
        %v1415 = vld [vmem:[%s11] sm:$0x1]
        %v1417 = vlaneseq
        %v1418 = vshrl.u32 %v1417, 7
        %v1419 = vsub.s32 0, %v1418
        %v1420 = vrot.slane %v1415, %v1419
        %v1426 = vunpack.c.l.b16 %v1411
        %v1427 = vunpack.c.l.b16 %v1412
        %v1428 = vunpack.c.l.b16 %v1413
        %v1429 = vunpack.c.l.b16 %v1414
        %v1430 = vpack.c.b16 %v1427, %v1426
        %v1431 = vpack.c.b16 %v1429, %v1428
        %v1435 = vsel %vm736, %v1410, 0
        %1437 = vmatprep.subr.bf16.mxu0 0
        %1438 = vmatpush1.bf16.msra.mxu0 %v1430
        %1439 = vmatprep.subr.bf16.mxu0 0
        %1440 = vmatpush1.bf16.msra.mxu0 %v1431
        %1441 = vmatprep.subr.bf16.mxu0 0
        %1442 = vmatpush1.bf16.msra.mxu0 0
        %1443 = vmatprep.subr.bf16.mxu0 0
        %1444 = vmatpush1.bf16.msra.mxu0 0
        %1445 = vmatprep.subr.bf16.mxu0 0
        %1446 = vmatpush1.bf16.msra.mxu0 0
        %1447 = vmatprep.subr.bf16.mxu0 0
        %1448 = vmatpush1.bf16.msra.mxu0 0
        %1449 = vmatprep.subr.bf16.mxu0 0
        %1450 = vmatpush1.bf16.msra.mxu0 0
        %1451 = vmatprep.subr.bf16.mxu0 0
        %1452 = vmatpush1.bf16.msra.mxu0 0
        %1453 = vmatprep.subr.bf16.mxu0 0
        %1454 = vmatpush1.bf16.msra.mxu0 0
        %1455 = vmatprep.subr.bf16.mxu0 0
        %1456 = vmatpush1.bf16.msra.mxu0 0
        %1457 = vmatprep.subr.bf16.mxu0 0
        %1458 = vmatpush1.bf16.msra.mxu0 0
        %1459 = vmatprep.subr.bf16.mxu0 0
        %1460 = vmatpush1.bf16.msra.mxu0 0
        %1461 = vmatprep.subr.bf16.mxu0 0
        %1462 = vmatpush1.bf16.msra.mxu0 0
        %1463 = vmatprep.subr.bf16.mxu0 0
        %1464 = vmatpush1.bf16.msra.mxu0 0
        %1465 = vmatprep.subr.bf16.mxu0 0
        %1466 = vmatpush1.bf16.msra.mxu0 0
        %1467 = vmatprep.subr.bf16.mxu0 0
        %1468 = vmatpush1.bf16.msra.mxu0 0
        %1469 = vmatprep.mubr.bf16.mxu0 0
        %1470 = vmatmul.mubr.bf16.gmra.mrb[0].mxu0 %v1435
        %v1471 = vpop.f32.mrb[0].mxu0
        %v1472 = vadd.f32 %v1420, %v1471
        %v1473 = vpop.f32.mrb[0].mxu0
        %v1474 = vpop.f32.mrb[0].mxu0
        %v1475 = vpop.f32.mrb[0].mxu0
        %1476 = vdwg.mxu0
        %v1477 = vpack.c.bf16 %v1405, %v1405
        %v1478 = vpack.c.bf16 %v1472, %v1472
        %v1480 = vsel %vm790, %v1477, 0
        %v1483 = vsel %vm790, %v1478, 0
        %1485 = vmatprep.subr.bf16.mxu0 0
        %1486 = vmatpush1.bf16.xpose.msra.mxu0 %v1483
        %1487 = vmatprep.subr.bf16.mxu0 0
        %1488 = vmatpush1.bf16.xpose.msra.mxu0 0
        %1489 = vmatprep.subr.bf16.mxu0 0
        %1490 = vmatpush1.bf16.xpose.msra.mxu0 0
        %1491 = vmatprep.subr.bf16.mxu0 0
        %1492 = vmatpush1.bf16.xpose.msra.mxu0 0
        %1493 = vmatprep.subr.bf16.mxu0 0
        %1494 = vmatpush1.bf16.xpose.msra.mxu0 0
        %1495 = vmatprep.subr.bf16.mxu0 0
        %1496 = vmatpush1.bf16.xpose.msra.mxu0 0
        %1497 = vmatprep.subr.bf16.mxu0 0
        %1498 = vmatpush1.bf16.xpose.msra.mxu0 0
        %1499 = vmatprep.subr.bf16.mxu0 0
        %1500 = vmatpush1.bf16.xpose.msra.mxu0 0
        %1501 = vmatprep.subr.bf16.mxu0 0
        %1502 = vmatpush1.bf16.xpose.msra.mxu0 0
        %1503 = vmatprep.subr.bf16.mxu0 0
        %1504 = vmatpush1.bf16.xpose.msra.mxu0 0
        %1505 = vmatprep.subr.bf16.mxu0 0
        %1506 = vmatpush1.bf16.xpose.msra.mxu0 0
        %1507 = vmatprep.subr.bf16.mxu0 0
        %1508 = vmatpush1.bf16.xpose.msra.mxu0 0
        %1509 = vmatprep.subr.bf16.mxu0 0
        %1510 = vmatpush1.bf16.xpose.msra.mxu0 0
        %1511 = vmatprep.subr.bf16.mxu0 0
        %1512 = vmatpush1.bf16.xpose.msra.mxu0 0
        %1513 = vmatprep.subr.bf16.mxu0 0
        %1514 = vmatpush1.bf16.xpose.msra.mxu0 0
        %1515 = vmatprep.subr.bf16.mxu0 0
        %1516 = vmatpush1.bf16.xpose.msra.mxu0 0
        %1517 = vmatprep.mubr.bf16.mxu0 0
        %1518 = vmatmul.mubr.bf16.gmra.mrb[0].mxu0 %v1480
        %v1519 = vpop.f32.mrb[0].mxu0
        %v1520 = vadd.f32 0.0, %v1519
        %v1521 = vpop.f32.mrb[0].mxu0
        %v1522 = vpop.f32.mrb[0].mxu0
        %v1523 = vpop.f32.mrb[0].mxu0
        %1524 = vdwg.mxu0
        %v1525 = vsel %vm790, %v1520, -inf
        %1526 = vmax.xlane.f32.xlu0 %v1525
        %v1527 = vpop.xlane.xlu0 %1526
        %v1528 = vsub.f32 %v1520, %v1527
        %v1529 = vmul.f32 %v1528, 1.442695
        %v1530 = vpow.pop %v1529
        %v1531 = vsel %vm790, %v1530, 0.0
        %1532 = vadd.xlane.f32.xlu0 %v1531
        %v1533 = vpop.xlane.xlu0 %1532
        %v1534 = vrcp.pop %v1533
        %v1535 = vmul.f32 %v1530, %v1534
        %v1536 = vpack.c.bf16 %v1535, %v1535
        %1538 = vrot.lane.b32.xlu0 %v1478, 96
        %v1539 = vpop.permute.xlu0 %1538
        %v1541 = vsel %vm790, %v1536, 0
        %v1544 = vsel %vm854, %v1539, 0
        %1546 = vmatprep.subr.bf16.mxu0 0
        %1547 = vmatpush1.bf16.msra.mxu0 %v1544
        %1548 = vmatprep.subr.bf16.mxu0 0
        %1549 = vmatpush1.bf16.msra.mxu0 0
        %1550 = vmatprep.subr.bf16.mxu0 0
        %1551 = vmatpush1.bf16.msra.mxu0 0
        %1552 = vmatprep.subr.bf16.mxu0 0
        %1553 = vmatpush1.bf16.msra.mxu0 0
        %1554 = vmatprep.subr.bf16.mxu0 0
        %1555 = vmatpush1.bf16.msra.mxu0 0
        %1556 = vmatprep.subr.bf16.mxu0 0
        %1557 = vmatpush1.bf16.msra.mxu0 0
        %1558 = vmatprep.subr.bf16.mxu0 0
        %1559 = vmatpush1.bf16.msra.mxu0 0
        %1560 = vmatprep.subr.bf16.mxu0 0
        %1561 = vmatpush1.bf16.msra.mxu0 0
        %1562 = vmatprep.subr.bf16.mxu0 0
        %1563 = vmatpush1.bf16.msra.mxu0 0
        %1564 = vmatprep.subr.bf16.mxu0 0
        %1565 = vmatpush1.bf16.msra.mxu0 0
        %1566 = vmatprep.subr.bf16.mxu0 0
        %1567 = vmatpush1.bf16.msra.mxu0 0
        %1568 = vmatprep.subr.bf16.mxu0 0
        %1569 = vmatpush1.bf16.msra.mxu0 0
        %1570 = vmatprep.subr.bf16.mxu0 0
        %1571 = vmatpush1.bf16.msra.mxu0 0
        %1572 = vmatprep.subr.bf16.mxu0 0
        %1573 = vmatpush1.bf16.msra.mxu0 0
        %1574 = vmatprep.subr.bf16.mxu0 0
        %1575 = vmatpush1.bf16.msra.mxu0 0
        %1576 = vmatprep.subr.bf16.mxu0 0
        %1577 = vmatpush1.bf16.msra.mxu0 0
        %1578 = vmatprep.mubr.bf16.mxu0 0
        %1579 = vmatmul.mubr.bf16.gmra.mrb[0].mxu0 %v1541
        %v1580 = vpop.f32.mrb[0].mxu0
        %v1581 = vadd.f32 0.0, %v1580
        %v1582 = vpop.f32.mrb[0].mxu0
        %v1583 = vpop.f32.mrb[0].mxu0
        %v1584 = vpop.f32.mrb[0].mxu0
        %1585 = vdwg.mxu0
        %1587 = vrot.lane.b32.xlu0 %v1477, 120
        %v1588 = vpop.permute.xlu0 %1587
        %1589 = vrot.lane.b32.xlu0 %v1478, 120
        %v1590 = vpop.permute.xlu0 %1589
        %v1592 = vsel %vm790, %v1588, 0
        %v1595 = vsel %vm790, %v1590, 0
        %1597 = vmatprep.subr.bf16.mxu0 0
        %1598 = vmatpush1.bf16.xpose.msra.mxu0 %v1595
        %1599 = vmatprep.subr.bf16.mxu0 0
        %1600 = vmatpush1.bf16.xpose.msra.mxu0 0
        %1601 = vmatprep.subr.bf16.mxu0 0
        %1602 = vmatpush1.bf16.xpose.msra.mxu0 0
        %1603 = vmatprep.subr.bf16.mxu0 0
        %1604 = vmatpush1.bf16.xpose.msra.mxu0 0
        %1605 = vmatprep.subr.bf16.mxu0 0
        %1606 = vmatpush1.bf16.xpose.msra.mxu0 0
        %1607 = vmatprep.subr.bf16.mxu0 0
        %1608 = vmatpush1.bf16.xpose.msra.mxu0 0
        %1609 = vmatprep.subr.bf16.mxu0 0
        %1610 = vmatpush1.bf16.xpose.msra.mxu0 0
        %1611 = vmatprep.subr.bf16.mxu0 0
        %1612 = vmatpush1.bf16.xpose.msra.mxu0 0
        %1613 = vmatprep.subr.bf16.mxu0 0
        %1614 = vmatpush1.bf16.xpose.msra.mxu0 0
        %1615 = vmatprep.subr.bf16.mxu0 0
        %1616 = vmatpush1.bf16.xpose.msra.mxu0 0
        %1617 = vmatprep.subr.bf16.mxu0 0
        %1618 = vmatpush1.bf16.xpose.msra.mxu0 0
        %1619 = vmatprep.subr.bf16.mxu0 0
        %1620 = vmatpush1.bf16.xpose.msra.mxu0 0
        %1621 = vmatprep.subr.bf16.mxu0 0
        %1622 = vmatpush1.bf16.xpose.msra.mxu0 0
        %1623 = vmatprep.subr.bf16.mxu0 0
        %1624 = vmatpush1.bf16.xpose.msra.mxu0 0
        %1625 = vmatprep.subr.bf16.mxu0 0
        %1626 = vmatpush1.bf16.xpose.msra.mxu0 0
        %1627 = vmatprep.subr.bf16.mxu0 0
        %1628 = vmatpush1.bf16.xpose.msra.mxu0 0
        %1629 = vmatprep.mubr.bf16.mxu0 0
        %1630 = vmatmul.mubr.bf16.gmra.mrb[0].mxu0 %v1592
        %v1631 = vpop.f32.mrb[0].mxu0
        %v1632 = vadd.f32 0.0, %v1631
        %v1633 = vpop.f32.mrb[0].mxu0
        %v1634 = vpop.f32.mrb[0].mxu0
        %v1635 = vpop.f32.mrb[0].mxu0
        %1636 = vdwg.mxu0
        %v1637 = vsel %vm790, %v1632, -inf
        %1638 = vmax.xlane.f32.xlu0 %v1637
        %v1639 = vpop.xlane.xlu0 %1638
        %v1640 = vsub.f32 %v1632, %v1639
        %v1641 = vmul.f32 %v1640, 1.442695
        %v1642 = vpow.pop %v1641
        %v1643 = vsel %vm790, %v1642, 0.0
        %1644 = vadd.xlane.f32.xlu0 %v1643
        %v1645 = vpop.xlane.xlu0 %1644
        %v1646 = vrcp.pop %v1645
        %v1647 = vmul.f32 %v1642, %v1646
        %v1648 = vpack.c.bf16 %v1647, %v1647
        %1649 = vrot.lane.b32.xlu0 %v1478, 88
        %v1650 = vpop.permute.xlu0 %1649
        %v1652 = vsel %vm790, %v1648, 0
        %v1655 = vsel %vm854, %v1650, 0
        %1657 = vmatprep.subr.bf16.mxu0 0
        %1658 = vmatpush1.bf16.msra.mxu0 %v1655
        %1659 = vmatprep.subr.bf16.mxu0 0
        %1660 = vmatpush1.bf16.msra.mxu0 0
        %1661 = vmatprep.subr.bf16.mxu0 0
        %1662 = vmatpush1.bf16.msra.mxu0 0
        %1663 = vmatprep.subr.bf16.mxu0 0
        %1664 = vmatpush1.bf16.msra.mxu0 0
        %1665 = vmatprep.subr.bf16.mxu0 0
        %1666 = vmatpush1.bf16.msra.mxu0 0
        %1667 = vmatprep.subr.bf16.mxu0 0
        %1668 = vmatpush1.bf16.msra.mxu0 0
        %1669 = vmatprep.subr.bf16.mxu0 0
        %1670 = vmatpush1.bf16.msra.mxu0 0
        %1671 = vmatprep.subr.bf16.mxu0 0
        %1672 = vmatpush1.bf16.msra.mxu0 0
        %1673 = vmatprep.subr.bf16.mxu0 0
        %1674 = vmatpush1.bf16.msra.mxu0 0
        %1675 = vmatprep.subr.bf16.mxu0 0
        %1676 = vmatpush1.bf16.msra.mxu0 0
        %1677 = vmatprep.subr.bf16.mxu0 0
        %1678 = vmatpush1.bf16.msra.mxu0 0
        %1679 = vmatprep.subr.bf16.mxu0 0
        %1680 = vmatpush1.bf16.msra.mxu0 0
        %1681 = vmatprep.subr.bf16.mxu0 0
        %1682 = vmatpush1.bf16.msra.mxu0 0
        %1683 = vmatprep.subr.bf16.mxu0 0
        %1684 = vmatpush1.bf16.msra.mxu0 0
        %1685 = vmatprep.subr.bf16.mxu0 0
        %1686 = vmatpush1.bf16.msra.mxu0 0
        %1687 = vmatprep.subr.bf16.mxu0 0
        %1688 = vmatpush1.bf16.msra.mxu0 0
        %1689 = vmatprep.mubr.bf16.mxu0 0
        %1690 = vmatmul.mubr.bf16.gmra.mrb[0].mxu0 %v1652
        %v1691 = vpop.f32.mrb[0].mxu0
        %v1692 = vadd.f32 0.0, %v1691
        %v1693 = vpop.f32.mrb[0].mxu0
        %v1694 = vpop.f32.mrb[0].mxu0
        %v1695 = vpop.f32.mrb[0].mxu0
        %1696 = vdwg.mxu0
        %1697 = vrot.lane.b32.xlu0 %v1477, 112
        %v1698 = vpop.permute.xlu0 %1697
        %1699 = vrot.lane.b32.xlu0 %v1478, 112
        %v1700 = vpop.permute.xlu0 %1699
        %v1702 = vsel %vm790, %v1698, 0
        %v1705 = vsel %vm790, %v1700, 0
        %1707 = vmatprep.subr.bf16.mxu0 0
        %1708 = vmatpush1.bf16.xpose.msra.mxu0 %v1705
        %1709 = vmatprep.subr.bf16.mxu0 0
        %1710 = vmatpush1.bf16.xpose.msra.mxu0 0
        %1711 = vmatprep.subr.bf16.mxu0 0
        %1712 = vmatpush1.bf16.xpose.msra.mxu0 0
        %1713 = vmatprep.subr.bf16.mxu0 0
        %1714 = vmatpush1.bf16.xpose.msra.mxu0 0
        %1715 = vmatprep.subr.bf16.mxu0 0
        %1716 = vmatpush1.bf16.xpose.msra.mxu0 0
        %1717 = vmatprep.subr.bf16.mxu0 0
        %1718 = vmatpush1.bf16.xpose.msra.mxu0 0
        %1719 = vmatprep.subr.bf16.mxu0 0
        %1720 = vmatpush1.bf16.xpose.msra.mxu0 0
        %1721 = vmatprep.subr.bf16.mxu0 0
        %1722 = vmatpush1.bf16.xpose.msra.mxu0 0
        %1723 = vmatprep.subr.bf16.mxu0 0
        %1724 = vmatpush1.bf16.xpose.msra.mxu0 0
        %1725 = vmatprep.subr.bf16.mxu0 0
        %1726 = vmatpush1.bf16.xpose.msra.mxu0 0
        %1727 = vmatprep.subr.bf16.mxu0 0
        %1728 = vmatpush1.bf16.xpose.msra.mxu0 0
        %1729 = vmatprep.subr.bf16.mxu0 0
        %1730 = vmatpush1.bf16.xpose.msra.mxu0 0
        %1731 = vmatprep.subr.bf16.mxu0 0
        %1732 = vmatpush1.bf16.xpose.msra.mxu0 0
        %1733 = vmatprep.subr.bf16.mxu0 0
        %1734 = vmatpush1.bf16.xpose.msra.mxu0 0
        %1735 = vmatprep.subr.bf16.mxu0 0
        %1736 = vmatpush1.bf16.xpose.msra.mxu0 0
        %1737 = vmatprep.subr.bf16.mxu0 0
        %1738 = vmatpush1.bf16.xpose.msra.mxu0 0
        %1739 = vmatprep.mubr.bf16.mxu0 0
        %1740 = vmatmul.mubr.bf16.gmra.mrb[0].mxu0 %v1702
        %v1741 = vpop.f32.mrb[0].mxu0
        %v1742 = vadd.f32 0.0, %v1741
        %v1743 = vpop.f32.mrb[0].mxu0
        %v1744 = vpop.f32.mrb[0].mxu0
        %v1745 = vpop.f32.mrb[0].mxu0
        %1746 = vdwg.mxu0
        %v1747 = vsel %vm790, %v1742, -inf
        %1748 = vmax.xlane.f32.xlu0 %v1747
        %v1749 = vpop.xlane.xlu0 %1748
        %v1750 = vsub.f32 %v1742, %v1749
        %v1751 = vmul.f32 %v1750, 1.442695
        %v1752 = vpow.pop %v1751
        %v1753 = vsel %vm790, %v1752, 0.0
        %1754 = vadd.xlane.f32.xlu0 %v1753
        %v1755 = vpop.xlane.xlu0 %1754
        %v1756 = vrcp.pop %v1755
        %v1757 = vmul.f32 %v1752, %v1756
        %v1758 = vpack.c.bf16 %v1757, %v1757
        %1759 = vrot.lane.b32.xlu0 %v1478, 80
        %v1760 = vpop.permute.xlu0 %1759
        %v1762 = vsel %vm790, %v1758, 0
        %v1765 = vsel %vm854, %v1760, 0
        %1767 = vmatprep.subr.bf16.mxu0 0
        %1768 = vmatpush1.bf16.msra.mxu0 %v1765
        %1769 = vmatprep.subr.bf16.mxu0 0
        %1770 = vmatpush1.bf16.msra.mxu0 0
        %1771 = vmatprep.subr.bf16.mxu0 0
        %1772 = vmatpush1.bf16.msra.mxu0 0
        %1773 = vmatprep.subr.bf16.mxu0 0
        %1774 = vmatpush1.bf16.msra.mxu0 0
        %1775 = vmatprep.subr.bf16.mxu0 0
        %1776 = vmatpush1.bf16.msra.mxu0 0
        %1777 = vmatprep.subr.bf16.mxu0 0
        %1778 = vmatpush1.bf16.msra.mxu0 0
        %1779 = vmatprep.subr.bf16.mxu0 0
        %1780 = vmatpush1.bf16.msra.mxu0 0
        %1781 = vmatprep.subr.bf16.mxu0 0
        %1782 = vmatpush1.bf16.msra.mxu0 0
        %1783 = vmatprep.subr.bf16.mxu0 0
        %1784 = vmatpush1.bf16.msra.mxu0 0
        %1785 = vmatprep.subr.bf16.mxu0 0
        %1786 = vmatpush1.bf16.msra.mxu0 0
        %1787 = vmatprep.subr.bf16.mxu0 0
        %1788 = vmatpush1.bf16.msra.mxu0 0
        %1789 = vmatprep.subr.bf16.mxu0 0
        %1790 = vmatpush1.bf16.msra.mxu0 0
        %1791 = vmatprep.subr.bf16.mxu0 0
        %1792 = vmatpush1.bf16.msra.mxu0 0
        %1793 = vmatprep.subr.bf16.mxu0 0
        %1794 = vmatpush1.bf16.msra.mxu0 0
        %1795 = vmatprep.subr.bf16.mxu0 0
        %1796 = vmatpush1.bf16.msra.mxu0 0
        %1797 = vmatprep.subr.bf16.mxu0 0
        %1798 = vmatpush1.bf16.msra.mxu0 0
        %1799 = vmatprep.mubr.bf16.mxu0 0
        %1800 = vmatmul.mubr.bf16.gmra.mrb[0].mxu0 %v1762
        %v1801 = vpop.f32.mrb[0].mxu0
        %v1802 = vadd.f32 0.0, %v1801
        %v1803 = vpop.f32.mrb[0].mxu0
        %v1804 = vpop.f32.mrb[0].mxu0
        %v1805 = vpop.f32.mrb[0].mxu0
        %1806 = vdwg.mxu0
        %1807 = vrot.lane.b32.xlu0 %v1477, 104
        %v1808 = vpop.permute.xlu0 %1807
        %1809 = vrot.lane.b32.xlu0 %v1478, 104
        %v1810 = vpop.permute.xlu0 %1809
        %v1812 = vsel %vm790, %v1808, 0
        %v1815 = vsel %vm790, %v1810, 0
        %1817 = vmatprep.subr.bf16.mxu0 0
        %1818 = vmatpush1.bf16.xpose.msra.mxu0 %v1815
        %1819 = vmatprep.subr.bf16.mxu0 0
        %1820 = vmatpush1.bf16.xpose.msra.mxu0 0
        %1821 = vmatprep.subr.bf16.mxu0 0
        %1822 = vmatpush1.bf16.xpose.msra.mxu0 0
        %1823 = vmatprep.subr.bf16.mxu0 0
        %1824 = vmatpush1.bf16.xpose.msra.mxu0 0
        %1825 = vmatprep.subr.bf16.mxu0 0
        %1826 = vmatpush1.bf16.xpose.msra.mxu0 0
        %1827 = vmatprep.subr.bf16.mxu0 0
        %1828 = vmatpush1.bf16.xpose.msra.mxu0 0
        %1829 = vmatprep.subr.bf16.mxu0 0
        %1830 = vmatpush1.bf16.xpose.msra.mxu0 0
        %1831 = vmatprep.subr.bf16.mxu0 0
        %1832 = vmatpush1.bf16.xpose.msra.mxu0 0
        %1833 = vmatprep.subr.bf16.mxu0 0
        %1834 = vmatpush1.bf16.xpose.msra.mxu0 0
        %1835 = vmatprep.subr.bf16.mxu0 0
        %1836 = vmatpush1.bf16.xpose.msra.mxu0 0
        %1837 = vmatprep.subr.bf16.mxu0 0
        %1838 = vmatpush1.bf16.xpose.msra.mxu0 0
        %1839 = vmatprep.subr.bf16.mxu0 0
        %1840 = vmatpush1.bf16.xpose.msra.mxu0 0
        %1841 = vmatprep.subr.bf16.mxu0 0
        %1842 = vmatpush1.bf16.xpose.msra.mxu0 0
        %1843 = vmatprep.subr.bf16.mxu0 0
        %1844 = vmatpush1.bf16.xpose.msra.mxu0 0
        %1845 = vmatprep.subr.bf16.mxu0 0
        %1846 = vmatpush1.bf16.xpose.msra.mxu0 0
        %1847 = vmatprep.subr.bf16.mxu0 0
        %1848 = vmatpush1.bf16.xpose.msra.mxu0 0
        %1849 = vmatprep.mubr.bf16.mxu0 0
        %1850 = vmatmul.mubr.bf16.gmra.mrb[0].mxu0 %v1812
        %v1851 = vpop.f32.mrb[0].mxu0
        %v1852 = vadd.f32 0.0, %v1851
        %v1853 = vpop.f32.mrb[0].mxu0
        %v1854 = vpop.f32.mrb[0].mxu0
        %v1855 = vpop.f32.mrb[0].mxu0
        %1856 = vdwg.mxu0
        %v1857 = vsel %vm790, %v1852, -inf
        %1858 = vmax.xlane.f32.xlu0 %v1857
        %v1859 = vpop.xlane.xlu0 %1858
        %v1860 = vsub.f32 %v1852, %v1859
        %v1861 = vmul.f32 %v1860, 1.442695
        %v1862 = vpow.pop %v1861
        %v1863 = vsel %vm790, %v1862, 0.0
        %1864 = vadd.xlane.f32.xlu0 %v1863
        %v1865 = vpop.xlane.xlu0 %1864
        %v1866 = vrcp.pop %v1865
        %v1867 = vmul.f32 %v1862, %v1866
        %v1868 = vpack.c.bf16 %v1867, %v1867
        %1869 = vrot.lane.b32.xlu0 %v1478, 72
        %v1870 = vpop.permute.xlu0 %1869
        %v1872 = vsel %vm790, %v1868, 0
        %v1875 = vsel %vm854, %v1870, 0
        %1877 = vmatprep.subr.bf16.mxu0 0
        %1878 = vmatpush1.bf16.msra.mxu0 %v1875
        %1879 = vmatprep.subr.bf16.mxu0 0
        %1880 = vmatpush1.bf16.msra.mxu0 0
        %1881 = vmatprep.subr.bf16.mxu0 0
        %1882 = vmatpush1.bf16.msra.mxu0 0
        %1883 = vmatprep.subr.bf16.mxu0 0
        %1884 = vmatpush1.bf16.msra.mxu0 0
        %1885 = vmatprep.subr.bf16.mxu0 0
        %1886 = vmatpush1.bf16.msra.mxu0 0
        %1887 = vmatprep.subr.bf16.mxu0 0
        %1888 = vmatpush1.bf16.msra.mxu0 0
        %1889 = vmatprep.subr.bf16.mxu0 0
        %1890 = vmatpush1.bf16.msra.mxu0 0
        %1891 = vmatprep.subr.bf16.mxu0 0
        %1892 = vmatpush1.bf16.msra.mxu0 0
        %1893 = vmatprep.subr.bf16.mxu0 0
        %1894 = vmatpush1.bf16.msra.mxu0 0
        %1895 = vmatprep.subr.bf16.mxu0 0
        %1896 = vmatpush1.bf16.msra.mxu0 0
        %1897 = vmatprep.subr.bf16.mxu0 0
        %1898 = vmatpush1.bf16.msra.mxu0 0
        %1899 = vmatprep.subr.bf16.mxu0 0
        %1900 = vmatpush1.bf16.msra.mxu0 0
        %1901 = vmatprep.subr.bf16.mxu0 0
        %1902 = vmatpush1.bf16.msra.mxu0 0
        %1903 = vmatprep.subr.bf16.mxu0 0
        %1904 = vmatpush1.bf16.msra.mxu0 0
        %1905 = vmatprep.subr.bf16.mxu0 0
        %1906 = vmatpush1.bf16.msra.mxu0 0
        %1907 = vmatprep.subr.bf16.mxu0 0
        %1908 = vmatpush1.bf16.msra.mxu0 0
        %1909 = vmatprep.mubr.bf16.mxu0 0
        %1910 = vmatmul.mubr.bf16.gmra.mrb[0].mxu0 %v1872
        %v1911 = vpop.f32.mrb[0].mxu0
        %v1912 = vadd.f32 0.0, %v1911
        %v1913 = vpop.f32.mrb[0].mxu0
        %v1914 = vpop.f32.mrb[0].mxu0
        %v1915 = vpop.f32.mrb[0].mxu0
        %1916 = vdwg.mxu0
        %1918 = vrot.lane.b32.xlu0 %v1692, 8
        %v1919 = vpop.permute.xlu0 %1918
        %1922 = vrot.lane.b32.xlu0 %v1802, 16
        %v1923 = vpop.permute.xlu0 %1922
        %1926 = vrot.lane.b32.xlu0 %v1912, 24
        %v1927 = vpop.permute.xlu0 %1926
        %v1929 = vsel %vm790, %v1581, %v1919
        %v1930 = vsel %vm1241, %v1929, %v1923
        %v1931 = vsel %vm1243, %v1930, %v1927
        %v1932 = vpack.c.bf16 %v1931, %v1931
        %v1933 = vld [vmem:[%s12] sm:$0xf]
        %v1934 = vld [vmem:[%s12 + $0x4] sm:$0xf]
        %v1935 = vld [vmem:[%s12 + $0x8] sm:$0xf]
        %v1936 = vld [vmem:[%s12 + $0xc] sm:$0xf]
        %v1937 = vld [vmem:[%s13] sm:$0x1]
        %v1939 = vlaneseq
        %v1940 = vshrl.u32 %v1939, 7
        %v1941 = vsub.s32 0, %v1940
        %v1942 = vrot.slane %v1937, %v1941
        %v1948 = vunpack.c.l.b16 %v1933
        %v1949 = vunpack.c.l.b16 %v1934
        %v1950 = vunpack.c.l.b16 %v1935
        %v1951 = vunpack.c.l.b16 %v1936
        %v1952 = vpack.c.b16 %v1949, %v1948
        %v1953 = vpack.c.b16 %v1951, %v1950
        %v1957 = vsel %vm736, %v1932, 0
        %1959 = vmatprep.subr.bf16.mxu0 0
        %1960 = vmatpush1.bf16.msra.mxu0 %v1952
        %1961 = vmatprep.subr.bf16.mxu0 0
        %1962 = vmatpush1.bf16.msra.mxu0 %v1953
        %1963 = vmatprep.subr.bf16.mxu0 0
        %1964 = vmatpush1.bf16.msra.mxu0 0
        %1965 = vmatprep.subr.bf16.mxu0 0
        %1966 = vmatpush1.bf16.msra.mxu0 0
        %1967 = vmatprep.subr.bf16.mxu0 0
        %1968 = vmatpush1.bf16.msra.mxu0 0
        %1969 = vmatprep.subr.bf16.mxu0 0
        %1970 = vmatpush1.bf16.msra.mxu0 0
        %1971 = vmatprep.subr.bf16.mxu0 0
        %1972 = vmatpush1.bf16.msra.mxu0 0
        %1973 = vmatprep.subr.bf16.mxu0 0
        %1974 = vmatpush1.bf16.msra.mxu0 0
        %1975 = vmatprep.subr.bf16.mxu0 0
        %1976 = vmatpush1.bf16.msra.mxu0 0
        %1977 = vmatprep.subr.bf16.mxu0 0
        %1978 = vmatpush1.bf16.msra.mxu0 0
        %1979 = vmatprep.subr.bf16.mxu0 0
        %1980 = vmatpush1.bf16.msra.mxu0 0
        %1981 = vmatprep.subr.bf16.mxu0 0
        %1982 = vmatpush1.bf16.msra.mxu0 0
        %1983 = vmatprep.subr.bf16.mxu0 0
        %1984 = vmatpush1.bf16.msra.mxu0 0
        %1985 = vmatprep.subr.bf16.mxu0 0
        %1986 = vmatpush1.bf16.msra.mxu0 0
        %1987 = vmatprep.subr.bf16.mxu0 0
        %1988 = vmatpush1.bf16.msra.mxu0 0
        %1989 = vmatprep.subr.bf16.mxu0 0
        %1990 = vmatpush1.bf16.msra.mxu0 0
        %1991 = vmatprep.mubr.bf16.mxu0 0
        %1992 = vmatmul.mubr.bf16.gmra.mrb[0].mxu0 %v1957
        %v1993 = vpop.f32.mrb[0].mxu0
        %v1994 = vadd.f32 %v1942, %v1993
        %v1995 = vpop.f32.mrb[0].mxu0
        %v1996 = vpop.f32.mrb[0].mxu0
        %v1997 = vpop.f32.mrb[0].mxu0
        %1998 = vdwg.mxu0
        %v1999 = vadd.f32 %v1342, %v1994
        %v2000 = vld [vmem:[%s14] sm:$0x1]
        %v2001 = vld [vmem:[%s15] sm:$0x1]
        %v2002 = vsel %vm736, %v1999, 0.0
        %2003 = vadd.xlane.f32.xlu0 %v2002
        %v2004 = vpop.xlane.xlu0 %2003
        %v2005 = vmul.f32 %v2004, %v1318
        %v2006 = vsub.f32 %v1999, %v2005
        %v2007 = vmul.f32 %v2006, %v2006
        %v2008 = vsel %vm736, %v2007, 0.0
        %2009 = vadd.xlane.f32.xlu0 %v2008
        %v2010 = vpop.xlane.xlu0 %2009
        %v2011 = vmul.f32 %v2010, %v1318
        %v2012 = vadd.f32 %v2011, 1e-05
        %v2013 = vrsqrt.pop %v2012
        %v2014 = vmul.f32 %v2006, %v2013
        %v2016 = vlaneseq
        %v2017 = vshrl.u32 %v2016, 7
        %v2018 = vsub.s32 0, %v2017
        %v2019 = vrot.slane %v2000, %v2018
        %v2021 = vmul.f32 %v2014, %v2019
        %v2023 = vlaneseq
        %v2024 = vshrl.u32 %v2023, 7
        %v2025 = vsub.s32 0, %v2024
        %v2026 = vrot.slane %v2001, %v2025
        %v2028 = vadd.f32 %v2021, %v2026
        %v2029 = vpack.c.bf16 %v2028, %v2028
        %v2030 = vld [vmem:[%s16] sm:$0xf]
        %v2031 = vld [vmem:[%s16 + $0x4] sm:$0xf]
        %v2032 = vld [vmem:[%s16 + $0x8] sm:$0xf]
        %v2033 = vld [vmem:[%s16 + $0xc] sm:$0xf]
        %v2034 = vld [vmem:[%s17] sm:$0x1]
        %v2036 = vlaneseq
        %v2037 = vshrl.u32 %v2036, 7
        %v2038 = vsub.s32 0, %v2037
        %v2039 = vrot.slane %v2034, %v2038
        %v2045 = vunpack.c.l.b16 %v2030
        %v2046 = vunpack.c.l.b16 %v2031
        %v2047 = vunpack.c.l.b16 %v2032
        %v2048 = vunpack.c.l.b16 %v2033
        %v2049 = vpack.c.b16 %v2046, %v2045
        %v2050 = vpack.c.b16 %v2048, %v2047
        %v2054 = vsel %vm736, %v2029, 0
        %2056 = vmatprep.subr.bf16.mxu0 0
        %2057 = vmatpush1.bf16.msra.mxu0 %v2049
        %2058 = vmatprep.subr.bf16.mxu0 0
        %2059 = vmatpush1.bf16.msra.mxu0 %v2050
        %2060 = vmatprep.subr.bf16.mxu0 0
        %2061 = vmatpush1.bf16.msra.mxu0 0
        %2062 = vmatprep.subr.bf16.mxu0 0
        %2063 = vmatpush1.bf16.msra.mxu0 0
        %2064 = vmatprep.subr.bf16.mxu0 0
        %2065 = vmatpush1.bf16.msra.mxu0 0
        %2066 = vmatprep.subr.bf16.mxu0 0
        %2067 = vmatpush1.bf16.msra.mxu0 0
        %2068 = vmatprep.subr.bf16.mxu0 0
        %2069 = vmatpush1.bf16.msra.mxu0 0
        %2070 = vmatprep.subr.bf16.mxu0 0
        %2071 = vmatpush1.bf16.msra.mxu0 0
        %2072 = vmatprep.subr.bf16.mxu0 0
        %2073 = vmatpush1.bf16.msra.mxu0 0
        %2074 = vmatprep.subr.bf16.mxu0 0
        %2075 = vmatpush1.bf16.msra.mxu0 0
        %2076 = vmatprep.subr.bf16.mxu0 0
        %2077 = vmatpush1.bf16.msra.mxu0 0
        %2078 = vmatprep.subr.bf16.mxu0 0
        %2079 = vmatpush1.bf16.msra.mxu0 0
        %2080 = vmatprep.subr.bf16.mxu0 0
        %2081 = vmatpush1.bf16.msra.mxu0 0
        %2082 = vmatprep.subr.bf16.mxu0 0
        %2083 = vmatpush1.bf16.msra.mxu0 0
        %2084 = vmatprep.subr.bf16.mxu0 0
        %2085 = vmatpush1.bf16.msra.mxu0 0
        %2086 = vmatprep.subr.bf16.mxu0 0
        %2087 = vmatpush1.bf16.msra.mxu0 0
        %2088 = vmatprep.mubr.bf16.mxu0 0
        %2089 = vmatmul.mubr.bf16.gmra.mrb[0].mxu0 %v2054
        %v2090 = vpop.f32.mrb[0].mxu0
        %v2091 = vadd.f32 %v2039, %v2090
        %v2092 = vpop.f32.mrb[0].mxu0
        %v2093 = vpop.f32.mrb[0].mxu0
        %v2094 = vpop.f32.mrb[0].mxu0
        %2095 = vdwg.mxu0
        %v2096 = vmax.f32 %v2091, 0.0
        %v2097 = vpack.c.bf16 %v2096, %v2096
        %v2098 = vld [vmem:[%s18] sm:$0xf]
        %v2099 = vld [vmem:[%s18 + $0x4] sm:$0xf]
        %v2100 = vld [vmem:[%s18 + $0x8] sm:$0xf]
        %v2101 = vld [vmem:[%s18 + $0xc] sm:$0xf]
        %v2102 = vld [vmem:[%s18 + $0x10] sm:$0xf]
        %v2103 = vld [vmem:[%s18 + $0x14] sm:$0xf]
        %v2104 = vld [vmem:[%s18 + $0x18] sm:$0xf]
        %v2105 = vld [vmem:[%s18 + $0x1c] sm:$0xf]
        %v2106 = vld [vmem:[%s18 + $0x20] sm:$0xf]
        %v2107 = vld [vmem:[%s18 + $0x24] sm:$0xf]
        %v2108 = vld [vmem:[%s18 + $0x28] sm:$0xf]
        %v2109 = vld [vmem:[%s18 + $0x2c] sm:$0xf]
        %v2110 = vld [vmem:[%s18 + $0x30] sm:$0xf]
        %v2111 = vld [vmem:[%s18 + $0x34] sm:$0xf]
        %v2112 = vld [vmem:[%s18 + $0x38] sm:$0xf]
        %v2113 = vld [vmem:[%s18 + $0x3c] sm:$0xf]
        %v2114 = vld [vmem:[%s19] sm:$0x1]
        %v2116 = vlaneseq
        %v2117 = vshrl.u32 %v2116, 7
        %v2118 = vsub.s32 0, %v2117
        %v2119 = vrot.slane %v2114, %v2118
        %v2137 = vunpack.c.l.b16 %v2098
        %v2138 = vunpack.c.l.b16 %v2099
        %v2139 = vunpack.c.l.b16 %v2100
        %v2140 = vunpack.c.l.b16 %v2101
        %v2141 = vunpack.c.l.b16 %v2102
        %v2142 = vunpack.c.l.b16 %v2103
        %v2143 = vunpack.c.l.b16 %v2104
        %v2144 = vunpack.c.l.b16 %v2105
        %v2145 = vunpack.c.l.b16 %v2106
        %v2146 = vunpack.c.l.b16 %v2107
        %v2147 = vunpack.c.l.b16 %v2108
        %v2148 = vunpack.c.l.b16 %v2109
        %v2149 = vunpack.c.l.b16 %v2110
        %v2150 = vunpack.c.l.b16 %v2111
        %v2151 = vunpack.c.l.b16 %v2112
        %v2152 = vunpack.c.l.b16 %v2113
        %v2153 = vpack.c.b16 %v2138, %v2137
        %v2154 = vpack.c.b16 %v2140, %v2139
        %v2155 = vpack.c.b16 %v2142, %v2141
        %v2156 = vpack.c.b16 %v2144, %v2143
        %v2157 = vpack.c.b16 %v2146, %v2145
        %v2158 = vpack.c.b16 %v2148, %v2147
        %v2159 = vpack.c.b16 %v2150, %v2149
        %v2160 = vpack.c.b16 %v2152, %v2151
        %2169 = vmatprep.subr.bf16.mxu0 0
        %2170 = vmatpush1.bf16.msra.mxu0 %v2153
        %2171 = vmatprep.subr.bf16.mxu0 0
        %2172 = vmatpush1.bf16.msra.mxu0 %v2154
        %2173 = vmatprep.subr.bf16.mxu0 0
        %2174 = vmatpush1.bf16.msra.mxu0 %v2155
        %2175 = vmatprep.subr.bf16.mxu0 0
        %2176 = vmatpush1.bf16.msra.mxu0 %v2156
        %2177 = vmatprep.subr.bf16.mxu0 0
        %2178 = vmatpush1.bf16.msra.mxu0 %v2157
        %2179 = vmatprep.subr.bf16.mxu0 0
        %2180 = vmatpush1.bf16.msra.mxu0 %v2158
        %2181 = vmatprep.subr.bf16.mxu0 0
        %2182 = vmatpush1.bf16.msra.mxu0 %v2159
        %2183 = vmatprep.subr.bf16.mxu0 0
        %2184 = vmatpush1.bf16.msra.mxu0 %v2160
        %2185 = vmatprep.subr.bf16.mxu0 0
        %2186 = vmatpush1.bf16.msra.mxu0 0
        %2187 = vmatprep.subr.bf16.mxu0 0
        %2188 = vmatpush1.bf16.msra.mxu0 0
        %2189 = vmatprep.subr.bf16.mxu0 0
        %2190 = vmatpush1.bf16.msra.mxu0 0
        %2191 = vmatprep.subr.bf16.mxu0 0
        %2192 = vmatpush1.bf16.msra.mxu0 0
        %2193 = vmatprep.subr.bf16.mxu0 0
        %2194 = vmatpush1.bf16.msra.mxu0 0
        %2195 = vmatprep.subr.bf16.mxu0 0
        %2196 = vmatpush1.bf16.msra.mxu0 0
        %2197 = vmatprep.subr.bf16.mxu0 0
        %2198 = vmatpush1.bf16.msra.mxu0 0
        %2199 = vmatprep.subr.bf16.mxu0 0
        %2200 = vmatpush1.bf16.msra.mxu0 0
        %2201 = vmatprep.mubr.bf16.mxu0 0
        %2202 = vmatmul.mubr.bf16.gmra.mrb[0].mxu0 %v2097
        %v2203 = vpop.f32.mrb[0].mxu0
        %v2204 = vadd.f32 %v2119, %v2203
        %v2205 = vpop.f32.mrb[0].mxu0
        %v2206 = vpop.f32.mrb[0].mxu0
        %v2207 = vpop.f32.mrb[0].mxu0
        %2208 = vdwg.mxu0
        %v2209 = vadd.f32 %v2028, %v2204
        %v2210 = vld [vmem:[%s20] sm:$0x1]
        %v2211 = vld [vmem:[#allocation2] sm:$0x1]
        %v2212 = vsel %vm736, %v2209, 0.0
        %2213 = vadd.xlane.f32.xlu0 %v2212
        %v2214 = vpop.xlane.xlu0 %2213
        %v2215 = vmul.f32 %v2214, %v1318
        %v2216 = vsub.f32 %v2209, %v2215
        %v2217 = vmul.f32 %v2216, %v2216
        %v2218 = vsel %vm736, %v2217, 0.0
        %2219 = vadd.xlane.f32.xlu0 %v2218
        %v2220 = vpop.xlane.xlu0 %2219
        %v2221 = vmul.f32 %v2220, %v1318
        %v2222 = vadd.f32 %v2221, 1e-05
        %v2223 = vrsqrt.pop %v2222
        %v2224 = vmul.f32 %v2216, %v2223
        %v2226 = vlaneseq
        %v2227 = vshrl.u32 %v2226, 7
        %v2228 = vsub.s32 0, %v2227
        %v2229 = vrot.slane %v2210, %v2228
        %v2231 = vmul.f32 %v2224, %v2229
        %v2233 = vlaneseq
        %v2234 = vshrl.u32 %v2233, 7
        %v2235 = vsub.s32 0, %v2234
        %v2236 = vrot.slane %v2211, %v2235
        %v2238 = vadd.f32 %v2231, %v2236
        %2239 = vst.msk [vmem:[%s708] sm:$0xff] %vm736, %v2238
        %p2240 = scmp.lt.s32.totalorder %s34, 1
        %s2241 = scalar_select %p2240, %s34, 1
        %s2242 = smul.addr %s2241, 8
        %s2243 = scalar_lea.vmem %s22, %s2242
        // Predicated region
        $region113: #{transformer_forward.8} parent=107 // pred_check
          %p2244 = pneg %p524
        $region114: #{transformer_forward.8} parent=107 // pred_check_branch
          %2246 = sbr.rel (%p2244) target = $region116
        $region115: #{transformer_forward.8} parent=107 // pred_region
          _
        $region116: #{transformer_forward.8} parent=107 // pred_fallthru
          _
      $region108: #{transformer_forward.8} parent=5 // pred_fallthru
        _
      %p2247 = scmp.le.s32.totalorder 2, %s29
      // Predicated region
      $region117: #{transformer_forward.8} parent=5 // pred_check
        %p2248 = pneg %p2247
      $region118: #{transformer_forward.8} parent=5 // pred_check_branch
        %2250 = sbr.rel (%p2248) target = $region120
      $region119: #{transformer_forward.8} parent=5 // pred_region
        %s2251 = ssub.s32 %s29, 2
        // Predicated region
        $region121: #{transformer_forward.8} parent=119 // pred_check
          %p2252 = pneg %p530
        $region122: #{transformer_forward.8} parent=119 // pred_check_branch
          %2254 = sbr.rel (%p2252) target = $region124
        $region123: #{transformer_forward.8} parent=119 // pred_region
          %p2255 = scmp.lt.s32.totalorder %s35, 1
          %s2256 = scalar_select %p2255, %s35, 1
          %s2257 = smul.addr %s2256, 8
          %s2258 = scalar_lea.vmem %s22, %s2257
        $region124: #{transformer_forward.8} parent=119 // pred_fallthru
          _
      $region120: #{transformer_forward.8} parent=5 // pred_fallthru
        _
    $region6: #{transformer_forward.8} parent=1 // loop_footer
      %s33 = sadd.s32 1, %s29
    $region7: #{transformer_forward.8} parent=1 // loop_footer_branch
      %28 = sbr.rel target = $region3
    $region8: #{transformer_forward.8} parent=1 // loop_exit
      _
    %2259 = vsyncpa [#allocation3], 1
    %s2260 = scalar_lea.sflag [#allocation3], 1
    %2261 = vsyncpa %s2260, 1

</llo_original>
